<compile_context>
chip_gen: v5e
topology: v5e:2x2
jax: 0.10.0
libtpu: 0.0.40
codegen_flags: <defaults>
</compile_context>

<pallas_src>
import numpy as np
import jax
import jax.numpy as jnp
from jax import lax
from jax.experimental import pallas as pl
from jax.experimental.pallas import tpu as pltpu

NEG_BIG = -10000000000.0
LSTM_TBLK = 32          # max timesteps per grid step (unrolled in-kernel)
LANE = 128


def _round_up(x, m):
    return ((x + m - 1) // m) * m


def _sigmoid(x):
    # sigmoid(x) == 0.5 * (1 + tanh(x / 2)): guaranteed single EUP op per call.
    return 0.5 * (jnp.tanh(0.5 * x) + 1.0)


# --------------------------------------------------------------------------
# Pallas kernel 1: bidirectional LSTM recurrence, one time-chunk per grid
# step.  Both directions are fused into a single [B, Gp] state and a single
# block-diagonal recurrent matmul per step.  gate_x already contains
# x @ W_ih^T + b_ih + b_hh in the same padded, gate-major lane layout.
# --------------------------------------------------------------------------
def _lstm_chunk_kernel(gx_ref, len_ref, whh_ref, out_ref, h_sc, c_sc):
    chunk = pl.program_id(0)
    tblk = gx_ref.shape[0]
    Gp = h_sc.shape[1]                     # padded fused state width (2H -> k*128)

    @pl.when(chunk == 0)
    def _():
        h_sc[...] = jnp.zeros_like(h_sc)
        c_sc[...] = jnp.zeros_like(c_sc)

    lens = len_ref[...]                    # [B, 1] int32 (loaded once per chunk)
    t0 = chunk * tblk

    h = h_sc[...]                          # [B, Gp] f32
    c = c_sc[...]

    # Fully unrolled time chunk: state stays in vregs, gate slices are
    # 128-lane aligned, one MXU matmul (both directions) per step.
    for i in range(tblk):
        gx = gx_ref[i]                     # [B, 4*Gp] f32 (hoisted input proj.)
        gh = jnp.dot(h.astype(jnp.bfloat16), whh_ref[...],
                     preferred_element_type=jnp.float32)
        gates = gx + gh                    # [B, 4*Gp]

        # PyTorch gate order: i, f, g, o; each block starts at a 128-multiple.
        i_g = _sigmoid(gates[:, 0 * Gp:1 * Gp])
        f_g = _sigmoid(gates[:, 1 * Gp:2 * Gp])
        g_g = jnp.tanh(gates[:, 2 * Gp:3 * Gp])
        o_g = _sigmoid(gates[:, 3 * Gp:4 * Gp])

        c_new = f_g * c + i_g * g_g
        h_new = o_g * jnp.tanh(c_new)

        # packed-sequence semantics: past a sequence's length the state is
        # frozen and the emitted output is zero.
        valid = (t0 + i) < lens            # [B, 1] bool
        c = jnp.where(valid, c_new, c)
        h = jnp.where(valid, h_new, h)
        out_ref[:, i:i + 1, :] = jnp.where(valid, h_new, 0.0)[:, None, :]

    h_sc[...] = h
    c_sc[...] = c


def _fuse_lstm_weights(fwd_params, bwd_params, Gp):
    """Pre-fuse per-direction LSTM weights into the kernel's padded gate-major
    layout.  Lane layout of each gate block g: [fwd H | bwd H | zero pad].

    Returns:
      w_cat: [4*Gp, 2*I] f..->bf16  input projection for x_cat = [x_fwd | x_bwd]
      b_cat: [4*Gp]      f32        fused biases (b_ih + b_hh)
      whh:   [Gp, 4*Gp]  bf16       block-diagonal recurrent weights
    """
    w_ih_f, w_hh_f, b_ih_f, b_hh_f = fwd_params
    w_ih_b, w_hh_b, b_ih_b, b_hh_b = bwd_params
    H = w_hh_f.shape[1]
    I = w_ih_f.shape[1]
    S = 2 * H

    wih_blocks, bias_blocks, whh_blocks = [], [], []
    bsum_f = b_ih_f + b_hh_f
    bsum_b = b_ih_b + b_hh_b
    for g in range(4):                               # PyTorch order: i, f, g, o
        # Input projection rows = output lanes of gate g, cols = [x_fwd | x_bwd].
        rf = jnp.pad(w_ih_f[g * H:(g + 1) * H, :], ((0, 0), (0, I)))
        rb = jnp.pad(w_ih_b[g * H:(g + 1) * H, :], ((0, 0), (I, 0)))
        wih_blocks.append(jnp.pad(jnp.concatenate([rf, rb], axis=0),
                                  ((0, Gp - S), (0, 0))))
        bias_blocks.append(jnp.pad(
            jnp.concatenate([bsum_f[g * H:(g + 1) * H],
                             bsum_b[g * H:(g + 1) * H]]), (0, Gp - S)))
        # Recurrent weights: block-diagonal over directions for gate g.
        top = jnp.pad(w_hh_f[g * H:(g + 1) * H, :].T, ((0, 0), (0, H)))
        bot = jnp.pad(w_hh_b[g * H:(g + 1) * H, :].T, ((0, 0), (H, 0)))
        whh_blocks.append(jnp.pad(jnp.concatenate([top, bot], axis=0),
                                  ((0, Gp - S), (0, Gp - S))))

    w_cat = jnp.concatenate(wih_blocks, axis=0).astype(jnp.bfloat16)   # [4Gp, 2I]
    b_cat = jnp.concatenate(bias_blocks, axis=0)                        # [4Gp]
    whh = jnp.concatenate(whh_blocks, axis=1).astype(jnp.bfloat16)      # [Gp, 4Gp]
    return w_cat, b_cat, whh


def bilstm_layer(x, lengths, fwd_params, bwd_params):
    """x: [B, T, I] f32 -> [B, T, 2H] f32 (zeros beyond each sequence)."""
    B, T, _ = x.shape
    H = fwd_params[1].shape[1]
    S = 2 * H
    Gp = _round_up(S, LANE)                # per-gate lane block (fused fwd+bwd)
    G4 = 4 * Gp

    lengths = lengths.astype(jnp.int32)
    t_idx = jnp.arange(T)

    # Backward direction consumes the sequence reversed within its length.
    rev_idx = jnp.clip(lengths[:, None] - 1 - t_idx[None, :], 0, T - 1)   # [B,T]
    x_bwd = jnp.take_along_axis(
        x, jnp.broadcast_to(rev_idx[:, :, None], x.shape), axis=1)
    x_cat = jnp.concatenate([x, x_bwd], axis=-1)                          # [B,T,2I]

    # Hoisted input projection for BOTH directions, emitted directly in the
    # kernel's time-major, gate-major, lane-padded layout (no relayout after).
    w_cat, b_cat, whh = _fuse_lstm_weights(fwd_params, bwd_params, Gp)
    gate_x = jnp.einsum('bti,gi->tbg', x_cat.astype(jnp.bfloat16), w_cat,
                        preferred_element_type=jnp.float32)
    gate_x = gate_x + b_cat[None, None, :]                                # [T,B,4Gp]

    # Pad time to a chunk multiple (padded steps are masked out in-kernel).
    tblk = min(LSTM_TBLK, _round_up(T, 8))
    T_pad = _round_up(T, tblk)
    if T_pad != T:
        gate_x = jnp.pad(gate_x, ((0, T_pad - T), (0, 0), (0, 0)))

    len_col = lengths.reshape(B, 1)

    out = pl.pallas_call(
        _lstm_chunk_kernel,
        out_shape=jax.ShapeDtypeStruct((B, T_pad, Gp), jnp.float32),
        grid_spec=pltpu.PrefetchScalarGridSpec(
            num_scalar_prefetch=0,
            grid=(T_pad // tblk,),
            in_specs=[
                pl.BlockSpec((tblk, B, G4), lambda t: (t, 0, 0)),
                pl.BlockSpec((B, 1), lambda t: (0, 0)),
                pl.BlockSpec((Gp, G4), lambda t: (0, 0)),
            ],
            out_specs=pl.BlockSpec((B, tblk, Gp), lambda t: (0, t, 0)),
            scratch_shapes=[pltpu.VMEM((B, Gp), jnp.float32),
                            pltpu.VMEM((B, Gp), jnp.float32)],
        ),
        compiler_params=pltpu.CompilerParams(
            dimension_semantics=("arbitrary",),        # recurrent carry in time
            vmem_limit_bytes=32 * 1024 * 1024),
    )(gate_x, len_col, whh)

    of = out[:, :T, 0:H]                               # fwd half, natural order
    ob_rev = out[:, :T, H:S]                           # bwd half, reversed time
    mask = (t_idx[None, :] < lengths[:, None]).astype(x.dtype)[:, :, None]
    ob = jnp.take_along_axis(
        ob_rev, jnp.broadcast_to(rev_idx[:, :, None], ob_rev.shape), axis=1) * mask
    return jnp.concatenate([of, ob], axis=-1)          # [B, T, 2H]


def bilstm(layer_params, x, lengths):
    h = x
    for (fwd, bwd) in layer_params:
        h = bilstm_layer(h, lengths, fwd, bwd)
    return h


def encode_hpu(layer_params, wemb_hpu, l_hpu, l_hs_list, hS):
    out = bilstm(layer_params, wemb_hpu, l_hpu)               # [N, mL_hpu, hS]
    N = out.shape[0]
    idx = jnp.broadcast_to((l_hpu - 1).astype(jnp.int32)[:, None, None],
                           (N, 1, hS))
    last = jnp.take_along_axis(out, idx, axis=1)[:, 0, :]     # [N, hS]

    # Static segment layout -> single gather instead of a python scatter loop.
    B = len(l_hs_list)
    Th = max(l_hs_list)
    gidx = np.zeros((B, Th), dtype=np.int32)
    valid = np.zeros((B, Th, 1), dtype=np.float32)
    st = 0
    for i, l1 in enumerate(l_hs_list):
        gidx[i, :l1] = np.arange(st, st + l1)
        valid[i, :l1, 0] = 1.0
        st += l1
    wenc_hs = jnp.take(last, jnp.asarray(gidx), axis=0) * jnp.asarray(valid)
    return wenc_hs                                            # [B, Th, hS]


# --------------------------------------------------------------------------
# Pallas kernel 2: attention + context + scoring head (batched grid, bf16
# matmul operands, in-kernel length masks, lane-dense (B, Th_p) output).
# --------------------------------------------------------------------------
def _wcp_score_kernel(wn_ref, whs_ref, ln_ref, lh_ref,
                      w3_ref, b3_ref, wout_ref, bout_ref, score_ref):
    bb, Tn, hS = wn_ref.shape
    Th = whs_ref.shape[1]

    wn = wn_ref[...]                       # [bb, Tn, hS] bf16
    whs = whs_ref[...]                     # [bb, Th, hS] bf16

    # Padding masks built in-kernel from int32 lengths (no mask DMAs).
    tok_valid = lax.broadcasted_iota(jnp.int32, (bb, Tn), 1) < ln_ref[...]
    hdr_valid = lax.broadcasted_iota(jnp.int32, (bb, Th), 1) < lh_ref[...]

    # W_att projection with batch folded into the matmul M dim.
    an = jnp.dot(wn.reshape(bb * Tn, hS), w3_ref[0],
                 preferred_element_type=jnp.float32) + b3_ref[0:1, :]
    an = an.reshape(bb, Tn, hS).astype(jnp.bfloat16)

    # att[b,h,n] = sum_d whs[b,h,d] * an[b,n,d]  (no transpose materialized).
    att = lax.dot_general(whs, an, (((2,), (2,)), ((0,), (0,))),
                          preferred_element_type=jnp.float32)   # [bb, Th, Tn]

    # Mask NL padding, softmax over NL tokens (exact division).
    att = jnp.where(tok_valid[:, None, :], att, NEG_BIG)
    att_max = jnp.max(att, axis=2, keepdims=True)
    e = jnp.exp(att - att_max)
    p = e / jnp.sum(e, axis=2, keepdims=True)

    # Context vectors: c_n[b,h,:] = sum_n p[b,h,n] * wn[b,n,:]
    c_n = lax.dot_general(p.astype(jnp.bfloat16), wn,
                          (((2,), (1,)), ((0,), (0,))),
                          preferred_element_type=jnp.float32)   # [bb, Th, hS]

    # y = [W_c(c_n), W_hs(wenc_hs)]; score = Linear(tanh(y)) without concat:
    # split the 1-column output weight and do a VPU multiply + row reduction.
    y1 = jnp.dot(c_n.reshape(bb * Th, hS).astype(jnp.bfloat16), w3_ref[1],
                 preferred_element_type=jnp.float32) + b3_ref[1:2, :]
    y2 = jnp.dot(whs.reshape(bb * Th, hS), w3_ref[2],
                 preferred_element_type=jnp.float32) + b3_ref[2:3, :]
    t1 = jnp.tanh(y1).reshape(bb, Th, hS)
    t2 = jnp.tanh(y2).reshape(bb, Th, hS)

    w_top = wout_ref[0:1, :]               # [1, hS] f32
    w_bot = wout_ref[1:2, :]
    s = (jnp.sum(t1 * w_top[None, :, :], axis=-1)
         + jnp.sum(t2 * w_bot[None, :, :], axis=-1)) + bout_ref[0, 0]

    # Penalty on header padding (and on batch/block padding).
    score_ref[...] = jnp.where(hdr_valid, s, NEG_BIG)


def wcp_attention_score(wenc_n, wenc_hs, l_n, l_hs, head_params):
    B, Tn, hS = wenc_n.shape
    _, Th, _ = wenc_hs.shape
    (W_att_w, W_att_b, W_c_w, W_c_b, W_hs_w, W_hs_b, W_out_w, W_out_b) = head_params

    # Token axis -> sublane multiple; header axis -> full 128-lane tile so the
    # score writeback is an unmasked vst.
    Tn_p = _round_up(Tn, 8)
    Th_p = _round_up(Th, LANE)

    # Batch block: as large as possible; keep two blocks when the batch allows
    # so both v7x TensorCores get work.
    if B <= 8:
        B_p = B
        bb = B
    else:
        B_p = _round_up(B, 16)
        bb = B_p // 2

    def pad3(a, b_p, t_p):
        return jnp.pad(a, ((0, b_p - a.shape[0]), (0, t_p - a.shape[1]), (0, 0)))

    wn = pad3(wenc_n, B_p, Tn_p).astype(jnp.bfloat16)
    whs = pad3(wenc_hs, B_p, Th_p).astype(jnp.bfloat16)

    ln = jnp.pad(l_n.astype(jnp.int32), (0, B_p - B)).reshape(B_p, 1)
    lh = jnp.pad(l_hs.astype(jnp.int32), (0, B_p - B)).reshape(B_p, 1)

    # Pack the three hS x hS projections / biases into single operands.
    w3 = jnp.stack([W_att_w.T, W_c_w.T, W_hs_w.T], axis=0).astype(jnp.bfloat16)
    b3 = jnp.stack([W_att_b, W_c_b, W_hs_b], axis=0)                 # [3, hS] f32
    wout = jnp.stack([W_out_w[0, :hS], W_out_w[0, hS:]], axis=0)     # [2, hS] f32
    bout = W_out_b.reshape(1, 1)                                     # SMEM scalar

    const2 = lambda b: (0, 0)
    const3 = lambda b: (0, 0, 0)
    gs = pltpu.PrefetchScalarGridSpec(
        num_scalar_prefetch=0,
        grid=(B_p // bb,),
        in_specs=[
            pl.BlockSpec((bb, Tn_p, hS), lambda b: (b, 0, 0)),
            pl.BlockSpec((bb, Th_p, hS), lambda b: (b, 0, 0)),
            pl.BlockSpec((bb, 1), lambda b: (b, 0)),
            pl.BlockSpec((bb, 1), lambda b: (b, 0)),
            pl.BlockSpec((3, hS, hS), const3),
            pl.BlockSpec((3, hS), const2),
            pl.BlockSpec((2, hS), const2),
            pl.BlockSpec(memory_space=pltpu.MemorySpace.SMEM),
        ],
        out_specs=pl.BlockSpec((bb, Th_p), lambda b: (b, 0)),
    )
    out = pl.pallas_call(
        _wcp_score_kernel,
        out_shape=jax.ShapeDtypeStruct((B_p, Th_p), jnp.float32),
        grid_spec=gs,
        compiler_params=pltpu.CompilerParams(
            dimension_semantics=("parallel",),
            vmem_limit_bytes=32 * 1024 * 1024),
    )(wn, whs, ln, lh, w3, b3, wout, bout)
    return out[:B, :Th]


# --------------------------------------------------------------------------
# Deterministic parameter initialization (PyTorch default uniform bounds).
# --------------------------------------------------------------------------
def init_linear(key, out_f, in_f):
    k1, k2 = jax.random.split(key)
    bound = in_f ** -0.5
    w = jax.random.uniform(k1, (out_f, in_f), jnp.float32, -bound, bound)
    b = jax.random.uniform(k2, (out_f,), jnp.float32, -bound, bound)
    return w, b


def init_lstm(key, input_size, H, num_layers):
    params = []
    bound = H ** -0.5
    for layer in range(num_layers):
        in_sz = input_size if layer == 0 else 2 * H
        dirs = []
        for _ in range(2):  # forward, backward
            key, k1, k2, k3, k4 = jax.random.split(key, 5)
            w_ih = jax.random.uniform(k1, (4 * H, in_sz), jnp.float32, -bound, bound)
            w_hh = jax.random.uniform(k2, (4 * H, H), jnp.float32, -bound, bound)
            b_ih = jax.random.uniform(k3, (4 * H,), jnp.float32, -bound, bound)
            b_hh = jax.random.uniform(k4, (4 * H,), jnp.float32, -bound, bound)
            dirs.append((w_ih, w_hh, b_ih, b_hh))
        params.append(tuple(dirs))
    return params


# --------------------------------------------------------------------------
# Full WCP forward.
# --------------------------------------------------------------------------
def wcp_forward(enc_n_params, enc_h_params, head_params,
                wemb_n, l_n, wemb_hpu, l_hpu, l_hs_list, hS):
    wenc_n = bilstm(enc_n_params, wemb_n, l_n)                          # [B, mL_n, hS]
    wenc_hs = encode_hpu(enc_h_params, wemb_hpu, l_hpu, l_hs_list, hS)  # [B, mL_hs, hS]
    l_hs = jnp.array(l_hs_list, dtype=jnp.int32)
    score = wcp_attention_score(wenc_n, wenc_hs, l_n, l_hs, head_params)
    return score                                                        # [B, mL_hs]


if __name__ == "__main__":
    key = jax.random.PRNGKey(0)

    # Small, module-consistent shapes.
    iS, hS, lS = 32, 16, 2
    H = hS // 2
    B = 2
    l_n_list = [8, 6]
    mL_n = max(l_n_list)
    l_hs_list = (3, 2)
    l_hpu_list = [4, 3, 2, 5, 3]          # one length per header (sum(l_hs) headers)
    mL_hpu = max(l_hpu_list)
    total_headers = sum(l_hs_list)

    keys = jax.random.split(key, 8)
    wemb_n = jax.random.normal(keys[0], (B, mL_n, iS), dtype=jnp.float32)
    wemb_hpu = jax.random.normal(keys[1], (total_headers, mL_hpu, iS),
                                 dtype=jnp.float32)

    enc_n_params = init_lstm(keys[2], iS, H, lS)
    enc_h_params = init_lstm(keys[3], iS, H, lS)
    W_att_w, W_att_b = init_linear(keys[4], hS, hS)
    W_c_w, W_c_b = init_linear(keys[5], hS, hS)
    W_hs_w, W_hs_b = init_linear(keys[6], hS, hS)
    W_out_w, W_out_b = init_linear(keys[7], 1, 2 * hS)
    head_params = (W_att_w, W_att_b, W_c_w, W_c_b, W_hs_w, W_hs_b, W_out_w, W_out_b)

    l_n = jnp.array(l_n_list, dtype=jnp.int32)
    l_hpu = jnp.array(l_hpu_list, dtype=jnp.int32)

    fwd = jax.jit(wcp_forward, static_argnames=("l_hs_list", "hS"))
    score = fwd(enc_n_params, enc_h_params, head_params,
                wemb_n, l_n, wemb_hpu, l_hpu, l_hs_list, hS)
    score = jax.block_until_ready(score)
    assert score.shape == (B, max(l_hs_list))
    assert bool(jnp.all(jnp.isfinite(score)))
    print("KERNEL_OK")
</pallas_src>

<mosaic_0001>
module attributes {stable_mosaic.version = 11 : i64} {
  func.func @_lstm_chunk_kernel(%arg0: i32, %arg1: memref<8x5x512xf32, #tpu.memory_space<vmem>>, %arg2: memref<5x1xi32, #tpu.memory_space<vmem>>, %arg3: memref<128x512xbf16, #tpu.memory_space<vmem>>, %arg4: memref<5x8x128xf32, #tpu.memory_space<vmem>>, %arg5: memref<5x128xf32, #tpu.memory_space<vmem>>, %arg6: memref<5x128xf32, #tpu.memory_space<vmem>>) attributes {dimension_semantics = [#tpu.dimension_semantics<arbitrary>], iteration_bounds = array<i64: 1>, scalar_prefetch = 0 : i64, scratch_operands = 2 : i64, tpu.core_type = #tpu.core_type<tc>, window_params = [{transform_indices = @transform_0, window_bounds = array<i64: 8, 5, 512>}, {pipeline_mode = #tpu.pipeline_mode<synchronous>, transform_indices = @transform_1, window_bounds = array<i64: 5, 1>}, {pipeline_mode = #tpu.pipeline_mode<synchronous>, transform_indices = @transform_2, window_bounds = array<i64: 128, 512>}, {transform_indices = @transform_3, window_bounds = array<i64: 5, 8, 128>}]} {
    %c0_i32 = arith.constant 0 : i32
    %0 = arith.cmpi eq, %arg0, %c0_i32 : i32
    %1 = arith.extui %0 : i1 to i32
    %c0_i32_0 = arith.constant 0 : i32
    %2 = arith.cmpi ne, %1, %c0_i32_0 : i32
    scf.if %2 {
      %cst_155 = arith.constant 0.000000e+00 : f32
      %425 = vector.broadcast %cst_155 : f32 to vector<5x128xf32>
      %c0_156 = arith.constant 0 : index
      %c0_157 = arith.constant 0 : index
      %426 = vector.load %arg5[%c0_156, %c0_157] : memref<5x128xf32, #tpu.memory_space<vmem>>, vector<5x128xf32>
      tpu.vector_store %arg5[%c0_156, %c0_157], %425 {strides = array<i32>} : memref<5x128xf32, #tpu.memory_space<vmem>>, vector<5x128xf32>,
      %cst_158 = arith.constant 0.000000e+00 : f32
      %427 = vector.broadcast %cst_158 : f32 to vector<5x128xf32>
      %c0_159 = arith.constant 0 : index
      %c0_160 = arith.constant 0 : index
      %428 = vector.load %arg6[%c0_159, %c0_160] : memref<5x128xf32, #tpu.memory_space<vmem>>, vector<5x128xf32>
      tpu.vector_store %arg6[%c0_159, %c0_160], %427 {strides = array<i32>} : memref<5x128xf32, #tpu.memory_space<vmem>>, vector<5x128xf32>,
    } else {
    }
    %c0 = arith.constant 0 : index
    %c0_1 = arith.constant 0 : index
    %3 = vector.load %arg2[%c0, %c0_1] : memref<5x1xi32, #tpu.memory_space<vmem>>, vector<5x1xi32>
    %c8_i32 = arith.constant 8 : i32
    %4 = arith.muli %arg0, %c8_i32 : i32
    %c0_2 = arith.constant 0 : index
    %c0_3 = arith.constant 0 : index
    %5 = vector.load %arg5[%c0_2, %c0_3] : memref<5x128xf32, #tpu.memory_space<vmem>>, vector<5x128xf32>
    %c0_4 = arith.constant 0 : index
    %c0_5 = arith.constant 0 : index
    %6 = vector.load %arg6[%c0_4, %c0_5] : memref<5x128xf32, #tpu.memory_space<vmem>>, vector<5x128xf32>
    %c0_6 = arith.constant 0 : index
    %c0_7 = arith.constant 0 : index
    %c0_8 = arith.constant 0 : index
    %7 = vector.load %arg1[%c0_6, %c0_7, %c0_8] : memref<8x5x512xf32, #tpu.memory_space<vmem>>, vector<1x5x512xf32>
    %8 = vector.shape_cast %7 : vector<1x5x512xf32> to vector<5x512xf32>
    %9 = arith.truncf %5 : vector<5x128xf32> to vector<5x128xbf16>
    %c0_9 = arith.constant 0 : index
    %c0_10 = arith.constant 0 : index
    %10 = vector.load %arg3[%c0_9, %c0_10] : memref<128x512xbf16, #tpu.memory_space<vmem>>, vector<128x512xbf16>
    %cst = arith.constant dense<0.000000e+00> : vector<5x512xf32>
    %11 = tpu.matmul %9, %10, %cst {dimension_numbers = #tpu.dot_dimension_numbers<[1], [0], [0], [1], [0, 0, 1, 1], [], []>} : vector<5x128xbf16>, vector<128x512xbf16>, vector<5x512xf32> -> vector<5x512xf32>
    %12 = arith.addf %8, %11 : vector<5x512xf32>
    %13 = vector.extract_strided_slice %12 {offsets = [0, 0], sizes = [5, 128], strides = [1, 1]} : vector<5x512xf32> to vector<5x128xf32>
    %cst_11 = arith.constant 5.000000e-01 : f32
    %14 = vector.broadcast %cst_11 : f32 to vector<5x128xf32>
    %15 = arith.mulf %14, %13 : vector<5x128xf32>
    %16 = math.tanh %15 : vector<5x128xf32>
    %cst_12 = arith.constant 1.000000e+00 : f32
    %17 = vector.broadcast %cst_12 : f32 to vector<5x128xf32>
    %18 = arith.addf %16, %17 : vector<5x128xf32>
    %cst_13 = arith.constant 5.000000e-01 : f32
    %19 = vector.broadcast %cst_13 : f32 to vector<5x128xf32>
    %20 = arith.mulf %19, %18 : vector<5x128xf32>
    %21 = vector.extract_strided_slice %12 {offsets = [0, 128], sizes = [5, 128], strides = [1, 1]} : vector<5x512xf32> to vector<5x128xf32>
    %cst_14 = arith.constant 5.000000e-01 : f32
    %22 = vector.broadcast %cst_14 : f32 to vector<5x128xf32>
    %23 = arith.mulf %22, %21 : vector<5x128xf32>
    %24 = math.tanh %23 : vector<5x128xf32>
    %cst_15 = arith.constant 1.000000e+00 : f32
    %25 = vector.broadcast %cst_15 : f32 to vector<5x128xf32>
    %26 = arith.addf %24, %25 : vector<5x128xf32>
    %cst_16 = arith.constant 5.000000e-01 : f32
    %27 = vector.broadcast %cst_16 : f32 to vector<5x128xf32>
    %28 = arith.mulf %27, %26 : vector<5x128xf32>
    %29 = vector.extract_strided_slice %12 {offsets = [0, 256], sizes = [5, 128], strides = [1, 1]} : vector<5x512xf32> to vector<5x128xf32>
    %30 = math.tanh %29 : vector<5x128xf32>
    %31 = vector.extract_strided_slice %12 {offsets = [0, 384], sizes = [5, 128], strides = [1, 1]} : vector<5x512xf32> to vector<5x128xf32>
    %cst_17 = arith.constant 5.000000e-01 : f32
    %32 = vector.broadcast %cst_17 : f32 to vector<5x128xf32>
    %33 = arith.mulf %32, %31 : vector<5x128xf32>
    %34 = math.tanh %33 : vector<5x128xf32>
    %cst_18 = arith.constant 1.000000e+00 : f32
    %35 = vector.broadcast %cst_18 : f32 to vector<5x128xf32>
    %36 = arith.addf %34, %35 : vector<5x128xf32>
    %cst_19 = arith.constant 5.000000e-01 : f32
    %37 = vector.broadcast %cst_19 : f32 to vector<5x128xf32>
    %38 = arith.mulf %37, %36 : vector<5x128xf32>
    %39 = arith.mulf %28, %6 : vector<5x128xf32>
    %40 = arith.mulf %20, %30 : vector<5x128xf32>
    %41 = arith.addf %39, %40 : vector<5x128xf32>
    %42 = math.tanh %41 : vector<5x128xf32>
    %43 = arith.mulf %38, %42 : vector<5x128xf32>
    %c0_i32_20 = arith.constant 0 : i32
    %44 = arith.addi %4, %c0_i32_20 : i32
    %45 = vector.broadcast %44 : i32 to vector<5x1xi32>
    %46 = arith.cmpi slt, %45, %3 : vector<5x1xi32>
    %47 = vector.shape_cast %46 : vector<5x1xi1> to vector<5x1xi1>
    %48 = vector.broadcast %47 : vector<5x1xi1> to vector<5x128xi1>
    %49 = arith.select %48, %41, %6 : vector<5x128xi1>, vector<5x128xf32>
    %50 = vector.shape_cast %46 : vector<5x1xi1> to vector<5x1xi1>
    %51 = vector.broadcast %50 : vector<5x1xi1> to vector<5x128xi1>
    %52 = arith.select %51, %43, %5 : vector<5x128xi1>, vector<5x128xf32>
    %cst_21 = arith.constant 0.000000e+00 : f32
    %53 = vector.shape_cast %46 : vector<5x1xi1> to vector<5x1xi1>
    %54 = vector.broadcast %53 : vector<5x1xi1> to vector<5x128xi1>
    %55 = vector.broadcast %cst_21 : f32 to vector<5x128xf32>
    %56 = arith.select %54, %43, %55 : vector<5x128xi1>, vector<5x128xf32>
    %57 = vector.shape_cast %56 : vector<5x128xf32> to vector<5x1x128xf32>
    %c0_22 = arith.constant 0 : index
    %c0_23 = arith.constant 0 : index
    %c0_24 = arith.constant 0 : index
    %58 = vector.load %arg4[%c0_22, %c0_23, %c0_24] : memref<5x8x128xf32, #tpu.memory_space<vmem>>, vector<5x1x128xf32>
    tpu.vector_store %arg4[%c0_22, %c0_23, %c0_24], %57 {strides = array<i32>} : memref<5x8x128xf32, #tpu.memory_space<vmem>>, vector<5x1x128xf32>,
    %c1 = arith.constant 1 : index
    %c0_25 = arith.constant 0 : index
    %c0_26 = arith.constant 0 : index
    %59 = vector.load %arg1[%c1, %c0_25, %c0_26] : memref<8x5x512xf32, #tpu.memory_space<vmem>>, vector<1x5x512xf32>
    %60 = vector.shape_cast %59 : vector<1x5x512xf32> to vector<5x512xf32>
    %61 = arith.truncf %52 : vector<5x128xf32> to vector<5x128xbf16>
    %c0_27 = arith.constant 0 : index
    %c0_28 = arith.constant 0 : index
    %62 = vector.load %arg3[%c0_27, %c0_28] : memref<128x512xbf16, #tpu.memory_space<vmem>>, vector<128x512xbf16>
    %cst_29 = arith.constant dense<0.000000e+00> : vector<5x512xf32>
    %63 = tpu.matmul %61, %62, %cst_29 {dimension_numbers = #tpu.dot_dimension_numbers<[1], [0], [0], [1], [0, 0, 1, 1], [], []>} : vector<5x128xbf16>, vector<128x512xbf16>, vector<5x512xf32> -> vector<5x512xf32>
    %64 = arith.addf %60, %63 : vector<5x512xf32>
    %65 = vector.extract_strided_slice %64 {offsets = [0, 0], sizes = [5, 128], strides = [1, 1]} : vector<5x512xf32> to vector<5x128xf32>
    %cst_30 = arith.constant 5.000000e-01 : f32
    %66 = vector.broadcast %cst_30 : f32 to vector<5x128xf32>
    %67 = arith.mulf %66, %65 : vector<5x128xf32>
    %68 = math.tanh %67 : vector<5x128xf32>
    %cst_31 = arith.constant 1.000000e+00 : f32
    %69 = vector.broadcast %cst_31 : f32 to vector<5x128xf32>
    %70 = arith.addf %68, %69 : vector<5x128xf32>
    %cst_32 = arith.constant 5.000000e-01 : f32
    %71 = vector.broadcast %cst_32 : f32 to vector<5x128xf32>
    %72 = arith.mulf %71, %70 : vector<5x128xf32>
    %73 = vector.extract_strided_slice %64 {offsets = [0, 128], sizes = [5, 128], strides = [1, 1]} : vector<5x512xf32> to vector<5x128xf32>
    %cst_33 = arith.constant 5.000000e-01 : f32
    %74 = vector.broadcast %cst_33 : f32 to vector<5x128xf32>
    %75 = arith.mulf %74, %73 : vector<5x128xf32>
    %76 = math.tanh %75 : vector<5x128xf32>
    %cst_34 = arith.constant 1.000000e+00 : f32
    %77 = vector.broadcast %cst_34 : f32 to vector<5x128xf32>
    %78 = arith.addf %76, %77 : vector<5x128xf32>
    %cst_35 = arith.constant 5.000000e-01 : f32
    %79 = vector.broadcast %cst_35 : f32 to vector<5x128xf32>
    %80 = arith.mulf %79, %78 : vector<5x128xf32>
    %81 = vector.extract_strided_slice %64 {offsets = [0, 256], sizes = [5, 128], strides = [1, 1]} : vector<5x512xf32> to vector<5x128xf32>
    %82 = math.tanh %81 : vector<5x128xf32>
    %83 = vector.extract_strided_slice %64 {offsets = [0, 384], sizes = [5, 128], strides = [1, 1]} : vector<5x512xf32> to vector<5x128xf32>
    %cst_36 = arith.constant 5.000000e-01 : f32
    %84 = vector.broadcast %cst_36 : f32 to vector<5x128xf32>
    %85 = arith.mulf %84, %83 : vector<5x128xf32>
    %86 = math.tanh %85 : vector<5x128xf32>
    %cst_37 = arith.constant 1.000000e+00 : f32
    %87 = vector.broadcast %cst_37 : f32 to vector<5x128xf32>
    %88 = arith.addf %86, %87 : vector<5x128xf32>
    %cst_38 = arith.constant 5.000000e-01 : f32
    %89 = vector.broadcast %cst_38 : f32 to vector<5x128xf32>
    %90 = arith.mulf %89, %88 : vector<5x128xf32>
    %91 = arith.mulf %80, %49 : vector<5x128xf32>
    %92 = arith.mulf %72, %82 : vector<5x128xf32>
    %93 = arith.addf %91, %92 : vector<5x128xf32>
    %94 = math.tanh %93 : vector<5x128xf32>
    %95 = arith.mulf %90, %94 : vector<5x128xf32>
    %c1_i32 = arith.constant 1 : i32
    %96 = arith.addi %4, %c1_i32 : i32
    %97 = vector.broadcast %96 : i32 to vector<5x1xi32>
    %98 = arith.cmpi slt, %97, %3 : vector<5x1xi32>
    %99 = vector.shape_cast %98 : vector<5x1xi1> to vector<5x1xi1>
    %100 = vector.broadcast %99 : vector<5x1xi1> to vector<5x128xi1>
    %101 = arith.select %100, %93, %49 : vector<5x128xi1>, vector<5x128xf32>
    %102 = vector.shape_cast %98 : vector<5x1xi1> to vector<5x1xi1>
    %103 = vector.broadcast %102 : vector<5x1xi1> to vector<5x128xi1>
    %104 = arith.select %103, %95, %52 : vector<5x128xi1>, vector<5x128xf32>
    %cst_39 = arith.constant 0.000000e+00 : f32
    %105 = vector.shape_cast %98 : vector<5x1xi1> to vector<5x1xi1>
    %106 = vector.broadcast %105 : vector<5x1xi1> to vector<5x128xi1>
    %107 = vector.broadcast %cst_39 : f32 to vector<5x128xf32>
    %108 = arith.select %106, %95, %107 : vector<5x128xi1>, vector<5x128xf32>
    %109 = vector.shape_cast %108 : vector<5x128xf32> to vector<5x1x128xf32>
    %c0_40 = arith.constant 0 : index
    %c1_41 = arith.constant 1 : index
    %c0_42 = arith.constant 0 : index
    %110 = vector.load %arg4[%c0_40, %c1_41, %c0_42] : memref<5x8x128xf32, #tpu.memory_space<vmem>>, vector<5x1x128xf32>
    tpu.vector_store %arg4[%c0_40, %c1_41, %c0_42], %109 {strides = array<i32>} : memref<5x8x128xf32, #tpu.memory_space<vmem>>, vector<5x1x128xf32>,
    %c2 = arith.constant 2 : index
    %c0_43 = arith.constant 0 : index
    %c0_44 = arith.constant 0 : index
    %111 = vector.load %arg1[%c2, %c0_43, %c0_44] : memref<8x5x512xf32, #tpu.memory_space<vmem>>, vector<1x5x512xf32>
    %112 = vector.shape_cast %111 : vector<1x5x512xf32> to vector<5x512xf32>
    %113 = arith.truncf %104 : vector<5x128xf32> to vector<5x128xbf16>
    %c0_45 = arith.constant 0 : index
    %c0_46 = arith.constant 0 : index
    %114 = vector.load %arg3[%c0_45, %c0_46] : memref<128x512xbf16, #tpu.memory_space<vmem>>, vector<128x512xbf16>
    %cst_47 = arith.constant dense<0.000000e+00> : vector<5x512xf32>
    %115 = tpu.matmul %113, %114, %cst_47 {dimension_numbers = #tpu.dot_dimension_numbers<[1], [0], [0], [1], [0, 0, 1, 1], [], []>} : vector<5x128xbf16>, vector<128x512xbf16>, vector<5x512xf32> -> vector<5x512xf32>
    %116 = arith.addf %112, %115 : vector<5x512xf32>
    %117 = vector.extract_strided_slice %116 {offsets = [0, 0], sizes = [5, 128], strides = [1, 1]} : vector<5x512xf32> to vector<5x128xf32>
    %cst_48 = arith.constant 5.000000e-01 : f32
    %118 = vector.broadcast %cst_48 : f32 to vector<5x128xf32>
    %119 = arith.mulf %118, %117 : vector<5x128xf32>
    %120 = math.tanh %119 : vector<5x128xf32>
    %cst_49 = arith.constant 1.000000e+00 : f32
    %121 = vector.broadcast %cst_49 : f32 to vector<5x128xf32>
    %122 = arith.addf %120, %121 : vector<5x128xf32>
    %cst_50 = arith.constant 5.000000e-01 : f32
    %123 = vector.broadcast %cst_50 : f32 to vector<5x128xf32>
    %124 = arith.mulf %123, %122 : vector<5x128xf32>
    %125 = vector.extract_strided_slice %116 {offsets = [0, 128], sizes = [5, 128], strides = [1, 1]} : vector<5x512xf32> to vector<5x128xf32>
    %cst_51 = arith.constant 5.000000e-01 : f32
    %126 = vector.broadcast %cst_51 : f32 to vector<5x128xf32>
    %127 = arith.mulf %126, %125 : vector<5x128xf32>
    %128 = math.tanh %127 : vector<5x128xf32>
    %cst_52 = arith.constant 1.000000e+00 : f32
    %129 = vector.broadcast %cst_52 : f32 to vector<5x128xf32>
    %130 = arith.addf %128, %129 : vector<5x128xf32>
    %cst_53 = arith.constant 5.000000e-01 : f32
    %131 = vector.broadcast %cst_53 : f32 to vector<5x128xf32>
    %132 = arith.mulf %131, %130 : vector<5x128xf32>
    %133 = vector.extract_strided_slice %116 {offsets = [0, 256], sizes = [5, 128], strides = [1, 1]} : vector<5x512xf32> to vector<5x128xf32>
    %134 = math.tanh %133 : vector<5x128xf32>
    %135 = vector.extract_strided_slice %116 {offsets = [0, 384], sizes = [5, 128], strides = [1, 1]} : vector<5x512xf32> to vector<5x128xf32>
    %cst_54 = arith.constant 5.000000e-01 : f32
    %136 = vector.broadcast %cst_54 : f32 to vector<5x128xf32>
    %137 = arith.mulf %136, %135 : vector<5x128xf32>
    %138 = math.tanh %137 : vector<5x128xf32>
    %cst_55 = arith.constant 1.000000e+00 : f32
    %139 = vector.broadcast %cst_55 : f32 to vector<5x128xf32>
    %140 = arith.addf %138, %139 : vector<5x128xf32>
    %cst_56 = arith.constant 5.000000e-01 : f32
    %141 = vector.broadcast %cst_56 : f32 to vector<5x128xf32>
    %142 = arith.mulf %141, %140 : vector<5x128xf32>
    %143 = arith.mulf %132, %101 : vector<5x128xf32>
    %144 = arith.mulf %124, %134 : vector<5x128xf32>
    %145 = arith.addf %143, %144 : vector<5x128xf32>
    %146 = math.tanh %145 : vector<5x128xf32>
    %147 = arith.mulf %142, %146 : vector<5x128xf32>
    %c2_i32 = arith.constant 2 : i32
    %148 = arith.addi %4, %c2_i32 : i32
    %149 = vector.broadcast %148 : i32 to vector<5x1xi32>
    %150 = arith.cmpi slt, %149, %3 : vector<5x1xi32>
    %151 = vector.shape_cast %150 : vector<5x1xi1> to vector<5x1xi1>
    %152 = vector.broadcast %151 : vector<5x1xi1> to vector<5x128xi1>
    %153 = arith.select %152, %145, %101 : vector<5x128xi1>, vector<5x128xf32>
    %154 = vector.shape_cast %150 : vector<5x1xi1> to vector<5x1xi1>
    %155 = vector.broadcast %154 : vector<5x1xi1> to vector<5x128xi1>
    %156 = arith.select %155, %147, %104 : vector<5x128xi1>, vector<5x128xf32>
    %cst_57 = arith.constant 0.000000e+00 : f32
    %157 = vector.shape_cast %150 : vector<5x1xi1> to vector<5x1xi1>
    %158 = vector.broadcast %157 : vector<5x1xi1> to vector<5x128xi1>
    %159 = vector.broadcast %cst_57 : f32 to vector<5x128xf32>
    %160 = arith.select %158, %147, %159 : vector<5x128xi1>, vector<5x128xf32>
    %161 = vector.shape_cast %160 : vector<5x128xf32> to vector<5x1x128xf32>
    %c0_58 = arith.constant 0 : index
    %c2_59 = arith.constant 2 : index
    %c0_60 = arith.constant 0 : index
    %162 = vector.load %arg4[%c0_58, %c2_59, %c0_60] : memref<5x8x128xf32, #tpu.memory_space<vmem>>, vector<5x1x128xf32>
    tpu.vector_store %arg4[%c0_58, %c2_59, %c0_60], %161 {strides = array<i32>} : memref<5x8x128xf32, #tpu.memory_space<vmem>>, vector<5x1x128xf32>,
    %c3 = arith.constant 3 : index
    %c0_61 = arith.constant 0 : index
    %c0_62 = arith.constant 0 : index
    %163 = vector.load %arg1[%c3, %c0_61, %c0_62] : memref<8x5x512xf32, #tpu.memory_space<vmem>>, vector<1x5x512xf32>
    %164 = vector.shape_cast %163 : vector<1x5x512xf32> to vector<5x512xf32>
    %165 = arith.truncf %156 : vector<5x128xf32> to vector<5x128xbf16>
    %c0_63 = arith.constant 0 : index
    %c0_64 = arith.constant 0 : index
    %166 = vector.load %arg3[%c0_63, %c0_64] : memref<128x512xbf16, #tpu.memory_space<vmem>>, vector<128x512xbf16>
    %cst_65 = arith.constant dense<0.000000e+00> : vector<5x512xf32>
    %167 = tpu.matmul %165, %166, %cst_65 {dimension_numbers = #tpu.dot_dimension_numbers<[1], [0], [0], [1], [0, 0, 1, 1], [], []>} : vector<5x128xbf16>, vector<128x512xbf16>, vector<5x512xf32> -> vector<5x512xf32>
    %168 = arith.addf %164, %167 : vector<5x512xf32>
    %169 = vector.extract_strided_slice %168 {offsets = [0, 0], sizes = [5, 128], strides = [1, 1]} : vector<5x512xf32> to vector<5x128xf32>
    %cst_66 = arith.constant 5.000000e-01 : f32
    %170 = vector.broadcast %cst_66 : f32 to vector<5x128xf32>
    %171 = arith.mulf %170, %169 : vector<5x128xf32>
    %172 = math.tanh %171 : vector<5x128xf32>
    %cst_67 = arith.constant 1.000000e+00 : f32
    %173 = vector.broadcast %cst_67 : f32 to vector<5x128xf32>
    %174 = arith.addf %172, %173 : vector<5x128xf32>
    %cst_68 = arith.constant 5.000000e-01 : f32
    %175 = vector.broadcast %cst_68 : f32 to vector<5x128xf32>
    %176 = arith.mulf %175, %174 : vector<5x128xf32>
    %177 = vector.extract_strided_slice %168 {offsets = [0, 128], sizes = [5, 128], strides = [1, 1]} : vector<5x512xf32> to vector<5x128xf32>
    %cst_69 = arith.constant 5.000000e-01 : f32
    %178 = vector.broadcast %cst_69 : f32 to vector<5x128xf32>
    %179 = arith.mulf %178, %177 : vector<5x128xf32>
    %180 = math.tanh %179 : vector<5x128xf32>
    %cst_70 = arith.constant 1.000000e+00 : f32
    %181 = vector.broadcast %cst_70 : f32 to vector<5x128xf32>
    %182 = arith.addf %180, %181 : vector<5x128xf32>
    %cst_71 = arith.constant 5.000000e-01 : f32
    %183 = vector.broadcast %cst_71 : f32 to vector<5x128xf32>
    %184 = arith.mulf %183, %182 : vector<5x128xf32>
    %185 = vector.extract_strided_slice %168 {offsets = [0, 256], sizes = [5, 128], strides = [1, 1]} : vector<5x512xf32> to vector<5x128xf32>
    %186 = math.tanh %185 : vector<5x128xf32>
    %187 = vector.extract_strided_slice %168 {offsets = [0, 384], sizes = [5, 128], strides = [1, 1]} : vector<5x512xf32> to vector<5x128xf32>
    %cst_72 = arith.constant 5.000000e-01 : f32
    %188 = vector.broadcast %cst_72 : f32 to vector<5x128xf32>
    %189 = arith.mulf %188, %187 : vector<5x128xf32>
    %190 = math.tanh %189 : vector<5x128xf32>
    %cst_73 = arith.constant 1.000000e+00 : f32
    %191 = vector.broadcast %cst_73 : f32 to vector<5x128xf32>
    %192 = arith.addf %190, %191 : vector<5x128xf32>
    %cst_74 = arith.constant 5.000000e-01 : f32
    %193 = vector.broadcast %cst_74 : f32 to vector<5x128xf32>
    %194 = arith.mulf %193, %192 : vector<5x128xf32>
    %195 = arith.mulf %184, %153 : vector<5x128xf32>
    %196 = arith.mulf %176, %186 : vector<5x128xf32>
    %197 = arith.addf %195, %196 : vector<5x128xf32>
    %198 = math.tanh %197 : vector<5x128xf32>
    %199 = arith.mulf %194, %198 : vector<5x128xf32>
    %c3_i32 = arith.constant 3 : i32
    %200 = arith.addi %4, %c3_i32 : i32
    %201 = vector.broadcast %200 : i32 to vector<5x1xi32>
    %202 = arith.cmpi slt, %201, %3 : vector<5x1xi32>
    %203 = vector.shape_cast %202 : vector<5x1xi1> to vector<5x1xi1>
    %204 = vector.broadcast %203 : vector<5x1xi1> to vector<5x128xi1>
    %205 = arith.select %204, %197, %153 : vector<5x128xi1>, vector<5x128xf32>
    %206 = vector.shape_cast %202 : vector<5x1xi1> to vector<5x1xi1>
    %207 = vector.broadcast %206 : vector<5x1xi1> to vector<5x128xi1>
    %208 = arith.select %207, %199, %156 : vector<5x128xi1>, vector<5x128xf32>
    %cst_75 = arith.constant 0.000000e+00 : f32
    %209 = vector.shape_cast %202 : vector<5x1xi1> to vector<5x1xi1>
    %210 = vector.broadcast %209 : vector<5x1xi1> to vector<5x128xi1>
    %211 = vector.broadcast %cst_75 : f32 to vector<5x128xf32>
    %212 = arith.select %210, %199, %211 : vector<5x128xi1>, vector<5x128xf32>
    %213 = vector.shape_cast %212 : vector<5x128xf32> to vector<5x1x128xf32>
    %c0_76 = arith.constant 0 : index
    %c3_77 = arith.constant 3 : index
    %c0_78 = arith.constant 0 : index
    %214 = vector.load %arg4[%c0_76, %c3_77, %c0_78] : memref<5x8x128xf32, #tpu.memory_space<vmem>>, vector<5x1x128xf32>
    tpu.vector_store %arg4[%c0_76, %c3_77, %c0_78], %213 {strides = array<i32>} : memref<5x8x128xf32, #tpu.memory_space<vmem>>, vector<5x1x128xf32>,
    %c4 = arith.constant 4 : index
    %c0_79 = arith.constant 0 : index
    %c0_80 = arith.constant 0 : index
    %215 = vector.load %arg1[%c4, %c0_79, %c0_80] : memref<8x5x512xf32, #tpu.memory_space<vmem>>, vector<1x5x512xf32>
    %216 = vector.shape_cast %215 : vector<1x5x512xf32> to vector<5x512xf32>
    %217 = arith.truncf %208 : vector<5x128xf32> to vector<5x128xbf16>
    %c0_81 = arith.constant 0 : index
    %c0_82 = arith.constant 0 : index
    %218 = vector.load %arg3[%c0_81, %c0_82] : memref<128x512xbf16, #tpu.memory_space<vmem>>, vector<128x512xbf16>
    %cst_83 = arith.constant dense<0.000000e+00> : vector<5x512xf32>
    %219 = tpu.matmul %217, %218, %cst_83 {dimension_numbers = #tpu.dot_dimension_numbers<[1], [0], [0], [1], [0, 0, 1, 1], [], []>} : vector<5x128xbf16>, vector<128x512xbf16>, vector<5x512xf32> -> vector<5x512xf32>
    %220 = arith.addf %216, %219 : vector<5x512xf32>
    %221 = vector.extract_strided_slice %220 {offsets = [0, 0], sizes = [5, 128], strides = [1, 1]} : vector<5x512xf32> to vector<5x128xf32>
    %cst_84 = arith.constant 5.000000e-01 : f32
    %222 = vector.broadcast %cst_84 : f32 to vector<5x128xf32>
    %223 = arith.mulf %222, %221 : vector<5x128xf32>
    %224 = math.tanh %223 : vector<5x128xf32>
    %cst_85 = arith.constant 1.000000e+00 : f32
    %225 = vector.broadcast %cst_85 : f32 to vector<5x128xf32>
    %226 = arith.addf %224, %225 : vector<5x128xf32>
    %cst_86 = arith.constant 5.000000e-01 : f32
    %227 = vector.broadcast %cst_86 : f32 to vector<5x128xf32>
    %228 = arith.mulf %227, %226 : vector<5x128xf32>
    %229 = vector.extract_strided_slice %220 {offsets = [0, 128], sizes = [5, 128], strides = [1, 1]} : vector<5x512xf32> to vector<5x128xf32>
    %cst_87 = arith.constant 5.000000e-01 : f32
    %230 = vector.broadcast %cst_87 : f32 to vector<5x128xf32>
    %231 = arith.mulf %230, %229 : vector<5x128xf32>
    %232 = math.tanh %231 : vector<5x128xf32>
    %cst_88 = arith.constant 1.000000e+00 : f32
    %233 = vector.broadcast %cst_88 : f32 to vector<5x128xf32>
    %234 = arith.addf %232, %233 : vector<5x128xf32>
    %cst_89 = arith.constant 5.000000e-01 : f32
    %235 = vector.broadcast %cst_89 : f32 to vector<5x128xf32>
    %236 = arith.mulf %235, %234 : vector<5x128xf32>
    %237 = vector.extract_strided_slice %220 {offsets = [0, 256], sizes = [5, 128], strides = [1, 1]} : vector<5x512xf32> to vector<5x128xf32>
    %238 = math.tanh %237 : vector<5x128xf32>
    %239 = vector.extract_strided_slice %220 {offsets = [0, 384], sizes = [5, 128], strides = [1, 1]} : vector<5x512xf32> to vector<5x128xf32>
    %cst_90 = arith.constant 5.000000e-01 : f32
    %240 = vector.broadcast %cst_90 : f32 to vector<5x128xf32>
    %241 = arith.mulf %240, %239 : vector<5x128xf32>
    %242 = math.tanh %241 : vector<5x128xf32>
    %cst_91 = arith.constant 1.000000e+00 : f32
    %243 = vector.broadcast %cst_91 : f32 to vector<5x128xf32>
    %244 = arith.addf %242, %243 : vector<5x128xf32>
    %cst_92 = arith.constant 5.000000e-01 : f32
    %245 = vector.broadcast %cst_92 : f32 to vector<5x128xf32>
    %246 = arith.mulf %245, %244 : vector<5x128xf32>
    %247 = arith.mulf %236, %205 : vector<5x128xf32>
    %248 = arith.mulf %228, %238 : vector<5x128xf32>
    %249 = arith.addf %247, %248 : vector<5x128xf32>
    %250 = math.tanh %249 : vector<5x128xf32>
    %251 = arith.mulf %246, %250 : vector<5x128xf32>
    %c4_i32 = arith.constant 4 : i32
    %252 = arith.addi %4, %c4_i32 : i32
    %253 = vector.broadcast %252 : i32 to vector<5x1xi32>
    %254 = arith.cmpi slt, %253, %3 : vector<5x1xi32>
    %255 = vector.shape_cast %254 : vector<5x1xi1> to vector<5x1xi1>
    %256 = vector.broadcast %255 : vector<5x1xi1> to vector<5x128xi1>
    %257 = arith.select %256, %249, %205 : vector<5x128xi1>, vector<5x128xf32>
    %258 = vector.shape_cast %254 : vector<5x1xi1> to vector<5x1xi1>
    %259 = vector.broadcast %258 : vector<5x1xi1> to vector<5x128xi1>
    %260 = arith.select %259, %251, %208 : vector<5x128xi1>, vector<5x128xf32>
    %cst_93 = arith.constant 0.000000e+00 : f32
    %261 = vector.shape_cast %254 : vector<5x1xi1> to vector<5x1xi1>
    %262 = vector.broadcast %261 : vector<5x1xi1> to vector<5x128xi1>
    %263 = vector.broadcast %cst_93 : f32 to vector<5x128xf32>
    %264 = arith.select %262, %251, %263 : vector<5x128xi1>, vector<5x128xf32>
    %265 = vector.shape_cast %264 : vector<5x128xf32> to vector<5x1x128xf32>
    %c0_94 = arith.constant 0 : index
    %c4_95 = arith.constant 4 : index
    %c0_96 = arith.constant 0 : index
    %266 = vector.load %arg4[%c0_94, %c4_95, %c0_96] : memref<5x8x128xf32, #tpu.memory_space<vmem>>, vector<5x1x128xf32>
    tpu.vector_store %arg4[%c0_94, %c4_95, %c0_96], %265 {strides = array<i32>} : memref<5x8x128xf32, #tpu.memory_space<vmem>>, vector<5x1x128xf32>,
    %c5 = arith.constant 5 : index
    %c0_97 = arith.constant 0 : index
    %c0_98 = arith.constant 0 : index
    %267 = vector.load %arg1[%c5, %c0_97, %c0_98] : memref<8x5x512xf32, #tpu.memory_space<vmem>>, vector<1x5x512xf32>
    %268 = vector.shape_cast %267 : vector<1x5x512xf32> to vector<5x512xf32>
    %269 = arith.truncf %260 : vector<5x128xf32> to vector<5x128xbf16>
    %c0_99 = arith.constant 0 : index
    %c0_100 = arith.constant 0 : index
    %270 = vector.load %arg3[%c0_99, %c0_100] : memref<128x512xbf16, #tpu.memory_space<vmem>>, vector<128x512xbf16>
    %cst_101 = arith.constant dense<0.000000e+00> : vector<5x512xf32>
    %271 = tpu.matmul %269, %270, %cst_101 {dimension_numbers = #tpu.dot_dimension_numbers<[1], [0], [0], [1], [0, 0, 1, 1], [], []>} : vector<5x128xbf16>, vector<128x512xbf16>, vector<5x512xf32> -> vector<5x512xf32>
    %272 = arith.addf %268, %271 : vector<5x512xf32>
    %273 = vector.extract_strided_slice %272 {offsets = [0, 0], sizes = [5, 128], strides = [1, 1]} : vector<5x512xf32> to vector<5x128xf32>
    %cst_102 = arith.constant 5.000000e-01 : f32
    %274 = vector.broadcast %cst_102 : f32 to vector<5x128xf32>
    %275 = arith.mulf %274, %273 : vector<5x128xf32>
    %276 = math.tanh %275 : vector<5x128xf32>
    %cst_103 = arith.constant 1.000000e+00 : f32
    %277 = vector.broadcast %cst_103 : f32 to vector<5x128xf32>
    %278 = arith.addf %276, %277 : vector<5x128xf32>
    %cst_104 = arith.constant 5.000000e-01 : f32
    %279 = vector.broadcast %cst_104 : f32 to vector<5x128xf32>
    %280 = arith.mulf %279, %278 : vector<5x128xf32>
    %281 = vector.extract_strided_slice %272 {offsets = [0, 128], sizes = [5, 128], strides = [1, 1]} : vector<5x512xf32> to vector<5x128xf32>
    %cst_105 = arith.constant 5.000000e-01 : f32
    %282 = vector.broadcast %cst_105 : f32 to vector<5x128xf32>
    %283 = arith.mulf %282, %281 : vector<5x128xf32>
    %284 = math.tanh %283 : vector<5x128xf32>
    %cst_106 = arith.constant 1.000000e+00 : f32
    %285 = vector.broadcast %cst_106 : f32 to vector<5x128xf32>
    %286 = arith.addf %284, %285 : vector<5x128xf32>
    %cst_107 = arith.constant 5.000000e-01 : f32
    %287 = vector.broadcast %cst_107 : f32 to vector<5x128xf32>
    %288 = arith.mulf %287, %286 : vector<5x128xf32>
    %289 = vector.extract_strided_slice %272 {offsets = [0, 256], sizes = [5, 128], strides = [1, 1]} : vector<5x512xf32> to vector<5x128xf32>
    %290 = math.tanh %289 : vector<5x128xf32>
    %291 = vector.extract_strided_slice %272 {offsets = [0, 384], sizes = [5, 128], strides = [1, 1]} : vector<5x512xf32> to vector<5x128xf32>
    %cst_108 = arith.constant 5.000000e-01 : f32
    %292 = vector.broadcast %cst_108 : f32 to vector<5x128xf32>
    %293 = arith.mulf %292, %291 : vector<5x128xf32>
    %294 = math.tanh %293 : vector<5x128xf32>
    %cst_109 = arith.constant 1.000000e+00 : f32
    %295 = vector.broadcast %cst_109 : f32 to vector<5x128xf32>
    %296 = arith.addf %294, %295 : vector<5x128xf32>
    %cst_110 = arith.constant 5.000000e-01 : f32
    %297 = vector.broadcast %cst_110 : f32 to vector<5x128xf32>
    %298 = arith.mulf %297, %296 : vector<5x128xf32>
    %299 = arith.mulf %288, %257 : vector<5x128xf32>
    %300 = arith.mulf %280, %290 : vector<5x128xf32>
    %301 = arith.addf %299, %300 : vector<5x128xf32>
    %302 = math.tanh %301 : vector<5x128xf32>
    %303 = arith.mulf %298, %302 : vector<5x128xf32>
    %c5_i32 = arith.constant 5 : i32
    %304 = arith.addi %4, %c5_i32 : i32
    %305 = vector.broadcast %304 : i32 to vector<5x1xi32>
    %306 = arith.cmpi slt, %305, %3 : vector<5x1xi32>
    %307 = vector.shape_cast %306 : vector<5x1xi1> to vector<5x1xi1>
    %308 = vector.broadcast %307 : vector<5x1xi1> to vector<5x128xi1>
    %309 = arith.select %308, %301, %257 : vector<5x128xi1>, vector<5x128xf32>
    %310 = vector.shape_cast %306 : vector<5x1xi1> to vector<5x1xi1>
    %311 = vector.broadcast %310 : vector<5x1xi1> to vector<5x128xi1>
    %312 = arith.select %311, %303, %260 : vector<5x128xi1>, vector<5x128xf32>
    %cst_111 = arith.constant 0.000000e+00 : f32
    %313 = vector.shape_cast %306 : vector<5x1xi1> to vector<5x1xi1>
    %314 = vector.broadcast %313 : vector<5x1xi1> to vector<5x128xi1>
    %315 = vector.broadcast %cst_111 : f32 to vector<5x128xf32>
    %316 = arith.select %314, %303, %315 : vector<5x128xi1>, vector<5x128xf32>
    %317 = vector.shape_cast %316 : vector<5x128xf32> to vector<5x1x128xf32>
    %c0_112 = arith.constant 0 : index
    %c5_113 = arith.constant 5 : index
    %c0_114 = arith.constant 0 : index
    %318 = vector.load %arg4[%c0_112, %c5_113, %c0_114] : memref<5x8x128xf32, #tpu.memory_space<vmem>>, vector<5x1x128xf32>
    tpu.vector_store %arg4[%c0_112, %c5_113, %c0_114], %317 {strides = array<i32>} : memref<5x8x128xf32, #tpu.memory_space<vmem>>, vector<5x1x128xf32>,
    %c6 = arith.constant 6 : index
    %c0_115 = arith.constant 0 : index
    %c0_116 = arith.constant 0 : index
    %319 = vector.load %arg1[%c6, %c0_115, %c0_116] : memref<8x5x512xf32, #tpu.memory_space<vmem>>, vector<1x5x512xf32>
    %320 = vector.shape_cast %319 : vector<1x5x512xf32> to vector<5x512xf32>
    %321 = arith.truncf %312 : vector<5x128xf32> to vector<5x128xbf16>
    %c0_117 = arith.constant 0 : index
    %c0_118 = arith.constant 0 : index
    %322 = vector.load %arg3[%c0_117, %c0_118] : memref<128x512xbf16, #tpu.memory_space<vmem>>, vector<128x512xbf16>
    %cst_119 = arith.constant dense<0.000000e+00> : vector<5x512xf32>
    %323 = tpu.matmul %321, %322, %cst_119 {dimension_numbers = #tpu.dot_dimension_numbers<[1], [0], [0], [1], [0, 0, 1, 1], [], []>} : vector<5x128xbf16>, vector<128x512xbf16>, vector<5x512xf32> -> vector<5x512xf32>
    %324 = arith.addf %320, %323 : vector<5x512xf32>
    %325 = vector.extract_strided_slice %324 {offsets = [0, 0], sizes = [5, 128], strides = [1, 1]} : vector<5x512xf32> to vector<5x128xf32>
    %cst_120 = arith.constant 5.000000e-01 : f32
    %326 = vector.broadcast %cst_120 : f32 to vector<5x128xf32>
    %327 = arith.mulf %326, %325 : vector<5x128xf32>
    %328 = math.tanh %327 : vector<5x128xf32>
    %cst_121 = arith.constant 1.000000e+00 : f32
    %329 = vector.broadcast %cst_121 : f32 to vector<5x128xf32>
    %330 = arith.addf %328, %329 : vector<5x128xf32>
    %cst_122 = arith.constant 5.000000e-01 : f32
    %331 = vector.broadcast %cst_122 : f32 to vector<5x128xf32>
    %332 = arith.mulf %331, %330 : vector<5x128xf32>
    %333 = vector.extract_strided_slice %324 {offsets = [0, 128], sizes = [5, 128], strides = [1, 1]} : vector<5x512xf32> to vector<5x128xf32>
    %cst_123 = arith.constant 5.000000e-01 : f32
    %334 = vector.broadcast %cst_123 : f32 to vector<5x128xf32>
    %335 = arith.mulf %334, %333 : vector<5x128xf32>
    %336 = math.tanh %335 : vector<5x128xf32>
    %cst_124 = arith.constant 1.000000e+00 : f32
    %337 = vector.broadcast %cst_124 : f32 to vector<5x128xf32>
    %338 = arith.addf %336, %337 : vector<5x128xf32>
    %cst_125 = arith.constant 5.000000e-01 : f32
    %339 = vector.broadcast %cst_125 : f32 to vector<5x128xf32>
    %340 = arith.mulf %339, %338 : vector<5x128xf32>
    %341 = vector.extract_strided_slice %324 {offsets = [0, 256], sizes = [5, 128], strides = [1, 1]} : vector<5x512xf32> to vector<5x128xf32>
    %342 = math.tanh %341 : vector<5x128xf32>
    %343 = vector.extract_strided_slice %324 {offsets = [0, 384], sizes = [5, 128], strides = [1, 1]} : vector<5x512xf32> to vector<5x128xf32>
    %cst_126 = arith.constant 5.000000e-01 : f32
    %344 = vector.broadcast %cst_126 : f32 to vector<5x128xf32>
    %345 = arith.mulf %344, %343 : vector<5x128xf32>
    %346 = math.tanh %345 : vector<5x128xf32>
    %cst_127 = arith.constant 1.000000e+00 : f32
    %347 = vector.broadcast %cst_127 : f32 to vector<5x128xf32>
    %348 = arith.addf %346, %347 : vector<5x128xf32>
    %cst_128 = arith.constant 5.000000e-01 : f32
    %349 = vector.broadcast %cst_128 : f32 to vector<5x128xf32>
    %350 = arith.mulf %349, %348 : vector<5x128xf32>
    %351 = arith.mulf %340, %309 : vector<5x128xf32>
    %352 = arith.mulf %332, %342 : vector<5x128xf32>
    %353 = arith.addf %351, %352 : vector<5x128xf32>
    %354 = math.tanh %353 : vector<5x128xf32>
    %355 = arith.mulf %350, %354 : vector<5x128xf32>
    %c6_i32 = arith.constant 6 : i32
    %356 = arith.addi %4, %c6_i32 : i32
    %357 = vector.broadcast %356 : i32 to vector<5x1xi32>
    %358 = arith.cmpi slt, %357, %3 : vector<5x1xi32>
    %359 = vector.shape_cast %358 : vector<5x1xi1> to vector<5x1xi1>
    %360 = vector.broadcast %359 : vector<5x1xi1> to vector<5x128xi1>
    %361 = arith.select %360, %353, %309 : vector<5x128xi1>, vector<5x128xf32>
    %362 = vector.shape_cast %358 : vector<5x1xi1> to vector<5x1xi1>
    %363 = vector.broadcast %362 : vector<5x1xi1> to vector<5x128xi1>
    %364 = arith.select %363, %355, %312 : vector<5x128xi1>, vector<5x128xf32>
    %cst_129 = arith.constant 0.000000e+00 : f32
    %365 = vector.shape_cast %358 : vector<5x1xi1> to vector<5x1xi1>
    %366 = vector.broadcast %365 : vector<5x1xi1> to vector<5x128xi1>
    %367 = vector.broadcast %cst_129 : f32 to vector<5x128xf32>
    %368 = arith.select %366, %355, %367 : vector<5x128xi1>, vector<5x128xf32>
    %369 = vector.shape_cast %368 : vector<5x128xf32> to vector<5x1x128xf32>
    %c0_130 = arith.constant 0 : index
    %c6_131 = arith.constant 6 : index
    %c0_132 = arith.constant 0 : index
    %370 = vector.load %arg4[%c0_130, %c6_131, %c0_132] : memref<5x8x128xf32, #tpu.memory_space<vmem>>, vector<5x1x128xf32>
    tpu.vector_store %arg4[%c0_130, %c6_131, %c0_132], %369 {strides = array<i32>} : memref<5x8x128xf32, #tpu.memory_space<vmem>>, vector<5x1x128xf32>,
    %c7 = arith.constant 7 : index
    %c0_133 = arith.constant 0 : index
    %c0_134 = arith.constant 0 : index
    %371 = vector.load %arg1[%c7, %c0_133, %c0_134] : memref<8x5x512xf32, #tpu.memory_space<vmem>>, vector<1x5x512xf32>
    %372 = vector.shape_cast %371 : vector<1x5x512xf32> to vector<5x512xf32>
    %373 = arith.truncf %364 : vector<5x128xf32> to vector<5x128xbf16>
    %c0_135 = arith.constant 0 : index
    %c0_136 = arith.constant 0 : index
    %374 = vector.load %arg3[%c0_135, %c0_136] : memref<128x512xbf16, #tpu.memory_space<vmem>>, vector<128x512xbf16>
    %cst_137 = arith.constant dense<0.000000e+00> : vector<5x512xf32>
    %375 = tpu.matmul %373, %374, %cst_137 {dimension_numbers = #tpu.dot_dimension_numbers<[1], [0], [0], [1], [0, 0, 1, 1], [], []>} : vector<5x128xbf16>, vector<128x512xbf16>, vector<5x512xf32> -> vector<5x512xf32>
    %376 = arith.addf %372, %375 : vector<5x512xf32>
    %377 = vector.extract_strided_slice %376 {offsets = [0, 0], sizes = [5, 128], strides = [1, 1]} : vector<5x512xf32> to vector<5x128xf32>
    %cst_138 = arith.constant 5.000000e-01 : f32
    %378 = vector.broadcast %cst_138 : f32 to vector<5x128xf32>
    %379 = arith.mulf %378, %377 : vector<5x128xf32>
    %380 = math.tanh %379 : vector<5x128xf32>
    %cst_139 = arith.constant 1.000000e+00 : f32
    %381 = vector.broadcast %cst_139 : f32 to vector<5x128xf32>
    %382 = arith.addf %380, %381 : vector<5x128xf32>
    %cst_140 = arith.constant 5.000000e-01 : f32
    %383 = vector.broadcast %cst_140 : f32 to vector<5x128xf32>
    %384 = arith.mulf %383, %382 : vector<5x128xf32>
    %385 = vector.extract_strided_slice %376 {offsets = [0, 128], sizes = [5, 128], strides = [1, 1]} : vector<5x512xf32> to vector<5x128xf32>
    %cst_141 = arith.constant 5.000000e-01 : f32
    %386 = vector.broadcast %cst_141 : f32 to vector<5x128xf32>
    %387 = arith.mulf %386, %385 : vector<5x128xf32>
    %388 = math.tanh %387 : vector<5x128xf32>
    %cst_142 = arith.constant 1.000000e+00 : f32
    %389 = vector.broadcast %cst_142 : f32 to vector<5x128xf32>
    %390 = arith.addf %388, %389 : vector<5x128xf32>
    %cst_143 = arith.constant 5.000000e-01 : f32
    %391 = vector.broadcast %cst_143 : f32 to vector<5x128xf32>
    %392 = arith.mulf %391, %390 : vector<5x128xf32>
    %393 = vector.extract_strided_slice %376 {offsets = [0, 256], sizes = [5, 128], strides = [1, 1]} : vector<5x512xf32> to vector<5x128xf32>
    %394 = math.tanh %393 : vector<5x128xf32>
    %395 = vector.extract_strided_slice %376 {offsets = [0, 384], sizes = [5, 128], strides = [1, 1]} : vector<5x512xf32> to vector<5x128xf32>
    %cst_144 = arith.constant 5.000000e-01 : f32
    %396 = vector.broadcast %cst_144 : f32 to vector<5x128xf32>
    %397 = arith.mulf %396, %395 : vector<5x128xf32>
    %398 = math.tanh %397 : vector<5x128xf32>
    %cst_145 = arith.constant 1.000000e+00 : f32
    %399 = vector.broadcast %cst_145 : f32 to vector<5x128xf32>
    %400 = arith.addf %398, %399 : vector<5x128xf32>
    %cst_146 = arith.constant 5.000000e-01 : f32
    %401 = vector.broadcast %cst_146 : f32 to vector<5x128xf32>
    %402 = arith.mulf %401, %400 : vector<5x128xf32>
    %403 = arith.mulf %392, %361 : vector<5x128xf32>
    %404 = arith.mulf %384, %394 : vector<5x128xf32>
    %405 = arith.addf %403, %404 : vector<5x128xf32>
    %406 = math.tanh %405 : vector<5x128xf32>
    %407 = arith.mulf %402, %406 : vector<5x128xf32>
    %c7_i32 = arith.constant 7 : i32
    %408 = arith.addi %4, %c7_i32 : i32
    %409 = vector.broadcast %408 : i32 to vector<5x1xi32>
    %410 = arith.cmpi slt, %409, %3 : vector<5x1xi32>
    %411 = vector.shape_cast %410 : vector<5x1xi1> to vector<5x1xi1>
    %412 = vector.broadcast %411 : vector<5x1xi1> to vector<5x128xi1>
    %413 = arith.select %412, %405, %361 : vector<5x128xi1>, vector<5x128xf32>
    %414 = vector.shape_cast %410 : vector<5x1xi1> to vector<5x1xi1>
    %415 = vector.broadcast %414 : vector<5x1xi1> to vector<5x128xi1>
    %416 = arith.select %415, %407, %364 : vector<5x128xi1>, vector<5x128xf32>
    %cst_147 = arith.constant 0.000000e+00 : f32
    %417 = vector.shape_cast %410 : vector<5x1xi1> to vector<5x1xi1>
    %418 = vector.broadcast %417 : vector<5x1xi1> to vector<5x128xi1>
    %419 = vector.broadcast %cst_147 : f32 to vector<5x128xf32>
    %420 = arith.select %418, %407, %419 : vector<5x128xi1>, vector<5x128xf32>
    %421 = vector.shape_cast %420 : vector<5x128xf32> to vector<5x1x128xf32>
    %c0_148 = arith.constant 0 : index
    %c7_149 = arith.constant 7 : index
    %c0_150 = arith.constant 0 : index
    %422 = vector.load %arg4[%c0_148, %c7_149, %c0_150] : memref<5x8x128xf32, #tpu.memory_space<vmem>>, vector<5x1x128xf32>
    tpu.vector_store %arg4[%c0_148, %c7_149, %c0_150], %421 {strides = array<i32>} : memref<5x8x128xf32, #tpu.memory_space<vmem>>, vector<5x1x128xf32>,
    %c0_151 = arith.constant 0 : index
    %c0_152 = arith.constant 0 : index
    %423 = vector.load %arg5[%c0_151, %c0_152] : memref<5x128xf32, #tpu.memory_space<vmem>>, vector<5x128xf32>
    tpu.vector_store %arg5[%c0_151, %c0_152], %416 {strides = array<i32>} : memref<5x128xf32, #tpu.memory_space<vmem>>, vector<5x128xf32>,
    %c0_153 = arith.constant 0 : index
    %c0_154 = arith.constant 0 : index
    %424 = vector.load %arg6[%c0_153, %c0_154] : memref<5x128xf32, #tpu.memory_space<vmem>>, vector<5x128xf32>
    tpu.vector_store %arg6[%c0_153, %c0_154], %413 {strides = array<i32>} : memref<5x128xf32, #tpu.memory_space<vmem>>, vector<5x128xf32>,
    return
  }
  func.func @transform_0(%arg0: i32) -> (i32, i32, i32) {
    %c0_i32 = arith.constant 0 : i32
    %c0_i32_0 = arith.constant 0 : i32
    %c0_i32_1 = arith.constant 0 : i32
    return %arg0, %c0_i32, %c0_i32_0 : i32, i32, i32
  }
  func.func @transform_1(%arg0: i32) -> (i32, i32) {
    %c0_i32 = arith.constant 0 : i32
    %c0_i32_0 = arith.constant 0 : i32
    %c0_i32_1 = arith.constant 0 : i32
    return %c0_i32, %c0_i32_0 : i32, i32
  }
  func.func @transform_2(%arg0: i32) -> (i32, i32) {
    %c0_i32 = arith.constant 0 : i32
    %c0_i32_0 = arith.constant 0 : i32
    %c0_i32_1 = arith.constant 0 : i32
    return %c0_i32, %c0_i32_0 : i32, i32
  }
  func.func @transform_3(%arg0: i32) -> (i32, i32, i32) {
    %c0_i32 = arith.constant 0 : i32
    %c0_i32_0 = arith.constant 0 : i32
    %c0_i32_1 = arith.constant 0 : i32
    return %c0_i32, %arg0, %c0_i32_0 : i32, i32, i32
  }
}

module attributes {stable_mosaic.version = 11 : i64} {
  func.func @_lstm_chunk_kernel(%arg0: i32, %arg1: memref<8x2x512xf32, #tpu.memory_space<vmem>>, %arg2: memref<2x1xi32, #tpu.memory_space<vmem>>, %arg3: memref<128x512xbf16, #tpu.memory_space<vmem>>, %arg4: memref<2x8x128xf32, #tpu.memory_space<vmem>>, %arg5: memref<2x128xf32, #tpu.memory_space<vmem>>, %arg6: memref<2x128xf32, #tpu.memory_space<vmem>>) attributes {dimension_semantics = [#tpu.dimension_semantics<arbitrary>], iteration_bounds = array<i64: 1>, scalar_prefetch = 0 : i64, scratch_operands = 2 : i64, tpu.core_type = #tpu.core_type<tc>, window_params = [{transform_indices = @transform_0, window_bounds = array<i64: 8, 2, 512>}, {pipeline_mode = #tpu.pipeline_mode<synchronous>, transform_indices = @transform_1, window_bounds = array<i64: 2, 1>}, {pipeline_mode = #tpu.pipeline_mode<synchronous>, transform_indices = @transform_2, window_bounds = array<i64: 128, 512>}, {transform_indices = @transform_3, window_bounds = array<i64: 2, 8, 128>}]} {
    %c0_i32 = arith.constant 0 : i32
    %0 = arith.cmpi eq, %arg0, %c0_i32 : i32
    %1 = arith.extui %0 : i1 to i32
    %c0_i32_0 = arith.constant 0 : i32
    %2 = arith.cmpi ne, %1, %c0_i32_0 : i32
    scf.if %2 {
      %cst_155 = arith.constant 0.000000e+00 : f32
      %425 = vector.broadcast %cst_155 : f32 to vector<2x128xf32>
      %c0_156 = arith.constant 0 : index
      %c0_157 = arith.constant 0 : index
      %426 = vector.load %arg5[%c0_156, %c0_157] : memref<2x128xf32, #tpu.memory_space<vmem>>, vector<2x128xf32>
      tpu.vector_store %arg5[%c0_156, %c0_157], %425 {strides = array<i32>} : memref<2x128xf32, #tpu.memory_space<vmem>>, vector<2x128xf32>,
      %cst_158 = arith.constant 0.000000e+00 : f32
      %427 = vector.broadcast %cst_158 : f32 to vector<2x128xf32>
      %c0_159 = arith.constant 0 : index
      %c0_160 = arith.constant 0 : index
      %428 = vector.load %arg6[%c0_159, %c0_160] : memref<2x128xf32, #tpu.memory_space<vmem>>, vector<2x128xf32>
      tpu.vector_store %arg6[%c0_159, %c0_160], %427 {strides = array<i32>} : memref<2x128xf32, #tpu.memory_space<vmem>>, vector<2x128xf32>,
    } else {
    }
    %c0 = arith.constant 0 : index
    %c0_1 = arith.constant 0 : index
    %3 = vector.load %arg2[%c0, %c0_1] : memref<2x1xi32, #tpu.memory_space<vmem>>, vector<2x1xi32>
    %c8_i32 = arith.constant 8 : i32
    %4 = arith.muli %arg0, %c8_i32 : i32
    %c0_2 = arith.constant 0 : index
    %c0_3 = arith.constant 0 : index
    %5 = vector.load %arg5[%c0_2, %c0_3] : memref<2x128xf32, #tpu.memory_space<vmem>>, vector<2x128xf32>
    %c0_4 = arith.constant 0 : index
    %c0_5 = arith.constant 0 : index
    %6 = vector.load %arg6[%c0_4, %c0_5] : memref<2x128xf32, #tpu.memory_space<vmem>>, vector<2x128xf32>
    %c0_6 = arith.constant 0 : index
    %c0_7 = arith.constant 0 : index
    %c0_8 = arith.constant 0 : index
    %7 = vector.load %arg1[%c0_6, %c0_7, %c0_8] : memref<8x2x512xf32, #tpu.memory_space<vmem>>, vector<1x2x512xf32>
    %8 = vector.shape_cast %7 : vector<1x2x512xf32> to vector<2x512xf32>
    %9 = arith.truncf %5 : vector<2x128xf32> to vector<2x128xbf16>
    %c0_9 = arith.constant 0 : index
    %c0_10 = arith.constant 0 : index
    %10 = vector.load %arg3[%c0_9, %c0_10] : memref<128x512xbf16, #tpu.memory_space<vmem>>, vector<128x512xbf16>
    %cst = arith.constant dense<0.000000e+00> : vector<2x512xf32>
    %11 = tpu.matmul %9, %10, %cst {dimension_numbers = #tpu.dot_dimension_numbers<[1], [0], [0], [1], [0, 0, 1, 1], [], []>} : vector<2x128xbf16>, vector<128x512xbf16>, vector<2x512xf32> -> vector<2x512xf32>
    %12 = arith.addf %8, %11 : vector<2x512xf32>
    %13 = vector.extract_strided_slice %12 {offsets = [0, 0], sizes = [2, 128], strides = [1, 1]} : vector<2x512xf32> to vector<2x128xf32>
    %cst_11 = arith.constant 5.000000e-01 : f32
    %14 = vector.broadcast %cst_11 : f32 to vector<2x128xf32>
    %15 = arith.mulf %14, %13 : vector<2x128xf32>
    %16 = math.tanh %15 : vector<2x128xf32>
    %cst_12 = arith.constant 1.000000e+00 : f32
    %17 = vector.broadcast %cst_12 : f32 to vector<2x128xf32>
    %18 = arith.addf %16, %17 : vector<2x128xf32>
    %cst_13 = arith.constant 5.000000e-01 : f32
    %19 = vector.broadcast %cst_13 : f32 to vector<2x128xf32>
    %20 = arith.mulf %19, %18 : vector<2x128xf32>
    %21 = vector.extract_strided_slice %12 {offsets = [0, 128], sizes = [2, 128], strides = [1, 1]} : vector<2x512xf32> to vector<2x128xf32>
    %cst_14 = arith.constant 5.000000e-01 : f32
    %22 = vector.broadcast %cst_14 : f32 to vector<2x128xf32>
    %23 = arith.mulf %22, %21 : vector<2x128xf32>
    %24 = math.tanh %23 : vector<2x128xf32>
    %cst_15 = arith.constant 1.000000e+00 : f32
    %25 = vector.broadcast %cst_15 : f32 to vector<2x128xf32>
    %26 = arith.addf %24, %25 : vector<2x128xf32>
    %cst_16 = arith.constant 5.000000e-01 : f32
    %27 = vector.broadcast %cst_16 : f32 to vector<2x128xf32>
    %28 = arith.mulf %27, %26 : vector<2x128xf32>
    %29 = vector.extract_strided_slice %12 {offsets = [0, 256], sizes = [2, 128], strides = [1, 1]} : vector<2x512xf32> to vector<2x128xf32>
    %30 = math.tanh %29 : vector<2x128xf32>
    %31 = vector.extract_strided_slice %12 {offsets = [0, 384], sizes = [2, 128], strides = [1, 1]} : vector<2x512xf32> to vector<2x128xf32>
    %cst_17 = arith.constant 5.000000e-01 : f32
    %32 = vector.broadcast %cst_17 : f32 to vector<2x128xf32>
    %33 = arith.mulf %32, %31 : vector<2x128xf32>
    %34 = math.tanh %33 : vector<2x128xf32>
    %cst_18 = arith.constant 1.000000e+00 : f32
    %35 = vector.broadcast %cst_18 : f32 to vector<2x128xf32>
    %36 = arith.addf %34, %35 : vector<2x128xf32>
    %cst_19 = arith.constant 5.000000e-01 : f32
    %37 = vector.broadcast %cst_19 : f32 to vector<2x128xf32>
    %38 = arith.mulf %37, %36 : vector<2x128xf32>
    %39 = arith.mulf %28, %6 : vector<2x128xf32>
    %40 = arith.mulf %20, %30 : vector<2x128xf32>
    %41 = arith.addf %39, %40 : vector<2x128xf32>
    %42 = math.tanh %41 : vector<2x128xf32>
    %43 = arith.mulf %38, %42 : vector<2x128xf32>
    %c0_i32_20 = arith.constant 0 : i32
    %44 = arith.addi %4, %c0_i32_20 : i32
    %45 = vector.broadcast %44 : i32 to vector<2x1xi32>
    %46 = arith.cmpi slt, %45, %3 : vector<2x1xi32>
    %47 = vector.shape_cast %46 : vector<2x1xi1> to vector<2x1xi1>
    %48 = vector.broadcast %47 : vector<2x1xi1> to vector<2x128xi1>
    %49 = arith.select %48, %41, %6 : vector<2x128xi1>, vector<2x128xf32>
    %50 = vector.shape_cast %46 : vector<2x1xi1> to vector<2x1xi1>
    %51 = vector.broadcast %50 : vector<2x1xi1> to vector<2x128xi1>
    %52 = arith.select %51, %43, %5 : vector<2x128xi1>, vector<2x128xf32>
    %cst_21 = arith.constant 0.000000e+00 : f32
    %53 = vector.shape_cast %46 : vector<2x1xi1> to vector<2x1xi1>
    %54 = vector.broadcast %53 : vector<2x1xi1> to vector<2x128xi1>
    %55 = vector.broadcast %cst_21 : f32 to vector<2x128xf32>
    %56 = arith.select %54, %43, %55 : vector<2x128xi1>, vector<2x128xf32>
    %57 = vector.shape_cast %56 : vector<2x128xf32> to vector<2x1x128xf32>
    %c0_22 = arith.constant 0 : index
    %c0_23 = arith.constant 0 : index
    %c0_24 = arith.constant 0 : index
    %58 = vector.load %arg4[%c0_22, %c0_23, %c0_24] : memref<2x8x128xf32, #tpu.memory_space<vmem>>, vector<2x1x128xf32>
    tpu.vector_store %arg4[%c0_22, %c0_23, %c0_24], %57 {strides = array<i32>} : memref<2x8x128xf32, #tpu.memory_space<vmem>>, vector<2x1x128xf32>,
    %c1 = arith.constant 1 : index
    %c0_25 = arith.constant 0 : index
    %c0_26 = arith.constant 0 : index
    %59 = vector.load %arg1[%c1, %c0_25, %c0_26] : memref<8x2x512xf32, #tpu.memory_space<vmem>>, vector<1x2x512xf32>
    %60 = vector.shape_cast %59 : vector<1x2x512xf32> to vector<2x512xf32>
    %61 = arith.truncf %52 : vector<2x128xf32> to vector<2x128xbf16>
    %c0_27 = arith.constant 0 : index
    %c0_28 = arith.constant 0 : index
    %62 = vector.load %arg3[%c0_27, %c0_28] : memref<128x512xbf16, #tpu.memory_space<vmem>>, vector<128x512xbf16>
    %cst_29 = arith.constant dense<0.000000e+00> : vector<2x512xf32>
    %63 = tpu.matmul %61, %62, %cst_29 {dimension_numbers = #tpu.dot_dimension_numbers<[1], [0], [0], [1], [0, 0, 1, 1], [], []>} : vector<2x128xbf16>, vector<128x512xbf16>, vector<2x512xf32> -> vector<2x512xf32>
    %64 = arith.addf %60, %63 : vector<2x512xf32>
    %65 = vector.extract_strided_slice %64 {offsets = [0, 0], sizes = [2, 128], strides = [1, 1]} : vector<2x512xf32> to vector<2x128xf32>
    %cst_30 = arith.constant 5.000000e-01 : f32
    %66 = vector.broadcast %cst_30 : f32 to vector<2x128xf32>
    %67 = arith.mulf %66, %65 : vector<2x128xf32>
    %68 = math.tanh %67 : vector<2x128xf32>
    %cst_31 = arith.constant 1.000000e+00 : f32
    %69 = vector.broadcast %cst_31 : f32 to vector<2x128xf32>
    %70 = arith.addf %68, %69 : vector<2x128xf32>
    %cst_32 = arith.constant 5.000000e-01 : f32
    %71 = vector.broadcast %cst_32 : f32 to vector<2x128xf32>
    %72 = arith.mulf %71, %70 : vector<2x128xf32>
    %73 = vector.extract_strided_slice %64 {offsets = [0, 128], sizes = [2, 128], strides = [1, 1]} : vector<2x512xf32> to vector<2x128xf32>
    %cst_33 = arith.constant 5.000000e-01 : f32
    %74 = vector.broadcast %cst_33 : f32 to vector<2x128xf32>
    %75 = arith.mulf %74, %73 : vector<2x128xf32>
    %76 = math.tanh %75 : vector<2x128xf32>
    %cst_34 = arith.constant 1.000000e+00 : f32
    %77 = vector.broadcast %cst_34 : f32 to vector<2x128xf32>
    %78 = arith.addf %76, %77 : vector<2x128xf32>
    %cst_35 = arith.constant 5.000000e-01 : f32
    %79 = vector.broadcast %cst_35 : f32 to vector<2x128xf32>
    %80 = arith.mulf %79, %78 : vector<2x128xf32>
    %81 = vector.extract_strided_slice %64 {offsets = [0, 256], sizes = [2, 128], strides = [1, 1]} : vector<2x512xf32> to vector<2x128xf32>
    %82 = math.tanh %81 : vector<2x128xf32>
    %83 = vector.extract_strided_slice %64 {offsets = [0, 384], sizes = [2, 128], strides = [1, 1]} : vector<2x512xf32> to vector<2x128xf32>
    %cst_36 = arith.constant 5.000000e-01 : f32
    %84 = vector.broadcast %cst_36 : f32 to vector<2x128xf32>
    %85 = arith.mulf %84, %83 : vector<2x128xf32>
    %86 = math.tanh %85 : vector<2x128xf32>
    %cst_37 = arith.constant 1.000000e+00 : f32
    %87 = vector.broadcast %cst_37 : f32 to vector<2x128xf32>
    %88 = arith.addf %86, %87 : vector<2x128xf32>
    %cst_38 = arith.constant 5.000000e-01 : f32
    %89 = vector.broadcast %cst_38 : f32 to vector<2x128xf32>
    %90 = arith.mulf %89, %88 : vector<2x128xf32>
    %91 = arith.mulf %80, %49 : vector<2x128xf32>
    %92 = arith.mulf %72, %82 : vector<2x128xf32>
    %93 = arith.addf %91, %92 : vector<2x128xf32>
    %94 = math.tanh %93 : vector<2x128xf32>
    %95 = arith.mulf %90, %94 : vector<2x128xf32>
    %c1_i32 = arith.constant 1 : i32
    %96 = arith.addi %4, %c1_i32 : i32
    %97 = vector.broadcast %96 : i32 to vector<2x1xi32>
    %98 = arith.cmpi slt, %97, %3 : vector<2x1xi32>
    %99 = vector.shape_cast %98 : vector<2x1xi1> to vector<2x1xi1>
    %100 = vector.broadcast %99 : vector<2x1xi1> to vector<2x128xi1>
    %101 = arith.select %100, %93, %49 : vector<2x128xi1>, vector<2x128xf32>
    %102 = vector.shape_cast %98 : vector<2x1xi1> to vector<2x1xi1>
    %103 = vector.broadcast %102 : vector<2x1xi1> to vector<2x128xi1>
    %104 = arith.select %103, %95, %52 : vector<2x128xi1>, vector<2x128xf32>
    %cst_39 = arith.constant 0.000000e+00 : f32
    %105 = vector.shape_cast %98 : vector<2x1xi1> to vector<2x1xi1>
    %106 = vector.broadcast %105 : vector<2x1xi1> to vector<2x128xi1>
    %107 = vector.broadcast %cst_39 : f32 to vector<2x128xf32>
    %108 = arith.select %106, %95, %107 : vector<2x128xi1>, vector<2x128xf32>
    %109 = vector.shape_cast %108 : vector<2x128xf32> to vector<2x1x128xf32>
    %c0_40 = arith.constant 0 : index
    %c1_41 = arith.constant 1 : index
    %c0_42 = arith.constant 0 : index
    %110 = vector.load %arg4[%c0_40, %c1_41, %c0_42] : memref<2x8x128xf32, #tpu.memory_space<vmem>>, vector<2x1x128xf32>
    tpu.vector_store %arg4[%c0_40, %c1_41, %c0_42], %109 {strides = array<i32>} : memref<2x8x128xf32, #tpu.memory_space<vmem>>, vector<2x1x128xf32>,
    %c2 = arith.constant 2 : index
    %c0_43 = arith.constant 0 : index
    %c0_44 = arith.constant 0 : index
    %111 = vector.load %arg1[%c2, %c0_43, %c0_44] : memref<8x2x512xf32, #tpu.memory_space<vmem>>, vector<1x2x512xf32>
    %112 = vector.shape_cast %111 : vector<1x2x512xf32> to vector<2x512xf32>
    %113 = arith.truncf %104 : vector<2x128xf32> to vector<2x128xbf16>
    %c0_45 = arith.constant 0 : index
    %c0_46 = arith.constant 0 : index
    %114 = vector.load %arg3[%c0_45, %c0_46] : memref<128x512xbf16, #tpu.memory_space<vmem>>, vector<128x512xbf16>
    %cst_47 = arith.constant dense<0.000000e+00> : vector<2x512xf32>
    %115 = tpu.matmul %113, %114, %cst_47 {dimension_numbers = #tpu.dot_dimension_numbers<[1], [0], [0], [1], [0, 0, 1, 1], [], []>} : vector<2x128xbf16>, vector<128x512xbf16>, vector<2x512xf32> -> vector<2x512xf32>
    %116 = arith.addf %112, %115 : vector<2x512xf32>
    %117 = vector.extract_strided_slice %116 {offsets = [0, 0], sizes = [2, 128], strides = [1, 1]} : vector<2x512xf32> to vector<2x128xf32>
    %cst_48 = arith.constant 5.000000e-01 : f32
    %118 = vector.broadcast %cst_48 : f32 to vector<2x128xf32>
    %119 = arith.mulf %118, %117 : vector<2x128xf32>
    %120 = math.tanh %119 : vector<2x128xf32>
    %cst_49 = arith.constant 1.000000e+00 : f32
    %121 = vector.broadcast %cst_49 : f32 to vector<2x128xf32>
    %122 = arith.addf %120, %121 : vector<2x128xf32>
    %cst_50 = arith.constant 5.000000e-01 : f32
    %123 = vector.broadcast %cst_50 : f32 to vector<2x128xf32>
    %124 = arith.mulf %123, %122 : vector<2x128xf32>
    %125 = vector.extract_strided_slice %116 {offsets = [0, 128], sizes = [2, 128], strides = [1, 1]} : vector<2x512xf32> to vector<2x128xf32>
    %cst_51 = arith.constant 5.000000e-01 : f32
    %126 = vector.broadcast %cst_51 : f32 to vector<2x128xf32>
    %127 = arith.mulf %126, %125 : vector<2x128xf32>
    %128 = math.tanh %127 : vector<2x128xf32>
    %cst_52 = arith.constant 1.000000e+00 : f32
    %129 = vector.broadcast %cst_52 : f32 to vector<2x128xf32>
    %130 = arith.addf %128, %129 : vector<2x128xf32>
    %cst_53 = arith.constant 5.000000e-01 : f32
    %131 = vector.broadcast %cst_53 : f32 to vector<2x128xf32>
    %132 = arith.mulf %131, %130 : vector<2x128xf32>
    %133 = vector.extract_strided_slice %116 {offsets = [0, 256], sizes = [2, 128], strides = [1, 1]} : vector<2x512xf32> to vector<2x128xf32>
    %134 = math.tanh %133 : vector<2x128xf32>
    %135 = vector.extract_strided_slice %116 {offsets = [0, 384], sizes = [2, 128], strides = [1, 1]} : vector<2x512xf32> to vector<2x128xf32>
    %cst_54 = arith.constant 5.000000e-01 : f32
    %136 = vector.broadcast %cst_54 : f32 to vector<2x128xf32>
    %137 = arith.mulf %136, %135 : vector<2x128xf32>
    %138 = math.tanh %137 : vector<2x128xf32>
    %cst_55 = arith.constant 1.000000e+00 : f32
    %139 = vector.broadcast %cst_55 : f32 to vector<2x128xf32>
    %140 = arith.addf %138, %139 : vector<2x128xf32>
    %cst_56 = arith.constant 5.000000e-01 : f32
    %141 = vector.broadcast %cst_56 : f32 to vector<2x128xf32>
    %142 = arith.mulf %141, %140 : vector<2x128xf32>
    %143 = arith.mulf %132, %101 : vector<2x128xf32>
    %144 = arith.mulf %124, %134 : vector<2x128xf32>
    %145 = arith.addf %143, %144 : vector<2x128xf32>
    %146 = math.tanh %145 : vector<2x128xf32>
    %147 = arith.mulf %142, %146 : vector<2x128xf32>
    %c2_i32 = arith.constant 2 : i32
    %148 = arith.addi %4, %c2_i32 : i32
    %149 = vector.broadcast %148 : i32 to vector<2x1xi32>
    %150 = arith.cmpi slt, %149, %3 : vector<2x1xi32>
    %151 = vector.shape_cast %150 : vector<2x1xi1> to vector<2x1xi1>
    %152 = vector.broadcast %151 : vector<2x1xi1> to vector<2x128xi1>
    %153 = arith.select %152, %145, %101 : vector<2x128xi1>, vector<2x128xf32>
    %154 = vector.shape_cast %150 : vector<2x1xi1> to vector<2x1xi1>
    %155 = vector.broadcast %154 : vector<2x1xi1> to vector<2x128xi1>
    %156 = arith.select %155, %147, %104 : vector<2x128xi1>, vector<2x128xf32>
    %cst_57 = arith.constant 0.000000e+00 : f32
    %157 = vector.shape_cast %150 : vector<2x1xi1> to vector<2x1xi1>
    %158 = vector.broadcast %157 : vector<2x1xi1> to vector<2x128xi1>
    %159 = vector.broadcast %cst_57 : f32 to vector<2x128xf32>
    %160 = arith.select %158, %147, %159 : vector<2x128xi1>, vector<2x128xf32>
    %161 = vector.shape_cast %160 : vector<2x128xf32> to vector<2x1x128xf32>
    %c0_58 = arith.constant 0 : index
    %c2_59 = arith.constant 2 : index
    %c0_60 = arith.constant 0 : index
    %162 = vector.load %arg4[%c0_58, %c2_59, %c0_60] : memref<2x8x128xf32, #tpu.memory_space<vmem>>, vector<2x1x128xf32>
    tpu.vector_store %arg4[%c0_58, %c2_59, %c0_60], %161 {strides = array<i32>} : memref<2x8x128xf32, #tpu.memory_space<vmem>>, vector<2x1x128xf32>,
    %c3 = arith.constant 3 : index
    %c0_61 = arith.constant 0 : index
    %c0_62 = arith.constant 0 : index
    %163 = vector.load %arg1[%c3, %c0_61, %c0_62] : memref<8x2x512xf32, #tpu.memory_space<vmem>>, vector<1x2x512xf32>
    %164 = vector.shape_cast %163 : vector<1x2x512xf32> to vector<2x512xf32>
    %165 = arith.truncf %156 : vector<2x128xf32> to vector<2x128xbf16>
    %c0_63 = arith.constant 0 : index
    %c0_64 = arith.constant 0 : index
    %166 = vector.load %arg3[%c0_63, %c0_64] : memref<128x512xbf16, #tpu.memory_space<vmem>>, vector<128x512xbf16>
    %cst_65 = arith.constant dense<0.000000e+00> : vector<2x512xf32>
    %167 = tpu.matmul %165, %166, %cst_65 {dimension_numbers = #tpu.dot_dimension_numbers<[1], [0], [0], [1], [0, 0, 1, 1], [], []>} : vector<2x128xbf16>, vector<128x512xbf16>, vector<2x512xf32> -> vector<2x512xf32>
    %168 = arith.addf %164, %167 : vector<2x512xf32>
    %169 = vector.extract_strided_slice %168 {offsets = [0, 0], sizes = [2, 128], strides = [1, 1]} : vector<2x512xf32> to vector<2x128xf32>
    %cst_66 = arith.constant 5.000000e-01 : f32
    %170 = vector.broadcast %cst_66 : f32 to vector<2x128xf32>
    %171 = arith.mulf %170, %169 : vector<2x128xf32>
    %172 = math.tanh %171 : vector<2x128xf32>
    %cst_67 = arith.constant 1.000000e+00 : f32
    %173 = vector.broadcast %cst_67 : f32 to vector<2x128xf32>
    %174 = arith.addf %172, %173 : vector<2x128xf32>
    %cst_68 = arith.constant 5.000000e-01 : f32
    %175 = vector.broadcast %cst_68 : f32 to vector<2x128xf32>
    %176 = arith.mulf %175, %174 : vector<2x128xf32>
    %177 = vector.extract_strided_slice %168 {offsets = [0, 128], sizes = [2, 128], strides = [1, 1]} : vector<2x512xf32> to vector<2x128xf32>
    %cst_69 = arith.constant 5.000000e-01 : f32
    %178 = vector.broadcast %cst_69 : f32 to vector<2x128xf32>
    %179 = arith.mulf %178, %177 : vector<2x128xf32>
    %180 = math.tanh %179 : vector<2x128xf32>
    %cst_70 = arith.constant 1.000000e+00 : f32
    %181 = vector.broadcast %cst_70 : f32 to vector<2x128xf32>
    %182 = arith.addf %180, %181 : vector<2x128xf32>
    %cst_71 = arith.constant 5.000000e-01 : f32
    %183 = vector.broadcast %cst_71 : f32 to vector<2x128xf32>
    %184 = arith.mulf %183, %182 : vector<2x128xf32>
    %185 = vector.extract_strided_slice %168 {offsets = [0, 256], sizes = [2, 128], strides = [1, 1]} : vector<2x512xf32> to vector<2x128xf32>
    %186 = math.tanh %185 : vector<2x128xf32>
    %187 = vector.extract_strided_slice %168 {offsets = [0, 384], sizes = [2, 128], strides = [1, 1]} : vector<2x512xf32> to vector<2x128xf32>
    %cst_72 = arith.constant 5.000000e-01 : f32
    %188 = vector.broadcast %cst_72 : f32 to vector<2x128xf32>
    %189 = arith.mulf %188, %187 : vector<2x128xf32>
    %190 = math.tanh %189 : vector<2x128xf32>
    %cst_73 = arith.constant 1.000000e+00 : f32
    %191 = vector.broadcast %cst_73 : f32 to vector<2x128xf32>
    %192 = arith.addf %190, %191 : vector<2x128xf32>
    %cst_74 = arith.constant 5.000000e-01 : f32
    %193 = vector.broadcast %cst_74 : f32 to vector<2x128xf32>
    %194 = arith.mulf %193, %192 : vector<2x128xf32>
    %195 = arith.mulf %184, %153 : vector<2x128xf32>
    %196 = arith.mulf %176, %186 : vector<2x128xf32>
    %197 = arith.addf %195, %196 : vector<2x128xf32>
    %198 = math.tanh %197 : vector<2x128xf32>
    %199 = arith.mulf %194, %198 : vector<2x128xf32>
    %c3_i32 = arith.constant 3 : i32
    %200 = arith.addi %4, %c3_i32 : i32
    %201 = vector.broadcast %200 : i32 to vector<2x1xi32>
    %202 = arith.cmpi slt, %201, %3 : vector<2x1xi32>
    %203 = vector.shape_cast %202 : vector<2x1xi1> to vector<2x1xi1>
    %204 = vector.broadcast %203 : vector<2x1xi1> to vector<2x128xi1>
    %205 = arith.select %204, %197, %153 : vector<2x128xi1>, vector<2x128xf32>
    %206 = vector.shape_cast %202 : vector<2x1xi1> to vector<2x1xi1>
    %207 = vector.broadcast %206 : vector<2x1xi1> to vector<2x128xi1>
    %208 = arith.select %207, %199, %156 : vector<2x128xi1>, vector<2x128xf32>
    %cst_75 = arith.constant 0.000000e+00 : f32
    %209 = vector.shape_cast %202 : vector<2x1xi1> to vector<2x1xi1>
    %210 = vector.broadcast %209 : vector<2x1xi1> to vector<2x128xi1>
    %211 = vector.broadcast %cst_75 : f32 to vector<2x128xf32>
    %212 = arith.select %210, %199, %211 : vector<2x128xi1>, vector<2x128xf32>
    %213 = vector.shape_cast %212 : vector<2x128xf32> to vector<2x1x128xf32>
    %c0_76 = arith.constant 0 : index
    %c3_77 = arith.constant 3 : index
    %c0_78 = arith.constant 0 : index
    %214 = vector.load %arg4[%c0_76, %c3_77, %c0_78] : memref<2x8x128xf32, #tpu.memory_space<vmem>>, vector<2x1x128xf32>
    tpu.vector_store %arg4[%c0_76, %c3_77, %c0_78], %213 {strides = array<i32>} : memref<2x8x128xf32, #tpu.memory_space<vmem>>, vector<2x1x128xf32>,
    %c4 = arith.constant 4 : index
    %c0_79 = arith.constant 0 : index
    %c0_80 = arith.constant 0 : index
    %215 = vector.load %arg1[%c4, %c0_79, %c0_80] : memref<8x2x512xf32, #tpu.memory_space<vmem>>, vector<1x2x512xf32>
    %216 = vector.shape_cast %215 : vector<1x2x512xf32> to vector<2x512xf32>
    %217 = arith.truncf %208 : vector<2x128xf32> to vector<2x128xbf16>
    %c0_81 = arith.constant 0 : index
    %c0_82 = arith.constant 0 : index
    %218 = vector.load %arg3[%c0_81, %c0_82] : memref<128x512xbf16, #tpu.memory_space<vmem>>, vector<128x512xbf16>
    %cst_83 = arith.constant dense<0.000000e+00> : vector<2x512xf32>
    %219 = tpu.matmul %217, %218, %cst_83 {dimension_numbers = #tpu.dot_dimension_numbers<[1], [0], [0], [1], [0, 0, 1, 1], [], []>} : vector<2x128xbf16>, vector<128x512xbf16>, vector<2x512xf32> -> vector<2x512xf32>
    %220 = arith.addf %216, %219 : vector<2x512xf32>
    %221 = vector.extract_strided_slice %220 {offsets = [0, 0], sizes = [2, 128], strides = [1, 1]} : vector<2x512xf32> to vector<2x128xf32>
    %cst_84 = arith.constant 5.000000e-01 : f32
    %222 = vector.broadcast %cst_84 : f32 to vector<2x128xf32>
    %223 = arith.mulf %222, %221 : vector<2x128xf32>
    %224 = math.tanh %223 : vector<2x128xf32>
    %cst_85 = arith.constant 1.000000e+00 : f32
    %225 = vector.broadcast %cst_85 : f32 to vector<2x128xf32>
    %226 = arith.addf %224, %225 : vector<2x128xf32>
    %cst_86 = arith.constant 5.000000e-01 : f32
    %227 = vector.broadcast %cst_86 : f32 to vector<2x128xf32>
    %228 = arith.mulf %227, %226 : vector<2x128xf32>
    %229 = vector.extract_strided_slice %220 {offsets = [0, 128], sizes = [2, 128], strides = [1, 1]} : vector<2x512xf32> to vector<2x128xf32>
    %cst_87 = arith.constant 5.000000e-01 : f32
    %230 = vector.broadcast %cst_87 : f32 to vector<2x128xf32>
    %231 = arith.mulf %230, %229 : vector<2x128xf32>
    %232 = math.tanh %231 : vector<2x128xf32>
    %cst_88 = arith.constant 1.000000e+00 : f32
    %233 = vector.broadcast %cst_88 : f32 to vector<2x128xf32>
    %234 = arith.addf %232, %233 : vector<2x128xf32>
    %cst_89 = arith.constant 5.000000e-01 : f32
    %235 = vector.broadcast %cst_89 : f32 to vector<2x128xf32>
    %236 = arith.mulf %235, %234 : vector<2x128xf32>
    %237 = vector.extract_strided_slice %220 {offsets = [0, 256], sizes = [2, 128], strides = [1, 1]} : vector<2x512xf32> to vector<2x128xf32>
    %238 = math.tanh %237 : vector<2x128xf32>
    %239 = vector.extract_strided_slice %220 {offsets = [0, 384], sizes = [2, 128], strides = [1, 1]} : vector<2x512xf32> to vector<2x128xf32>
    %cst_90 = arith.constant 5.000000e-01 : f32
    %240 = vector.broadcast %cst_90 : f32 to vector<2x128xf32>
    %241 = arith.mulf %240, %239 : vector<2x128xf32>
    %242 = math.tanh %241 : vector<2x128xf32>
    %cst_91 = arith.constant 1.000000e+00 : f32
    %243 = vector.broadcast %cst_91 : f32 to vector<2x128xf32>
    %244 = arith.addf %242, %243 : vector<2x128xf32>
    %cst_92 = arith.constant 5.000000e-01 : f32
    %245 = vector.broadcast %cst_92 : f32 to vector<2x128xf32>
    %246 = arith.mulf %245, %244 : vector<2x128xf32>
    %247 = arith.mulf %236, %205 : vector<2x128xf32>
    %248 = arith.mulf %228, %238 : vector<2x128xf32>
    %249 = arith.addf %247, %248 : vector<2x128xf32>
    %250 = math.tanh %249 : vector<2x128xf32>
    %251 = arith.mulf %246, %250 : vector<2x128xf32>
    %c4_i32 = arith.constant 4 : i32
    %252 = arith.addi %4, %c4_i32 : i32
    %253 = vector.broadcast %252 : i32 to vector<2x1xi32>
    %254 = arith.cmpi slt, %253, %3 : vector<2x1xi32>
    %255 = vector.shape_cast %254 : vector<2x1xi1> to vector<2x1xi1>
    %256 = vector.broadcast %255 : vector<2x1xi1> to vector<2x128xi1>
    %257 = arith.select %256, %249, %205 : vector<2x128xi1>, vector<2x128xf32>
    %258 = vector.shape_cast %254 : vector<2x1xi1> to vector<2x1xi1>
    %259 = vector.broadcast %258 : vector<2x1xi1> to vector<2x128xi1>
    %260 = arith.select %259, %251, %208 : vector<2x128xi1>, vector<2x128xf32>
    %cst_93 = arith.constant 0.000000e+00 : f32
    %261 = vector.shape_cast %254 : vector<2x1xi1> to vector<2x1xi1>
    %262 = vector.broadcast %261 : vector<2x1xi1> to vector<2x128xi1>
    %263 = vector.broadcast %cst_93 : f32 to vector<2x128xf32>
    %264 = arith.select %262, %251, %263 : vector<2x128xi1>, vector<2x128xf32>
    %265 = vector.shape_cast %264 : vector<2x128xf32> to vector<2x1x128xf32>
    %c0_94 = arith.constant 0 : index
    %c4_95 = arith.constant 4 : index
    %c0_96 = arith.constant 0 : index
    %266 = vector.load %arg4[%c0_94, %c4_95, %c0_96] : memref<2x8x128xf32, #tpu.memory_space<vmem>>, vector<2x1x128xf32>
    tpu.vector_store %arg4[%c0_94, %c4_95, %c0_96], %265 {strides = array<i32>} : memref<2x8x128xf32, #tpu.memory_space<vmem>>, vector<2x1x128xf32>,
    %c5 = arith.constant 5 : index
    %c0_97 = arith.constant 0 : index
    %c0_98 = arith.constant 0 : index
    %267 = vector.load %arg1[%c5, %c0_97, %c0_98] : memref<8x2x512xf32, #tpu.memory_space<vmem>>, vector<1x2x512xf32>
    %268 = vector.shape_cast %267 : vector<1x2x512xf32> to vector<2x512xf32>
    %269 = arith.truncf %260 : vector<2x128xf32> to vector<2x128xbf16>
    %c0_99 = arith.constant 0 : index
    %c0_100 = arith.constant 0 : index
    %270 = vector.load %arg3[%c0_99, %c0_100] : memref<128x512xbf16, #tpu.memory_space<vmem>>, vector<128x512xbf16>
    %cst_101 = arith.constant dense<0.000000e+00> : vector<2x512xf32>
    %271 = tpu.matmul %269, %270, %cst_101 {dimension_numbers = #tpu.dot_dimension_numbers<[1], [0], [0], [1], [0, 0, 1, 1], [], []>} : vector<2x128xbf16>, vector<128x512xbf16>, vector<2x512xf32> -> vector<2x512xf32>
    %272 = arith.addf %268, %271 : vector<2x512xf32>
    %273 = vector.extract_strided_slice %272 {offsets = [0, 0], sizes = [2, 128], strides = [1, 1]} : vector<2x512xf32> to vector<2x128xf32>
    %cst_102 = arith.constant 5.000000e-01 : f32
    %274 = vector.broadcast %cst_102 : f32 to vector<2x128xf32>
    %275 = arith.mulf %274, %273 : vector<2x128xf32>
    %276 = math.tanh %275 : vector<2x128xf32>
    %cst_103 = arith.constant 1.000000e+00 : f32
    %277 = vector.broadcast %cst_103 : f32 to vector<2x128xf32>
    %278 = arith.addf %276, %277 : vector<2x128xf32>
    %cst_104 = arith.constant 5.000000e-01 : f32
    %279 = vector.broadcast %cst_104 : f32 to vector<2x128xf32>
    %280 = arith.mulf %279, %278 : vector<2x128xf32>
    %281 = vector.extract_strided_slice %272 {offsets = [0, 128], sizes = [2, 128], strides = [1, 1]} : vector<2x512xf32> to vector<2x128xf32>
    %cst_105 = arith.constant 5.000000e-01 : f32
    %282 = vector.broadcast %cst_105 : f32 to vector<2x128xf32>
    %283 = arith.mulf %282, %281 : vector<2x128xf32>
    %284 = math.tanh %283 : vector<2x128xf32>
    %cst_106 = arith.constant 1.000000e+00 : f32
    %285 = vector.broadcast %cst_106 : f32 to vector<2x128xf32>
    %286 = arith.addf %284, %285 : vector<2x128xf32>
    %cst_107 = arith.constant 5.000000e-01 : f32
    %287 = vector.broadcast %cst_107 : f32 to vector<2x128xf32>
    %288 = arith.mulf %287, %286 : vector<2x128xf32>
    %289 = vector.extract_strided_slice %272 {offsets = [0, 256], sizes = [2, 128], strides = [1, 1]} : vector<2x512xf32> to vector<2x128xf32>
    %290 = math.tanh %289 : vector<2x128xf32>
    %291 = vector.extract_strided_slice %272 {offsets = [0, 384], sizes = [2, 128], strides = [1, 1]} : vector<2x512xf32> to vector<2x128xf32>
    %cst_108 = arith.constant 5.000000e-01 : f32
    %292 = vector.broadcast %cst_108 : f32 to vector<2x128xf32>
    %293 = arith.mulf %292, %291 : vector<2x128xf32>
    %294 = math.tanh %293 : vector<2x128xf32>
    %cst_109 = arith.constant 1.000000e+00 : f32
    %295 = vector.broadcast %cst_109 : f32 to vector<2x128xf32>
    %296 = arith.addf %294, %295 : vector<2x128xf32>
    %cst_110 = arith.constant 5.000000e-01 : f32
    %297 = vector.broadcast %cst_110 : f32 to vector<2x128xf32>
    %298 = arith.mulf %297, %296 : vector<2x128xf32>
    %299 = arith.mulf %288, %257 : vector<2x128xf32>
    %300 = arith.mulf %280, %290 : vector<2x128xf32>
    %301 = arith.addf %299, %300 : vector<2x128xf32>
    %302 = math.tanh %301 : vector<2x128xf32>
    %303 = arith.mulf %298, %302 : vector<2x128xf32>
    %c5_i32 = arith.constant 5 : i32
    %304 = arith.addi %4, %c5_i32 : i32
    %305 = vector.broadcast %304 : i32 to vector<2x1xi32>
    %306 = arith.cmpi slt, %305, %3 : vector<2x1xi32>
    %307 = vector.shape_cast %306 : vector<2x1xi1> to vector<2x1xi1>
    %308 = vector.broadcast %307 : vector<2x1xi1> to vector<2x128xi1>
    %309 = arith.select %308, %301, %257 : vector<2x128xi1>, vector<2x128xf32>
    %310 = vector.shape_cast %306 : vector<2x1xi1> to vector<2x1xi1>
    %311 = vector.broadcast %310 : vector<2x1xi1> to vector<2x128xi1>
    %312 = arith.select %311, %303, %260 : vector<2x128xi1>, vector<2x128xf32>
    %cst_111 = arith.constant 0.000000e+00 : f32
    %313 = vector.shape_cast %306 : vector<2x1xi1> to vector<2x1xi1>
    %314 = vector.broadcast %313 : vector<2x1xi1> to vector<2x128xi1>
    %315 = vector.broadcast %cst_111 : f32 to vector<2x128xf32>
    %316 = arith.select %314, %303, %315 : vector<2x128xi1>, vector<2x128xf32>
    %317 = vector.shape_cast %316 : vector<2x128xf32> to vector<2x1x128xf32>
    %c0_112 = arith.constant 0 : index
    %c5_113 = arith.constant 5 : index
    %c0_114 = arith.constant 0 : index
    %318 = vector.load %arg4[%c0_112, %c5_113, %c0_114] : memref<2x8x128xf32, #tpu.memory_space<vmem>>, vector<2x1x128xf32>
    tpu.vector_store %arg4[%c0_112, %c5_113, %c0_114], %317 {strides = array<i32>} : memref<2x8x128xf32, #tpu.memory_space<vmem>>, vector<2x1x128xf32>,
    %c6 = arith.constant 6 : index
    %c0_115 = arith.constant 0 : index
    %c0_116 = arith.constant 0 : index
    %319 = vector.load %arg1[%c6, %c0_115, %c0_116] : memref<8x2x512xf32, #tpu.memory_space<vmem>>, vector<1x2x512xf32>
    %320 = vector.shape_cast %319 : vector<1x2x512xf32> to vector<2x512xf32>
    %321 = arith.truncf %312 : vector<2x128xf32> to vector<2x128xbf16>
    %c0_117 = arith.constant 0 : index
    %c0_118 = arith.constant 0 : index
    %322 = vector.load %arg3[%c0_117, %c0_118] : memref<128x512xbf16, #tpu.memory_space<vmem>>, vector<128x512xbf16>
    %cst_119 = arith.constant dense<0.000000e+00> : vector<2x512xf32>
    %323 = tpu.matmul %321, %322, %cst_119 {dimension_numbers = #tpu.dot_dimension_numbers<[1], [0], [0], [1], [0, 0, 1, 1], [], []>} : vector<2x128xbf16>, vector<128x512xbf16>, vector<2x512xf32> -> vector<2x512xf32>
    %324 = arith.addf %320, %323 : vector<2x512xf32>
    %325 = vector.extract_strided_slice %324 {offsets = [0, 0], sizes = [2, 128], strides = [1, 1]} : vector<2x512xf32> to vector<2x128xf32>
    %cst_120 = arith.constant 5.000000e-01 : f32
    %326 = vector.broadcast %cst_120 : f32 to vector<2x128xf32>
    %327 = arith.mulf %326, %325 : vector<2x128xf32>
    %328 = math.tanh %327 : vector<2x128xf32>
    %cst_121 = arith.constant 1.000000e+00 : f32
    %329 = vector.broadcast %cst_121 : f32 to vector<2x128xf32>
    %330 = arith.addf %328, %329 : vector<2x128xf32>
    %cst_122 = arith.constant 5.000000e-01 : f32
    %331 = vector.broadcast %cst_122 : f32 to vector<2x128xf32>
    %332 = arith.mulf %331, %330 : vector<2x128xf32>
    %333 = vector.extract_strided_slice %324 {offsets = [0, 128], sizes = [2, 128], strides = [1, 1]} : vector<2x512xf32> to vector<2x128xf32>
    %cst_123 = arith.constant 5.000000e-01 : f32
    %334 = vector.broadcast %cst_123 : f32 to vector<2x128xf32>
    %335 = arith.mulf %334, %333 : vector<2x128xf32>
    %336 = math.tanh %335 : vector<2x128xf32>
    %cst_124 = arith.constant 1.000000e+00 : f32
    %337 = vector.broadcast %cst_124 : f32 to vector<2x128xf32>
    %338 = arith.addf %336, %337 : vector<2x128xf32>
    %cst_125 = arith.constant 5.000000e-01 : f32
    %339 = vector.broadcast %cst_125 : f32 to vector<2x128xf32>
    %340 = arith.mulf %339, %338 : vector<2x128xf32>
    %341 = vector.extract_strided_slice %324 {offsets = [0, 256], sizes = [2, 128], strides = [1, 1]} : vector<2x512xf32> to vector<2x128xf32>
    %342 = math.tanh %341 : vector<2x128xf32>
    %343 = vector.extract_strided_slice %324 {offsets = [0, 384], sizes = [2, 128], strides = [1, 1]} : vector<2x512xf32> to vector<2x128xf32>
    %cst_126 = arith.constant 5.000000e-01 : f32
    %344 = vector.broadcast %cst_126 : f32 to vector<2x128xf32>
    %345 = arith.mulf %344, %343 : vector<2x128xf32>
    %346 = math.tanh %345 : vector<2x128xf32>
    %cst_127 = arith.constant 1.000000e+00 : f32
    %347 = vector.broadcast %cst_127 : f32 to vector<2x128xf32>
    %348 = arith.addf %346, %347 : vector<2x128xf32>
    %cst_128 = arith.constant 5.000000e-01 : f32
    %349 = vector.broadcast %cst_128 : f32 to vector<2x128xf32>
    %350 = arith.mulf %349, %348 : vector<2x128xf32>
    %351 = arith.mulf %340, %309 : vector<2x128xf32>
    %352 = arith.mulf %332, %342 : vector<2x128xf32>
    %353 = arith.addf %351, %352 : vector<2x128xf32>
    %354 = math.tanh %353 : vector<2x128xf32>
    %355 = arith.mulf %350, %354 : vector<2x128xf32>
    %c6_i32 = arith.constant 6 : i32
    %356 = arith.addi %4, %c6_i32 : i32
    %357 = vector.broadcast %356 : i32 to vector<2x1xi32>
    %358 = arith.cmpi slt, %357, %3 : vector<2x1xi32>
    %359 = vector.shape_cast %358 : vector<2x1xi1> to vector<2x1xi1>
    %360 = vector.broadcast %359 : vector<2x1xi1> to vector<2x128xi1>
    %361 = arith.select %360, %353, %309 : vector<2x128xi1>, vector<2x128xf32>
    %362 = vector.shape_cast %358 : vector<2x1xi1> to vector<2x1xi1>
    %363 = vector.broadcast %362 : vector<2x1xi1> to vector<2x128xi1>
    %364 = arith.select %363, %355, %312 : vector<2x128xi1>, vector<2x128xf32>
    %cst_129 = arith.constant 0.000000e+00 : f32
    %365 = vector.shape_cast %358 : vector<2x1xi1> to vector<2x1xi1>
    %366 = vector.broadcast %365 : vector<2x1xi1> to vector<2x128xi1>
    %367 = vector.broadcast %cst_129 : f32 to vector<2x128xf32>
    %368 = arith.select %366, %355, %367 : vector<2x128xi1>, vector<2x128xf32>
    %369 = vector.shape_cast %368 : vector<2x128xf32> to vector<2x1x128xf32>
    %c0_130 = arith.constant 0 : index
    %c6_131 = arith.constant 6 : index
    %c0_132 = arith.constant 0 : index
    %370 = vector.load %arg4[%c0_130, %c6_131, %c0_132] : memref<2x8x128xf32, #tpu.memory_space<vmem>>, vector<2x1x128xf32>
    tpu.vector_store %arg4[%c0_130, %c6_131, %c0_132], %369 {strides = array<i32>} : memref<2x8x128xf32, #tpu.memory_space<vmem>>, vector<2x1x128xf32>,
    %c7 = arith.constant 7 : index
    %c0_133 = arith.constant 0 : index
    %c0_134 = arith.constant 0 : index
    %371 = vector.load %arg1[%c7, %c0_133, %c0_134] : memref<8x2x512xf32, #tpu.memory_space<vmem>>, vector<1x2x512xf32>
    %372 = vector.shape_cast %371 : vector<1x2x512xf32> to vector<2x512xf32>
    %373 = arith.truncf %364 : vector<2x128xf32> to vector<2x128xbf16>
    %c0_135 = arith.constant 0 : index
    %c0_136 = arith.constant 0 : index
    %374 = vector.load %arg3[%c0_135, %c0_136] : memref<128x512xbf16, #tpu.memory_space<vmem>>, vector<128x512xbf16>
    %cst_137 = arith.constant dense<0.000000e+00> : vector<2x512xf32>
    %375 = tpu.matmul %373, %374, %cst_137 {dimension_numbers = #tpu.dot_dimension_numbers<[1], [0], [0], [1], [0, 0, 1, 1], [], []>} : vector<2x128xbf16>, vector<128x512xbf16>, vector<2x512xf32> -> vector<2x512xf32>
    %376 = arith.addf %372, %375 : vector<2x512xf32>
    %377 = vector.extract_strided_slice %376 {offsets = [0, 0], sizes = [2, 128], strides = [1, 1]} : vector<2x512xf32> to vector<2x128xf32>
    %cst_138 = arith.constant 5.000000e-01 : f32
    %378 = vector.broadcast %cst_138 : f32 to vector<2x128xf32>
    %379 = arith.mulf %378, %377 : vector<2x128xf32>
    %380 = math.tanh %379 : vector<2x128xf32>
    %cst_139 = arith.constant 1.000000e+00 : f32
    %381 = vector.broadcast %cst_139 : f32 to vector<2x128xf32>
    %382 = arith.addf %380, %381 : vector<2x128xf32>
    %cst_140 = arith.constant 5.000000e-01 : f32
    %383 = vector.broadcast %cst_140 : f32 to vector<2x128xf32>
    %384 = arith.mulf %383, %382 : vector<2x128xf32>
    %385 = vector.extract_strided_slice %376 {offsets = [0, 128], sizes = [2, 128], strides = [1, 1]} : vector<2x512xf32> to vector<2x128xf32>
    %cst_141 = arith.constant 5.000000e-01 : f32
    %386 = vector.broadcast %cst_141 : f32 to vector<2x128xf32>
    %387 = arith.mulf %386, %385 : vector<2x128xf32>
    %388 = math.tanh %387 : vector<2x128xf32>
    %cst_142 = arith.constant 1.000000e+00 : f32
    %389 = vector.broadcast %cst_142 : f32 to vector<2x128xf32>
    %390 = arith.addf %388, %389 : vector<2x128xf32>
    %cst_143 = arith.constant 5.000000e-01 : f32
    %391 = vector.broadcast %cst_143 : f32 to vector<2x128xf32>
    %392 = arith.mulf %391, %390 : vector<2x128xf32>
    %393 = vector.extract_strided_slice %376 {offsets = [0, 256], sizes = [2, 128], strides = [1, 1]} : vector<2x512xf32> to vector<2x128xf32>
    %394 = math.tanh %393 : vector<2x128xf32>
    %395 = vector.extract_strided_slice %376 {offsets = [0, 384], sizes = [2, 128], strides = [1, 1]} : vector<2x512xf32> to vector<2x128xf32>
    %cst_144 = arith.constant 5.000000e-01 : f32
    %396 = vector.broadcast %cst_144 : f32 to vector<2x128xf32>
    %397 = arith.mulf %396, %395 : vector<2x128xf32>
    %398 = math.tanh %397 : vector<2x128xf32>
    %cst_145 = arith.constant 1.000000e+00 : f32
    %399 = vector.broadcast %cst_145 : f32 to vector<2x128xf32>
    %400 = arith.addf %398, %399 : vector<2x128xf32>
    %cst_146 = arith.constant 5.000000e-01 : f32
    %401 = vector.broadcast %cst_146 : f32 to vector<2x128xf32>
    %402 = arith.mulf %401, %400 : vector<2x128xf32>
    %403 = arith.mulf %392, %361 : vector<2x128xf32>
    %404 = arith.mulf %384, %394 : vector<2x128xf32>
    %405 = arith.addf %403, %404 : vector<2x128xf32>
    %406 = math.tanh %405 : vector<2x128xf32>
    %407 = arith.mulf %402, %406 : vector<2x128xf32>
    %c7_i32 = arith.constant 7 : i32
    %408 = arith.addi %4, %c7_i32 : i32
    %409 = vector.broadcast %408 : i32 to vector<2x1xi32>
    %410 = arith.cmpi slt, %409, %3 : vector<2x1xi32>
    %411 = vector.shape_cast %410 : vector<2x1xi1> to vector<2x1xi1>
    %412 = vector.broadcast %411 : vector<2x1xi1> to vector<2x128xi1>
    %413 = arith.select %412, %405, %361 : vector<2x128xi1>, vector<2x128xf32>
    %414 = vector.shape_cast %410 : vector<2x1xi1> to vector<2x1xi1>
    %415 = vector.broadcast %414 : vector<2x1xi1> to vector<2x128xi1>
    %416 = arith.select %415, %407, %364 : vector<2x128xi1>, vector<2x128xf32>
    %cst_147 = arith.constant 0.000000e+00 : f32
    %417 = vector.shape_cast %410 : vector<2x1xi1> to vector<2x1xi1>
    %418 = vector.broadcast %417 : vector<2x1xi1> to vector<2x128xi1>
    %419 = vector.broadcast %cst_147 : f32 to vector<2x128xf32>
    %420 = arith.select %418, %407, %419 : vector<2x128xi1>, vector<2x128xf32>
    %421 = vector.shape_cast %420 : vector<2x128xf32> to vector<2x1x128xf32>
    %c0_148 = arith.constant 0 : index
    %c7_149 = arith.constant 7 : index
    %c0_150 = arith.constant 0 : index
    %422 = vector.load %arg4[%c0_148, %c7_149, %c0_150] : memref<2x8x128xf32, #tpu.memory_space<vmem>>, vector<2x1x128xf32>
    tpu.vector_store %arg4[%c0_148, %c7_149, %c0_150], %421 {strides = array<i32>} : memref<2x8x128xf32, #tpu.memory_space<vmem>>, vector<2x1x128xf32>,
    %c0_151 = arith.constant 0 : index
    %c0_152 = arith.constant 0 : index
    %423 = vector.load %arg5[%c0_151, %c0_152] : memref<2x128xf32, #tpu.memory_space<vmem>>, vector<2x128xf32>
    tpu.vector_store %arg5[%c0_151, %c0_152], %416 {strides = array<i32>} : memref<2x128xf32, #tpu.memory_space<vmem>>, vector<2x128xf32>,
    %c0_153 = arith.constant 0 : index
    %c0_154 = arith.constant 0 : index
    %424 = vector.load %arg6[%c0_153, %c0_154] : memref<2x128xf32, #tpu.memory_space<vmem>>, vector<2x128xf32>
    tpu.vector_store %arg6[%c0_153, %c0_154], %413 {strides = array<i32>} : memref<2x128xf32, #tpu.memory_space<vmem>>, vector<2x128xf32>,
    return
  }
  func.func @transform_0(%arg0: i32) -> (i32, i32, i32) {
    %c0_i32 = arith.constant 0 : i32
    %c0_i32_0 = arith.constant 0 : i32
    %c0_i32_1 = arith.constant 0 : i32
    return %arg0, %c0_i32, %c0_i32_0 : i32, i32, i32
  }
  func.func @transform_1(%arg0: i32) -> (i32, i32) {
    %c0_i32 = arith.constant 0 : i32
    %c0_i32_0 = arith.constant 0 : i32
    %c0_i32_1 = arith.constant 0 : i32
    return %c0_i32, %c0_i32_0 : i32, i32
  }
  func.func @transform_2(%arg0: i32) -> (i32, i32) {
    %c0_i32 = arith.constant 0 : i32
    %c0_i32_0 = arith.constant 0 : i32
    %c0_i32_1 = arith.constant 0 : i32
    return %c0_i32, %c0_i32_0 : i32, i32
  }
  func.func @transform_3(%arg0: i32) -> (i32, i32, i32) {
    %c0_i32 = arith.constant 0 : i32
    %c0_i32_0 = arith.constant 0 : i32
    %c0_i32_1 = arith.constant 0 : i32
    return %c0_i32, %arg0, %c0_i32_0 : i32, i32, i32
  }
}

module attributes {stable_mosaic.version = 11 : i64} {
  func.func @_wcp_score_kernel(%arg0: i32, %arg1: memref<2x8x16xbf16, #tpu.memory_space<vmem>>, %arg2: memref<2x128x16xbf16, #tpu.memory_space<vmem>>, %arg3: memref<2x1xi32, #tpu.memory_space<vmem>>, %arg4: memref<2x1xi32, #tpu.memory_space<vmem>>, %arg5: memref<3x16x16xbf16, #tpu.memory_space<vmem>>, %arg6: memref<3x16xf32, #tpu.memory_space<vmem>>, %arg7: memref<2x16xf32, #tpu.memory_space<vmem>>, %arg8: memref<1x1xf32, #tpu.memory_space<smem>>, %arg9: memref<2x128xf32, #tpu.memory_space<vmem>>) attributes {dimension_semantics = [#tpu.dimension_semantics<parallel>], iteration_bounds = array<i64: 1>, scalar_prefetch = 0 : i64, scratch_operands = 0 : i64, tpu.core_type = #tpu.core_type<tc>, window_params = [{transform_indices = @transform_0, window_bounds = array<i64: 2, 8, 16>}, {transform_indices = @transform_1, window_bounds = array<i64: 2, 128, 16>}, {transform_indices = @transform_2, window_bounds = array<i64: 2, 1>}, {transform_indices = @transform_3, window_bounds = array<i64: 2, 1>}, {pipeline_mode = #tpu.pipeline_mode<synchronous>, transform_indices = @transform_4, window_bounds = array<i64: 3, 16, 16>}, {pipeline_mode = #tpu.pipeline_mode<synchronous>, transform_indices = @transform_5, window_bounds = array<i64: 3, 16>}, {pipeline_mode = #tpu.pipeline_mode<synchronous>, transform_indices = @transform_6, window_bounds = array<i64: 2, 16>}, {transform_indices = @transform_7, window_bounds = array<i64: 1, 1>}, {transform_indices = @transform_8, window_bounds = array<i64: 2, 128>}]} {
    %c0 = arith.constant 0 : index
    %c0_0 = arith.constant 0 : index
    %c0_1 = arith.constant 0 : index
    %0 = vector.load %arg1[%c0, %c0_0, %c0_1] : memref<2x8x16xbf16, #tpu.memory_space<vmem>>, vector<2x8x16xbf16>
    %c0_2 = arith.constant 0 : index
    %c0_3 = arith.constant 0 : index
    %c0_4 = arith.constant 0 : index
    %1 = vector.load %arg2[%c0_2, %c0_3, %c0_4] : memref<2x128x16xbf16, #tpu.memory_space<vmem>>, vector<2x128x16xbf16>
    %2 = tpu.iota {dimensions = array<i32: 1>} : vector<2x8xi32>
    %c0_5 = arith.constant 0 : index
    %c0_6 = arith.constant 0 : index
    %3 = vector.load %arg3[%c0_5, %c0_6] : memref<2x1xi32, #tpu.memory_space<vmem>>, vector<2x1xi32>
    %4 = vector.broadcast %3 : vector<2x1xi32> to vector<2x8xi32>
    %5 = arith.cmpi slt, %2, %4 : vector<2x8xi32>
    %6 = tpu.iota {dimensions = array<i32: 1>} : vector<2x128xi32>
    %c0_7 = arith.constant 0 : index
    %c0_8 = arith.constant 0 : index
    %7 = vector.load %arg4[%c0_7, %c0_8] : memref<2x1xi32, #tpu.memory_space<vmem>>, vector<2x1xi32>
    %8 = vector.broadcast %7 : vector<2x1xi32> to vector<2x128xi32>
    %9 = arith.cmpi slt, %6, %8 : vector<2x128xi32>
    %10 = vector.shape_cast %0 : vector<2x8x16xbf16> to vector<16x16xbf16>
    %c0_9 = arith.constant 0 : index
    %c0_10 = arith.constant 0 : index
    %c0_11 = arith.constant 0 : index
    %11 = vector.load %arg5[%c0_9, %c0_10, %c0_11] : memref<3x16x16xbf16, #tpu.memory_space<vmem>>, vector<1x16x16xbf16>
    %12 = vector.shape_cast %11 : vector<1x16x16xbf16> to vector<16x16xbf16>
    %cst = arith.constant dense<0.000000e+00> : vector<16x16xf32>
    %13 = tpu.matmul %10, %12, %cst {dimension_numbers = #tpu.dot_dimension_numbers<[1], [0], [0], [1], [0, 0, 1, 1], [], []>} : vector<16x16xbf16>, vector<16x16xbf16>, vector<16x16xf32> -> vector<16x16xf32>
    %c0_12 = arith.constant 0 : index
    %c0_13 = arith.constant 0 : index
    %14 = vector.load %arg6[%c0_12, %c0_13] : memref<3x16xf32, #tpu.memory_space<vmem>>, vector<1x16xf32>
    %15 = vector.broadcast %14 : vector<1x16xf32> to vector<16x16xf32>
    %16 = arith.addf %13, %15 : vector<16x16xf32>
    %17 = vector.shape_cast %16 : vector<16x16xf32> to vector<2x8x16xf32>
    %18 = arith.truncf %17 : vector<2x8x16xf32> to vector<2x8x16xbf16>
    %cst_14 = arith.constant dense<0.000000e+00> : vector<2x128x8xf32>
    %19 = tpu.matmul %1, %18, %cst_14 {dimension_numbers = #tpu.dot_dimension_numbers<[2], [2], [1], [1], [0, 0, 0, 1, 1, 1], [0], [0]>} : vector<2x128x16xbf16>, vector<2x8x16xbf16>, vector<2x128x8xf32> -> vector<2x128x8xf32>
    %20 = vector.shape_cast %5 : vector<2x8xi1> to vector<2x1x8xi1>
    %cst_15 = arith.constant -1.000000e+10 : f32
    %21 = vector.shape_cast %20 : vector<2x1x8xi1> to vector<2x1x8xi1>
    %22 = vector.broadcast %21 : vector<2x1x8xi1> to vector<2x128x8xi1>
    %23 = vector.broadcast %cst_15 : f32 to vector<2x128x8xf32>
    %24 = arith.select %22, %19, %23 : vector<2x128x8xi1>, vector<2x128x8xf32>
    %cst_16 = arith.constant dense<0xFF800000> : vector<2x128xf32>
    %25 = vector.multi_reduction <maximumf>, %24, %cst_16 [2] : vector<2x128x8xf32> to vector<2x128xf32>
    %26 = vector.shape_cast %25 : vector<2x128xf32> to vector<2x128x1xf32>
    %27 = vector.broadcast %26 : vector<2x128x1xf32> to vector<2x128x8xf32>
    %28 = arith.subf %24, %27 : vector<2x128x8xf32>
    %29 = math.exp %28 : vector<2x128x8xf32>
    %cst_17 = arith.constant dense<0.000000e+00> : vector<2x128xf32>
    %30 = vector.multi_reduction <add>, %29, %cst_17 [2] : vector<2x128x8xf32> to vector<2x128xf32>
    %31 = vector.shape_cast %30 : vector<2x128xf32> to vector<2x128x1xf32>
    %32 = vector.broadcast %31 : vector<2x128x1xf32> to vector<2x128x8xf32>
    %33 = arith.divf %29, %32 : vector<2x128x8xf32>
    %34 = arith.truncf %33 : vector<2x128x8xf32> to vector<2x128x8xbf16>
    %cst_18 = arith.constant dense<0.000000e+00> : vector<2x128x16xf32>
    %35 = tpu.matmul %34, %0, %cst_18 {dimension_numbers = #tpu.dot_dimension_numbers<[2], [1], [1], [2], [0, 0, 0, 1, 1, 2], [0], [0]>} : vector<2x128x8xbf16>, vector<2x8x16xbf16>, vector<2x128x16xf32> -> vector<2x128x16xf32>
    %36 = vector.shape_cast %35 : vector<2x128x16xf32> to vector<256x16xf32>
    %37 = arith.truncf %36 : vector<256x16xf32> to vector<256x16xbf16>
    %c1 = arith.constant 1 : index
    %c0_19 = arith.constant 0 : index
    %c0_20 = arith.constant 0 : index
    %38 = vector.load %arg5[%c1, %c0_19, %c0_20] : memref<3x16x16xbf16, #tpu.memory_space<vmem>>, vector<1x16x16xbf16>
    %39 = vector.shape_cast %38 : vector<1x16x16xbf16> to vector<16x16xbf16>
    %cst_21 = arith.constant dense<0.000000e+00> : vector<256x16xf32>
    %40 = tpu.matmul %37, %39, %cst_21 {dimension_numbers = #tpu.dot_dimension_numbers<[1], [0], [0], [1], [0, 0, 1, 1], [], []>} : vector<256x16xbf16>, vector<16x16xbf16>, vector<256x16xf32> -> vector<256x16xf32>
    %c1_22 = arith.constant 1 : index
    %c0_23 = arith.constant 0 : index
    %41 = vector.load %arg6[%c1_22, %c0_23] : memref<3x16xf32, #tpu.memory_space<vmem>>, vector<1x16xf32>
    %42 = vector.broadcast %41 : vector<1x16xf32> to vector<256x16xf32>
    %43 = arith.addf %40, %42 : vector<256x16xf32>
    %44 = vector.shape_cast %1 : vector<2x128x16xbf16> to vector<256x16xbf16>
    %c2 = arith.constant 2 : index
    %c0_24 = arith.constant 0 : index
    %c0_25 = arith.constant 0 : index
    %45 = vector.load %arg5[%c2, %c0_24, %c0_25] : memref<3x16x16xbf16, #tpu.memory_space<vmem>>, vector<1x16x16xbf16>
    %46 = vector.shape_cast %45 : vector<1x16x16xbf16> to vector<16x16xbf16>
    %cst_26 = arith.constant dense<0.000000e+00> : vector<256x16xf32>
    %47 = tpu.matmul %44, %46, %cst_26 {dimension_numbers = #tpu.dot_dimension_numbers<[1], [0], [0], [1], [0, 0, 1, 1], [], []>} : vector<256x16xbf16>, vector<16x16xbf16>, vector<256x16xf32> -> vector<256x16xf32>
    %c2_27 = arith.constant 2 : index
    %c0_28 = arith.constant 0 : index
    %48 = vector.load %arg6[%c2_27, %c0_28] : memref<3x16xf32, #tpu.memory_space<vmem>>, vector<1x16xf32>
    %49 = vector.broadcast %48 : vector<1x16xf32> to vector<256x16xf32>
    %50 = arith.addf %47, %49 : vector<256x16xf32>
    %51 = math.tanh %43 : vector<256x16xf32>
    %52 = vector.shape_cast %51 : vector<256x16xf32> to vector<2x128x16xf32>
    %53 = math.tanh %50 : vector<256x16xf32>
    %54 = vector.shape_cast %53 : vector<256x16xf32> to vector<2x128x16xf32>
    %c0_29 = arith.constant 0 : index
    %c0_30 = arith.constant 0 : index
    %55 = vector.load %arg7[%c0_29, %c0_30] : memref<2x16xf32, #tpu.memory_space<vmem>>, vector<1x16xf32>
    %c1_31 = arith.constant 1 : index
    %c0_32 = arith.constant 0 : index
    %56 = vector.load %arg7[%c1_31, %c0_32] : memref<2x16xf32, #tpu.memory_space<vmem>>, vector<1x16xf32>
    %57 = vector.shape_cast %55 : vector<1x16xf32> to vector<1x1x16xf32>
    %58 = vector.broadcast %57 : vector<1x1x16xf32> to vector<2x128x16xf32>
    %59 = arith.mulf %52, %58 : vector<2x128x16xf32>
    %cst_33 = arith.constant dense<0.000000e+00> : vector<2x128xf32>
    %60 = vector.multi_reduction <add>, %59, %cst_33 [2] : vector<2x128x16xf32> to vector<2x128xf32>
    %61 = vector.shape_cast %56 : vector<1x16xf32> to vector<1x1x16xf32>
    %62 = vector.broadcast %61 : vector<1x1x16xf32> to vector<2x128x16xf32>
    %63 = arith.mulf %54, %62 : vector<2x128x16xf32>
    %cst_34 = arith.constant dense<0.000000e+00> : vector<2x128xf32>
    %64 = vector.multi_reduction <add>, %63, %cst_34 [2] : vector<2x128x16xf32> to vector<2x128xf32>
    %65 = arith.addf %60, %64 : vector<2x128xf32>
    %c0_35 = arith.constant 0 : index
    %c0_36 = arith.constant 0 : index
    %66 = memref.load %arg8[%c0_35, %c0_36] : memref<1x1xf32, #tpu.memory_space<smem>>
    %67 = vector.broadcast %66 : f32 to vector<2x128xf32>
    %68 = arith.addf %65, %67 : vector<2x128xf32>
    %cst_37 = arith.constant -1.000000e+10 : f32
    %69 = vector.broadcast %cst_37 : f32 to vector<2x128xf32>
    %70 = arith.select %9, %68, %69 : vector<2x128xi1>, vector<2x128xf32>
    %c0_38 = arith.constant 0 : index
    %c0_39 = arith.constant 0 : index
    %71 = vector.load %arg9[%c0_38, %c0_39] : memref<2x128xf32, #tpu.memory_space<vmem>>, vector<2x128xf32>
    tpu.vector_store %arg9[%c0_38, %c0_39], %70 {strides = array<i32>} : memref<2x128xf32, #tpu.memory_space<vmem>>, vector<2x128xf32>,
    return
  }
  func.func @transform_0(%arg0: i32) -> (i32, i32, i32) {
    %c0_i32 = arith.constant 0 : i32
    %c0_i32_0 = arith.constant 0 : i32
    %c0_i32_1 = arith.constant 0 : i32
    return %arg0, %c0_i32, %c0_i32_0 : i32, i32, i32
  }
  func.func @transform_1(%arg0: i32) -> (i32, i32, i32) {
    %c0_i32 = arith.constant 0 : i32
    %c0_i32_0 = arith.constant 0 : i32
    %c0_i32_1 = arith.constant 0 : i32
    return %arg0, %c0_i32, %c0_i32_0 : i32, i32, i32
  }
  func.func @transform_2(%arg0: i32) -> (i32, i32) {
    %c0_i32 = arith.constant 0 : i32
    %c0_i32_0 = arith.constant 0 : i32
    return %arg0, %c0_i32 : i32, i32
  }
  func.func @transform_3(%arg0: i32) -> (i32, i32) {
    %c0_i32 = arith.constant 0 : i32
    %c0_i32_0 = arith.constant 0 : i32
    return %arg0, %c0_i32 : i32, i32
  }
  func.func @transform_4(%arg0: i32) -> (i32, i32, i32) {
    %c0_i32 = arith.constant 0 : i32
    %c0_i32_0 = arith.constant 0 : i32
    %c0_i32_1 = arith.constant 0 : i32
    %c0_i32_2 = arith.constant 0 : i32
    return %c0_i32, %c0_i32_0, %c0_i32_1 : i32, i32, i32
  }
  func.func @transform_5(%arg0: i32) -> (i32, i32) {
    %c0_i32 = arith.constant 0 : i32
    %c0_i32_0 = arith.constant 0 : i32
    %c0_i32_1 = arith.constant 0 : i32
    return %c0_i32, %c0_i32_0 : i32, i32
  }
  func.func @transform_6(%arg0: i32) -> (i32, i32) {
    %c0_i32 = arith.constant 0 : i32
    %c0_i32_0 = arith.constant 0 : i32
    %c0_i32_1 = arith.constant 0 : i32
    return %c0_i32, %c0_i32_0 : i32, i32
  }
  func.func @transform_7(%arg0: i32) -> (i32, i32) {
    %c0_i32 = arith.constant 0 : i32
    %c0_i32_0 = arith.constant 0 : i32
    %c0_i32_1 = arith.constant 0 : i32
    return %c0_i32, %c0_i32_0 : i32, i32
  }
  func.func @transform_8(%arg0: i32) -> (i32, i32) {
    %c0_i32 = arith.constant 0 : i32
    %c0_i32_0 = arith.constant 0 : i32
    return %arg0, %c0_i32 : i32, i32
  }
}

</mosaic_0001>

<llo_original>
// kernel: wcp_forward.7
$region0: #{wcp_forward.7}
  #allocation0 [shape = 'u32[]', space=smem, size = 0x4, offset = 0x4, fixed_abs, tag = 'smem constant byte address 0x4 - core index']
  #allocation1 [shape = 'u32[72,128]{1,0:T(1,128)}', space=vmem, size = 0x9000, scoped, tag = 'internal scratch']
  #allocation2 [shape = 'f32[5,128]{1,0:T(8,128)}', space=vmem, size = 0x1000, scoped, tag = 'scratch operand']
  #allocation3 [shape = 'f32[5,128]{1,0:T(8,128)}', space=vmem, size = 0x1000, scoped, tag = 'scratch operand']
  %s0 = inlined_call_operand.vmem [shape: f32[8,5,512], index: 0, kind: input, shape index: {}]
  %s1 = inlined_call_operand.vmem [shape: s32[5,1], index: 1, kind: input, shape index: {}]
  %s2 = inlined_call_operand.vmem [shape: bf16[128,512], index: 2, kind: input, shape index: {}]
  %s3 = inlined_call_operand.vmem [shape: f32[5,8,128], index: 3, kind: output, shape index: {}]
  %s4 = sld [smem:[#allocation0]]
  $region26: #{wcp_forward.7} parent=0
    _
  %s6 = ssub.s32 1, %s4
  %s7 = scalar_select 0, %s6, %s4
  // Predicated region
  $region2: #{wcp_forward.7} parent=0 // pred_check
    _
  $region3: #{wcp_forward.7} parent=0 // pred_check_branch
    %9 = sbr.rel (0) target = $region5
  $region4: #{wcp_forward.7} parent=0 // pred_region
    _
  $region5: #{wcp_forward.7} parent=0 // pred_fallthru
    _
  // Predicated region
  $region6: #{wcp_forward.7} parent=0 // pred_check
    _
  $region7: #{wcp_forward.7} parent=0 // pred_check_branch
    %11 = sbr.rel (0) target = $region9
  $region8: #{wcp_forward.7} parent=0 // pred_region
    _
  $region9: #{wcp_forward.7} parent=0 // pred_fallthru
    _
  // Predicated region
  $region10: #{wcp_forward.7} parent=0 // pred_check
    _
  $region11: #{wcp_forward.7} parent=0 // pred_check_branch
    %13 = sbr.rel (0) target = $region13
  $region12: #{wcp_forward.7} parent=0 // pred_region
    _
  $region13: #{wcp_forward.7} parent=0 // pred_fallthru
    _
  %p14 = scmp.eq.s32.totalorder 0, 0
  // Predicated region
  $region14: #{wcp_forward.7} parent=0 // pred_check
    %p15 = pneg %p14
  $region15: #{wcp_forward.7} parent=0 // pred_check_branch
    %17 = sbr.rel (%p15) target = $region17
  $region16: #{wcp_forward.7} parent=0 // pred_region
    %18 = vst [vmem:[#allocation2] sm:$0x1f] 0.0
    %19 = vst [vmem:[#allocation3] sm:$0x1f] 0.0
  $region17: #{wcp_forward.7} parent=0 // pred_fallthru
    _
  %v20 = vld [vmem:[%s1] sm:$0x1f]
  %s21 = smul.u32 0, 8
  %v22 = vld [vmem:[#allocation2] sm:$0x1f]
  %v23 = vld [vmem:[#allocation3] sm:$0x1f]
  %v24 = vld [vmem:[%s0] sm:$0x1f]
  %v25 = vld [vmem:[%s0 + $0x8] sm:$0x1f]
  %v26 = vld [vmem:[%s0 + $0x10] sm:$0x1f]
  %v27 = vld [vmem:[%s0 + $0x18] sm:$0x1f]
  %v28 = vpack.c.bf16 %v22, %v22
  %v29 = vld [vmem:[%s2] sm:$0xff]
  %v30 = vld [vmem:[%s2 + $0x8] sm:$0xff]
  %v31 = vld [vmem:[%s2 + $0x10] sm:$0xff]
  %v32 = vld [vmem:[%s2 + $0x18] sm:$0xff]
  %v33 = vld [vmem:[%s2 + $0x20] sm:$0xff]
  %v34 = vld [vmem:[%s2 + $0x28] sm:$0xff]
  %v35 = vld [vmem:[%s2 + $0x30] sm:$0xff]
  %v36 = vld [vmem:[%s2 + $0x38] sm:$0xff]
  %v37 = vld [vmem:[%s2 + $0x40] sm:$0xff]
  %v38 = vld [vmem:[%s2 + $0x48] sm:$0xff]
  %v39 = vld [vmem:[%s2 + $0x50] sm:$0xff]
  %v40 = vld [vmem:[%s2 + $0x58] sm:$0xff]
  %v41 = vld [vmem:[%s2 + $0x60] sm:$0xff]
  %v42 = vld [vmem:[%s2 + $0x68] sm:$0xff]
  %v43 = vld [vmem:[%s2 + $0x70] sm:$0xff]
  %v44 = vld [vmem:[%s2 + $0x78] sm:$0xff]
  %v45 = vld [vmem:[%s2 + $0x80] sm:$0xff]
  %v46 = vld [vmem:[%s2 + $0x88] sm:$0xff]
  %v47 = vld [vmem:[%s2 + $0x90] sm:$0xff]
  %v48 = vld [vmem:[%s2 + $0x98] sm:$0xff]
  %v49 = vld [vmem:[%s2 + $0xa0] sm:$0xff]
  %v50 = vld [vmem:[%s2 + $0xa8] sm:$0xff]
  %v51 = vld [vmem:[%s2 + $0xb0] sm:$0xff]
  %v52 = vld [vmem:[%s2 + $0xb8] sm:$0xff]
  %v53 = vld [vmem:[%s2 + $0xc0] sm:$0xff]
  %v54 = vld [vmem:[%s2 + $0xc8] sm:$0xff]
  %v55 = vld [vmem:[%s2 + $0xd0] sm:$0xff]
  %v56 = vld [vmem:[%s2 + $0xd8] sm:$0xff]
  %v57 = vld [vmem:[%s2 + $0xe0] sm:$0xff]
  %v58 = vld [vmem:[%s2 + $0xe8] sm:$0xff]
  %v59 = vld [vmem:[%s2 + $0xf0] sm:$0xff]
  %v60 = vld [vmem:[%s2 + $0xf8] sm:$0xff]
  %v93 = vunpack.c.l.b16 %v29
  %v94 = vunpack.c.h.b16 %v29
  %v95 = vunpack.c.l.b16 %v30
  %v96 = vunpack.c.h.b16 %v30
  %v97 = vunpack.c.l.b16 %v31
  %v98 = vunpack.c.h.b16 %v31
  %v99 = vunpack.c.l.b16 %v32
  %v100 = vunpack.c.h.b16 %v32
  %v101 = vunpack.c.l.b16 %v33
  %v102 = vunpack.c.h.b16 %v33
  %v103 = vunpack.c.l.b16 %v34
  %v104 = vunpack.c.h.b16 %v34
  %v105 = vunpack.c.l.b16 %v35
  %v106 = vunpack.c.h.b16 %v35
  %v107 = vunpack.c.l.b16 %v36
  %v108 = vunpack.c.h.b16 %v36
  %v109 = vunpack.c.l.b16 %v37
  %v110 = vunpack.c.h.b16 %v37
  %v111 = vunpack.c.l.b16 %v38
  %v112 = vunpack.c.h.b16 %v38
  %v113 = vunpack.c.l.b16 %v39
  %v114 = vunpack.c.h.b16 %v39
  %v115 = vunpack.c.l.b16 %v40
  %v116 = vunpack.c.h.b16 %v40
  %v117 = vunpack.c.l.b16 %v41
  %v118 = vunpack.c.h.b16 %v41
  %v119 = vunpack.c.l.b16 %v42
  %v120 = vunpack.c.h.b16 %v42
  %v121 = vunpack.c.l.b16 %v43
  %v122 = vunpack.c.h.b16 %v43
  %v123 = vunpack.c.l.b16 %v44
  %v124 = vunpack.c.h.b16 %v44
  %v125 = vunpack.c.l.b16 %v45
  %v126 = vunpack.c.h.b16 %v45
  %v127 = vunpack.c.l.b16 %v46
  %v128 = vunpack.c.h.b16 %v46
  %v129 = vunpack.c.l.b16 %v47
  %v130 = vunpack.c.h.b16 %v47
  %v131 = vunpack.c.l.b16 %v48
  %v132 = vunpack.c.h.b16 %v48
  %v133 = vunpack.c.l.b16 %v49
  %v134 = vunpack.c.h.b16 %v49
  %v135 = vunpack.c.l.b16 %v50
  %v136 = vunpack.c.h.b16 %v50
  %v137 = vunpack.c.l.b16 %v51
  %v138 = vunpack.c.h.b16 %v51
  %v139 = vunpack.c.l.b16 %v52
  %v140 = vunpack.c.h.b16 %v52
  %v141 = vunpack.c.l.b16 %v53
  %v142 = vunpack.c.h.b16 %v53
  %v143 = vunpack.c.l.b16 %v54
  %v144 = vunpack.c.h.b16 %v54
  %v145 = vunpack.c.l.b16 %v55
  %v146 = vunpack.c.h.b16 %v55
  %v147 = vunpack.c.l.b16 %v56
  %v148 = vunpack.c.h.b16 %v56
  %v149 = vunpack.c.l.b16 %v57
  %v150 = vunpack.c.h.b16 %v57
  %v151 = vunpack.c.l.b16 %v58
  %v152 = vunpack.c.h.b16 %v58
  %v153 = vunpack.c.l.b16 %v59
  %v154 = vunpack.c.h.b16 %v59
  %v155 = vunpack.c.l.b16 %v60
  %v156 = vunpack.c.h.b16 %v60
  %v157 = vpack.c.b16 %v97, %v93
  %v158 = vpack.c.b16 %v98, %v94
  %v159 = vpack.c.b16 %v99, %v95
  %v160 = vpack.c.b16 %v100, %v96
  %v161 = vpack.c.b16 %v105, %v101
  %v162 = vpack.c.b16 %v106, %v102
  %v163 = vpack.c.b16 %v107, %v103
  %v164 = vpack.c.b16 %v108, %v104
  %v165 = vpack.c.b16 %v113, %v109
  %v166 = vpack.c.b16 %v114, %v110
  %v167 = vpack.c.b16 %v115, %v111
  %v168 = vpack.c.b16 %v116, %v112
  %v169 = vpack.c.b16 %v121, %v117
  %v170 = vpack.c.b16 %v122, %v118
  %v171 = vpack.c.b16 %v123, %v119
  %v172 = vpack.c.b16 %v124, %v120
  %v173 = vpack.c.b16 %v129, %v125
  %v174 = vpack.c.b16 %v130, %v126
  %v175 = vpack.c.b16 %v131, %v127
  %v176 = vpack.c.b16 %v132, %v128
  %v177 = vpack.c.b16 %v137, %v133
  %v178 = vpack.c.b16 %v138, %v134
  %v179 = vpack.c.b16 %v139, %v135
  %v180 = vpack.c.b16 %v140, %v136
  %v181 = vpack.c.b16 %v145, %v141
  %v182 = vpack.c.b16 %v146, %v142
  %v183 = vpack.c.b16 %v147, %v143
  %v184 = vpack.c.b16 %v148, %v144
  %v185 = vpack.c.b16 %v153, %v149
  %v186 = vpack.c.b16 %v154, %v150
  %v187 = vpack.c.b16 %v155, %v151
  %v188 = vpack.c.b16 %v156, %v152
  %221 = vmatpush.bf16.msra.mxu0 %v185
  %222 = vmatpush.bf16.msra.mxu0 %v181
  %223 = vmatpush.bf16.msra.mxu0 %v177
  %224 = vmatpush.bf16.msra.mxu0 %v173
  %225 = vmatpush.bf16.msra.mxu0 %v169
  %226 = vmatpush.bf16.msra.mxu0 %v165
  %227 = vmatpush.bf16.msra.mxu0 %v161
  %228 = vmatpush.bf16.msra.mxu0 %v157
  %229 = vmatmul.bf16.gmra.mxu0 %v28
  %v230 = vpop.f32.mrf.mxu0
  %v231 = vadd.f32 0.0, %v230
  %v232 = vpop.f32.mrf.mxu0
  %233 = vdwg.mxu0
  %234 = vmatpush.bf16.msra.mxu0 %v186
  %235 = vmatpush.bf16.msra.mxu0 %v182
  %236 = vmatpush.bf16.msra.mxu0 %v178
  %237 = vmatpush.bf16.msra.mxu0 %v174
  %238 = vmatpush.bf16.msra.mxu0 %v170
  %239 = vmatpush.bf16.msra.mxu0 %v166
  %240 = vmatpush.bf16.msra.mxu0 %v162
  %241 = vmatpush.bf16.msra.mxu0 %v158
  %242 = vmatmul.bf16.gmra.mxu0 %v28
  %v243 = vpop.f32.mrf.mxu0
  %v244 = vadd.f32 0.0, %v243
  %v245 = vpop.f32.mrf.mxu0
  %246 = vdwg.mxu0
  %247 = vmatpush.bf16.msra.mxu0 %v187
  %248 = vmatpush.bf16.msra.mxu0 %v183
  %249 = vmatpush.bf16.msra.mxu0 %v179
  %250 = vmatpush.bf16.msra.mxu0 %v175
  %251 = vmatpush.bf16.msra.mxu0 %v171
  %252 = vmatpush.bf16.msra.mxu0 %v167
  %253 = vmatpush.bf16.msra.mxu0 %v163
  %254 = vmatpush.bf16.msra.mxu0 %v159
  %255 = vmatmul.bf16.gmra.mxu0 %v28
  %v256 = vpop.f32.mrf.mxu0
  %v257 = vadd.f32 0.0, %v256
  %v258 = vpop.f32.mrf.mxu0
  %259 = vdwg.mxu0
  %260 = vmatpush.bf16.msra.mxu0 %v188
  %261 = vmatpush.bf16.msra.mxu0 %v184
  %262 = vmatpush.bf16.msra.mxu0 %v180
  %263 = vmatpush.bf16.msra.mxu0 %v176
  %264 = vmatpush.bf16.msra.mxu0 %v172
  %265 = vmatpush.bf16.msra.mxu0 %v168
  %266 = vmatpush.bf16.msra.mxu0 %v164
  %267 = vmatpush.bf16.msra.mxu0 %v160
  %268 = vmatmul.bf16.gmra.mxu0 %v28
  %v269 = vpop.f32.mrf.mxu0
  %v270 = vadd.f32 0.0, %v269
  %v271 = vpop.f32.mrf.mxu0
  %272 = vdwg.mxu0
  %v273 = vadd.f32 %v24, %v231
  %v274 = vadd.f32 %v25, %v244
  %v275 = vadd.f32 %v26, %v257
  %v276 = vadd.f32 %v27, %v270
  %v277 = vmul.f32 %v273, 0.5
  %v278 = vtanh.pop %v277
  %v279 = vadd.f32 %v278, 1.0
  %v280 = vmul.f32 %v279, 0.5
  %v281 = vmul.f32 %v274, 0.5
  %v282 = vtanh.pop %v281
  %v283 = vadd.f32 %v282, 1.0
  %v284 = vmul.f32 %v283, 0.5
  %v285 = vtanh.pop %v275
  %v286 = vmul.f32 %v276, 0.5
  %v287 = vtanh.pop %v286
  %v288 = vadd.f32 %v287, 1.0
  %v289 = vmul.f32 %v288, 0.5
  %v290 = vmul.f32 %v284, %v23
  %v291 = vmul.f32 %v280, %v285
  %v292 = vadd.f32 %v290, %v291
  %v293 = vtanh.pop %v292
  %v294 = vmul.f32 %v289, %v293
  %v295 = vstv %s21
  %vm296 = vcmp.lt.s32.totalorder %v295, %v20
  %v297 = vsel %vm296, 1, 0
  %298 = vset.pattern.permute.xlu0 0
  %299 = vperm.xlu0 %298, %v297
  %v300 = vpop.permute.xlu0 %299
  %vm301 = vcmp.eq.s32.totalorder %v300, 1
  %v302 = vsel %vm301, %v292, %v23
  %v303 = vsel %vm301, %v294, %v22
  %v304 = vsel %vm301, %v294, 0.0
  %v306 = vrot.slane %v304, 1
  %v307 = vrot.slane %v304, 2
  %v308 = vrot.slane %v304, 3
  %v309 = vrot.slane %v304, 4
  %314 = vst [vmem:[%s3] sm:$0x1] %v304
  %315 = vst [vmem:[%s3 + $0x8] sm:$0x1] %v306
  %316 = vst [vmem:[%s3 + $0x10] sm:$0x1] %v307
  %317 = vst [vmem:[%s3 + $0x18] sm:$0x1] %v308
  %318 = vst [vmem:[%s3 + $0x20] sm:$0x1] %v309
  %s319 = scalar_lea.vmem %s0, 32
  %v320 = vld [vmem:[%s319] sm:$0x1f]
  %v321 = vld [vmem:[%s319 + $0x8] sm:$0x1f]
  %v322 = vld [vmem:[%s319 + $0x10] sm:$0x1f]
  %v323 = vld [vmem:[%s319 + $0x18] sm:$0x1f]
  %v324 = vpack.c.bf16 %v303, %v303
  %v325 = vld [vmem:[%s2] sm:$0xff]
  %v326 = vld [vmem:[%s2 + $0x8] sm:$0xff]
  %v327 = vld [vmem:[%s2 + $0x10] sm:$0xff]
  %v328 = vld [vmem:[%s2 + $0x18] sm:$0xff]
  %v329 = vld [vmem:[%s2 + $0x20] sm:$0xff]
  %v330 = vld [vmem:[%s2 + $0x28] sm:$0xff]
  %v331 = vld [vmem:[%s2 + $0x30] sm:$0xff]
  %v332 = vld [vmem:[%s2 + $0x38] sm:$0xff]
  %v333 = vld [vmem:[%s2 + $0x40] sm:$0xff]
  %v334 = vld [vmem:[%s2 + $0x48] sm:$0xff]
  %v335 = vld [vmem:[%s2 + $0x50] sm:$0xff]
  %v336 = vld [vmem:[%s2 + $0x58] sm:$0xff]
  %v337 = vld [vmem:[%s2 + $0x60] sm:$0xff]
  %v338 = vld [vmem:[%s2 + $0x68] sm:$0xff]
  %v339 = vld [vmem:[%s2 + $0x70] sm:$0xff]
  %v340 = vld [vmem:[%s2 + $0x78] sm:$0xff]
  %v341 = vld [vmem:[%s2 + $0x80] sm:$0xff]
  %v342 = vld [vmem:[%s2 + $0x88] sm:$0xff]
  %v343 = vld [vmem:[%s2 + $0x90] sm:$0xff]
  %v344 = vld [vmem:[%s2 + $0x98] sm:$0xff]
  %v345 = vld [vmem:[%s2 + $0xa0] sm:$0xff]
  %v346 = vld [vmem:[%s2 + $0xa8] sm:$0xff]
  %v347 = vld [vmem:[%s2 + $0xb0] sm:$0xff]
  %v348 = vld [vmem:[%s2 + $0xb8] sm:$0xff]
  %v349 = vld [vmem:[%s2 + $0xc0] sm:$0xff]
  %v350 = vld [vmem:[%s2 + $0xc8] sm:$0xff]
  %v351 = vld [vmem:[%s2 + $0xd0] sm:$0xff]
  %v352 = vld [vmem:[%s2 + $0xd8] sm:$0xff]
  %v353 = vld [vmem:[%s2 + $0xe0] sm:$0xff]
  %v354 = vld [vmem:[%s2 + $0xe8] sm:$0xff]
  %v355 = vld [vmem:[%s2 + $0xf0] sm:$0xff]
  %v356 = vld [vmem:[%s2 + $0xf8] sm:$0xff]
  %v389 = vunpack.c.l.b16 %v325
  %v390 = vunpack.c.h.b16 %v325
  %v391 = vunpack.c.l.b16 %v326
  %v392 = vunpack.c.h.b16 %v326
  %v393 = vunpack.c.l.b16 %v327
  %v394 = vunpack.c.h.b16 %v327
  %v395 = vunpack.c.l.b16 %v328
  %v396 = vunpack.c.h.b16 %v328
  %v397 = vunpack.c.l.b16 %v329
  %v398 = vunpack.c.h.b16 %v329
  %v399 = vunpack.c.l.b16 %v330
  %v400 = vunpack.c.h.b16 %v330
  %v401 = vunpack.c.l.b16 %v331
  %v402 = vunpack.c.h.b16 %v331
  %v403 = vunpack.c.l.b16 %v332
  %v404 = vunpack.c.h.b16 %v332
  %v405 = vunpack.c.l.b16 %v333
  %v406 = vunpack.c.h.b16 %v333
  %v407 = vunpack.c.l.b16 %v334
  %v408 = vunpack.c.h.b16 %v334
  %v409 = vunpack.c.l.b16 %v335
  %v410 = vunpack.c.h.b16 %v335
  %v411 = vunpack.c.l.b16 %v336
  %v412 = vunpack.c.h.b16 %v336
  %v413 = vunpack.c.l.b16 %v337
  %v414 = vunpack.c.h.b16 %v337
  %v415 = vunpack.c.l.b16 %v338
  %v416 = vunpack.c.h.b16 %v338
  %v417 = vunpack.c.l.b16 %v339
  %v418 = vunpack.c.h.b16 %v339
  %v419 = vunpack.c.l.b16 %v340
  %v420 = vunpack.c.h.b16 %v340
  %v421 = vunpack.c.l.b16 %v341
  %v422 = vunpack.c.h.b16 %v341
  %v423 = vunpack.c.l.b16 %v342
  %v424 = vunpack.c.h.b16 %v342
  %v425 = vunpack.c.l.b16 %v343
  %v426 = vunpack.c.h.b16 %v343
  %v427 = vunpack.c.l.b16 %v344
  %v428 = vunpack.c.h.b16 %v344
  %v429 = vunpack.c.l.b16 %v345
  %v430 = vunpack.c.h.b16 %v345
  %v431 = vunpack.c.l.b16 %v346
  %v432 = vunpack.c.h.b16 %v346
  %v433 = vunpack.c.l.b16 %v347
  %v434 = vunpack.c.h.b16 %v347
  %v435 = vunpack.c.l.b16 %v348
  %v436 = vunpack.c.h.b16 %v348
  %v437 = vunpack.c.l.b16 %v349
  %v438 = vunpack.c.h.b16 %v349
  %v439 = vunpack.c.l.b16 %v350
  %v440 = vunpack.c.h.b16 %v350
  %v441 = vunpack.c.l.b16 %v351
  %v442 = vunpack.c.h.b16 %v351
  %v443 = vunpack.c.l.b16 %v352
  %v444 = vunpack.c.h.b16 %v352
  %v445 = vunpack.c.l.b16 %v353
  %v446 = vunpack.c.h.b16 %v353
  %v447 = vunpack.c.l.b16 %v354
  %v448 = vunpack.c.h.b16 %v354
  %v449 = vunpack.c.l.b16 %v355
  %v450 = vunpack.c.h.b16 %v355
  %v451 = vunpack.c.l.b16 %v356
  %v452 = vunpack.c.h.b16 %v356
  %v453 = vpack.c.b16 %v393, %v389
  %v454 = vpack.c.b16 %v394, %v390
  %v455 = vpack.c.b16 %v395, %v391
  %v456 = vpack.c.b16 %v396, %v392
  %v457 = vpack.c.b16 %v401, %v397
  %v458 = vpack.c.b16 %v402, %v398
  %v459 = vpack.c.b16 %v403, %v399
  %v460 = vpack.c.b16 %v404, %v400
  %v461 = vpack.c.b16 %v409, %v405
  %v462 = vpack.c.b16 %v410, %v406
  %v463 = vpack.c.b16 %v411, %v407
  %v464 = vpack.c.b16 %v412, %v408
  %v465 = vpack.c.b16 %v417, %v413
  %v466 = vpack.c.b16 %v418, %v414
  %v467 = vpack.c.b16 %v419, %v415
  %v468 = vpack.c.b16 %v420, %v416
  %v469 = vpack.c.b16 %v425, %v421
  %v470 = vpack.c.b16 %v426, %v422
  %v471 = vpack.c.b16 %v427, %v423
  %v472 = vpack.c.b16 %v428, %v424
  %v473 = vpack.c.b16 %v433, %v429
  %v474 = vpack.c.b16 %v434, %v430
  %v475 = vpack.c.b16 %v435, %v431
  %v476 = vpack.c.b16 %v436, %v432
  %v477 = vpack.c.b16 %v441, %v437
  %v478 = vpack.c.b16 %v442, %v438
  %v479 = vpack.c.b16 %v443, %v439
  %v480 = vpack.c.b16 %v444, %v440
  %v481 = vpack.c.b16 %v449, %v445
  %v482 = vpack.c.b16 %v450, %v446
  %v483 = vpack.c.b16 %v451, %v447
  %v484 = vpack.c.b16 %v452, %v448
  %517 = vmatpush.bf16.msra.mxu0 %v481
  %518 = vmatpush.bf16.msra.mxu0 %v477
  %519 = vmatpush.bf16.msra.mxu0 %v473
  %520 = vmatpush.bf16.msra.mxu0 %v469
  %521 = vmatpush.bf16.msra.mxu0 %v465
  %522 = vmatpush.bf16.msra.mxu0 %v461
  %523 = vmatpush.bf16.msra.mxu0 %v457
  %524 = vmatpush.bf16.msra.mxu0 %v453
  %525 = vmatmul.bf16.gmra.mxu0 %v324
  %v526 = vpop.f32.mrf.mxu0
  %v527 = vadd.f32 0.0, %v526
  %v528 = vpop.f32.mrf.mxu0
  %529 = vdwg.mxu0
  %530 = vmatpush.bf16.msra.mxu0 %v482
  %531 = vmatpush.bf16.msra.mxu0 %v478
  %532 = vmatpush.bf16.msra.mxu0 %v474
  %533 = vmatpush.bf16.msra.mxu0 %v470
  %534 = vmatpush.bf16.msra.mxu0 %v466
  %535 = vmatpush.bf16.msra.mxu0 %v462
  %536 = vmatpush.bf16.msra.mxu0 %v458
  %537 = vmatpush.bf16.msra.mxu0 %v454
  %538 = vmatmul.bf16.gmra.mxu0 %v324
  %v539 = vpop.f32.mrf.mxu0
  %v540 = vadd.f32 0.0, %v539
  %v541 = vpop.f32.mrf.mxu0
  %542 = vdwg.mxu0
  %543 = vmatpush.bf16.msra.mxu0 %v483
  %544 = vmatpush.bf16.msra.mxu0 %v479
  %545 = vmatpush.bf16.msra.mxu0 %v475
  %546 = vmatpush.bf16.msra.mxu0 %v471
  %547 = vmatpush.bf16.msra.mxu0 %v467
  %548 = vmatpush.bf16.msra.mxu0 %v463
  %549 = vmatpush.bf16.msra.mxu0 %v459
  %550 = vmatpush.bf16.msra.mxu0 %v455
  %551 = vmatmul.bf16.gmra.mxu0 %v324
  %v552 = vpop.f32.mrf.mxu0
  %v553 = vadd.f32 0.0, %v552
  %v554 = vpop.f32.mrf.mxu0
  %555 = vdwg.mxu0
  %556 = vmatpush.bf16.msra.mxu0 %v484
  %557 = vmatpush.bf16.msra.mxu0 %v480
  %558 = vmatpush.bf16.msra.mxu0 %v476
  %559 = vmatpush.bf16.msra.mxu0 %v472
  %560 = vmatpush.bf16.msra.mxu0 %v468
  %561 = vmatpush.bf16.msra.mxu0 %v464
  %562 = vmatpush.bf16.msra.mxu0 %v460
  %563 = vmatpush.bf16.msra.mxu0 %v456
  %564 = vmatmul.bf16.gmra.mxu0 %v324
  %v565 = vpop.f32.mrf.mxu0
  %v566 = vadd.f32 0.0, %v565
  %v567 = vpop.f32.mrf.mxu0
  %568 = vdwg.mxu0
  %v569 = vadd.f32 %v320, %v527
  %v570 = vadd.f32 %v321, %v540
  %v571 = vadd.f32 %v322, %v553
  %v572 = vadd.f32 %v323, %v566
  %v573 = vmul.f32 %v569, 0.5
  %v574 = vtanh.pop %v573
  %v575 = vadd.f32 %v574, 1.0
  %v576 = vmul.f32 %v575, 0.5
  %v577 = vmul.f32 %v570, 0.5
  %v578 = vtanh.pop %v577
  %v579 = vadd.f32 %v578, 1.0
  %v580 = vmul.f32 %v579, 0.5
  %v581 = vtanh.pop %v571
  %v582 = vmul.f32 %v572, 0.5
  %v583 = vtanh.pop %v582
  %v584 = vadd.f32 %v583, 1.0
  %v585 = vmul.f32 %v584, 0.5
  %v586 = vmul.f32 %v580, %v302
  %v587 = vmul.f32 %v576, %v581
  %v588 = vadd.f32 %v586, %v587
  %v589 = vtanh.pop %v588
  %v590 = vmul.f32 %v585, %v589
  %s591 = sadd.s32 %s21, 1
  %v592 = vstv %s591
  %vm593 = vcmp.lt.s32.totalorder %v592, %v20
  %v594 = vsel %vm593, 1, 0
  %595 = vset.pattern.permute.xlu0 0
  %596 = vperm.xlu0 %595, %v594
  %v597 = vpop.permute.xlu0 %596
  %vm598 = vcmp.eq.s32.totalorder %v597, 1
  %v599 = vsel %vm598, %v588, %v302
  %v600 = vsel %vm598, %v590, %v303
  %v601 = vsel %vm598, %v590, 0.0
  %v603 = vrot.slane %v601, 1
  %v604 = vrot.slane %v601, 2
  %v605 = vrot.slane %v601, 3
  %v606 = vrot.slane %v601, 4
  %611 = vst [vmem:[%s3 + $0x1] sm:$0x1] %v601
  %612 = vst [vmem:[%s3 + $0x9] sm:$0x1] %v603
  %613 = vst [vmem:[%s3 + $0x11] sm:$0x1] %v604
  %614 = vst [vmem:[%s3 + $0x19] sm:$0x1] %v605
  %615 = vst [vmem:[%s3 + $0x21] sm:$0x1] %v606
  %s616 = scalar_lea.vmem %s0, 64
  %v617 = vld [vmem:[%s616] sm:$0x1f]
  %v618 = vld [vmem:[%s616 + $0x8] sm:$0x1f]
  %v619 = vld [vmem:[%s616 + $0x10] sm:$0x1f]
  %v620 = vld [vmem:[%s616 + $0x18] sm:$0x1f]
  %v621 = vpack.c.bf16 %v600, %v600
  %v622 = vld [vmem:[%s2] sm:$0xff]
  %v623 = vld [vmem:[%s2 + $0x8] sm:$0xff]
  %v624 = vld [vmem:[%s2 + $0x10] sm:$0xff]
  %v625 = vld [vmem:[%s2 + $0x18] sm:$0xff]
  %v626 = vld [vmem:[%s2 + $0x20] sm:$0xff]
  %v627 = vld [vmem:[%s2 + $0x28] sm:$0xff]
  %v628 = vld [vmem:[%s2 + $0x30] sm:$0xff]
  %v629 = vld [vmem:[%s2 + $0x38] sm:$0xff]
  %v630 = vld [vmem:[%s2 + $0x40] sm:$0xff]
  %v631 = vld [vmem:[%s2 + $0x48] sm:$0xff]
  %v632 = vld [vmem:[%s2 + $0x50] sm:$0xff]
  %v633 = vld [vmem:[%s2 + $0x58] sm:$0xff]
  %v634 = vld [vmem:[%s2 + $0x60] sm:$0xff]
  %v635 = vld [vmem:[%s2 + $0x68] sm:$0xff]
  %v636 = vld [vmem:[%s2 + $0x70] sm:$0xff]
  %v637 = vld [vmem:[%s2 + $0x78] sm:$0xff]
  %v638 = vld [vmem:[%s2 + $0x80] sm:$0xff]
  %v639 = vld [vmem:[%s2 + $0x88] sm:$0xff]
  %v640 = vld [vmem:[%s2 + $0x90] sm:$0xff]
  %v641 = vld [vmem:[%s2 + $0x98] sm:$0xff]
  %v642 = vld [vmem:[%s2 + $0xa0] sm:$0xff]
  %v643 = vld [vmem:[%s2 + $0xa8] sm:$0xff]
  %v644 = vld [vmem:[%s2 + $0xb0] sm:$0xff]
  %v645 = vld [vmem:[%s2 + $0xb8] sm:$0xff]
  %v646 = vld [vmem:[%s2 + $0xc0] sm:$0xff]
  %v647 = vld [vmem:[%s2 + $0xc8] sm:$0xff]
  %v648 = vld [vmem:[%s2 + $0xd0] sm:$0xff]
  %v649 = vld [vmem:[%s2 + $0xd8] sm:$0xff]
  %v650 = vld [vmem:[%s2 + $0xe0] sm:$0xff]
  %v651 = vld [vmem:[%s2 + $0xe8] sm:$0xff]
  %v652 = vld [vmem:[%s2 + $0xf0] sm:$0xff]
  %v653 = vld [vmem:[%s2 + $0xf8] sm:$0xff]
  %v686 = vunpack.c.l.b16 %v622
  %v687 = vunpack.c.h.b16 %v622
  %v688 = vunpack.c.l.b16 %v623
  %v689 = vunpack.c.h.b16 %v623
  %v690 = vunpack.c.l.b16 %v624
  %v691 = vunpack.c.h.b16 %v624
  %v692 = vunpack.c.l.b16 %v625
  %v693 = vunpack.c.h.b16 %v625
  %v694 = vunpack.c.l.b16 %v626
  %v695 = vunpack.c.h.b16 %v626
  %v696 = vunpack.c.l.b16 %v627
  %v697 = vunpack.c.h.b16 %v627
  %v698 = vunpack.c.l.b16 %v628
  %v699 = vunpack.c.h.b16 %v628
  %v700 = vunpack.c.l.b16 %v629
  %v701 = vunpack.c.h.b16 %v629
  %v702 = vunpack.c.l.b16 %v630
  %v703 = vunpack.c.h.b16 %v630
  %v704 = vunpack.c.l.b16 %v631
  %v705 = vunpack.c.h.b16 %v631
  %v706 = vunpack.c.l.b16 %v632
  %v707 = vunpack.c.h.b16 %v632
  %v708 = vunpack.c.l.b16 %v633
  %v709 = vunpack.c.h.b16 %v633
  %v710 = vunpack.c.l.b16 %v634
  %v711 = vunpack.c.h.b16 %v634
  %v712 = vunpack.c.l.b16 %v635
  %v713 = vunpack.c.h.b16 %v635
  %v714 = vunpack.c.l.b16 %v636
  %v715 = vunpack.c.h.b16 %v636
  %v716 = vunpack.c.l.b16 %v637
  %v717 = vunpack.c.h.b16 %v637
  %v718 = vunpack.c.l.b16 %v638
  %v719 = vunpack.c.h.b16 %v638
  %v720 = vunpack.c.l.b16 %v639
  %v721 = vunpack.c.h.b16 %v639
  %v722 = vunpack.c.l.b16 %v640
  %v723 = vunpack.c.h.b16 %v640
  %v724 = vunpack.c.l.b16 %v641
  %v725 = vunpack.c.h.b16 %v641
  %v726 = vunpack.c.l.b16 %v642
  %v727 = vunpack.c.h.b16 %v642
  %v728 = vunpack.c.l.b16 %v643
  %v729 = vunpack.c.h.b16 %v643
  %v730 = vunpack.c.l.b16 %v644
  %v731 = vunpack.c.h.b16 %v644
  %v732 = vunpack.c.l.b16 %v645
  %v733 = vunpack.c.h.b16 %v645
  %v734 = vunpack.c.l.b16 %v646
  %v735 = vunpack.c.h.b16 %v646
  %v736 = vunpack.c.l.b16 %v647
  %v737 = vunpack.c.h.b16 %v647
  %v738 = vunpack.c.l.b16 %v648
  %v739 = vunpack.c.h.b16 %v648
  %v740 = vunpack.c.l.b16 %v649
  %v741 = vunpack.c.h.b16 %v649
  %v742 = vunpack.c.l.b16 %v650
  %v743 = vunpack.c.h.b16 %v650
  %v744 = vunpack.c.l.b16 %v651
  %v745 = vunpack.c.h.b16 %v651
  %v746 = vunpack.c.l.b16 %v652
  %v747 = vunpack.c.h.b16 %v652
  %v748 = vunpack.c.l.b16 %v653
  %v749 = vunpack.c.h.b16 %v653
  %v750 = vpack.c.b16 %v690, %v686
  %v751 = vpack.c.b16 %v691, %v687
  %v752 = vpack.c.b16 %v692, %v688
  %v753 = vpack.c.b16 %v693, %v689
  %v754 = vpack.c.b16 %v698, %v694
  %v755 = vpack.c.b16 %v699, %v695
  %v756 = vpack.c.b16 %v700, %v696
  %v757 = vpack.c.b16 %v701, %v697
  %v758 = vpack.c.b16 %v706, %v702
  %v759 = vpack.c.b16 %v707, %v703
  %v760 = vpack.c.b16 %v708, %v704
  %v761 = vpack.c.b16 %v709, %v705
  %v762 = vpack.c.b16 %v714, %v710
  %v763 = vpack.c.b16 %v715, %v711
  %v764 = vpack.c.b16 %v716, %v712
  %v765 = vpack.c.b16 %v717, %v713
  %v766 = vpack.c.b16 %v722, %v718
  %v767 = vpack.c.b16 %v723, %v719
  %v768 = vpack.c.b16 %v724, %v720
  %v769 = vpack.c.b16 %v725, %v721
  %v770 = vpack.c.b16 %v730, %v726
  %v771 = vpack.c.b16 %v731, %v727
  %v772 = vpack.c.b16 %v732, %v728
  %v773 = vpack.c.b16 %v733, %v729
  %v774 = vpack.c.b16 %v738, %v734
  %v775 = vpack.c.b16 %v739, %v735
  %v776 = vpack.c.b16 %v740, %v736
  %v777 = vpack.c.b16 %v741, %v737
  %v778 = vpack.c.b16 %v746, %v742
  %v779 = vpack.c.b16 %v747, %v743
  %v780 = vpack.c.b16 %v748, %v744
  %v781 = vpack.c.b16 %v749, %v745
  %814 = vmatpush.bf16.msra.mxu0 %v778
  %815 = vmatpush.bf16.msra.mxu0 %v774
  %816 = vmatpush.bf16.msra.mxu0 %v770
  %817 = vmatpush.bf16.msra.mxu0 %v766
  %818 = vmatpush.bf16.msra.mxu0 %v762
  %819 = vmatpush.bf16.msra.mxu0 %v758
  %820 = vmatpush.bf16.msra.mxu0 %v754
  %821 = vmatpush.bf16.msra.mxu0 %v750
  %822 = vmatmul.bf16.gmra.mxu0 %v621
  %v823 = vpop.f32.mrf.mxu0
  %v824 = vadd.f32 0.0, %v823
  %v825 = vpop.f32.mrf.mxu0
  %826 = vdwg.mxu0
  %827 = vmatpush.bf16.msra.mxu0 %v779
  %828 = vmatpush.bf16.msra.mxu0 %v775
  %829 = vmatpush.bf16.msra.mxu0 %v771
  %830 = vmatpush.bf16.msra.mxu0 %v767
  %831 = vmatpush.bf16.msra.mxu0 %v763
  %832 = vmatpush.bf16.msra.mxu0 %v759
  %833 = vmatpush.bf16.msra.mxu0 %v755
  %834 = vmatpush.bf16.msra.mxu0 %v751
  %835 = vmatmul.bf16.gmra.mxu0 %v621
  %v836 = vpop.f32.mrf.mxu0
  %v837 = vadd.f32 0.0, %v836
  %v838 = vpop.f32.mrf.mxu0
  %839 = vdwg.mxu0
  %840 = vmatpush.bf16.msra.mxu0 %v780
  %841 = vmatpush.bf16.msra.mxu0 %v776
  %842 = vmatpush.bf16.msra.mxu0 %v772
  %843 = vmatpush.bf16.msra.mxu0 %v768
  %844 = vmatpush.bf16.msra.mxu0 %v764
  %845 = vmatpush.bf16.msra.mxu0 %v760
  %846 = vmatpush.bf16.msra.mxu0 %v756
  %847 = vmatpush.bf16.msra.mxu0 %v752
  %848 = vmatmul.bf16.gmra.mxu0 %v621
  %v849 = vpop.f32.mrf.mxu0
  %v850 = vadd.f32 0.0, %v849
  %v851 = vpop.f32.mrf.mxu0
  %852 = vdwg.mxu0
  %853 = vmatpush.bf16.msra.mxu0 %v781
  %854 = vmatpush.bf16.msra.mxu0 %v777
  %855 = vmatpush.bf16.msra.mxu0 %v773
  %856 = vmatpush.bf16.msra.mxu0 %v769
  %857 = vmatpush.bf16.msra.mxu0 %v765
  %858 = vmatpush.bf16.msra.mxu0 %v761
  %859 = vmatpush.bf16.msra.mxu0 %v757
  %860 = vmatpush.bf16.msra.mxu0 %v753
  %861 = vmatmul.bf16.gmra.mxu0 %v621
  %v862 = vpop.f32.mrf.mxu0
  %v863 = vadd.f32 0.0, %v862
  %v864 = vpop.f32.mrf.mxu0
  %865 = vdwg.mxu0
  %v866 = vadd.f32 %v617, %v824
  %v867 = vadd.f32 %v618, %v837
  %v868 = vadd.f32 %v619, %v850
  %v869 = vadd.f32 %v620, %v863
  %v870 = vmul.f32 %v866, 0.5
  %v871 = vtanh.pop %v870
  %v872 = vadd.f32 %v871, 1.0
  %v873 = vmul.f32 %v872, 0.5
  %v874 = vmul.f32 %v867, 0.5
  %v875 = vtanh.pop %v874
  %v876 = vadd.f32 %v875, 1.0
  %v877 = vmul.f32 %v876, 0.5
  %v878 = vtanh.pop %v868
  %v879 = vmul.f32 %v869, 0.5
  %v880 = vtanh.pop %v879
  %v881 = vadd.f32 %v880, 1.0
  %v882 = vmul.f32 %v881, 0.5
  %v883 = vmul.f32 %v877, %v599
  %v884 = vmul.f32 %v873, %v878
  %v885 = vadd.f32 %v883, %v884
  %v886 = vtanh.pop %v885
  %v887 = vmul.f32 %v882, %v886
  %s888 = sadd.s32 %s21, 2
  %v889 = vstv %s888
  %vm890 = vcmp.lt.s32.totalorder %v889, %v20
  %v891 = vsel %vm890, 1, 0
  %892 = vset.pattern.permute.xlu0 0
  %893 = vperm.xlu0 %892, %v891
  %v894 = vpop.permute.xlu0 %893
  %vm895 = vcmp.eq.s32.totalorder %v894, 1
  %v896 = vsel %vm895, %v885, %v599
  %v897 = vsel %vm895, %v887, %v600
  %v898 = vsel %vm895, %v887, 0.0
  %v900 = vrot.slane %v898, 1
  %v901 = vrot.slane %v898, 2
  %v902 = vrot.slane %v898, 3
  %v903 = vrot.slane %v898, 4
  %908 = vst [vmem:[%s3 + $0x2] sm:$0x1] %v898
  %909 = vst [vmem:[%s3 + $0xa] sm:$0x1] %v900
  %910 = vst [vmem:[%s3 + $0x12] sm:$0x1] %v901
  %911 = vst [vmem:[%s3 + $0x1a] sm:$0x1] %v902
  %912 = vst [vmem:[%s3 + $0x22] sm:$0x1] %v903
  %s913 = scalar_lea.vmem %s0, 96
  %v914 = vld [vmem:[%s913] sm:$0x1f]
  %v915 = vld [vmem:[%s913 + $0x8] sm:$0x1f]
  %v916 = vld [vmem:[%s913 + $0x10] sm:$0x1f]
  %v917 = vld [vmem:[%s913 + $0x18] sm:$0x1f]
  %v918 = vpack.c.bf16 %v897, %v897
  %v919 = vld [vmem:[%s2] sm:$0xff]
  %v920 = vld [vmem:[%s2 + $0x8] sm:$0xff]
  %v921 = vld [vmem:[%s2 + $0x10] sm:$0xff]
  %v922 = vld [vmem:[%s2 + $0x18] sm:$0xff]
  %v923 = vld [vmem:[%s2 + $0x20] sm:$0xff]
  %v924 = vld [vmem:[%s2 + $0x28] sm:$0xff]
  %v925 = vld [vmem:[%s2 + $0x30] sm:$0xff]
  %v926 = vld [vmem:[%s2 + $0x38] sm:$0xff]
  %v927 = vld [vmem:[%s2 + $0x40] sm:$0xff]
  %v928 = vld [vmem:[%s2 + $0x48] sm:$0xff]
  %v929 = vld [vmem:[%s2 + $0x50] sm:$0xff]
  %v930 = vld [vmem:[%s2 + $0x58] sm:$0xff]
  %v931 = vld [vmem:[%s2 + $0x60] sm:$0xff]
  %v932 = vld [vmem:[%s2 + $0x68] sm:$0xff]
  %v933 = vld [vmem:[%s2 + $0x70] sm:$0xff]
  %v934 = vld [vmem:[%s2 + $0x78] sm:$0xff]
  %v935 = vld [vmem:[%s2 + $0x80] sm:$0xff]
  %v936 = vld [vmem:[%s2 + $0x88] sm:$0xff]
  %v937 = vld [vmem:[%s2 + $0x90] sm:$0xff]
  %v938 = vld [vmem:[%s2 + $0x98] sm:$0xff]
  %v939 = vld [vmem:[%s2 + $0xa0] sm:$0xff]
  %v940 = vld [vmem:[%s2 + $0xa8] sm:$0xff]
  %v941 = vld [vmem:[%s2 + $0xb0] sm:$0xff]
  %v942 = vld [vmem:[%s2 + $0xb8] sm:$0xff]
  %v943 = vld [vmem:[%s2 + $0xc0] sm:$0xff]
  %v944 = vld [vmem:[%s2 + $0xc8] sm:$0xff]
  %v945 = vld [vmem:[%s2 + $0xd0] sm:$0xff]
  %v946 = vld [vmem:[%s2 + $0xd8] sm:$0xff]
  %v947 = vld [vmem:[%s2 + $0xe0] sm:$0xff]
  %v948 = vld [vmem:[%s2 + $0xe8] sm:$0xff]
  %v949 = vld [vmem:[%s2 + $0xf0] sm:$0xff]
  %v950 = vld [vmem:[%s2 + $0xf8] sm:$0xff]
  %v983 = vunpack.c.l.b16 %v919
  %v984 = vunpack.c.h.b16 %v919
  %v985 = vunpack.c.l.b16 %v920
  %v986 = vunpack.c.h.b16 %v920
  %v987 = vunpack.c.l.b16 %v921
  %v988 = vunpack.c.h.b16 %v921
  %v989 = vunpack.c.l.b16 %v922
  %v990 = vunpack.c.h.b16 %v922
  %v991 = vunpack.c.l.b16 %v923
  %v992 = vunpack.c.h.b16 %v923
  %v993 = vunpack.c.l.b16 %v924
  %v994 = vunpack.c.h.b16 %v924
  %v995 = vunpack.c.l.b16 %v925
  %v996 = vunpack.c.h.b16 %v925
  %v997 = vunpack.c.l.b16 %v926
  %v998 = vunpack.c.h.b16 %v926
  %v999 = vunpack.c.l.b16 %v927
  %v1000 = vunpack.c.h.b16 %v927
  %v1001 = vunpack.c.l.b16 %v928
  %v1002 = vunpack.c.h.b16 %v928
  %v1003 = vunpack.c.l.b16 %v929
  %v1004 = vunpack.c.h.b16 %v929
  %v1005 = vunpack.c.l.b16 %v930
  %v1006 = vunpack.c.h.b16 %v930
  %v1007 = vunpack.c.l.b16 %v931
  %v1008 = vunpack.c.h.b16 %v931
  %v1009 = vunpack.c.l.b16 %v932
  %v1010 = vunpack.c.h.b16 %v932
  %v1011 = vunpack.c.l.b16 %v933
  %v1012 = vunpack.c.h.b16 %v933
  %v1013 = vunpack.c.l.b16 %v934
  %v1014 = vunpack.c.h.b16 %v934
  %v1015 = vunpack.c.l.b16 %v935
  %v1016 = vunpack.c.h.b16 %v935
  %v1017 = vunpack.c.l.b16 %v936
  %v1018 = vunpack.c.h.b16 %v936
  %v1019 = vunpack.c.l.b16 %v937
  %v1020 = vunpack.c.h.b16 %v937
  %v1021 = vunpack.c.l.b16 %v938
  %v1022 = vunpack.c.h.b16 %v938
  %v1023 = vunpack.c.l.b16 %v939
  %v1024 = vunpack.c.h.b16 %v939
  %v1025 = vunpack.c.l.b16 %v940
  %v1026 = vunpack.c.h.b16 %v940
  %v1027 = vunpack.c.l.b16 %v941
  %v1028 = vunpack.c.h.b16 %v941
  %v1029 = vunpack.c.l.b16 %v942
  %v1030 = vunpack.c.h.b16 %v942
  %v1031 = vunpack.c.l.b16 %v943
  %v1032 = vunpack.c.h.b16 %v943
  %v1033 = vunpack.c.l.b16 %v944
  %v1034 = vunpack.c.h.b16 %v944
  %v1035 = vunpack.c.l.b16 %v945
  %v1036 = vunpack.c.h.b16 %v945
  %v1037 = vunpack.c.l.b16 %v946
  %v1038 = vunpack.c.h.b16 %v946
  %v1039 = vunpack.c.l.b16 %v947
  %v1040 = vunpack.c.h.b16 %v947
  %v1041 = vunpack.c.l.b16 %v948
  %v1042 = vunpack.c.h.b16 %v948
  %v1043 = vunpack.c.l.b16 %v949
  %v1044 = vunpack.c.h.b16 %v949
  %v1045 = vunpack.c.l.b16 %v950
  %v1046 = vunpack.c.h.b16 %v950
  %v1047 = vpack.c.b16 %v987, %v983
  %v1048 = vpack.c.b16 %v988, %v984
  %v1049 = vpack.c.b16 %v989, %v985
  %v1050 = vpack.c.b16 %v990, %v986
  %v1051 = vpack.c.b16 %v995, %v991
  %v1052 = vpack.c.b16 %v996, %v992
  %v1053 = vpack.c.b16 %v997, %v993
  %v1054 = vpack.c.b16 %v998, %v994
  %v1055 = vpack.c.b16 %v1003, %v999
  %v1056 = vpack.c.b16 %v1004, %v1000
  %v1057 = vpack.c.b16 %v1005, %v1001
  %v1058 = vpack.c.b16 %v1006, %v1002
  %v1059 = vpack.c.b16 %v1011, %v1007
  %v1060 = vpack.c.b16 %v1012, %v1008
  %v1061 = vpack.c.b16 %v1013, %v1009
  %v1062 = vpack.c.b16 %v1014, %v1010
  %v1063 = vpack.c.b16 %v1019, %v1015
  %v1064 = vpack.c.b16 %v1020, %v1016
  %v1065 = vpack.c.b16 %v1021, %v1017
  %v1066 = vpack.c.b16 %v1022, %v1018
  %v1067 = vpack.c.b16 %v1027, %v1023
  %v1068 = vpack.c.b16 %v1028, %v1024
  %v1069 = vpack.c.b16 %v1029, %v1025
  %v1070 = vpack.c.b16 %v1030, %v1026
  %v1071 = vpack.c.b16 %v1035, %v1031
  %v1072 = vpack.c.b16 %v1036, %v1032
  %v1073 = vpack.c.b16 %v1037, %v1033
  %v1074 = vpack.c.b16 %v1038, %v1034
  %v1075 = vpack.c.b16 %v1043, %v1039
  %v1076 = vpack.c.b16 %v1044, %v1040
  %v1077 = vpack.c.b16 %v1045, %v1041
  %v1078 = vpack.c.b16 %v1046, %v1042
  %1111 = vmatpush.bf16.msra.mxu0 %v1075
  %1112 = vmatpush.bf16.msra.mxu0 %v1071
  %1113 = vmatpush.bf16.msra.mxu0 %v1067
  %1114 = vmatpush.bf16.msra.mxu0 %v1063
  %1115 = vmatpush.bf16.msra.mxu0 %v1059
  %1116 = vmatpush.bf16.msra.mxu0 %v1055
  %1117 = vmatpush.bf16.msra.mxu0 %v1051
  %1118 = vmatpush.bf16.msra.mxu0 %v1047
  %1119 = vmatmul.bf16.gmra.mxu0 %v918
  %v1120 = vpop.f32.mrf.mxu0
  %v1121 = vadd.f32 0.0, %v1120
  %v1122 = vpop.f32.mrf.mxu0
  %1123 = vdwg.mxu0
  %1124 = vmatpush.bf16.msra.mxu0 %v1076
  %1125 = vmatpush.bf16.msra.mxu0 %v1072
  %1126 = vmatpush.bf16.msra.mxu0 %v1068
  %1127 = vmatpush.bf16.msra.mxu0 %v1064
  %1128 = vmatpush.bf16.msra.mxu0 %v1060
  %1129 = vmatpush.bf16.msra.mxu0 %v1056
  %1130 = vmatpush.bf16.msra.mxu0 %v1052
  %1131 = vmatpush.bf16.msra.mxu0 %v1048
  %1132 = vmatmul.bf16.gmra.mxu0 %v918
  %v1133 = vpop.f32.mrf.mxu0
  %v1134 = vadd.f32 0.0, %v1133
  %v1135 = vpop.f32.mrf.mxu0
  %1136 = vdwg.mxu0
  %1137 = vmatpush.bf16.msra.mxu0 %v1077
  %1138 = vmatpush.bf16.msra.mxu0 %v1073
  %1139 = vmatpush.bf16.msra.mxu0 %v1069
  %1140 = vmatpush.bf16.msra.mxu0 %v1065
  %1141 = vmatpush.bf16.msra.mxu0 %v1061
  %1142 = vmatpush.bf16.msra.mxu0 %v1057
  %1143 = vmatpush.bf16.msra.mxu0 %v1053
  %1144 = vmatpush.bf16.msra.mxu0 %v1049
  %1145 = vmatmul.bf16.gmra.mxu0 %v918
  %v1146 = vpop.f32.mrf.mxu0
  %v1147 = vadd.f32 0.0, %v1146
  %v1148 = vpop.f32.mrf.mxu0
  %1149 = vdwg.mxu0
  %1150 = vmatpush.bf16.msra.mxu0 %v1078
  %1151 = vmatpush.bf16.msra.mxu0 %v1074
  %1152 = vmatpush.bf16.msra.mxu0 %v1070
  %1153 = vmatpush.bf16.msra.mxu0 %v1066
  %1154 = vmatpush.bf16.msra.mxu0 %v1062
  %1155 = vmatpush.bf16.msra.mxu0 %v1058
  %1156 = vmatpush.bf16.msra.mxu0 %v1054
  %1157 = vmatpush.bf16.msra.mxu0 %v1050
  %1158 = vmatmul.bf16.gmra.mxu0 %v918
  %v1159 = vpop.f32.mrf.mxu0
  %v1160 = vadd.f32 0.0, %v1159
  %v1161 = vpop.f32.mrf.mxu0
  %1162 = vdwg.mxu0
  %v1163 = vadd.f32 %v914, %v1121
  %v1164 = vadd.f32 %v915, %v1134
  %v1165 = vadd.f32 %v916, %v1147
  %v1166 = vadd.f32 %v917, %v1160
  %v1167 = vmul.f32 %v1163, 0.5
  %v1168 = vtanh.pop %v1167
  %v1169 = vadd.f32 %v1168, 1.0
  %v1170 = vmul.f32 %v1169, 0.5
  %v1171 = vmul.f32 %v1164, 0.5
  %v1172 = vtanh.pop %v1171
  %v1173 = vadd.f32 %v1172, 1.0
  %v1174 = vmul.f32 %v1173, 0.5
  %v1175 = vtanh.pop %v1165
  %v1176 = vmul.f32 %v1166, 0.5
  %v1177 = vtanh.pop %v1176
  %v1178 = vadd.f32 %v1177, 1.0
  %v1179 = vmul.f32 %v1178, 0.5
  %v1180 = vmul.f32 %v1174, %v896
  %v1181 = vmul.f32 %v1170, %v1175
  %v1182 = vadd.f32 %v1180, %v1181
  %v1183 = vtanh.pop %v1182
  %v1184 = vmul.f32 %v1179, %v1183
  %s1185 = sadd.s32 %s21, 3
  %v1186 = vstv %s1185
  %vm1187 = vcmp.lt.s32.totalorder %v1186, %v20
  %v1188 = vsel %vm1187, 1, 0
  %1189 = vset.pattern.permute.xlu0 0
  %1190 = vperm.xlu0 %1189, %v1188
  %v1191 = vpop.permute.xlu0 %1190
  %vm1192 = vcmp.eq.s32.totalorder %v1191, 1
  %v1193 = vsel %vm1192, %v1182, %v896
  %v1194 = vsel %vm1192, %v1184, %v897
  %v1195 = vsel %vm1192, %v1184, 0.0
  %v1197 = vrot.slane %v1195, 1
  %v1198 = vrot.slane %v1195, 2
  %v1199 = vrot.slane %v1195, 3
  %v1200 = vrot.slane %v1195, 4
  %1205 = vst [vmem:[%s3 + $0x3] sm:$0x1] %v1195
  %1206 = vst [vmem:[%s3 + $0xb] sm:$0x1] %v1197
  %1207 = vst [vmem:[%s3 + $0x13] sm:$0x1] %v1198
  %1208 = vst [vmem:[%s3 + $0x1b] sm:$0x1] %v1199
  %1209 = vst [vmem:[%s3 + $0x23] sm:$0x1] %v1200
  %s1210 = scalar_lea.vmem %s0, 128
  %v1211 = vld [vmem:[%s1210] sm:$0x1f]
  %v1212 = vld [vmem:[%s1210 + $0x8] sm:$0x1f]
  %v1213 = vld [vmem:[%s1210 + $0x10] sm:$0x1f]
  %v1214 = vld [vmem:[%s1210 + $0x18] sm:$0x1f]
  %v1215 = vpack.c.bf16 %v1194, %v1194
  %v1216 = vld [vmem:[%s2] sm:$0xff]
  %v1217 = vld [vmem:[%s2 + $0x8] sm:$0xff]
  %v1218 = vld [vmem:[%s2 + $0x10] sm:$0xff]
  %v1219 = vld [vmem:[%s2 + $0x18] sm:$0xff]
  %v1220 = vld [vmem:[%s2 + $0x20] sm:$0xff]
  %v1221 = vld [vmem:[%s2 + $0x28] sm:$0xff]
  %v1222 = vld [vmem:[%s2 + $0x30] sm:$0xff]
  %v1223 = vld [vmem:[%s2 + $0x38] sm:$0xff]
  %v1224 = vld [vmem:[%s2 + $0x40] sm:$0xff]
  %v1225 = vld [vmem:[%s2 + $0x48] sm:$0xff]
  %v1226 = vld [vmem:[%s2 + $0x50] sm:$0xff]
  %v1227 = vld [vmem:[%s2 + $0x58] sm:$0xff]
  %v1228 = vld [vmem:[%s2 + $0x60] sm:$0xff]
  %v1229 = vld [vmem:[%s2 + $0x68] sm:$0xff]
  %v1230 = vld [vmem:[%s2 + $0x70] sm:$0xff]
  %v1231 = vld [vmem:[%s2 + $0x78] sm:$0xff]
  %v1232 = vld [vmem:[%s2 + $0x80] sm:$0xff]
  %v1233 = vld [vmem:[%s2 + $0x88] sm:$0xff]
  %v1234 = vld [vmem:[%s2 + $0x90] sm:$0xff]
  %v1235 = vld [vmem:[%s2 + $0x98] sm:$0xff]
  %v1236 = vld [vmem:[%s2 + $0xa0] sm:$0xff]
  %v1237 = vld [vmem:[%s2 + $0xa8] sm:$0xff]
  %v1238 = vld [vmem:[%s2 + $0xb0] sm:$0xff]
  %v1239 = vld [vmem:[%s2 + $0xb8] sm:$0xff]
  %v1240 = vld [vmem:[%s2 + $0xc0] sm:$0xff]
  %v1241 = vld [vmem:[%s2 + $0xc8] sm:$0xff]
  %v1242 = vld [vmem:[%s2 + $0xd0] sm:$0xff]
  %v1243 = vld [vmem:[%s2 + $0xd8] sm:$0xff]
  %v1244 = vld [vmem:[%s2 + $0xe0] sm:$0xff]
  %v1245 = vld [vmem:[%s2 + $0xe8] sm:$0xff]
  %v1246 = vld [vmem:[%s2 + $0xf0] sm:$0xff]
  %v1247 = vld [vmem:[%s2 + $0xf8] sm:$0xff]
  %v1280 = vunpack.c.l.b16 %v1216
  %v1281 = vunpack.c.h.b16 %v1216
  %v1282 = vunpack.c.l.b16 %v1217
  %v1283 = vunpack.c.h.b16 %v1217
  %v1284 = vunpack.c.l.b16 %v1218
  %v1285 = vunpack.c.h.b16 %v1218
  %v1286 = vunpack.c.l.b16 %v1219
  %v1287 = vunpack.c.h.b16 %v1219
  %v1288 = vunpack.c.l.b16 %v1220
  %v1289 = vunpack.c.h.b16 %v1220
  %v1290 = vunpack.c.l.b16 %v1221
  %v1291 = vunpack.c.h.b16 %v1221
  %v1292 = vunpack.c.l.b16 %v1222
  %v1293 = vunpack.c.h.b16 %v1222
  %v1294 = vunpack.c.l.b16 %v1223
  %v1295 = vunpack.c.h.b16 %v1223
  %v1296 = vunpack.c.l.b16 %v1224
  %v1297 = vunpack.c.h.b16 %v1224
  %v1298 = vunpack.c.l.b16 %v1225
  %v1299 = vunpack.c.h.b16 %v1225
  %v1300 = vunpack.c.l.b16 %v1226
  %v1301 = vunpack.c.h.b16 %v1226
  %v1302 = vunpack.c.l.b16 %v1227
  %v1303 = vunpack.c.h.b16 %v1227
  %v1304 = vunpack.c.l.b16 %v1228
  %v1305 = vunpack.c.h.b16 %v1228
  %v1306 = vunpack.c.l.b16 %v1229
  %v1307 = vunpack.c.h.b16 %v1229
  %v1308 = vunpack.c.l.b16 %v1230
  %v1309 = vunpack.c.h.b16 %v1230
  %v1310 = vunpack.c.l.b16 %v1231
  %v1311 = vunpack.c.h.b16 %v1231
  %v1312 = vunpack.c.l.b16 %v1232
  %v1313 = vunpack.c.h.b16 %v1232
  %v1314 = vunpack.c.l.b16 %v1233
  %v1315 = vunpack.c.h.b16 %v1233
  %v1316 = vunpack.c.l.b16 %v1234
  %v1317 = vunpack.c.h.b16 %v1234
  %v1318 = vunpack.c.l.b16 %v1235
  %v1319 = vunpack.c.h.b16 %v1235
  %v1320 = vunpack.c.l.b16 %v1236
  %v1321 = vunpack.c.h.b16 %v1236
  %v1322 = vunpack.c.l.b16 %v1237
  %v1323 = vunpack.c.h.b16 %v1237
  %v1324 = vunpack.c.l.b16 %v1238
  %v1325 = vunpack.c.h.b16 %v1238
  %v1326 = vunpack.c.l.b16 %v1239
  %v1327 = vunpack.c.h.b16 %v1239
  %v1328 = vunpack.c.l.b16 %v1240
  %v1329 = vunpack.c.h.b16 %v1240
  %v1330 = vunpack.c.l.b16 %v1241
  %v1331 = vunpack.c.h.b16 %v1241
  %v1332 = vunpack.c.l.b16 %v1242
  %v1333 = vunpack.c.h.b16 %v1242
  %v1334 = vunpack.c.l.b16 %v1243
  %v1335 = vunpack.c.h.b16 %v1243
  %v1336 = vunpack.c.l.b16 %v1244
  %v1337 = vunpack.c.h.b16 %v1244
  %v1338 = vunpack.c.l.b16 %v1245
  %v1339 = vunpack.c.h.b16 %v1245
  %v1340 = vunpack.c.l.b16 %v1246
  %v1341 = vunpack.c.h.b16 %v1246
  %v1342 = vunpack.c.l.b16 %v1247
  %v1343 = vunpack.c.h.b16 %v1247
  %v1344 = vpack.c.b16 %v1284, %v1280
  %v1345 = vpack.c.b16 %v1285, %v1281
  %v1346 = vpack.c.b16 %v1286, %v1282
  %v1347 = vpack.c.b16 %v1287, %v1283
  %v1348 = vpack.c.b16 %v1292, %v1288
  %v1349 = vpack.c.b16 %v1293, %v1289
  %v1350 = vpack.c.b16 %v1294, %v1290
  %v1351 = vpack.c.b16 %v1295, %v1291
  %v1352 = vpack.c.b16 %v1300, %v1296
  %v1353 = vpack.c.b16 %v1301, %v1297
  %v1354 = vpack.c.b16 %v1302, %v1298
  %v1355 = vpack.c.b16 %v1303, %v1299
  %v1356 = vpack.c.b16 %v1308, %v1304
  %v1357 = vpack.c.b16 %v1309, %v1305
  %v1358 = vpack.c.b16 %v1310, %v1306
  %v1359 = vpack.c.b16 %v1311, %v1307
  %v1360 = vpack.c.b16 %v1316, %v1312
  %v1361 = vpack.c.b16 %v1317, %v1313
  %v1362 = vpack.c.b16 %v1318, %v1314
  %v1363 = vpack.c.b16 %v1319, %v1315
  %v1364 = vpack.c.b16 %v1324, %v1320
  %v1365 = vpack.c.b16 %v1325, %v1321
  %v1366 = vpack.c.b16 %v1326, %v1322
  %v1367 = vpack.c.b16 %v1327, %v1323
  %v1368 = vpack.c.b16 %v1332, %v1328
  %v1369 = vpack.c.b16 %v1333, %v1329
  %v1370 = vpack.c.b16 %v1334, %v1330
  %v1371 = vpack.c.b16 %v1335, %v1331
  %v1372 = vpack.c.b16 %v1340, %v1336
  %v1373 = vpack.c.b16 %v1341, %v1337
  %v1374 = vpack.c.b16 %v1342, %v1338
  %v1375 = vpack.c.b16 %v1343, %v1339
  %1408 = vmatpush.bf16.msra.mxu0 %v1372
  %1409 = vmatpush.bf16.msra.mxu0 %v1368
  %1410 = vmatpush.bf16.msra.mxu0 %v1364
  %1411 = vmatpush.bf16.msra.mxu0 %v1360
  %1412 = vmatpush.bf16.msra.mxu0 %v1356
  %1413 = vmatpush.bf16.msra.mxu0 %v1352
  %1414 = vmatpush.bf16.msra.mxu0 %v1348
  %1415 = vmatpush.bf16.msra.mxu0 %v1344
  %1416 = vmatmul.bf16.gmra.mxu0 %v1215
  %v1417 = vpop.f32.mrf.mxu0
  %v1418 = vadd.f32 0.0, %v1417
  %v1419 = vpop.f32.mrf.mxu0
  %1420 = vdwg.mxu0
  %1421 = vmatpush.bf16.msra.mxu0 %v1373
  %1422 = vmatpush.bf16.msra.mxu0 %v1369
  %1423 = vmatpush.bf16.msra.mxu0 %v1365
  %1424 = vmatpush.bf16.msra.mxu0 %v1361
  %1425 = vmatpush.bf16.msra.mxu0 %v1357
  %1426 = vmatpush.bf16.msra.mxu0 %v1353
  %1427 = vmatpush.bf16.msra.mxu0 %v1349
  %1428 = vmatpush.bf16.msra.mxu0 %v1345
  %1429 = vmatmul.bf16.gmra.mxu0 %v1215
  %v1430 = vpop.f32.mrf.mxu0
  %v1431 = vadd.f32 0.0, %v1430
  %v1432 = vpop.f32.mrf.mxu0
  %1433 = vdwg.mxu0
  %1434 = vmatpush.bf16.msra.mxu0 %v1374
  %1435 = vmatpush.bf16.msra.mxu0 %v1370
  %1436 = vmatpush.bf16.msra.mxu0 %v1366
  %1437 = vmatpush.bf16.msra.mxu0 %v1362
  %1438 = vmatpush.bf16.msra.mxu0 %v1358
  %1439 = vmatpush.bf16.msra.mxu0 %v1354
  %1440 = vmatpush.bf16.msra.mxu0 %v1350
  %1441 = vmatpush.bf16.msra.mxu0 %v1346
  %1442 = vmatmul.bf16.gmra.mxu0 %v1215
  %v1443 = vpop.f32.mrf.mxu0
  %v1444 = vadd.f32 0.0, %v1443
  %v1445 = vpop.f32.mrf.mxu0
  %1446 = vdwg.mxu0
  %1447 = vmatpush.bf16.msra.mxu0 %v1375
  %1448 = vmatpush.bf16.msra.mxu0 %v1371
  %1449 = vmatpush.bf16.msra.mxu0 %v1367
  %1450 = vmatpush.bf16.msra.mxu0 %v1363
  %1451 = vmatpush.bf16.msra.mxu0 %v1359
  %1452 = vmatpush.bf16.msra.mxu0 %v1355
  %1453 = vmatpush.bf16.msra.mxu0 %v1351
  %1454 = vmatpush.bf16.msra.mxu0 %v1347
  %1455 = vmatmul.bf16.gmra.mxu0 %v1215
  %v1456 = vpop.f32.mrf.mxu0
  %v1457 = vadd.f32 0.0, %v1456
  %v1458 = vpop.f32.mrf.mxu0
  %1459 = vdwg.mxu0
  %v1460 = vadd.f32 %v1211, %v1418
  %v1461 = vadd.f32 %v1212, %v1431
  %v1462 = vadd.f32 %v1213, %v1444
  %v1463 = vadd.f32 %v1214, %v1457
  %v1464 = vmul.f32 %v1460, 0.5
  %v1465 = vtanh.pop %v1464
  %v1466 = vadd.f32 %v1465, 1.0
  %v1467 = vmul.f32 %v1466, 0.5
  %v1468 = vmul.f32 %v1461, 0.5
  %v1469 = vtanh.pop %v1468
  %v1470 = vadd.f32 %v1469, 1.0
  %v1471 = vmul.f32 %v1470, 0.5
  %v1472 = vtanh.pop %v1462
  %v1473 = vmul.f32 %v1463, 0.5
  %v1474 = vtanh.pop %v1473
  %v1475 = vadd.f32 %v1474, 1.0
  %v1476 = vmul.f32 %v1475, 0.5
  %v1477 = vmul.f32 %v1471, %v1193
  %v1478 = vmul.f32 %v1467, %v1472
  %v1479 = vadd.f32 %v1477, %v1478
  %v1480 = vtanh.pop %v1479
  %v1481 = vmul.f32 %v1476, %v1480
  %s1482 = sadd.s32 %s21, 4
  %v1483 = vstv %s1482
  %vm1484 = vcmp.lt.s32.totalorder %v1483, %v20
  %v1485 = vsel %vm1484, 1, 0
  %1486 = vset.pattern.permute.xlu0 0
  %1487 = vperm.xlu0 %1486, %v1485
  %v1488 = vpop.permute.xlu0 %1487
  %vm1489 = vcmp.eq.s32.totalorder %v1488, 1
  %v1490 = vsel %vm1489, %v1479, %v1193
  %v1491 = vsel %vm1489, %v1481, %v1194
  %v1492 = vsel %vm1489, %v1481, 0.0
  %v1494 = vrot.slane %v1492, 1
  %v1495 = vrot.slane %v1492, 2
  %v1496 = vrot.slane %v1492, 3
  %v1497 = vrot.slane %v1492, 4
  %1502 = vst [vmem:[%s3 + $0x4] sm:$0x1] %v1492
  %1503 = vst [vmem:[%s3 + $0xc] sm:$0x1] %v1494
  %1504 = vst [vmem:[%s3 + $0x14] sm:$0x1] %v1495
  %1505 = vst [vmem:[%s3 + $0x1c] sm:$0x1] %v1496
  %1506 = vst [vmem:[%s3 + $0x24] sm:$0x1] %v1497
  %s1507 = scalar_lea.vmem %s0, 160
  %v1508 = vld [vmem:[%s1507] sm:$0x1f]
  %v1509 = vld [vmem:[%s1507 + $0x8] sm:$0x1f]
  %v1510 = vld [vmem:[%s1507 + $0x10] sm:$0x1f]
  %v1511 = vld [vmem:[%s1507 + $0x18] sm:$0x1f]
  %v1512 = vpack.c.bf16 %v1491, %v1491
  %v1513 = vld [vmem:[%s2] sm:$0xff]
  %v1514 = vld [vmem:[%s2 + $0x8] sm:$0xff]
  %v1515 = vld [vmem:[%s2 + $0x10] sm:$0xff]
  %v1516 = vld [vmem:[%s2 + $0x18] sm:$0xff]
  %v1517 = vld [vmem:[%s2 + $0x20] sm:$0xff]
  %v1518 = vld [vmem:[%s2 + $0x28] sm:$0xff]
  %v1519 = vld [vmem:[%s2 + $0x30] sm:$0xff]
  %v1520 = vld [vmem:[%s2 + $0x38] sm:$0xff]
  %v1521 = vld [vmem:[%s2 + $0x40] sm:$0xff]
  %v1522 = vld [vmem:[%s2 + $0x48] sm:$0xff]
  %v1523 = vld [vmem:[%s2 + $0x50] sm:$0xff]
  %v1524 = vld [vmem:[%s2 + $0x58] sm:$0xff]
  %v1525 = vld [vmem:[%s2 + $0x60] sm:$0xff]
  %v1526 = vld [vmem:[%s2 + $0x68] sm:$0xff]
  %v1527 = vld [vmem:[%s2 + $0x70] sm:$0xff]
  %v1528 = vld [vmem:[%s2 + $0x78] sm:$0xff]
  %v1529 = vld [vmem:[%s2 + $0x80] sm:$0xff]
  %v1530 = vld [vmem:[%s2 + $0x88] sm:$0xff]
  %v1531 = vld [vmem:[%s2 + $0x90] sm:$0xff]
  %v1532 = vld [vmem:[%s2 + $0x98] sm:$0xff]
  %v1533 = vld [vmem:[%s2 + $0xa0] sm:$0xff]
  %v1534 = vld [vmem:[%s2 + $0xa8] sm:$0xff]
  %v1535 = vld [vmem:[%s2 + $0xb0] sm:$0xff]
  %v1536 = vld [vmem:[%s2 + $0xb8] sm:$0xff]
  %v1537 = vld [vmem:[%s2 + $0xc0] sm:$0xff]
  %v1538 = vld [vmem:[%s2 + $0xc8] sm:$0xff]
  %v1539 = vld [vmem:[%s2 + $0xd0] sm:$0xff]
  %v1540 = vld [vmem:[%s2 + $0xd8] sm:$0xff]
  %v1541 = vld [vmem:[%s2 + $0xe0] sm:$0xff]
  %v1542 = vld [vmem:[%s2 + $0xe8] sm:$0xff]
  %v1543 = vld [vmem:[%s2 + $0xf0] sm:$0xff]
  %v1544 = vld [vmem:[%s2 + $0xf8] sm:$0xff]
  %v1577 = vunpack.c.l.b16 %v1513
  %v1578 = vunpack.c.h.b16 %v1513
  %v1579 = vunpack.c.l.b16 %v1514
  %v1580 = vunpack.c.h.b16 %v1514
  %v1581 = vunpack.c.l.b16 %v1515
  %v1582 = vunpack.c.h.b16 %v1515
  %v1583 = vunpack.c.l.b16 %v1516
  %v1584 = vunpack.c.h.b16 %v1516
  %v1585 = vunpack.c.l.b16 %v1517
  %v1586 = vunpack.c.h.b16 %v1517
  %v1587 = vunpack.c.l.b16 %v1518
  %v1588 = vunpack.c.h.b16 %v1518
  %v1589 = vunpack.c.l.b16 %v1519
  %v1590 = vunpack.c.h.b16 %v1519
  %v1591 = vunpack.c.l.b16 %v1520
  %v1592 = vunpack.c.h.b16 %v1520
  %v1593 = vunpack.c.l.b16 %v1521
  %v1594 = vunpack.c.h.b16 %v1521
  %v1595 = vunpack.c.l.b16 %v1522
  %v1596 = vunpack.c.h.b16 %v1522
  %v1597 = vunpack.c.l.b16 %v1523
  %v1598 = vunpack.c.h.b16 %v1523
  %v1599 = vunpack.c.l.b16 %v1524
  %v1600 = vunpack.c.h.b16 %v1524
  %v1601 = vunpack.c.l.b16 %v1525
  %v1602 = vunpack.c.h.b16 %v1525
  %v1603 = vunpack.c.l.b16 %v1526
  %v1604 = vunpack.c.h.b16 %v1526
  %v1605 = vunpack.c.l.b16 %v1527
  %v1606 = vunpack.c.h.b16 %v1527
  %v1607 = vunpack.c.l.b16 %v1528
  %v1608 = vunpack.c.h.b16 %v1528
  %v1609 = vunpack.c.l.b16 %v1529
  %v1610 = vunpack.c.h.b16 %v1529
  %v1611 = vunpack.c.l.b16 %v1530
  %v1612 = vunpack.c.h.b16 %v1530
  %v1613 = vunpack.c.l.b16 %v1531
  %v1614 = vunpack.c.h.b16 %v1531
  %v1615 = vunpack.c.l.b16 %v1532
  %v1616 = vunpack.c.h.b16 %v1532
  %v1617 = vunpack.c.l.b16 %v1533
  %v1618 = vunpack.c.h.b16 %v1533
  %v1619 = vunpack.c.l.b16 %v1534
  %v1620 = vunpack.c.h.b16 %v1534
  %v1621 = vunpack.c.l.b16 %v1535
  %v1622 = vunpack.c.h.b16 %v1535
  %v1623 = vunpack.c.l.b16 %v1536
  %v1624 = vunpack.c.h.b16 %v1536
  %v1625 = vunpack.c.l.b16 %v1537
  %v1626 = vunpack.c.h.b16 %v1537
  %v1627 = vunpack.c.l.b16 %v1538
  %v1628 = vunpack.c.h.b16 %v1538
  %v1629 = vunpack.c.l.b16 %v1539
  %v1630 = vunpack.c.h.b16 %v1539
  %v1631 = vunpack.c.l.b16 %v1540
  %v1632 = vunpack.c.h.b16 %v1540
  %v1633 = vunpack.c.l.b16 %v1541
  %v1634 = vunpack.c.h.b16 %v1541
  %v1635 = vunpack.c.l.b16 %v1542
  %v1636 = vunpack.c.h.b16 %v1542
  %v1637 = vunpack.c.l.b16 %v1543
  %v1638 = vunpack.c.h.b16 %v1543
  %v1639 = vunpack.c.l.b16 %v1544
  %v1640 = vunpack.c.h.b16 %v1544
  %v1641 = vpack.c.b16 %v1581, %v1577
  %v1642 = vpack.c.b16 %v1582, %v1578
  %v1643 = vpack.c.b16 %v1583, %v1579
  %v1644 = vpack.c.b16 %v1584, %v1580
  %v1645 = vpack.c.b16 %v1589, %v1585
  %v1646 = vpack.c.b16 %v1590, %v1586
  %v1647 = vpack.c.b16 %v1591, %v1587
  %v1648 = vpack.c.b16 %v1592, %v1588
  %v1649 = vpack.c.b16 %v1597, %v1593
  %v1650 = vpack.c.b16 %v1598, %v1594
  %v1651 = vpack.c.b16 %v1599, %v1595
  %v1652 = vpack.c.b16 %v1600, %v1596
  %v1653 = vpack.c.b16 %v1605, %v1601
  %v1654 = vpack.c.b16 %v1606, %v1602
  %v1655 = vpack.c.b16 %v1607, %v1603
  %v1656 = vpack.c.b16 %v1608, %v1604
  %v1657 = vpack.c.b16 %v1613, %v1609
  %v1658 = vpack.c.b16 %v1614, %v1610
  %v1659 = vpack.c.b16 %v1615, %v1611
  %v1660 = vpack.c.b16 %v1616, %v1612
  %v1661 = vpack.c.b16 %v1621, %v1617
  %v1662 = vpack.c.b16 %v1622, %v1618
  %v1663 = vpack.c.b16 %v1623, %v1619
  %v1664 = vpack.c.b16 %v1624, %v1620
  %v1665 = vpack.c.b16 %v1629, %v1625
  %v1666 = vpack.c.b16 %v1630, %v1626
  %v1667 = vpack.c.b16 %v1631, %v1627
  %v1668 = vpack.c.b16 %v1632, %v1628
  %v1669 = vpack.c.b16 %v1637, %v1633
  %v1670 = vpack.c.b16 %v1638, %v1634
  %v1671 = vpack.c.b16 %v1639, %v1635
  %v1672 = vpack.c.b16 %v1640, %v1636
  %1705 = vmatpush.bf16.msra.mxu0 %v1669
  %1706 = vmatpush.bf16.msra.mxu0 %v1665
  %1707 = vmatpush.bf16.msra.mxu0 %v1661
  %1708 = vmatpush.bf16.msra.mxu0 %v1657
  %1709 = vmatpush.bf16.msra.mxu0 %v1653
  %1710 = vmatpush.bf16.msra.mxu0 %v1649
  %1711 = vmatpush.bf16.msra.mxu0 %v1645
  %1712 = vmatpush.bf16.msra.mxu0 %v1641
  %1713 = vmatmul.bf16.gmra.mxu0 %v1512
  %v1714 = vpop.f32.mrf.mxu0
  %v1715 = vadd.f32 0.0, %v1714
  %v1716 = vpop.f32.mrf.mxu0
  %1717 = vdwg.mxu0
  %1718 = vmatpush.bf16.msra.mxu0 %v1670
  %1719 = vmatpush.bf16.msra.mxu0 %v1666
  %1720 = vmatpush.bf16.msra.mxu0 %v1662
  %1721 = vmatpush.bf16.msra.mxu0 %v1658
  %1722 = vmatpush.bf16.msra.mxu0 %v1654
  %1723 = vmatpush.bf16.msra.mxu0 %v1650
  %1724 = vmatpush.bf16.msra.mxu0 %v1646
  %1725 = vmatpush.bf16.msra.mxu0 %v1642
  %1726 = vmatmul.bf16.gmra.mxu0 %v1512
  %v1727 = vpop.f32.mrf.mxu0
  %v1728 = vadd.f32 0.0, %v1727
  %v1729 = vpop.f32.mrf.mxu0
  %1730 = vdwg.mxu0
  %1731 = vmatpush.bf16.msra.mxu0 %v1671
  %1732 = vmatpush.bf16.msra.mxu0 %v1667
  %1733 = vmatpush.bf16.msra.mxu0 %v1663
  %1734 = vmatpush.bf16.msra.mxu0 %v1659
  %1735 = vmatpush.bf16.msra.mxu0 %v1655
  %1736 = vmatpush.bf16.msra.mxu0 %v1651
  %1737 = vmatpush.bf16.msra.mxu0 %v1647
  %1738 = vmatpush.bf16.msra.mxu0 %v1643
  %1739 = vmatmul.bf16.gmra.mxu0 %v1512
  %v1740 = vpop.f32.mrf.mxu0
  %v1741 = vadd.f32 0.0, %v1740
  %v1742 = vpop.f32.mrf.mxu0
  %1743 = vdwg.mxu0
  %1744 = vmatpush.bf16.msra.mxu0 %v1672
  %1745 = vmatpush.bf16.msra.mxu0 %v1668
  %1746 = vmatpush.bf16.msra.mxu0 %v1664
  %1747 = vmatpush.bf16.msra.mxu0 %v1660
  %1748 = vmatpush.bf16.msra.mxu0 %v1656
  %1749 = vmatpush.bf16.msra.mxu0 %v1652
  %1750 = vmatpush.bf16.msra.mxu0 %v1648
  %1751 = vmatpush.bf16.msra.mxu0 %v1644
  %1752 = vmatmul.bf16.gmra.mxu0 %v1512
  %v1753 = vpop.f32.mrf.mxu0
  %v1754 = vadd.f32 0.0, %v1753
  %v1755 = vpop.f32.mrf.mxu0
  %1756 = vdwg.mxu0
  %v1757 = vadd.f32 %v1508, %v1715
  %v1758 = vadd.f32 %v1509, %v1728
  %v1759 = vadd.f32 %v1510, %v1741
  %v1760 = vadd.f32 %v1511, %v1754
  %v1761 = vmul.f32 %v1757, 0.5
  %v1762 = vtanh.pop %v1761
  %v1763 = vadd.f32 %v1762, 1.0
  %v1764 = vmul.f32 %v1763, 0.5
  %v1765 = vmul.f32 %v1758, 0.5
  %v1766 = vtanh.pop %v1765
  %v1767 = vadd.f32 %v1766, 1.0
  %v1768 = vmul.f32 %v1767, 0.5
  %v1769 = vtanh.pop %v1759
  %v1770 = vmul.f32 %v1760, 0.5
  %v1771 = vtanh.pop %v1770
  %v1772 = vadd.f32 %v1771, 1.0
  %v1773 = vmul.f32 %v1772, 0.5
  %v1774 = vmul.f32 %v1768, %v1490
  %v1775 = vmul.f32 %v1764, %v1769
  %v1776 = vadd.f32 %v1774, %v1775
  %v1777 = vtanh.pop %v1776
  %v1778 = vmul.f32 %v1773, %v1777
  %s1779 = sadd.s32 %s21, 5
  %v1780 = vstv %s1779
  %vm1781 = vcmp.lt.s32.totalorder %v1780, %v20
  %v1782 = vsel %vm1781, 1, 0
  %1783 = vset.pattern.permute.xlu0 0
  %1784 = vperm.xlu0 %1783, %v1782
  %v1785 = vpop.permute.xlu0 %1784
  %vm1786 = vcmp.eq.s32.totalorder %v1785, 1
  %v1787 = vsel %vm1786, %v1776, %v1490
  %v1788 = vsel %vm1786, %v1778, %v1491
  %v1789 = vsel %vm1786, %v1778, 0.0
  %v1791 = vrot.slane %v1789, 1
  %v1792 = vrot.slane %v1789, 2
  %v1793 = vrot.slane %v1789, 3
  %v1794 = vrot.slane %v1789, 4
  %1799 = vst [vmem:[%s3 + $0x5] sm:$0x1] %v1789
  %1800 = vst [vmem:[%s3 + $0xd] sm:$0x1] %v1791
  %1801 = vst [vmem:[%s3 + $0x15] sm:$0x1] %v1792
  %1802 = vst [vmem:[%s3 + $0x1d] sm:$0x1] %v1793
  %1803 = vst [vmem:[%s3 + $0x25] sm:$0x1] %v1794
  %s1804 = scalar_lea.vmem %s0, 192
  %v1805 = vld [vmem:[%s1804] sm:$0x1f]
  %v1806 = vld [vmem:[%s1804 + $0x8] sm:$0x1f]
  %v1807 = vld [vmem:[%s1804 + $0x10] sm:$0x1f]
  %v1808 = vld [vmem:[%s1804 + $0x18] sm:$0x1f]
  %v1809 = vpack.c.bf16 %v1788, %v1788
  %v1810 = vld [vmem:[%s2] sm:$0xff]
  %v1811 = vld [vmem:[%s2 + $0x8] sm:$0xff]
  %v1812 = vld [vmem:[%s2 + $0x10] sm:$0xff]
  %v1813 = vld [vmem:[%s2 + $0x18] sm:$0xff]
  %v1814 = vld [vmem:[%s2 + $0x20] sm:$0xff]
  %v1815 = vld [vmem:[%s2 + $0x28] sm:$0xff]
  %v1816 = vld [vmem:[%s2 + $0x30] sm:$0xff]
  %v1817 = vld [vmem:[%s2 + $0x38] sm:$0xff]
  %v1818 = vld [vmem:[%s2 + $0x40] sm:$0xff]
  %v1819 = vld [vmem:[%s2 + $0x48] sm:$0xff]
  %v1820 = vld [vmem:[%s2 + $0x50] sm:$0xff]
  %v1821 = vld [vmem:[%s2 + $0x58] sm:$0xff]
  %v1822 = vld [vmem:[%s2 + $0x60] sm:$0xff]
  %v1823 = vld [vmem:[%s2 + $0x68] sm:$0xff]
  %v1824 = vld [vmem:[%s2 + $0x70] sm:$0xff]
  %v1825 = vld [vmem:[%s2 + $0x78] sm:$0xff]
  %v1826 = vld [vmem:[%s2 + $0x80] sm:$0xff]
  %v1827 = vld [vmem:[%s2 + $0x88] sm:$0xff]
  %v1828 = vld [vmem:[%s2 + $0x90] sm:$0xff]
  %v1829 = vld [vmem:[%s2 + $0x98] sm:$0xff]
  %v1830 = vld [vmem:[%s2 + $0xa0] sm:$0xff]
  %v1831 = vld [vmem:[%s2 + $0xa8] sm:$0xff]
  %v1832 = vld [vmem:[%s2 + $0xb0] sm:$0xff]
  %v1833 = vld [vmem:[%s2 + $0xb8] sm:$0xff]
  %v1834 = vld [vmem:[%s2 + $0xc0] sm:$0xff]
  %v1835 = vld [vmem:[%s2 + $0xc8] sm:$0xff]
  %v1836 = vld [vmem:[%s2 + $0xd0] sm:$0xff]
  %v1837 = vld [vmem:[%s2 + $0xd8] sm:$0xff]
  %v1838 = vld [vmem:[%s2 + $0xe0] sm:$0xff]
  %v1839 = vld [vmem:[%s2 + $0xe8] sm:$0xff]
  %v1840 = vld [vmem:[%s2 + $0xf0] sm:$0xff]
  %v1841 = vld [vmem:[%s2 + $0xf8] sm:$0xff]
  %v1874 = vunpack.c.l.b16 %v1810
  %v1875 = vunpack.c.h.b16 %v1810
  %v1876 = vunpack.c.l.b16 %v1811
  %v1877 = vunpack.c.h.b16 %v1811
  %v1878 = vunpack.c.l.b16 %v1812
  %v1879 = vunpack.c.h.b16 %v1812
  %v1880 = vunpack.c.l.b16 %v1813
  %v1881 = vunpack.c.h.b16 %v1813
  %v1882 = vunpack.c.l.b16 %v1814
  %v1883 = vunpack.c.h.b16 %v1814
  %v1884 = vunpack.c.l.b16 %v1815
  %v1885 = vunpack.c.h.b16 %v1815
  %v1886 = vunpack.c.l.b16 %v1816
  %v1887 = vunpack.c.h.b16 %v1816
  %v1888 = vunpack.c.l.b16 %v1817
  %v1889 = vunpack.c.h.b16 %v1817
  %v1890 = vunpack.c.l.b16 %v1818
  %v1891 = vunpack.c.h.b16 %v1818
  %v1892 = vunpack.c.l.b16 %v1819
  %v1893 = vunpack.c.h.b16 %v1819
  %v1894 = vunpack.c.l.b16 %v1820
  %v1895 = vunpack.c.h.b16 %v1820
  %v1896 = vunpack.c.l.b16 %v1821
  %v1897 = vunpack.c.h.b16 %v1821
  %v1898 = vunpack.c.l.b16 %v1822
  %v1899 = vunpack.c.h.b16 %v1822
  %v1900 = vunpack.c.l.b16 %v1823
  %v1901 = vunpack.c.h.b16 %v1823
  %v1902 = vunpack.c.l.b16 %v1824
  %v1903 = vunpack.c.h.b16 %v1824
  %v1904 = vunpack.c.l.b16 %v1825
  %v1905 = vunpack.c.h.b16 %v1825
  %v1906 = vunpack.c.l.b16 %v1826
  %v1907 = vunpack.c.h.b16 %v1826
  %v1908 = vunpack.c.l.b16 %v1827
  %v1909 = vunpack.c.h.b16 %v1827
  %v1910 = vunpack.c.l.b16 %v1828
  %v1911 = vunpack.c.h.b16 %v1828
  %v1912 = vunpack.c.l.b16 %v1829
  %v1913 = vunpack.c.h.b16 %v1829
  %v1914 = vunpack.c.l.b16 %v1830
  %v1915 = vunpack.c.h.b16 %v1830
  %v1916 = vunpack.c.l.b16 %v1831
  %v1917 = vunpack.c.h.b16 %v1831
  %v1918 = vunpack.c.l.b16 %v1832
  %v1919 = vunpack.c.h.b16 %v1832
  %v1920 = vunpack.c.l.b16 %v1833
  %v1921 = vunpack.c.h.b16 %v1833
  %v1922 = vunpack.c.l.b16 %v1834
  %v1923 = vunpack.c.h.b16 %v1834
  %v1924 = vunpack.c.l.b16 %v1835
  %v1925 = vunpack.c.h.b16 %v1835
  %v1926 = vunpack.c.l.b16 %v1836
  %v1927 = vunpack.c.h.b16 %v1836
  %v1928 = vunpack.c.l.b16 %v1837
  %v1929 = vunpack.c.h.b16 %v1837
  %v1930 = vunpack.c.l.b16 %v1838
  %v1931 = vunpack.c.h.b16 %v1838
  %v1932 = vunpack.c.l.b16 %v1839
  %v1933 = vunpack.c.h.b16 %v1839
  %v1934 = vunpack.c.l.b16 %v1840
  %v1935 = vunpack.c.h.b16 %v1840
  %v1936 = vunpack.c.l.b16 %v1841
  %v1937 = vunpack.c.h.b16 %v1841
  %v1938 = vpack.c.b16 %v1878, %v1874
  %v1939 = vpack.c.b16 %v1879, %v1875
  %v1940 = vpack.c.b16 %v1880, %v1876
  %v1941 = vpack.c.b16 %v1881, %v1877
  %v1942 = vpack.c.b16 %v1886, %v1882
  %v1943 = vpack.c.b16 %v1887, %v1883
  %v1944 = vpack.c.b16 %v1888, %v1884
  %v1945 = vpack.c.b16 %v1889, %v1885
  %v1946 = vpack.c.b16 %v1894, %v1890
  %v1947 = vpack.c.b16 %v1895, %v1891
  %v1948 = vpack.c.b16 %v1896, %v1892
  %v1949 = vpack.c.b16 %v1897, %v1893
  %v1950 = vpack.c.b16 %v1902, %v1898
  %v1951 = vpack.c.b16 %v1903, %v1899
  %v1952 = vpack.c.b16 %v1904, %v1900
  %v1953 = vpack.c.b16 %v1905, %v1901
  %v1954 = vpack.c.b16 %v1910, %v1906
  %v1955 = vpack.c.b16 %v1911, %v1907
  %v1956 = vpack.c.b16 %v1912, %v1908
  %v1957 = vpack.c.b16 %v1913, %v1909
  %v1958 = vpack.c.b16 %v1918, %v1914
  %v1959 = vpack.c.b16 %v1919, %v1915
  %v1960 = vpack.c.b16 %v1920, %v1916
  %v1961 = vpack.c.b16 %v1921, %v1917
  %v1962 = vpack.c.b16 %v1926, %v1922
  %v1963 = vpack.c.b16 %v1927, %v1923
  %v1964 = vpack.c.b16 %v1928, %v1924
  %v1965 = vpack.c.b16 %v1929, %v1925
  %v1966 = vpack.c.b16 %v1934, %v1930
  %v1967 = vpack.c.b16 %v1935, %v1931
  %v1968 = vpack.c.b16 %v1936, %v1932
  %v1969 = vpack.c.b16 %v1937, %v1933
  %2002 = vmatpush.bf16.msra.mxu0 %v1966
  %2003 = vmatpush.bf16.msra.mxu0 %v1962
  %2004 = vmatpush.bf16.msra.mxu0 %v1958
  %2005 = vmatpush.bf16.msra.mxu0 %v1954
  %2006 = vmatpush.bf16.msra.mxu0 %v1950
  %2007 = vmatpush.bf16.msra.mxu0 %v1946
  %2008 = vmatpush.bf16.msra.mxu0 %v1942
  %2009 = vmatpush.bf16.msra.mxu0 %v1938
  %2010 = vmatmul.bf16.gmra.mxu0 %v1809
  %v2011 = vpop.f32.mrf.mxu0
  %v2012 = vadd.f32 0.0, %v2011
  %v2013 = vpop.f32.mrf.mxu0
  %2014 = vdwg.mxu0
  %2015 = vmatpush.bf16.msra.mxu0 %v1967
  %2016 = vmatpush.bf16.msra.mxu0 %v1963
  %2017 = vmatpush.bf16.msra.mxu0 %v1959
  %2018 = vmatpush.bf16.msra.mxu0 %v1955
  %2019 = vmatpush.bf16.msra.mxu0 %v1951
  %2020 = vmatpush.bf16.msra.mxu0 %v1947
  %2021 = vmatpush.bf16.msra.mxu0 %v1943
  %2022 = vmatpush.bf16.msra.mxu0 %v1939
  %2023 = vmatmul.bf16.gmra.mxu0 %v1809
  %v2024 = vpop.f32.mrf.mxu0
  %v2025 = vadd.f32 0.0, %v2024
  %v2026 = vpop.f32.mrf.mxu0
  %2027 = vdwg.mxu0
  %2028 = vmatpush.bf16.msra.mxu0 %v1968
  %2029 = vmatpush.bf16.msra.mxu0 %v1964
  %2030 = vmatpush.bf16.msra.mxu0 %v1960
  %2031 = vmatpush.bf16.msra.mxu0 %v1956
  %2032 = vmatpush.bf16.msra.mxu0 %v1952
  %2033 = vmatpush.bf16.msra.mxu0 %v1948
  %2034 = vmatpush.bf16.msra.mxu0 %v1944
  %2035 = vmatpush.bf16.msra.mxu0 %v1940
  %2036 = vmatmul.bf16.gmra.mxu0 %v1809
  %v2037 = vpop.f32.mrf.mxu0
  %v2038 = vadd.f32 0.0, %v2037
  %v2039 = vpop.f32.mrf.mxu0
  %2040 = vdwg.mxu0
  %2041 = vmatpush.bf16.msra.mxu0 %v1969
  %2042 = vmatpush.bf16.msra.mxu0 %v1965
  %2043 = vmatpush.bf16.msra.mxu0 %v1961
  %2044 = vmatpush.bf16.msra.mxu0 %v1957
  %2045 = vmatpush.bf16.msra.mxu0 %v1953
  %2046 = vmatpush.bf16.msra.mxu0 %v1949
  %2047 = vmatpush.bf16.msra.mxu0 %v1945
  %2048 = vmatpush.bf16.msra.mxu0 %v1941
  %2049 = vmatmul.bf16.gmra.mxu0 %v1809
  %v2050 = vpop.f32.mrf.mxu0
  %v2051 = vadd.f32 0.0, %v2050
  %v2052 = vpop.f32.mrf.mxu0
  %2053 = vdwg.mxu0
  %v2054 = vadd.f32 %v1805, %v2012
  %v2055 = vadd.f32 %v1806, %v2025
  %v2056 = vadd.f32 %v1807, %v2038
  %v2057 = vadd.f32 %v1808, %v2051
  %v2058 = vmul.f32 %v2054, 0.5
  %v2059 = vtanh.pop %v2058
  %v2060 = vadd.f32 %v2059, 1.0
  %v2061 = vmul.f32 %v2060, 0.5
  %v2062 = vmul.f32 %v2055, 0.5
  %v2063 = vtanh.pop %v2062
  %v2064 = vadd.f32 %v2063, 1.0
  %v2065 = vmul.f32 %v2064, 0.5
  %v2066 = vtanh.pop %v2056
  %v2067 = vmul.f32 %v2057, 0.5
  %v2068 = vtanh.pop %v2067
  %v2069 = vadd.f32 %v2068, 1.0
  %v2070 = vmul.f32 %v2069, 0.5
  %v2071 = vmul.f32 %v2065, %v1787
  %v2072 = vmul.f32 %v2061, %v2066
  %v2073 = vadd.f32 %v2071, %v2072
  %v2074 = vtanh.pop %v2073
  %v2075 = vmul.f32 %v2070, %v2074
  %s2076 = sadd.s32 %s21, 6
  %v2077 = vstv %s2076
  %vm2078 = vcmp.lt.s32.totalorder %v2077, %v20
  %v2079 = vsel %vm2078, 1, 0
  %2080 = vset.pattern.permute.xlu0 0
  %2081 = vperm.xlu0 %2080, %v2079
  %v2082 = vpop.permute.xlu0 %2081
  %vm2083 = vcmp.eq.s32.totalorder %v2082, 1
  %v2084 = vsel %vm2083, %v2073, %v1787
  %v2085 = vsel %vm2083, %v2075, %v1788
  %v2086 = vsel %vm2083, %v2075, 0.0
  %v2088 = vrot.slane %v2086, 1
  %v2089 = vrot.slane %v2086, 2
  %v2090 = vrot.slane %v2086, 3
  %v2091 = vrot.slane %v2086, 4
  %2096 = vst [vmem:[%s3 + $0x6] sm:$0x1] %v2086
  %2097 = vst [vmem:[%s3 + $0xe] sm:$0x1] %v2088
  %2098 = vst [vmem:[%s3 + $0x16] sm:$0x1] %v2089
  %2099 = vst [vmem:[%s3 + $0x1e] sm:$0x1] %v2090
  %2100 = vst [vmem:[%s3 + $0x26] sm:$0x1] %v2091
  %s2101 = scalar_lea.vmem %s0, 224
  %v2102 = vld [vmem:[%s2101] sm:$0x1f]
  %v2103 = vld [vmem:[%s2101 + $0x8] sm:$0x1f]
  %v2104 = vld [vmem:[%s2101 + $0x10] sm:$0x1f]
  %v2105 = vld [vmem:[%s2101 + $0x18] sm:$0x1f]
  %v2106 = vpack.c.bf16 %v2085, %v2085
  %v2107 = vld [vmem:[%s2] sm:$0xff]
  %v2108 = vld [vmem:[%s2 + $0x8] sm:$0xff]
  %v2109 = vld [vmem:[%s2 + $0x10] sm:$0xff]
  %v2110 = vld [vmem:[%s2 + $0x18] sm:$0xff]
  %v2111 = vld [vmem:[%s2 + $0x20] sm:$0xff]
  %v2112 = vld [vmem:[%s2 + $0x28] sm:$0xff]
  %v2113 = vld [vmem:[%s2 + $0x30] sm:$0xff]
  %v2114 = vld [vmem:[%s2 + $0x38] sm:$0xff]
  %v2115 = vld [vmem:[%s2 + $0x40] sm:$0xff]
  %v2116 = vld [vmem:[%s2 + $0x48] sm:$0xff]
  %v2117 = vld [vmem:[%s2 + $0x50] sm:$0xff]
  %v2118 = vld [vmem:[%s2 + $0x58] sm:$0xff]
  %v2119 = vld [vmem:[%s2 + $0x60] sm:$0xff]
  %v2120 = vld [vmem:[%s2 + $0x68] sm:$0xff]
  %v2121 = vld [vmem:[%s2 + $0x70] sm:$0xff]
  %v2122 = vld [vmem:[%s2 + $0x78] sm:$0xff]
  %v2123 = vld [vmem:[%s2 + $0x80] sm:$0xff]
  %v2124 = vld [vmem:[%s2 + $0x88] sm:$0xff]
  %v2125 = vld [vmem:[%s2 + $0x90] sm:$0xff]
  %v2126 = vld [vmem:[%s2 + $0x98] sm:$0xff]
  %v2127 = vld [vmem:[%s2 + $0xa0] sm:$0xff]
  %v2128 = vld [vmem:[%s2 + $0xa8] sm:$0xff]
  %v2129 = vld [vmem:[%s2 + $0xb0] sm:$0xff]
  %v2130 = vld [vmem:[%s2 + $0xb8] sm:$0xff]
  %v2131 = vld [vmem:[%s2 + $0xc0] sm:$0xff]
  %v2132 = vld [vmem:[%s2 + $0xc8] sm:$0xff]
  %v2133 = vld [vmem:[%s2 + $0xd0] sm:$0xff]
  %v2134 = vld [vmem:[%s2 + $0xd8] sm:$0xff]
  %v2135 = vld [vmem:[%s2 + $0xe0] sm:$0xff]
  %v2136 = vld [vmem:[%s2 + $0xe8] sm:$0xff]
  %v2137 = vld [vmem:[%s2 + $0xf0] sm:$0xff]
  %v2138 = vld [vmem:[%s2 + $0xf8] sm:$0xff]
  %v2171 = vunpack.c.l.b16 %v2107
  %v2172 = vunpack.c.h.b16 %v2107
  %v2173 = vunpack.c.l.b16 %v2108
  %v2174 = vunpack.c.h.b16 %v2108
  %v2175 = vunpack.c.l.b16 %v2109
  %v2176 = vunpack.c.h.b16 %v2109
  %v2177 = vunpack.c.l.b16 %v2110
  %v2178 = vunpack.c.h.b16 %v2110
  %v2179 = vunpack.c.l.b16 %v2111
  %v2180 = vunpack.c.h.b16 %v2111
  %v2181 = vunpack.c.l.b16 %v2112
  %v2182 = vunpack.c.h.b16 %v2112
  %v2183 = vunpack.c.l.b16 %v2113
  %v2184 = vunpack.c.h.b16 %v2113
  %v2185 = vunpack.c.l.b16 %v2114
  %v2186 = vunpack.c.h.b16 %v2114
  %v2187 = vunpack.c.l.b16 %v2115
  %v2188 = vunpack.c.h.b16 %v2115
  %v2189 = vunpack.c.l.b16 %v2116
  %v2190 = vunpack.c.h.b16 %v2116
  %v2191 = vunpack.c.l.b16 %v2117
  %v2192 = vunpack.c.h.b16 %v2117
  %v2193 = vunpack.c.l.b16 %v2118
  %v2194 = vunpack.c.h.b16 %v2118
  %v2195 = vunpack.c.l.b16 %v2119
  %v2196 = vunpack.c.h.b16 %v2119
  %v2197 = vunpack.c.l.b16 %v2120
  %v2198 = vunpack.c.h.b16 %v2120
  %v2199 = vunpack.c.l.b16 %v2121
  %v2200 = vunpack.c.h.b16 %v2121
  %v2201 = vunpack.c.l.b16 %v2122
  %v2202 = vunpack.c.h.b16 %v2122
  %v2203 = vunpack.c.l.b16 %v2123
  %v2204 = vunpack.c.h.b16 %v2123
  %v2205 = vunpack.c.l.b16 %v2124
  %v2206 = vunpack.c.h.b16 %v2124
  %v2207 = vunpack.c.l.b16 %v2125
  %v2208 = vunpack.c.h.b16 %v2125
  %v2209 = vunpack.c.l.b16 %v2126
  %v2210 = vunpack.c.h.b16 %v2126
  %v2211 = vunpack.c.l.b16 %v2127
  %v2212 = vunpack.c.h.b16 %v2127
  %v2213 = vunpack.c.l.b16 %v2128
  %v2214 = vunpack.c.h.b16 %v2128
  %v2215 = vunpack.c.l.b16 %v2129
  %v2216 = vunpack.c.h.b16 %v2129
  %v2217 = vunpack.c.l.b16 %v2130
  %v2218 = vunpack.c.h.b16 %v2130
  %v2219 = vunpack.c.l.b16 %v2131
  %v2220 = vunpack.c.h.b16 %v2131
  %v2221 = vunpack.c.l.b16 %v2132
  %v2222 = vunpack.c.h.b16 %v2132
  %v2223 = vunpack.c.l.b16 %v2133
  %v2224 = vunpack.c.h.b16 %v2133
  %v2225 = vunpack.c.l.b16 %v2134
  %v2226 = vunpack.c.h.b16 %v2134
  %v2227 = vunpack.c.l.b16 %v2135
  %v2228 = vunpack.c.h.b16 %v2135
  %v2229 = vunpack.c.l.b16 %v2136
  %v2230 = vunpack.c.h.b16 %v2136
  %v2231 = vunpack.c.l.b16 %v2137
  %v2232 = vunpack.c.h.b16 %v2137
  %v2233 = vunpack.c.l.b16 %v2138
  %v2234 = vunpack.c.h.b16 %v2138
  %v2235 = vpack.c.b16 %v2175, %v2171
  %v2236 = vpack.c.b16 %v2176, %v2172
  %v2237 = vpack.c.b16 %v2177, %v2173
  %v2238 = vpack.c.b16 %v2178, %v2174
  %v2239 = vpack.c.b16 %v2183, %v2179
  %v2240 = vpack.c.b16 %v2184, %v2180
  %v2241 = vpack.c.b16 %v2185, %v2181
  %v2242 = vpack.c.b16 %v2186, %v2182
  %v2243 = vpack.c.b16 %v2191, %v2187
  %v2244 = vpack.c.b16 %v2192, %v2188
  %v2245 = vpack.c.b16 %v2193, %v2189
  %v2246 = vpack.c.b16 %v2194, %v2190
  %v2247 = vpack.c.b16 %v2199, %v2195
  %v2248 = vpack.c.b16 %v2200, %v2196
  %v2249 = vpack.c.b16 %v2201, %v2197
  %v2250 = vpack.c.b16 %v2202, %v2198
  %v2251 = vpack.c.b16 %v2207, %v2203
  %v2252 = vpack.c.b16 %v2208, %v2204
  %v2253 = vpack.c.b16 %v2209, %v2205
  %v2254 = vpack.c.b16 %v2210, %v2206
  %v2255 = vpack.c.b16 %v2215, %v2211
  %v2256 = vpack.c.b16 %v2216, %v2212
  %v2257 = vpack.c.b16 %v2217, %v2213
  %v2258 = vpack.c.b16 %v2218, %v2214
  %v2259 = vpack.c.b16 %v2223, %v2219
  %v2260 = vpack.c.b16 %v2224, %v2220
  %v2261 = vpack.c.b16 %v2225, %v2221
  %v2262 = vpack.c.b16 %v2226, %v2222
  %v2263 = vpack.c.b16 %v2231, %v2227
  %v2264 = vpack.c.b16 %v2232, %v2228
  %v2265 = vpack.c.b16 %v2233, %v2229
  %v2266 = vpack.c.b16 %v2234, %v2230
  %2299 = vmatpush.bf16.msra.mxu0 %v2263
  %2300 = vmatpush.bf16.msra.mxu0 %v2259
  %2301 = vmatpush.bf16.msra.mxu0 %v2255
  %2302 = vmatpush.bf16.msra.mxu0 %v2251
  %2303 = vmatpush.bf16.msra.mxu0 %v2247
  %2304 = vmatpush.bf16.msra.mxu0 %v2243
  %2305 = vmatpush.bf16.msra.mxu0 %v2239
  %2306 = vmatpush.bf16.msra.mxu0 %v2235
  %2307 = vmatmul.bf16.gmra.mxu0 %v2106
  %v2308 = vpop.f32.mrf.mxu0
  %v2309 = vadd.f32 0.0, %v2308
  %v2310 = vpop.f32.mrf.mxu0
  %2311 = vdwg.mxu0
  %2312 = vmatpush.bf16.msra.mxu0 %v2264
  %2313 = vmatpush.bf16.msra.mxu0 %v2260
  %2314 = vmatpush.bf16.msra.mxu0 %v2256
  %2315 = vmatpush.bf16.msra.mxu0 %v2252
  %2316 = vmatpush.bf16.msra.mxu0 %v2248
  %2317 = vmatpush.bf16.msra.mxu0 %v2244
  %2318 = vmatpush.bf16.msra.mxu0 %v2240
  %2319 = vmatpush.bf16.msra.mxu0 %v2236
  %2320 = vmatmul.bf16.gmra.mxu0 %v2106
  %v2321 = vpop.f32.mrf.mxu0
  %v2322 = vadd.f32 0.0, %v2321
  %v2323 = vpop.f32.mrf.mxu0
  %2324 = vdwg.mxu0
  %2325 = vmatpush.bf16.msra.mxu0 %v2265
  %2326 = vmatpush.bf16.msra.mxu0 %v2261
  %2327 = vmatpush.bf16.msra.mxu0 %v2257
  %2328 = vmatpush.bf16.msra.mxu0 %v2253
  %2329 = vmatpush.bf16.msra.mxu0 %v2249
  %2330 = vmatpush.bf16.msra.mxu0 %v2245
  %2331 = vmatpush.bf16.msra.mxu0 %v2241
  %2332 = vmatpush.bf16.msra.mxu0 %v2237
  %2333 = vmatmul.bf16.gmra.mxu0 %v2106
  %v2334 = vpop.f32.mrf.mxu0
  %v2335 = vadd.f32 0.0, %v2334
  %v2336 = vpop.f32.mrf.mxu0
  %2337 = vdwg.mxu0
  %2338 = vmatpush.bf16.msra.mxu0 %v2266
  %2339 = vmatpush.bf16.msra.mxu0 %v2262
  %2340 = vmatpush.bf16.msra.mxu0 %v2258
  %2341 = vmatpush.bf16.msra.mxu0 %v2254
  %2342 = vmatpush.bf16.msra.mxu0 %v2250
  %2343 = vmatpush.bf16.msra.mxu0 %v2246
  %2344 = vmatpush.bf16.msra.mxu0 %v2242
  %2345 = vmatpush.bf16.msra.mxu0 %v2238
  %2346 = vmatmul.bf16.gmra.mxu0 %v2106
  %v2347 = vpop.f32.mrf.mxu0
  %v2348 = vadd.f32 0.0, %v2347
  %v2349 = vpop.f32.mrf.mxu0
  %2350 = vdwg.mxu0
  %v2351 = vadd.f32 %v2102, %v2309
  %v2352 = vadd.f32 %v2103, %v2322
  %v2353 = vadd.f32 %v2104, %v2335
  %v2354 = vadd.f32 %v2105, %v2348
  %v2355 = vmul.f32 %v2351, 0.5
  %v2356 = vtanh.pop %v2355
  %v2357 = vadd.f32 %v2356, 1.0
  %v2358 = vmul.f32 %v2357, 0.5
  %v2359 = vmul.f32 %v2352, 0.5
  %v2360 = vtanh.pop %v2359
  %v2361 = vadd.f32 %v2360, 1.0
  %v2362 = vmul.f32 %v2361, 0.5
  %v2363 = vtanh.pop %v2353
  %v2364 = vmul.f32 %v2354, 0.5
  %v2365 = vtanh.pop %v2364
  %v2366 = vadd.f32 %v2365, 1.0
  %v2367 = vmul.f32 %v2366, 0.5
  %v2368 = vmul.f32 %v2362, %v2084
  %v2369 = vmul.f32 %v2358, %v2363
  %v2370 = vadd.f32 %v2368, %v2369
  %v2371 = vtanh.pop %v2370
  %v2372 = vmul.f32 %v2367, %v2371
  %s2373 = sadd.s32 %s21, 7
  %v2374 = vstv %s2373
  %vm2375 = vcmp.lt.s32.totalorder %v2374, %v20
  %v2376 = vsel %vm2375, 1, 0
  %2377 = vset.pattern.permute.xlu0 0
  %2378 = vperm.xlu0 %2377, %v2376
  %v2379 = vpop.permute.xlu0 %2378
  %vm2380 = vcmp.eq.s32.totalorder %v2379, 1
  %v2381 = vsel %vm2380, %v2370, %v2084
  %v2382 = vsel %vm2380, %v2372, %v2085
  %v2383 = vsel %vm2380, %v2372, 0.0
  %v2385 = vrot.slane %v2383, 1
  %v2386 = vrot.slane %v2383, 2
  %v2387 = vrot.slane %v2383, 3
  %v2388 = vrot.slane %v2383, 4
  %2393 = vst [vmem:[%s3 + $0x7] sm:$0x1] %v2383
  %2394 = vst [vmem:[%s3 + $0xf] sm:$0x1] %v2385
  %2395 = vst [vmem:[%s3 + $0x17] sm:$0x1] %v2386
  %2396 = vst [vmem:[%s3 + $0x1f] sm:$0x1] %v2387
  %2397 = vst [vmem:[%s3 + $0x27] sm:$0x1] %v2388
  %2398 = vst [vmem:[#allocation2] sm:$0x1f] %v2382
  %2399 = vst [vmem:[#allocation3] sm:$0x1f] %v2381
  // Predicated region
  $region18: #{wcp_forward.7} parent=0 // pred_check
    _
  $region19: #{wcp_forward.7} parent=0 // pred_check_branch
    %2401 = sbr.rel (0) target = $region21
  $region20: #{wcp_forward.7} parent=0 // pred_region
    _
  $region21: #{wcp_forward.7} parent=0 // pred_fallthru
    _
  // Predicated region
  $region22: #{wcp_forward.7} parent=0 // pred_check
    _
  $region23: #{wcp_forward.7} parent=0 // pred_check_branch
    %2403 = sbr.rel (0) target = $region25
  $region24: #{wcp_forward.7} parent=0 // pred_region
    _
  $region25: #{wcp_forward.7} parent=0 // pred_fallthru
    _

// kernel: wcp_forward.5
$region0: #{wcp_forward.5}
  #allocation0 [shape = 'u32[]', space=smem, size = 0x4, offset = 0x4, fixed_abs, tag = 'smem constant byte address 0x4 - core index']
  #allocation1 [shape = 'u32[72,128]{1,0:T(1,128)}', space=vmem, size = 0x9000, scoped, tag = 'internal scratch']
  #allocation2 [shape = 'f32[2,128]{1,0:T(2,128)}', space=vmem, size = 0x400, scoped, tag = 'scratch operand']
  #allocation3 [shape = 'f32[2,128]{1,0:T(2,128)}', space=vmem, size = 0x400, scoped, tag = 'scratch operand']
  %s0 = inlined_call_operand.vmem [shape: f32[8,2,512], index: 0, kind: input, shape index: {}]
  %s1 = inlined_call_operand.vmem [shape: s32[2,1], index: 1, kind: input, shape index: {}]
  %s2 = inlined_call_operand.vmem [shape: bf16[128,512], index: 2, kind: input, shape index: {}]
  %s3 = inlined_call_operand.vmem [shape: f32[2,8,128], index: 3, kind: output, shape index: {}]
  %s4 = sld [smem:[#allocation0]]
  $region26: #{wcp_forward.5} parent=0
    _
  %s6 = ssub.s32 1, %s4
  %s7 = scalar_select 0, %s6, %s4
  // Predicated region
  $region2: #{wcp_forward.5} parent=0 // pred_check
    _
  $region3: #{wcp_forward.5} parent=0 // pred_check_branch
    %9 = sbr.rel (0) target = $region5
  $region4: #{wcp_forward.5} parent=0 // pred_region
    _
  $region5: #{wcp_forward.5} parent=0 // pred_fallthru
    _
  // Predicated region
  $region6: #{wcp_forward.5} parent=0 // pred_check
    _
  $region7: #{wcp_forward.5} parent=0 // pred_check_branch
    %11 = sbr.rel (0) target = $region9
  $region8: #{wcp_forward.5} parent=0 // pred_region
    _
  $region9: #{wcp_forward.5} parent=0 // pred_fallthru
    _
  // Predicated region
  $region10: #{wcp_forward.5} parent=0 // pred_check
    _
  $region11: #{wcp_forward.5} parent=0 // pred_check_branch
    %13 = sbr.rel (0) target = $region13
  $region12: #{wcp_forward.5} parent=0 // pred_region
    _
  $region13: #{wcp_forward.5} parent=0 // pred_fallthru
    _
  %p14 = scmp.eq.s32.totalorder 0, 0
  // Predicated region
  $region14: #{wcp_forward.5} parent=0 // pred_check
    %p15 = pneg %p14
  $region15: #{wcp_forward.5} parent=0 // pred_check_branch
    %17 = sbr.rel (%p15) target = $region17
  $region16: #{wcp_forward.5} parent=0 // pred_region
    %18 = vst [vmem:[#allocation2] sm:$0x3] 0.0
    %19 = vst [vmem:[#allocation3] sm:$0x3] 0.0
  $region17: #{wcp_forward.5} parent=0 // pred_fallthru
    _
  %v20 = vld [vmem:[%s1] sm:$0x3]
  %s21 = smul.u32 0, 8
  %v22 = vld [vmem:[#allocation2] sm:$0x3]
  %v23 = vld [vmem:[#allocation3] sm:$0x3]
  %v24 = vld [vmem:[%s0] sm:$0xff]
  %v25 = vpack.c.bf16 %v22, %v22
  %v26 = vld [vmem:[%s2] sm:$0xff]
  %v27 = vld [vmem:[%s2 + $0x8] sm:$0xff]
  %v28 = vld [vmem:[%s2 + $0x10] sm:$0xff]
  %v29 = vld [vmem:[%s2 + $0x18] sm:$0xff]
  %v30 = vld [vmem:[%s2 + $0x20] sm:$0xff]
  %v31 = vld [vmem:[%s2 + $0x28] sm:$0xff]
  %v32 = vld [vmem:[%s2 + $0x30] sm:$0xff]
  %v33 = vld [vmem:[%s2 + $0x38] sm:$0xff]
  %v34 = vld [vmem:[%s2 + $0x40] sm:$0xff]
  %v35 = vld [vmem:[%s2 + $0x48] sm:$0xff]
  %v36 = vld [vmem:[%s2 + $0x50] sm:$0xff]
  %v37 = vld [vmem:[%s2 + $0x58] sm:$0xff]
  %v38 = vld [vmem:[%s2 + $0x60] sm:$0xff]
  %v39 = vld [vmem:[%s2 + $0x68] sm:$0xff]
  %v40 = vld [vmem:[%s2 + $0x70] sm:$0xff]
  %v41 = vld [vmem:[%s2 + $0x78] sm:$0xff]
  %v42 = vld [vmem:[%s2 + $0x80] sm:$0xff]
  %v43 = vld [vmem:[%s2 + $0x88] sm:$0xff]
  %v44 = vld [vmem:[%s2 + $0x90] sm:$0xff]
  %v45 = vld [vmem:[%s2 + $0x98] sm:$0xff]
  %v46 = vld [vmem:[%s2 + $0xa0] sm:$0xff]
  %v47 = vld [vmem:[%s2 + $0xa8] sm:$0xff]
  %v48 = vld [vmem:[%s2 + $0xb0] sm:$0xff]
  %v49 = vld [vmem:[%s2 + $0xb8] sm:$0xff]
  %v50 = vld [vmem:[%s2 + $0xc0] sm:$0xff]
  %v51 = vld [vmem:[%s2 + $0xc8] sm:$0xff]
  %v52 = vld [vmem:[%s2 + $0xd0] sm:$0xff]
  %v53 = vld [vmem:[%s2 + $0xd8] sm:$0xff]
  %v54 = vld [vmem:[%s2 + $0xe0] sm:$0xff]
  %v55 = vld [vmem:[%s2 + $0xe8] sm:$0xff]
  %v56 = vld [vmem:[%s2 + $0xf0] sm:$0xff]
  %v57 = vld [vmem:[%s2 + $0xf8] sm:$0xff]
  %v90 = vunpack.c.l.b16 %v26
  %v91 = vunpack.c.h.b16 %v26
  %v92 = vunpack.c.l.b16 %v27
  %v93 = vunpack.c.h.b16 %v27
  %v94 = vunpack.c.l.b16 %v28
  %v95 = vunpack.c.h.b16 %v28
  %v96 = vunpack.c.l.b16 %v29
  %v97 = vunpack.c.h.b16 %v29
  %v98 = vunpack.c.l.b16 %v30
  %v99 = vunpack.c.h.b16 %v30
  %v100 = vunpack.c.l.b16 %v31
  %v101 = vunpack.c.h.b16 %v31
  %v102 = vunpack.c.l.b16 %v32
  %v103 = vunpack.c.h.b16 %v32
  %v104 = vunpack.c.l.b16 %v33
  %v105 = vunpack.c.h.b16 %v33
  %v106 = vunpack.c.l.b16 %v34
  %v107 = vunpack.c.h.b16 %v34
  %v108 = vunpack.c.l.b16 %v35
  %v109 = vunpack.c.h.b16 %v35
  %v110 = vunpack.c.l.b16 %v36
  %v111 = vunpack.c.h.b16 %v36
  %v112 = vunpack.c.l.b16 %v37
  %v113 = vunpack.c.h.b16 %v37
  %v114 = vunpack.c.l.b16 %v38
  %v115 = vunpack.c.h.b16 %v38
  %v116 = vunpack.c.l.b16 %v39
  %v117 = vunpack.c.h.b16 %v39
  %v118 = vunpack.c.l.b16 %v40
  %v119 = vunpack.c.h.b16 %v40
  %v120 = vunpack.c.l.b16 %v41
  %v121 = vunpack.c.h.b16 %v41
  %v122 = vunpack.c.l.b16 %v42
  %v123 = vunpack.c.h.b16 %v42
  %v124 = vunpack.c.l.b16 %v43
  %v125 = vunpack.c.h.b16 %v43
  %v126 = vunpack.c.l.b16 %v44
  %v127 = vunpack.c.h.b16 %v44
  %v128 = vunpack.c.l.b16 %v45
  %v129 = vunpack.c.h.b16 %v45
  %v130 = vunpack.c.l.b16 %v46
  %v131 = vunpack.c.h.b16 %v46
  %v132 = vunpack.c.l.b16 %v47
  %v133 = vunpack.c.h.b16 %v47
  %v134 = vunpack.c.l.b16 %v48
  %v135 = vunpack.c.h.b16 %v48
  %v136 = vunpack.c.l.b16 %v49
  %v137 = vunpack.c.h.b16 %v49
  %v138 = vunpack.c.l.b16 %v50
  %v139 = vunpack.c.h.b16 %v50
  %v140 = vunpack.c.l.b16 %v51
  %v141 = vunpack.c.h.b16 %v51
  %v142 = vunpack.c.l.b16 %v52
  %v143 = vunpack.c.h.b16 %v52
  %v144 = vunpack.c.l.b16 %v53
  %v145 = vunpack.c.h.b16 %v53
  %v146 = vunpack.c.l.b16 %v54
  %v147 = vunpack.c.h.b16 %v54
  %v148 = vunpack.c.l.b16 %v55
  %v149 = vunpack.c.h.b16 %v55
  %v150 = vunpack.c.l.b16 %v56
  %v151 = vunpack.c.h.b16 %v56
  %v152 = vunpack.c.l.b16 %v57
  %v153 = vunpack.c.h.b16 %v57
  %v154 = vpack.c.b16 %v94, %v90
  %v155 = vpack.c.b16 %v95, %v91
  %v156 = vpack.c.b16 %v96, %v92
  %v157 = vpack.c.b16 %v97, %v93
  %v158 = vpack.c.b16 %v102, %v98
  %v159 = vpack.c.b16 %v103, %v99
  %v160 = vpack.c.b16 %v104, %v100
  %v161 = vpack.c.b16 %v105, %v101
  %v162 = vpack.c.b16 %v110, %v106
  %v163 = vpack.c.b16 %v111, %v107
  %v164 = vpack.c.b16 %v112, %v108
  %v165 = vpack.c.b16 %v113, %v109
  %v166 = vpack.c.b16 %v118, %v114
  %v167 = vpack.c.b16 %v119, %v115
  %v168 = vpack.c.b16 %v120, %v116
  %v169 = vpack.c.b16 %v121, %v117
  %v170 = vpack.c.b16 %v126, %v122
  %v171 = vpack.c.b16 %v127, %v123
  %v172 = vpack.c.b16 %v128, %v124
  %v173 = vpack.c.b16 %v129, %v125
  %v174 = vpack.c.b16 %v134, %v130
  %v175 = vpack.c.b16 %v135, %v131
  %v176 = vpack.c.b16 %v136, %v132
  %v177 = vpack.c.b16 %v137, %v133
  %v178 = vpack.c.b16 %v142, %v138
  %v179 = vpack.c.b16 %v143, %v139
  %v180 = vpack.c.b16 %v144, %v140
  %v181 = vpack.c.b16 %v145, %v141
  %v182 = vpack.c.b16 %v150, %v146
  %v183 = vpack.c.b16 %v151, %v147
  %v184 = vpack.c.b16 %v152, %v148
  %v185 = vpack.c.b16 %v153, %v149
  %218 = vmatpush.bf16.msra.mxu0 %v182
  %219 = vmatpush.bf16.msra.mxu0 %v178
  %220 = vmatpush.bf16.msra.mxu0 %v174
  %221 = vmatpush.bf16.msra.mxu0 %v170
  %222 = vmatpush.bf16.msra.mxu0 %v166
  %223 = vmatpush.bf16.msra.mxu0 %v162
  %224 = vmatpush.bf16.msra.mxu0 %v158
  %225 = vmatpush.bf16.msra.mxu0 %v154
  %226 = vmatmul.bf16.gmra.mxu0 %v25
  %v227 = vpop.f32.mrf.mxu0
  %v228 = vadd.f32 0.0, %v227
  %v229 = vpop.f32.mrf.mxu0
  %230 = vdwg.mxu0
  %231 = vmatpush.bf16.msra.mxu0 %v183
  %232 = vmatpush.bf16.msra.mxu0 %v179
  %233 = vmatpush.bf16.msra.mxu0 %v175
  %234 = vmatpush.bf16.msra.mxu0 %v171
  %235 = vmatpush.bf16.msra.mxu0 %v167
  %236 = vmatpush.bf16.msra.mxu0 %v163
  %237 = vmatpush.bf16.msra.mxu0 %v159
  %238 = vmatpush.bf16.msra.mxu0 %v155
  %239 = vmatmul.bf16.gmra.mxu0 %v25
  %v240 = vpop.f32.mrf.mxu0
  %v241 = vadd.f32 0.0, %v240
  %v242 = vpop.f32.mrf.mxu0
  %243 = vdwg.mxu0
  %244 = vmatpush.bf16.msra.mxu0 %v184
  %245 = vmatpush.bf16.msra.mxu0 %v180
  %246 = vmatpush.bf16.msra.mxu0 %v176
  %247 = vmatpush.bf16.msra.mxu0 %v172
  %248 = vmatpush.bf16.msra.mxu0 %v168
  %249 = vmatpush.bf16.msra.mxu0 %v164
  %250 = vmatpush.bf16.msra.mxu0 %v160
  %251 = vmatpush.bf16.msra.mxu0 %v156
  %252 = vmatmul.bf16.gmra.mxu0 %v25
  %v253 = vpop.f32.mrf.mxu0
  %v254 = vadd.f32 0.0, %v253
  %v255 = vpop.f32.mrf.mxu0
  %256 = vdwg.mxu0
  %257 = vmatpush.bf16.msra.mxu0 %v185
  %258 = vmatpush.bf16.msra.mxu0 %v181
  %259 = vmatpush.bf16.msra.mxu0 %v177
  %260 = vmatpush.bf16.msra.mxu0 %v173
  %261 = vmatpush.bf16.msra.mxu0 %v169
  %262 = vmatpush.bf16.msra.mxu0 %v165
  %263 = vmatpush.bf16.msra.mxu0 %v161
  %264 = vmatpush.bf16.msra.mxu0 %v157
  %265 = vmatmul.bf16.gmra.mxu0 %v25
  %v266 = vpop.f32.mrf.mxu0
  %v267 = vadd.f32 0.0, %v266
  %v268 = vpop.f32.mrf.mxu0
  %269 = vdwg.mxu0
  %v274 = vrot.slane %v241, 6
  %v275 = vrot.slane %v254, 4
  %v276 = vrot.slane %v267, 2
  %vm277 = vcmask 1041408
  %v278 = vsel %vm277, %v228, %v274
  %vm279 = vcmask 1045508
  %v280 = vsel %vm279, %v275, %v276
  %vm281 = vcmask 1043456
  %v282 = vsel %vm281, %v278, %v280
  %v284 = vadd.f32 %v24, %v282
  %v285 = vmul.f32 %v284, 0.5
  %v286 = vtanh.pop %v285
  %v287 = vadd.f32 %v286, 1.0
  %v288 = vmul.f32 %v287, 0.5
  %v290 = vrot.slane %v284, 2
  %v292 = vmul.f32 %v290, 0.5
  %v293 = vtanh.pop %v292
  %v294 = vadd.f32 %v293, 1.0
  %v295 = vmul.f32 %v294, 0.5
  %v296 = vrot.slane %v284, 4
  %v298 = vtanh.pop %v296
  %v299 = vrot.slane %v284, 6
  %v301 = vmul.f32 %v299, 0.5
  %v302 = vtanh.pop %v301
  %v303 = vadd.f32 %v302, 1.0
  %v304 = vmul.f32 %v303, 0.5
  %v305 = vmul.f32 %v295, %v23
  %v306 = vmul.f32 %v288, %v298
  %v307 = vadd.f32 %v305, %v306
  %v308 = vtanh.pop %v307
  %v309 = vmul.f32 %v304, %v308
  %v310 = vstv %s21
  %vm311 = vcmp.lt.s32.totalorder %v310, %v20
  %v312 = vsel %vm311, 1, 0
  %313 = vset.pattern.permute.xlu0 0
  %314 = vperm.xlu0 %313, %v312
  %v315 = vpop.permute.xlu0 %314
  %vm316 = vcmp.eq.s32.totalorder %v315, 1
  %v317 = vsel %vm316, %v307, %v23
  %v318 = vsel %vm316, %v309, %v22
  %v319 = vsel %vm316, %v309, 0.0
  %v321 = vrot.slane %v319, 1
  %323 = vst [vmem:[%s3] sm:$0x1] %v319
  %324 = vst [vmem:[%s3 + $0x8] sm:$0x1] %v321
  %s325 = scalar_lea.vmem %s0, 8
  %v326 = vld [vmem:[%s325] sm:$0xff]
  %v327 = vpack.c.bf16 %v318, %v318
  %v328 = vld [vmem:[%s2] sm:$0xff]
  %v329 = vld [vmem:[%s2 + $0x8] sm:$0xff]
  %v330 = vld [vmem:[%s2 + $0x10] sm:$0xff]
  %v331 = vld [vmem:[%s2 + $0x18] sm:$0xff]
  %v332 = vld [vmem:[%s2 + $0x20] sm:$0xff]
  %v333 = vld [vmem:[%s2 + $0x28] sm:$0xff]
  %v334 = vld [vmem:[%s2 + $0x30] sm:$0xff]
  %v335 = vld [vmem:[%s2 + $0x38] sm:$0xff]
  %v336 = vld [vmem:[%s2 + $0x40] sm:$0xff]
  %v337 = vld [vmem:[%s2 + $0x48] sm:$0xff]
  %v338 = vld [vmem:[%s2 + $0x50] sm:$0xff]
  %v339 = vld [vmem:[%s2 + $0x58] sm:$0xff]
  %v340 = vld [vmem:[%s2 + $0x60] sm:$0xff]
  %v341 = vld [vmem:[%s2 + $0x68] sm:$0xff]
  %v342 = vld [vmem:[%s2 + $0x70] sm:$0xff]
  %v343 = vld [vmem:[%s2 + $0x78] sm:$0xff]
  %v344 = vld [vmem:[%s2 + $0x80] sm:$0xff]
  %v345 = vld [vmem:[%s2 + $0x88] sm:$0xff]
  %v346 = vld [vmem:[%s2 + $0x90] sm:$0xff]
  %v347 = vld [vmem:[%s2 + $0x98] sm:$0xff]
  %v348 = vld [vmem:[%s2 + $0xa0] sm:$0xff]
  %v349 = vld [vmem:[%s2 + $0xa8] sm:$0xff]
  %v350 = vld [vmem:[%s2 + $0xb0] sm:$0xff]
  %v351 = vld [vmem:[%s2 + $0xb8] sm:$0xff]
  %v352 = vld [vmem:[%s2 + $0xc0] sm:$0xff]
  %v353 = vld [vmem:[%s2 + $0xc8] sm:$0xff]
  %v354 = vld [vmem:[%s2 + $0xd0] sm:$0xff]
  %v355 = vld [vmem:[%s2 + $0xd8] sm:$0xff]
  %v356 = vld [vmem:[%s2 + $0xe0] sm:$0xff]
  %v357 = vld [vmem:[%s2 + $0xe8] sm:$0xff]
  %v358 = vld [vmem:[%s2 + $0xf0] sm:$0xff]
  %v359 = vld [vmem:[%s2 + $0xf8] sm:$0xff]
  %v392 = vunpack.c.l.b16 %v328
  %v393 = vunpack.c.h.b16 %v328
  %v394 = vunpack.c.l.b16 %v329
  %v395 = vunpack.c.h.b16 %v329
  %v396 = vunpack.c.l.b16 %v330
  %v397 = vunpack.c.h.b16 %v330
  %v398 = vunpack.c.l.b16 %v331
  %v399 = vunpack.c.h.b16 %v331
  %v400 = vunpack.c.l.b16 %v332
  %v401 = vunpack.c.h.b16 %v332
  %v402 = vunpack.c.l.b16 %v333
  %v403 = vunpack.c.h.b16 %v333
  %v404 = vunpack.c.l.b16 %v334
  %v405 = vunpack.c.h.b16 %v334
  %v406 = vunpack.c.l.b16 %v335
  %v407 = vunpack.c.h.b16 %v335
  %v408 = vunpack.c.l.b16 %v336
  %v409 = vunpack.c.h.b16 %v336
  %v410 = vunpack.c.l.b16 %v337
  %v411 = vunpack.c.h.b16 %v337
  %v412 = vunpack.c.l.b16 %v338
  %v413 = vunpack.c.h.b16 %v338
  %v414 = vunpack.c.l.b16 %v339
  %v415 = vunpack.c.h.b16 %v339
  %v416 = vunpack.c.l.b16 %v340
  %v417 = vunpack.c.h.b16 %v340
  %v418 = vunpack.c.l.b16 %v341
  %v419 = vunpack.c.h.b16 %v341
  %v420 = vunpack.c.l.b16 %v342
  %v421 = vunpack.c.h.b16 %v342
  %v422 = vunpack.c.l.b16 %v343
  %v423 = vunpack.c.h.b16 %v343
  %v424 = vunpack.c.l.b16 %v344
  %v425 = vunpack.c.h.b16 %v344
  %v426 = vunpack.c.l.b16 %v345
  %v427 = vunpack.c.h.b16 %v345
  %v428 = vunpack.c.l.b16 %v346
  %v429 = vunpack.c.h.b16 %v346
  %v430 = vunpack.c.l.b16 %v347
  %v431 = vunpack.c.h.b16 %v347
  %v432 = vunpack.c.l.b16 %v348
  %v433 = vunpack.c.h.b16 %v348
  %v434 = vunpack.c.l.b16 %v349
  %v435 = vunpack.c.h.b16 %v349
  %v436 = vunpack.c.l.b16 %v350
  %v437 = vunpack.c.h.b16 %v350
  %v438 = vunpack.c.l.b16 %v351
  %v439 = vunpack.c.h.b16 %v351
  %v440 = vunpack.c.l.b16 %v352
  %v441 = vunpack.c.h.b16 %v352
  %v442 = vunpack.c.l.b16 %v353
  %v443 = vunpack.c.h.b16 %v353
  %v444 = vunpack.c.l.b16 %v354
  %v445 = vunpack.c.h.b16 %v354
  %v446 = vunpack.c.l.b16 %v355
  %v447 = vunpack.c.h.b16 %v355
  %v448 = vunpack.c.l.b16 %v356
  %v449 = vunpack.c.h.b16 %v356
  %v450 = vunpack.c.l.b16 %v357
  %v451 = vunpack.c.h.b16 %v357
  %v452 = vunpack.c.l.b16 %v358
  %v453 = vunpack.c.h.b16 %v358
  %v454 = vunpack.c.l.b16 %v359
  %v455 = vunpack.c.h.b16 %v359
  %v456 = vpack.c.b16 %v396, %v392
  %v457 = vpack.c.b16 %v397, %v393
  %v458 = vpack.c.b16 %v398, %v394
  %v459 = vpack.c.b16 %v399, %v395
  %v460 = vpack.c.b16 %v404, %v400
  %v461 = vpack.c.b16 %v405, %v401
  %v462 = vpack.c.b16 %v406, %v402
  %v463 = vpack.c.b16 %v407, %v403
  %v464 = vpack.c.b16 %v412, %v408
  %v465 = vpack.c.b16 %v413, %v409
  %v466 = vpack.c.b16 %v414, %v410
  %v467 = vpack.c.b16 %v415, %v411
  %v468 = vpack.c.b16 %v420, %v416
  %v469 = vpack.c.b16 %v421, %v417
  %v470 = vpack.c.b16 %v422, %v418
  %v471 = vpack.c.b16 %v423, %v419
  %v472 = vpack.c.b16 %v428, %v424
  %v473 = vpack.c.b16 %v429, %v425
  %v474 = vpack.c.b16 %v430, %v426
  %v475 = vpack.c.b16 %v431, %v427
  %v476 = vpack.c.b16 %v436, %v432
  %v477 = vpack.c.b16 %v437, %v433
  %v478 = vpack.c.b16 %v438, %v434
  %v479 = vpack.c.b16 %v439, %v435
  %v480 = vpack.c.b16 %v444, %v440
  %v481 = vpack.c.b16 %v445, %v441
  %v482 = vpack.c.b16 %v446, %v442
  %v483 = vpack.c.b16 %v447, %v443
  %v484 = vpack.c.b16 %v452, %v448
  %v485 = vpack.c.b16 %v453, %v449
  %v486 = vpack.c.b16 %v454, %v450
  %v487 = vpack.c.b16 %v455, %v451
  %520 = vmatpush.bf16.msra.mxu0 %v484
  %521 = vmatpush.bf16.msra.mxu0 %v480
  %522 = vmatpush.bf16.msra.mxu0 %v476
  %523 = vmatpush.bf16.msra.mxu0 %v472
  %524 = vmatpush.bf16.msra.mxu0 %v468
  %525 = vmatpush.bf16.msra.mxu0 %v464
  %526 = vmatpush.bf16.msra.mxu0 %v460
  %527 = vmatpush.bf16.msra.mxu0 %v456
  %528 = vmatmul.bf16.gmra.mxu0 %v327
  %v529 = vpop.f32.mrf.mxu0
  %v530 = vadd.f32 0.0, %v529
  %v531 = vpop.f32.mrf.mxu0
  %532 = vdwg.mxu0
  %533 = vmatpush.bf16.msra.mxu0 %v485
  %534 = vmatpush.bf16.msra.mxu0 %v481
  %535 = vmatpush.bf16.msra.mxu0 %v477
  %536 = vmatpush.bf16.msra.mxu0 %v473
  %537 = vmatpush.bf16.msra.mxu0 %v469
  %538 = vmatpush.bf16.msra.mxu0 %v465
  %539 = vmatpush.bf16.msra.mxu0 %v461
  %540 = vmatpush.bf16.msra.mxu0 %v457
  %541 = vmatmul.bf16.gmra.mxu0 %v327
  %v542 = vpop.f32.mrf.mxu0
  %v543 = vadd.f32 0.0, %v542
  %v544 = vpop.f32.mrf.mxu0
  %545 = vdwg.mxu0
  %546 = vmatpush.bf16.msra.mxu0 %v486
  %547 = vmatpush.bf16.msra.mxu0 %v482
  %548 = vmatpush.bf16.msra.mxu0 %v478
  %549 = vmatpush.bf16.msra.mxu0 %v474
  %550 = vmatpush.bf16.msra.mxu0 %v470
  %551 = vmatpush.bf16.msra.mxu0 %v466
  %552 = vmatpush.bf16.msra.mxu0 %v462
  %553 = vmatpush.bf16.msra.mxu0 %v458
  %554 = vmatmul.bf16.gmra.mxu0 %v327
  %v555 = vpop.f32.mrf.mxu0
  %v556 = vadd.f32 0.0, %v555
  %v557 = vpop.f32.mrf.mxu0
  %558 = vdwg.mxu0
  %559 = vmatpush.bf16.msra.mxu0 %v487
  %560 = vmatpush.bf16.msra.mxu0 %v483
  %561 = vmatpush.bf16.msra.mxu0 %v479
  %562 = vmatpush.bf16.msra.mxu0 %v475
  %563 = vmatpush.bf16.msra.mxu0 %v471
  %564 = vmatpush.bf16.msra.mxu0 %v467
  %565 = vmatpush.bf16.msra.mxu0 %v463
  %566 = vmatpush.bf16.msra.mxu0 %v459
  %567 = vmatmul.bf16.gmra.mxu0 %v327
  %v568 = vpop.f32.mrf.mxu0
  %v569 = vadd.f32 0.0, %v568
  %v570 = vpop.f32.mrf.mxu0
  %571 = vdwg.mxu0
  %v576 = vrot.slane %v543, 6
  %v577 = vrot.slane %v556, 4
  %v578 = vrot.slane %v569, 2
  %v579 = vsel %vm277, %v530, %v576
  %v580 = vsel %vm279, %v577, %v578
  %v581 = vsel %vm281, %v579, %v580
  %v583 = vadd.f32 %v326, %v581
  %v584 = vmul.f32 %v583, 0.5
  %v585 = vtanh.pop %v584
  %v586 = vadd.f32 %v585, 1.0
  %v587 = vmul.f32 %v586, 0.5
  %v589 = vrot.slane %v583, 2
  %v591 = vmul.f32 %v589, 0.5
  %v592 = vtanh.pop %v591
  %v593 = vadd.f32 %v592, 1.0
  %v594 = vmul.f32 %v593, 0.5
  %v595 = vrot.slane %v583, 4
  %v597 = vtanh.pop %v595
  %v598 = vrot.slane %v583, 6
  %v600 = vmul.f32 %v598, 0.5
  %v601 = vtanh.pop %v600
  %v602 = vadd.f32 %v601, 1.0
  %v603 = vmul.f32 %v602, 0.5
  %v604 = vmul.f32 %v594, %v317
  %v605 = vmul.f32 %v587, %v597
  %v606 = vadd.f32 %v604, %v605
  %v607 = vtanh.pop %v606
  %v608 = vmul.f32 %v603, %v607
  %s609 = sadd.s32 %s21, 1
  %v610 = vstv %s609
  %vm611 = vcmp.lt.s32.totalorder %v610, %v20
  %v612 = vsel %vm611, 1, 0
  %613 = vset.pattern.permute.xlu0 0
  %614 = vperm.xlu0 %613, %v612
  %v615 = vpop.permute.xlu0 %614
  %vm616 = vcmp.eq.s32.totalorder %v615, 1
  %v617 = vsel %vm616, %v606, %v317
  %v618 = vsel %vm616, %v608, %v318
  %v619 = vsel %vm616, %v608, 0.0
  %v621 = vrot.slane %v619, 1
  %623 = vst [vmem:[%s3 + $0x1] sm:$0x1] %v619
  %624 = vst [vmem:[%s3 + $0x9] sm:$0x1] %v621
  %s625 = scalar_lea.vmem %s0, 16
  %v626 = vld [vmem:[%s625] sm:$0xff]
  %v627 = vpack.c.bf16 %v618, %v618
  %v628 = vld [vmem:[%s2] sm:$0xff]
  %v629 = vld [vmem:[%s2 + $0x8] sm:$0xff]
  %v630 = vld [vmem:[%s2 + $0x10] sm:$0xff]
  %v631 = vld [vmem:[%s2 + $0x18] sm:$0xff]
  %v632 = vld [vmem:[%s2 + $0x20] sm:$0xff]
  %v633 = vld [vmem:[%s2 + $0x28] sm:$0xff]
  %v634 = vld [vmem:[%s2 + $0x30] sm:$0xff]
  %v635 = vld [vmem:[%s2 + $0x38] sm:$0xff]
  %v636 = vld [vmem:[%s2 + $0x40] sm:$0xff]
  %v637 = vld [vmem:[%s2 + $0x48] sm:$0xff]
  %v638 = vld [vmem:[%s2 + $0x50] sm:$0xff]
  %v639 = vld [vmem:[%s2 + $0x58] sm:$0xff]
  %v640 = vld [vmem:[%s2 + $0x60] sm:$0xff]
  %v641 = vld [vmem:[%s2 + $0x68] sm:$0xff]
  %v642 = vld [vmem:[%s2 + $0x70] sm:$0xff]
  %v643 = vld [vmem:[%s2 + $0x78] sm:$0xff]
  %v644 = vld [vmem:[%s2 + $0x80] sm:$0xff]
  %v645 = vld [vmem:[%s2 + $0x88] sm:$0xff]
  %v646 = vld [vmem:[%s2 + $0x90] sm:$0xff]
  %v647 = vld [vmem:[%s2 + $0x98] sm:$0xff]
  %v648 = vld [vmem:[%s2 + $0xa0] sm:$0xff]
  %v649 = vld [vmem:[%s2 + $0xa8] sm:$0xff]
  %v650 = vld [vmem:[%s2 + $0xb0] sm:$0xff]
  %v651 = vld [vmem:[%s2 + $0xb8] sm:$0xff]
  %v652 = vld [vmem:[%s2 + $0xc0] sm:$0xff]
  %v653 = vld [vmem:[%s2 + $0xc8] sm:$0xff]
  %v654 = vld [vmem:[%s2 + $0xd0] sm:$0xff]
  %v655 = vld [vmem:[%s2 + $0xd8] sm:$0xff]
  %v656 = vld [vmem:[%s2 + $0xe0] sm:$0xff]
  %v657 = vld [vmem:[%s2 + $0xe8] sm:$0xff]
  %v658 = vld [vmem:[%s2 + $0xf0] sm:$0xff]
  %v659 = vld [vmem:[%s2 + $0xf8] sm:$0xff]
  %v692 = vunpack.c.l.b16 %v628
  %v693 = vunpack.c.h.b16 %v628
  %v694 = vunpack.c.l.b16 %v629
  %v695 = vunpack.c.h.b16 %v629
  %v696 = vunpack.c.l.b16 %v630
  %v697 = vunpack.c.h.b16 %v630
  %v698 = vunpack.c.l.b16 %v631
  %v699 = vunpack.c.h.b16 %v631
  %v700 = vunpack.c.l.b16 %v632
  %v701 = vunpack.c.h.b16 %v632
  %v702 = vunpack.c.l.b16 %v633
  %v703 = vunpack.c.h.b16 %v633
  %v704 = vunpack.c.l.b16 %v634
  %v705 = vunpack.c.h.b16 %v634
  %v706 = vunpack.c.l.b16 %v635
  %v707 = vunpack.c.h.b16 %v635
  %v708 = vunpack.c.l.b16 %v636
  %v709 = vunpack.c.h.b16 %v636
  %v710 = vunpack.c.l.b16 %v637
  %v711 = vunpack.c.h.b16 %v637
  %v712 = vunpack.c.l.b16 %v638
  %v713 = vunpack.c.h.b16 %v638
  %v714 = vunpack.c.l.b16 %v639
  %v715 = vunpack.c.h.b16 %v639
  %v716 = vunpack.c.l.b16 %v640
  %v717 = vunpack.c.h.b16 %v640
  %v718 = vunpack.c.l.b16 %v641
  %v719 = vunpack.c.h.b16 %v641
  %v720 = vunpack.c.l.b16 %v642
  %v721 = vunpack.c.h.b16 %v642
  %v722 = vunpack.c.l.b16 %v643
  %v723 = vunpack.c.h.b16 %v643
  %v724 = vunpack.c.l.b16 %v644
  %v725 = vunpack.c.h.b16 %v644
  %v726 = vunpack.c.l.b16 %v645
  %v727 = vunpack.c.h.b16 %v645
  %v728 = vunpack.c.l.b16 %v646
  %v729 = vunpack.c.h.b16 %v646
  %v730 = vunpack.c.l.b16 %v647
  %v731 = vunpack.c.h.b16 %v647
  %v732 = vunpack.c.l.b16 %v648
  %v733 = vunpack.c.h.b16 %v648
  %v734 = vunpack.c.l.b16 %v649
  %v735 = vunpack.c.h.b16 %v649
  %v736 = vunpack.c.l.b16 %v650
  %v737 = vunpack.c.h.b16 %v650
  %v738 = vunpack.c.l.b16 %v651
  %v739 = vunpack.c.h.b16 %v651
  %v740 = vunpack.c.l.b16 %v652
  %v741 = vunpack.c.h.b16 %v652
  %v742 = vunpack.c.l.b16 %v653
  %v743 = vunpack.c.h.b16 %v653
  %v744 = vunpack.c.l.b16 %v654
  %v745 = vunpack.c.h.b16 %v654
  %v746 = vunpack.c.l.b16 %v655
  %v747 = vunpack.c.h.b16 %v655
  %v748 = vunpack.c.l.b16 %v656
  %v749 = vunpack.c.h.b16 %v656
  %v750 = vunpack.c.l.b16 %v657
  %v751 = vunpack.c.h.b16 %v657
  %v752 = vunpack.c.l.b16 %v658
  %v753 = vunpack.c.h.b16 %v658
  %v754 = vunpack.c.l.b16 %v659
  %v755 = vunpack.c.h.b16 %v659
  %v756 = vpack.c.b16 %v696, %v692
  %v757 = vpack.c.b16 %v697, %v693
  %v758 = vpack.c.b16 %v698, %v694
  %v759 = vpack.c.b16 %v699, %v695
  %v760 = vpack.c.b16 %v704, %v700
  %v761 = vpack.c.b16 %v705, %v701
  %v762 = vpack.c.b16 %v706, %v702
  %v763 = vpack.c.b16 %v707, %v703
  %v764 = vpack.c.b16 %v712, %v708
  %v765 = vpack.c.b16 %v713, %v709
  %v766 = vpack.c.b16 %v714, %v710
  %v767 = vpack.c.b16 %v715, %v711
  %v768 = vpack.c.b16 %v720, %v716
  %v769 = vpack.c.b16 %v721, %v717
  %v770 = vpack.c.b16 %v722, %v718
  %v771 = vpack.c.b16 %v723, %v719
  %v772 = vpack.c.b16 %v728, %v724
  %v773 = vpack.c.b16 %v729, %v725
  %v774 = vpack.c.b16 %v730, %v726
  %v775 = vpack.c.b16 %v731, %v727
  %v776 = vpack.c.b16 %v736, %v732
  %v777 = vpack.c.b16 %v737, %v733
  %v778 = vpack.c.b16 %v738, %v734
  %v779 = vpack.c.b16 %v739, %v735
  %v780 = vpack.c.b16 %v744, %v740
  %v781 = vpack.c.b16 %v745, %v741
  %v782 = vpack.c.b16 %v746, %v742
  %v783 = vpack.c.b16 %v747, %v743
  %v784 = vpack.c.b16 %v752, %v748
  %v785 = vpack.c.b16 %v753, %v749
  %v786 = vpack.c.b16 %v754, %v750
  %v787 = vpack.c.b16 %v755, %v751
  %820 = vmatpush.bf16.msra.mxu0 %v784
  %821 = vmatpush.bf16.msra.mxu0 %v780
  %822 = vmatpush.bf16.msra.mxu0 %v776
  %823 = vmatpush.bf16.msra.mxu0 %v772
  %824 = vmatpush.bf16.msra.mxu0 %v768
  %825 = vmatpush.bf16.msra.mxu0 %v764
  %826 = vmatpush.bf16.msra.mxu0 %v760
  %827 = vmatpush.bf16.msra.mxu0 %v756
  %828 = vmatmul.bf16.gmra.mxu0 %v627
  %v829 = vpop.f32.mrf.mxu0
  %v830 = vadd.f32 0.0, %v829
  %v831 = vpop.f32.mrf.mxu0
  %832 = vdwg.mxu0
  %833 = vmatpush.bf16.msra.mxu0 %v785
  %834 = vmatpush.bf16.msra.mxu0 %v781
  %835 = vmatpush.bf16.msra.mxu0 %v777
  %836 = vmatpush.bf16.msra.mxu0 %v773
  %837 = vmatpush.bf16.msra.mxu0 %v769
  %838 = vmatpush.bf16.msra.mxu0 %v765
  %839 = vmatpush.bf16.msra.mxu0 %v761
  %840 = vmatpush.bf16.msra.mxu0 %v757
  %841 = vmatmul.bf16.gmra.mxu0 %v627
  %v842 = vpop.f32.mrf.mxu0
  %v843 = vadd.f32 0.0, %v842
  %v844 = vpop.f32.mrf.mxu0
  %845 = vdwg.mxu0
  %846 = vmatpush.bf16.msra.mxu0 %v786
  %847 = vmatpush.bf16.msra.mxu0 %v782
  %848 = vmatpush.bf16.msra.mxu0 %v778
  %849 = vmatpush.bf16.msra.mxu0 %v774
  %850 = vmatpush.bf16.msra.mxu0 %v770
  %851 = vmatpush.bf16.msra.mxu0 %v766
  %852 = vmatpush.bf16.msra.mxu0 %v762
  %853 = vmatpush.bf16.msra.mxu0 %v758
  %854 = vmatmul.bf16.gmra.mxu0 %v627
  %v855 = vpop.f32.mrf.mxu0
  %v856 = vadd.f32 0.0, %v855
  %v857 = vpop.f32.mrf.mxu0
  %858 = vdwg.mxu0
  %859 = vmatpush.bf16.msra.mxu0 %v787
  %860 = vmatpush.bf16.msra.mxu0 %v783
  %861 = vmatpush.bf16.msra.mxu0 %v779
  %862 = vmatpush.bf16.msra.mxu0 %v775
  %863 = vmatpush.bf16.msra.mxu0 %v771
  %864 = vmatpush.bf16.msra.mxu0 %v767
  %865 = vmatpush.bf16.msra.mxu0 %v763
  %866 = vmatpush.bf16.msra.mxu0 %v759
  %867 = vmatmul.bf16.gmra.mxu0 %v627
  %v868 = vpop.f32.mrf.mxu0
  %v869 = vadd.f32 0.0, %v868
  %v870 = vpop.f32.mrf.mxu0
  %871 = vdwg.mxu0
  %v876 = vrot.slane %v843, 6
  %v877 = vrot.slane %v856, 4
  %v878 = vrot.slane %v869, 2
  %v879 = vsel %vm277, %v830, %v876
  %v880 = vsel %vm279, %v877, %v878
  %v881 = vsel %vm281, %v879, %v880
  %v883 = vadd.f32 %v626, %v881
  %v884 = vmul.f32 %v883, 0.5
  %v885 = vtanh.pop %v884
  %v886 = vadd.f32 %v885, 1.0
  %v887 = vmul.f32 %v886, 0.5
  %v889 = vrot.slane %v883, 2
  %v891 = vmul.f32 %v889, 0.5
  %v892 = vtanh.pop %v891
  %v893 = vadd.f32 %v892, 1.0
  %v894 = vmul.f32 %v893, 0.5
  %v895 = vrot.slane %v883, 4
  %v897 = vtanh.pop %v895
  %v898 = vrot.slane %v883, 6
  %v900 = vmul.f32 %v898, 0.5
  %v901 = vtanh.pop %v900
  %v902 = vadd.f32 %v901, 1.0
  %v903 = vmul.f32 %v902, 0.5
  %v904 = vmul.f32 %v894, %v617
  %v905 = vmul.f32 %v887, %v897
  %v906 = vadd.f32 %v904, %v905
  %v907 = vtanh.pop %v906
  %v908 = vmul.f32 %v903, %v907
  %s909 = sadd.s32 %s21, 2
  %v910 = vstv %s909
  %vm911 = vcmp.lt.s32.totalorder %v910, %v20
  %v912 = vsel %vm911, 1, 0
  %913 = vset.pattern.permute.xlu0 0
  %914 = vperm.xlu0 %913, %v912
  %v915 = vpop.permute.xlu0 %914
  %vm916 = vcmp.eq.s32.totalorder %v915, 1
  %v917 = vsel %vm916, %v906, %v617
  %v918 = vsel %vm916, %v908, %v618
  %v919 = vsel %vm916, %v908, 0.0
  %v921 = vrot.slane %v919, 1
  %923 = vst [vmem:[%s3 + $0x2] sm:$0x1] %v919
  %924 = vst [vmem:[%s3 + $0xa] sm:$0x1] %v921
  %s925 = scalar_lea.vmem %s0, 24
  %v926 = vld [vmem:[%s925] sm:$0xff]
  %v927 = vpack.c.bf16 %v918, %v918
  %v928 = vld [vmem:[%s2] sm:$0xff]
  %v929 = vld [vmem:[%s2 + $0x8] sm:$0xff]
  %v930 = vld [vmem:[%s2 + $0x10] sm:$0xff]
  %v931 = vld [vmem:[%s2 + $0x18] sm:$0xff]
  %v932 = vld [vmem:[%s2 + $0x20] sm:$0xff]
  %v933 = vld [vmem:[%s2 + $0x28] sm:$0xff]
  %v934 = vld [vmem:[%s2 + $0x30] sm:$0xff]
  %v935 = vld [vmem:[%s2 + $0x38] sm:$0xff]
  %v936 = vld [vmem:[%s2 + $0x40] sm:$0xff]
  %v937 = vld [vmem:[%s2 + $0x48] sm:$0xff]
  %v938 = vld [vmem:[%s2 + $0x50] sm:$0xff]
  %v939 = vld [vmem:[%s2 + $0x58] sm:$0xff]
  %v940 = vld [vmem:[%s2 + $0x60] sm:$0xff]
  %v941 = vld [vmem:[%s2 + $0x68] sm:$0xff]
  %v942 = vld [vmem:[%s2 + $0x70] sm:$0xff]
  %v943 = vld [vmem:[%s2 + $0x78] sm:$0xff]
  %v944 = vld [vmem:[%s2 + $0x80] sm:$0xff]
  %v945 = vld [vmem:[%s2 + $0x88] sm:$0xff]
  %v946 = vld [vmem:[%s2 + $0x90] sm:$0xff]
  %v947 = vld [vmem:[%s2 + $0x98] sm:$0xff]
  %v948 = vld [vmem:[%s2 + $0xa0] sm:$0xff]
  %v949 = vld [vmem:[%s2 + $0xa8] sm:$0xff]
  %v950 = vld [vmem:[%s2 + $0xb0] sm:$0xff]
  %v951 = vld [vmem:[%s2 + $0xb8] sm:$0xff]
  %v952 = vld [vmem:[%s2 + $0xc0] sm:$0xff]
  %v953 = vld [vmem:[%s2 + $0xc8] sm:$0xff]
  %v954 = vld [vmem:[%s2 + $0xd0] sm:$0xff]
  %v955 = vld [vmem:[%s2 + $0xd8] sm:$0xff]
  %v956 = vld [vmem:[%s2 + $0xe0] sm:$0xff]
  %v957 = vld [vmem:[%s2 + $0xe8] sm:$0xff]
  %v958 = vld [vmem:[%s2 + $0xf0] sm:$0xff]
  %v959 = vld [vmem:[%s2 + $0xf8] sm:$0xff]
  %v992 = vunpack.c.l.b16 %v928
  %v993 = vunpack.c.h.b16 %v928
  %v994 = vunpack.c.l.b16 %v929
  %v995 = vunpack.c.h.b16 %v929
  %v996 = vunpack.c.l.b16 %v930
  %v997 = vunpack.c.h.b16 %v930
  %v998 = vunpack.c.l.b16 %v931
  %v999 = vunpack.c.h.b16 %v931
  %v1000 = vunpack.c.l.b16 %v932
  %v1001 = vunpack.c.h.b16 %v932
  %v1002 = vunpack.c.l.b16 %v933
  %v1003 = vunpack.c.h.b16 %v933
  %v1004 = vunpack.c.l.b16 %v934
  %v1005 = vunpack.c.h.b16 %v934
  %v1006 = vunpack.c.l.b16 %v935
  %v1007 = vunpack.c.h.b16 %v935
  %v1008 = vunpack.c.l.b16 %v936
  %v1009 = vunpack.c.h.b16 %v936
  %v1010 = vunpack.c.l.b16 %v937
  %v1011 = vunpack.c.h.b16 %v937
  %v1012 = vunpack.c.l.b16 %v938
  %v1013 = vunpack.c.h.b16 %v938
  %v1014 = vunpack.c.l.b16 %v939
  %v1015 = vunpack.c.h.b16 %v939
  %v1016 = vunpack.c.l.b16 %v940
  %v1017 = vunpack.c.h.b16 %v940
  %v1018 = vunpack.c.l.b16 %v941
  %v1019 = vunpack.c.h.b16 %v941
  %v1020 = vunpack.c.l.b16 %v942
  %v1021 = vunpack.c.h.b16 %v942
  %v1022 = vunpack.c.l.b16 %v943
  %v1023 = vunpack.c.h.b16 %v943
  %v1024 = vunpack.c.l.b16 %v944
  %v1025 = vunpack.c.h.b16 %v944
  %v1026 = vunpack.c.l.b16 %v945
  %v1027 = vunpack.c.h.b16 %v945
  %v1028 = vunpack.c.l.b16 %v946
  %v1029 = vunpack.c.h.b16 %v946
  %v1030 = vunpack.c.l.b16 %v947
  %v1031 = vunpack.c.h.b16 %v947
  %v1032 = vunpack.c.l.b16 %v948
  %v1033 = vunpack.c.h.b16 %v948
  %v1034 = vunpack.c.l.b16 %v949
  %v1035 = vunpack.c.h.b16 %v949
  %v1036 = vunpack.c.l.b16 %v950
  %v1037 = vunpack.c.h.b16 %v950
  %v1038 = vunpack.c.l.b16 %v951
  %v1039 = vunpack.c.h.b16 %v951
  %v1040 = vunpack.c.l.b16 %v952
  %v1041 = vunpack.c.h.b16 %v952
  %v1042 = vunpack.c.l.b16 %v953
  %v1043 = vunpack.c.h.b16 %v953
  %v1044 = vunpack.c.l.b16 %v954
  %v1045 = vunpack.c.h.b16 %v954
  %v1046 = vunpack.c.l.b16 %v955
  %v1047 = vunpack.c.h.b16 %v955
  %v1048 = vunpack.c.l.b16 %v956
  %v1049 = vunpack.c.h.b16 %v956
  %v1050 = vunpack.c.l.b16 %v957
  %v1051 = vunpack.c.h.b16 %v957
  %v1052 = vunpack.c.l.b16 %v958
  %v1053 = vunpack.c.h.b16 %v958
  %v1054 = vunpack.c.l.b16 %v959
  %v1055 = vunpack.c.h.b16 %v959
  %v1056 = vpack.c.b16 %v996, %v992
  %v1057 = vpack.c.b16 %v997, %v993
  %v1058 = vpack.c.b16 %v998, %v994
  %v1059 = vpack.c.b16 %v999, %v995
  %v1060 = vpack.c.b16 %v1004, %v1000
  %v1061 = vpack.c.b16 %v1005, %v1001
  %v1062 = vpack.c.b16 %v1006, %v1002
  %v1063 = vpack.c.b16 %v1007, %v1003
  %v1064 = vpack.c.b16 %v1012, %v1008
  %v1065 = vpack.c.b16 %v1013, %v1009
  %v1066 = vpack.c.b16 %v1014, %v1010
  %v1067 = vpack.c.b16 %v1015, %v1011
  %v1068 = vpack.c.b16 %v1020, %v1016
  %v1069 = vpack.c.b16 %v1021, %v1017
  %v1070 = vpack.c.b16 %v1022, %v1018
  %v1071 = vpack.c.b16 %v1023, %v1019
  %v1072 = vpack.c.b16 %v1028, %v1024
  %v1073 = vpack.c.b16 %v1029, %v1025
  %v1074 = vpack.c.b16 %v1030, %v1026
  %v1075 = vpack.c.b16 %v1031, %v1027
  %v1076 = vpack.c.b16 %v1036, %v1032
  %v1077 = vpack.c.b16 %v1037, %v1033
  %v1078 = vpack.c.b16 %v1038, %v1034
  %v1079 = vpack.c.b16 %v1039, %v1035
  %v1080 = vpack.c.b16 %v1044, %v1040
  %v1081 = vpack.c.b16 %v1045, %v1041
  %v1082 = vpack.c.b16 %v1046, %v1042
  %v1083 = vpack.c.b16 %v1047, %v1043
  %v1084 = vpack.c.b16 %v1052, %v1048
  %v1085 = vpack.c.b16 %v1053, %v1049
  %v1086 = vpack.c.b16 %v1054, %v1050
  %v1087 = vpack.c.b16 %v1055, %v1051
  %1120 = vmatpush.bf16.msra.mxu0 %v1084
  %1121 = vmatpush.bf16.msra.mxu0 %v1080
  %1122 = vmatpush.bf16.msra.mxu0 %v1076
  %1123 = vmatpush.bf16.msra.mxu0 %v1072
  %1124 = vmatpush.bf16.msra.mxu0 %v1068
  %1125 = vmatpush.bf16.msra.mxu0 %v1064
  %1126 = vmatpush.bf16.msra.mxu0 %v1060
  %1127 = vmatpush.bf16.msra.mxu0 %v1056
  %1128 = vmatmul.bf16.gmra.mxu0 %v927
  %v1129 = vpop.f32.mrf.mxu0
  %v1130 = vadd.f32 0.0, %v1129
  %v1131 = vpop.f32.mrf.mxu0
  %1132 = vdwg.mxu0
  %1133 = vmatpush.bf16.msra.mxu0 %v1085
  %1134 = vmatpush.bf16.msra.mxu0 %v1081
  %1135 = vmatpush.bf16.msra.mxu0 %v1077
  %1136 = vmatpush.bf16.msra.mxu0 %v1073
  %1137 = vmatpush.bf16.msra.mxu0 %v1069
  %1138 = vmatpush.bf16.msra.mxu0 %v1065
  %1139 = vmatpush.bf16.msra.mxu0 %v1061
  %1140 = vmatpush.bf16.msra.mxu0 %v1057
  %1141 = vmatmul.bf16.gmra.mxu0 %v927
  %v1142 = vpop.f32.mrf.mxu0
  %v1143 = vadd.f32 0.0, %v1142
  %v1144 = vpop.f32.mrf.mxu0
  %1145 = vdwg.mxu0
  %1146 = vmatpush.bf16.msra.mxu0 %v1086
  %1147 = vmatpush.bf16.msra.mxu0 %v1082
  %1148 = vmatpush.bf16.msra.mxu0 %v1078
  %1149 = vmatpush.bf16.msra.mxu0 %v1074
  %1150 = vmatpush.bf16.msra.mxu0 %v1070
  %1151 = vmatpush.bf16.msra.mxu0 %v1066
  %1152 = vmatpush.bf16.msra.mxu0 %v1062
  %1153 = vmatpush.bf16.msra.mxu0 %v1058
  %1154 = vmatmul.bf16.gmra.mxu0 %v927
  %v1155 = vpop.f32.mrf.mxu0
  %v1156 = vadd.f32 0.0, %v1155
  %v1157 = vpop.f32.mrf.mxu0
  %1158 = vdwg.mxu0
  %1159 = vmatpush.bf16.msra.mxu0 %v1087
  %1160 = vmatpush.bf16.msra.mxu0 %v1083
  %1161 = vmatpush.bf16.msra.mxu0 %v1079
  %1162 = vmatpush.bf16.msra.mxu0 %v1075
  %1163 = vmatpush.bf16.msra.mxu0 %v1071
  %1164 = vmatpush.bf16.msra.mxu0 %v1067
  %1165 = vmatpush.bf16.msra.mxu0 %v1063
  %1166 = vmatpush.bf16.msra.mxu0 %v1059
  %1167 = vmatmul.bf16.gmra.mxu0 %v927
  %v1168 = vpop.f32.mrf.mxu0
  %v1169 = vadd.f32 0.0, %v1168
  %v1170 = vpop.f32.mrf.mxu0
  %1171 = vdwg.mxu0
  %v1176 = vrot.slane %v1143, 6
  %v1177 = vrot.slane %v1156, 4
  %v1178 = vrot.slane %v1169, 2
  %v1179 = vsel %vm277, %v1130, %v1176
  %v1180 = vsel %vm279, %v1177, %v1178
  %v1181 = vsel %vm281, %v1179, %v1180
  %v1183 = vadd.f32 %v926, %v1181
  %v1184 = vmul.f32 %v1183, 0.5
  %v1185 = vtanh.pop %v1184
  %v1186 = vadd.f32 %v1185, 1.0
  %v1187 = vmul.f32 %v1186, 0.5
  %v1189 = vrot.slane %v1183, 2
  %v1191 = vmul.f32 %v1189, 0.5
  %v1192 = vtanh.pop %v1191
  %v1193 = vadd.f32 %v1192, 1.0
  %v1194 = vmul.f32 %v1193, 0.5
  %v1195 = vrot.slane %v1183, 4
  %v1197 = vtanh.pop %v1195
  %v1198 = vrot.slane %v1183, 6
  %v1200 = vmul.f32 %v1198, 0.5
  %v1201 = vtanh.pop %v1200
  %v1202 = vadd.f32 %v1201, 1.0
  %v1203 = vmul.f32 %v1202, 0.5
  %v1204 = vmul.f32 %v1194, %v917
  %v1205 = vmul.f32 %v1187, %v1197
  %v1206 = vadd.f32 %v1204, %v1205
  %v1207 = vtanh.pop %v1206
  %v1208 = vmul.f32 %v1203, %v1207
  %s1209 = sadd.s32 %s21, 3
  %v1210 = vstv %s1209
  %vm1211 = vcmp.lt.s32.totalorder %v1210, %v20
  %v1212 = vsel %vm1211, 1, 0
  %1213 = vset.pattern.permute.xlu0 0
  %1214 = vperm.xlu0 %1213, %v1212
  %v1215 = vpop.permute.xlu0 %1214
  %vm1216 = vcmp.eq.s32.totalorder %v1215, 1
  %v1217 = vsel %vm1216, %v1206, %v917
  %v1218 = vsel %vm1216, %v1208, %v918
  %v1219 = vsel %vm1216, %v1208, 0.0
  %v1221 = vrot.slane %v1219, 1
  %1223 = vst [vmem:[%s3 + $0x3] sm:$0x1] %v1219
  %1224 = vst [vmem:[%s3 + $0xb] sm:$0x1] %v1221
  %s1225 = scalar_lea.vmem %s0, 32
  %v1226 = vld [vmem:[%s1225] sm:$0xff]
  %v1227 = vpack.c.bf16 %v1218, %v1218
  %v1228 = vld [vmem:[%s2] sm:$0xff]
  %v1229 = vld [vmem:[%s2 + $0x8] sm:$0xff]
  %v1230 = vld [vmem:[%s2 + $0x10] sm:$0xff]
  %v1231 = vld [vmem:[%s2 + $0x18] sm:$0xff]
  %v1232 = vld [vmem:[%s2 + $0x20] sm:$0xff]
  %v1233 = vld [vmem:[%s2 + $0x28] sm:$0xff]
  %v1234 = vld [vmem:[%s2 + $0x30] sm:$0xff]
  %v1235 = vld [vmem:[%s2 + $0x38] sm:$0xff]
  %v1236 = vld [vmem:[%s2 + $0x40] sm:$0xff]
  %v1237 = vld [vmem:[%s2 + $0x48] sm:$0xff]
  %v1238 = vld [vmem:[%s2 + $0x50] sm:$0xff]
  %v1239 = vld [vmem:[%s2 + $0x58] sm:$0xff]
  %v1240 = vld [vmem:[%s2 + $0x60] sm:$0xff]
  %v1241 = vld [vmem:[%s2 + $0x68] sm:$0xff]
  %v1242 = vld [vmem:[%s2 + $0x70] sm:$0xff]
  %v1243 = vld [vmem:[%s2 + $0x78] sm:$0xff]
  %v1244 = vld [vmem:[%s2 + $0x80] sm:$0xff]
  %v1245 = vld [vmem:[%s2 + $0x88] sm:$0xff]
  %v1246 = vld [vmem:[%s2 + $0x90] sm:$0xff]
  %v1247 = vld [vmem:[%s2 + $0x98] sm:$0xff]
  %v1248 = vld [vmem:[%s2 + $0xa0] sm:$0xff]
  %v1249 = vld [vmem:[%s2 + $0xa8] sm:$0xff]
  %v1250 = vld [vmem:[%s2 + $0xb0] sm:$0xff]
  %v1251 = vld [vmem:[%s2 + $0xb8] sm:$0xff]
  %v1252 = vld [vmem:[%s2 + $0xc0] sm:$0xff]
  %v1253 = vld [vmem:[%s2 + $0xc8] sm:$0xff]
  %v1254 = vld [vmem:[%s2 + $0xd0] sm:$0xff]
  %v1255 = vld [vmem:[%s2 + $0xd8] sm:$0xff]
  %v1256 = vld [vmem:[%s2 + $0xe0] sm:$0xff]
  %v1257 = vld [vmem:[%s2 + $0xe8] sm:$0xff]
  %v1258 = vld [vmem:[%s2 + $0xf0] sm:$0xff]
  %v1259 = vld [vmem:[%s2 + $0xf8] sm:$0xff]
  %v1292 = vunpack.c.l.b16 %v1228
  %v1293 = vunpack.c.h.b16 %v1228
  %v1294 = vunpack.c.l.b16 %v1229
  %v1295 = vunpack.c.h.b16 %v1229
  %v1296 = vunpack.c.l.b16 %v1230
  %v1297 = vunpack.c.h.b16 %v1230
  %v1298 = vunpack.c.l.b16 %v1231
  %v1299 = vunpack.c.h.b16 %v1231
  %v1300 = vunpack.c.l.b16 %v1232
  %v1301 = vunpack.c.h.b16 %v1232
  %v1302 = vunpack.c.l.b16 %v1233
  %v1303 = vunpack.c.h.b16 %v1233
  %v1304 = vunpack.c.l.b16 %v1234
  %v1305 = vunpack.c.h.b16 %v1234
  %v1306 = vunpack.c.l.b16 %v1235
  %v1307 = vunpack.c.h.b16 %v1235
  %v1308 = vunpack.c.l.b16 %v1236
  %v1309 = vunpack.c.h.b16 %v1236
  %v1310 = vunpack.c.l.b16 %v1237
  %v1311 = vunpack.c.h.b16 %v1237
  %v1312 = vunpack.c.l.b16 %v1238
  %v1313 = vunpack.c.h.b16 %v1238
  %v1314 = vunpack.c.l.b16 %v1239
  %v1315 = vunpack.c.h.b16 %v1239
  %v1316 = vunpack.c.l.b16 %v1240
  %v1317 = vunpack.c.h.b16 %v1240
  %v1318 = vunpack.c.l.b16 %v1241
  %v1319 = vunpack.c.h.b16 %v1241
  %v1320 = vunpack.c.l.b16 %v1242
  %v1321 = vunpack.c.h.b16 %v1242
  %v1322 = vunpack.c.l.b16 %v1243
  %v1323 = vunpack.c.h.b16 %v1243
  %v1324 = vunpack.c.l.b16 %v1244
  %v1325 = vunpack.c.h.b16 %v1244
  %v1326 = vunpack.c.l.b16 %v1245
  %v1327 = vunpack.c.h.b16 %v1245
  %v1328 = vunpack.c.l.b16 %v1246
  %v1329 = vunpack.c.h.b16 %v1246
  %v1330 = vunpack.c.l.b16 %v1247
  %v1331 = vunpack.c.h.b16 %v1247
  %v1332 = vunpack.c.l.b16 %v1248
  %v1333 = vunpack.c.h.b16 %v1248
  %v1334 = vunpack.c.l.b16 %v1249
  %v1335 = vunpack.c.h.b16 %v1249
  %v1336 = vunpack.c.l.b16 %v1250
  %v1337 = vunpack.c.h.b16 %v1250
  %v1338 = vunpack.c.l.b16 %v1251
  %v1339 = vunpack.c.h.b16 %v1251
  %v1340 = vunpack.c.l.b16 %v1252
  %v1341 = vunpack.c.h.b16 %v1252
  %v1342 = vunpack.c.l.b16 %v1253
  %v1343 = vunpack.c.h.b16 %v1253
  %v1344 = vunpack.c.l.b16 %v1254
  %v1345 = vunpack.c.h.b16 %v1254
  %v1346 = vunpack.c.l.b16 %v1255
  %v1347 = vunpack.c.h.b16 %v1255
  %v1348 = vunpack.c.l.b16 %v1256
  %v1349 = vunpack.c.h.b16 %v1256
  %v1350 = vunpack.c.l.b16 %v1257
  %v1351 = vunpack.c.h.b16 %v1257
  %v1352 = vunpack.c.l.b16 %v1258
  %v1353 = vunpack.c.h.b16 %v1258
  %v1354 = vunpack.c.l.b16 %v1259
  %v1355 = vunpack.c.h.b16 %v1259
  %v1356 = vpack.c.b16 %v1296, %v1292
  %v1357 = vpack.c.b16 %v1297, %v1293
  %v1358 = vpack.c.b16 %v1298, %v1294
  %v1359 = vpack.c.b16 %v1299, %v1295
  %v1360 = vpack.c.b16 %v1304, %v1300
  %v1361 = vpack.c.b16 %v1305, %v1301
  %v1362 = vpack.c.b16 %v1306, %v1302
  %v1363 = vpack.c.b16 %v1307, %v1303
  %v1364 = vpack.c.b16 %v1312, %v1308
  %v1365 = vpack.c.b16 %v1313, %v1309
  %v1366 = vpack.c.b16 %v1314, %v1310
  %v1367 = vpack.c.b16 %v1315, %v1311
  %v1368 = vpack.c.b16 %v1320, %v1316
  %v1369 = vpack.c.b16 %v1321, %v1317
  %v1370 = vpack.c.b16 %v1322, %v1318
  %v1371 = vpack.c.b16 %v1323, %v1319
  %v1372 = vpack.c.b16 %v1328, %v1324
  %v1373 = vpack.c.b16 %v1329, %v1325
  %v1374 = vpack.c.b16 %v1330, %v1326
  %v1375 = vpack.c.b16 %v1331, %v1327
  %v1376 = vpack.c.b16 %v1336, %v1332
  %v1377 = vpack.c.b16 %v1337, %v1333
  %v1378 = vpack.c.b16 %v1338, %v1334
  %v1379 = vpack.c.b16 %v1339, %v1335
  %v1380 = vpack.c.b16 %v1344, %v1340
  %v1381 = vpack.c.b16 %v1345, %v1341
  %v1382 = vpack.c.b16 %v1346, %v1342
  %v1383 = vpack.c.b16 %v1347, %v1343
  %v1384 = vpack.c.b16 %v1352, %v1348
  %v1385 = vpack.c.b16 %v1353, %v1349
  %v1386 = vpack.c.b16 %v1354, %v1350
  %v1387 = vpack.c.b16 %v1355, %v1351
  %1420 = vmatpush.bf16.msra.mxu0 %v1384
  %1421 = vmatpush.bf16.msra.mxu0 %v1380
  %1422 = vmatpush.bf16.msra.mxu0 %v1376
  %1423 = vmatpush.bf16.msra.mxu0 %v1372
  %1424 = vmatpush.bf16.msra.mxu0 %v1368
  %1425 = vmatpush.bf16.msra.mxu0 %v1364
  %1426 = vmatpush.bf16.msra.mxu0 %v1360
  %1427 = vmatpush.bf16.msra.mxu0 %v1356
  %1428 = vmatmul.bf16.gmra.mxu0 %v1227
  %v1429 = vpop.f32.mrf.mxu0
  %v1430 = vadd.f32 0.0, %v1429
  %v1431 = vpop.f32.mrf.mxu0
  %1432 = vdwg.mxu0
  %1433 = vmatpush.bf16.msra.mxu0 %v1385
  %1434 = vmatpush.bf16.msra.mxu0 %v1381
  %1435 = vmatpush.bf16.msra.mxu0 %v1377
  %1436 = vmatpush.bf16.msra.mxu0 %v1373
  %1437 = vmatpush.bf16.msra.mxu0 %v1369
  %1438 = vmatpush.bf16.msra.mxu0 %v1365
  %1439 = vmatpush.bf16.msra.mxu0 %v1361
  %1440 = vmatpush.bf16.msra.mxu0 %v1357
  %1441 = vmatmul.bf16.gmra.mxu0 %v1227
  %v1442 = vpop.f32.mrf.mxu0
  %v1443 = vadd.f32 0.0, %v1442
  %v1444 = vpop.f32.mrf.mxu0
  %1445 = vdwg.mxu0
  %1446 = vmatpush.bf16.msra.mxu0 %v1386
  %1447 = vmatpush.bf16.msra.mxu0 %v1382
  %1448 = vmatpush.bf16.msra.mxu0 %v1378
  %1449 = vmatpush.bf16.msra.mxu0 %v1374
  %1450 = vmatpush.bf16.msra.mxu0 %v1370
  %1451 = vmatpush.bf16.msra.mxu0 %v1366
  %1452 = vmatpush.bf16.msra.mxu0 %v1362
  %1453 = vmatpush.bf16.msra.mxu0 %v1358
  %1454 = vmatmul.bf16.gmra.mxu0 %v1227
  %v1455 = vpop.f32.mrf.mxu0
  %v1456 = vadd.f32 0.0, %v1455
  %v1457 = vpop.f32.mrf.mxu0
  %1458 = vdwg.mxu0
  %1459 = vmatpush.bf16.msra.mxu0 %v1387
  %1460 = vmatpush.bf16.msra.mxu0 %v1383
  %1461 = vmatpush.bf16.msra.mxu0 %v1379
  %1462 = vmatpush.bf16.msra.mxu0 %v1375
  %1463 = vmatpush.bf16.msra.mxu0 %v1371
  %1464 = vmatpush.bf16.msra.mxu0 %v1367
  %1465 = vmatpush.bf16.msra.mxu0 %v1363
  %1466 = vmatpush.bf16.msra.mxu0 %v1359
  %1467 = vmatmul.bf16.gmra.mxu0 %v1227
  %v1468 = vpop.f32.mrf.mxu0
  %v1469 = vadd.f32 0.0, %v1468
  %v1470 = vpop.f32.mrf.mxu0
  %1471 = vdwg.mxu0
  %v1476 = vrot.slane %v1443, 6
  %v1477 = vrot.slane %v1456, 4
  %v1478 = vrot.slane %v1469, 2
  %v1479 = vsel %vm277, %v1430, %v1476
  %v1480 = vsel %vm279, %v1477, %v1478
  %v1481 = vsel %vm281, %v1479, %v1480
  %v1483 = vadd.f32 %v1226, %v1481
  %v1484 = vmul.f32 %v1483, 0.5
  %v1485 = vtanh.pop %v1484
  %v1486 = vadd.f32 %v1485, 1.0
  %v1487 = vmul.f32 %v1486, 0.5
  %v1489 = vrot.slane %v1483, 2
  %v1491 = vmul.f32 %v1489, 0.5
  %v1492 = vtanh.pop %v1491
  %v1493 = vadd.f32 %v1492, 1.0
  %v1494 = vmul.f32 %v1493, 0.5
  %v1495 = vrot.slane %v1483, 4
  %v1497 = vtanh.pop %v1495
  %v1498 = vrot.slane %v1483, 6
  %v1500 = vmul.f32 %v1498, 0.5
  %v1501 = vtanh.pop %v1500
  %v1502 = vadd.f32 %v1501, 1.0
  %v1503 = vmul.f32 %v1502, 0.5
  %v1504 = vmul.f32 %v1494, %v1217
  %v1505 = vmul.f32 %v1487, %v1497
  %v1506 = vadd.f32 %v1504, %v1505
  %v1507 = vtanh.pop %v1506
  %v1508 = vmul.f32 %v1503, %v1507
  %s1509 = sadd.s32 %s21, 4
  %v1510 = vstv %s1509
  %vm1511 = vcmp.lt.s32.totalorder %v1510, %v20
  %v1512 = vsel %vm1511, 1, 0
  %1513 = vset.pattern.permute.xlu0 0
  %1514 = vperm.xlu0 %1513, %v1512
  %v1515 = vpop.permute.xlu0 %1514
  %vm1516 = vcmp.eq.s32.totalorder %v1515, 1
  %v1517 = vsel %vm1516, %v1506, %v1217
  %v1518 = vsel %vm1516, %v1508, %v1218
  %v1519 = vsel %vm1516, %v1508, 0.0
  %v1521 = vrot.slane %v1519, 1
  %1523 = vst [vmem:[%s3 + $0x4] sm:$0x1] %v1519
  %1524 = vst [vmem:[%s3 + $0xc] sm:$0x1] %v1521
  %s1525 = scalar_lea.vmem %s0, 40
  %v1526 = vld [vmem:[%s1525] sm:$0xff]
  %v1527 = vpack.c.bf16 %v1518, %v1518
  %v1528 = vld [vmem:[%s2] sm:$0xff]
  %v1529 = vld [vmem:[%s2 + $0x8] sm:$0xff]
  %v1530 = vld [vmem:[%s2 + $0x10] sm:$0xff]
  %v1531 = vld [vmem:[%s2 + $0x18] sm:$0xff]
  %v1532 = vld [vmem:[%s2 + $0x20] sm:$0xff]
  %v1533 = vld [vmem:[%s2 + $0x28] sm:$0xff]
  %v1534 = vld [vmem:[%s2 + $0x30] sm:$0xff]
  %v1535 = vld [vmem:[%s2 + $0x38] sm:$0xff]
  %v1536 = vld [vmem:[%s2 + $0x40] sm:$0xff]
  %v1537 = vld [vmem:[%s2 + $0x48] sm:$0xff]
  %v1538 = vld [vmem:[%s2 + $0x50] sm:$0xff]
  %v1539 = vld [vmem:[%s2 + $0x58] sm:$0xff]
  %v1540 = vld [vmem:[%s2 + $0x60] sm:$0xff]
  %v1541 = vld [vmem:[%s2 + $0x68] sm:$0xff]
  %v1542 = vld [vmem:[%s2 + $0x70] sm:$0xff]
  %v1543 = vld [vmem:[%s2 + $0x78] sm:$0xff]
  %v1544 = vld [vmem:[%s2 + $0x80] sm:$0xff]
  %v1545 = vld [vmem:[%s2 + $0x88] sm:$0xff]
  %v1546 = vld [vmem:[%s2 + $0x90] sm:$0xff]
  %v1547 = vld [vmem:[%s2 + $0x98] sm:$0xff]
  %v1548 = vld [vmem:[%s2 + $0xa0] sm:$0xff]
  %v1549 = vld [vmem:[%s2 + $0xa8] sm:$0xff]
  %v1550 = vld [vmem:[%s2 + $0xb0] sm:$0xff]
  %v1551 = vld [vmem:[%s2 + $0xb8] sm:$0xff]
  %v1552 = vld [vmem:[%s2 + $0xc0] sm:$0xff]
  %v1553 = vld [vmem:[%s2 + $0xc8] sm:$0xff]
  %v1554 = vld [vmem:[%s2 + $0xd0] sm:$0xff]
  %v1555 = vld [vmem:[%s2 + $0xd8] sm:$0xff]
  %v1556 = vld [vmem:[%s2 + $0xe0] sm:$0xff]
  %v1557 = vld [vmem:[%s2 + $0xe8] sm:$0xff]
  %v1558 = vld [vmem:[%s2 + $0xf0] sm:$0xff]
  %v1559 = vld [vmem:[%s2 + $0xf8] sm:$0xff]
  %v1592 = vunpack.c.l.b16 %v1528
  %v1593 = vunpack.c.h.b16 %v1528
  %v1594 = vunpack.c.l.b16 %v1529
  %v1595 = vunpack.c.h.b16 %v1529
  %v1596 = vunpack.c.l.b16 %v1530
  %v1597 = vunpack.c.h.b16 %v1530
  %v1598 = vunpack.c.l.b16 %v1531
  %v1599 = vunpack.c.h.b16 %v1531
  %v1600 = vunpack.c.l.b16 %v1532
  %v1601 = vunpack.c.h.b16 %v1532
  %v1602 = vunpack.c.l.b16 %v1533
  %v1603 = vunpack.c.h.b16 %v1533
  %v1604 = vunpack.c.l.b16 %v1534
  %v1605 = vunpack.c.h.b16 %v1534
  %v1606 = vunpack.c.l.b16 %v1535
  %v1607 = vunpack.c.h.b16 %v1535
  %v1608 = vunpack.c.l.b16 %v1536
  %v1609 = vunpack.c.h.b16 %v1536
  %v1610 = vunpack.c.l.b16 %v1537
  %v1611 = vunpack.c.h.b16 %v1537
  %v1612 = vunpack.c.l.b16 %v1538
  %v1613 = vunpack.c.h.b16 %v1538
  %v1614 = vunpack.c.l.b16 %v1539
  %v1615 = vunpack.c.h.b16 %v1539
  %v1616 = vunpack.c.l.b16 %v1540
  %v1617 = vunpack.c.h.b16 %v1540
  %v1618 = vunpack.c.l.b16 %v1541
  %v1619 = vunpack.c.h.b16 %v1541
  %v1620 = vunpack.c.l.b16 %v1542
  %v1621 = vunpack.c.h.b16 %v1542
  %v1622 = vunpack.c.l.b16 %v1543
  %v1623 = vunpack.c.h.b16 %v1543
  %v1624 = vunpack.c.l.b16 %v1544
  %v1625 = vunpack.c.h.b16 %v1544
  %v1626 = vunpack.c.l.b16 %v1545
  %v1627 = vunpack.c.h.b16 %v1545
  %v1628 = vunpack.c.l.b16 %v1546
  %v1629 = vunpack.c.h.b16 %v1546
  %v1630 = vunpack.c.l.b16 %v1547
  %v1631 = vunpack.c.h.b16 %v1547
  %v1632 = vunpack.c.l.b16 %v1548
  %v1633 = vunpack.c.h.b16 %v1548
  %v1634 = vunpack.c.l.b16 %v1549
  %v1635 = vunpack.c.h.b16 %v1549
  %v1636 = vunpack.c.l.b16 %v1550
  %v1637 = vunpack.c.h.b16 %v1550
  %v1638 = vunpack.c.l.b16 %v1551
  %v1639 = vunpack.c.h.b16 %v1551
  %v1640 = vunpack.c.l.b16 %v1552
  %v1641 = vunpack.c.h.b16 %v1552
  %v1642 = vunpack.c.l.b16 %v1553
  %v1643 = vunpack.c.h.b16 %v1553
  %v1644 = vunpack.c.l.b16 %v1554
  %v1645 = vunpack.c.h.b16 %v1554
  %v1646 = vunpack.c.l.b16 %v1555
  %v1647 = vunpack.c.h.b16 %v1555
  %v1648 = vunpack.c.l.b16 %v1556
  %v1649 = vunpack.c.h.b16 %v1556
  %v1650 = vunpack.c.l.b16 %v1557
  %v1651 = vunpack.c.h.b16 %v1557
  %v1652 = vunpack.c.l.b16 %v1558
  %v1653 = vunpack.c.h.b16 %v1558
  %v1654 = vunpack.c.l.b16 %v1559
  %v1655 = vunpack.c.h.b16 %v1559
  %v1656 = vpack.c.b16 %v1596, %v1592
  %v1657 = vpack.c.b16 %v1597, %v1593
  %v1658 = vpack.c.b16 %v1598, %v1594
  %v1659 = vpack.c.b16 %v1599, %v1595
  %v1660 = vpack.c.b16 %v1604, %v1600
  %v1661 = vpack.c.b16 %v1605, %v1601
  %v1662 = vpack.c.b16 %v1606, %v1602
  %v1663 = vpack.c.b16 %v1607, %v1603
  %v1664 = vpack.c.b16 %v1612, %v1608
  %v1665 = vpack.c.b16 %v1613, %v1609
  %v1666 = vpack.c.b16 %v1614, %v1610
  %v1667 = vpack.c.b16 %v1615, %v1611
  %v1668 = vpack.c.b16 %v1620, %v1616
  %v1669 = vpack.c.b16 %v1621, %v1617
  %v1670 = vpack.c.b16 %v1622, %v1618
  %v1671 = vpack.c.b16 %v1623, %v1619
  %v1672 = vpack.c.b16 %v1628, %v1624
  %v1673 = vpack.c.b16 %v1629, %v1625
  %v1674 = vpack.c.b16 %v1630, %v1626
  %v1675 = vpack.c.b16 %v1631, %v1627
  %v1676 = vpack.c.b16 %v1636, %v1632
  %v1677 = vpack.c.b16 %v1637, %v1633
  %v1678 = vpack.c.b16 %v1638, %v1634
  %v1679 = vpack.c.b16 %v1639, %v1635
  %v1680 = vpack.c.b16 %v1644, %v1640
  %v1681 = vpack.c.b16 %v1645, %v1641
  %v1682 = vpack.c.b16 %v1646, %v1642
  %v1683 = vpack.c.b16 %v1647, %v1643
  %v1684 = vpack.c.b16 %v1652, %v1648
  %v1685 = vpack.c.b16 %v1653, %v1649
  %v1686 = vpack.c.b16 %v1654, %v1650
  %v1687 = vpack.c.b16 %v1655, %v1651
  %1720 = vmatpush.bf16.msra.mxu0 %v1684
  %1721 = vmatpush.bf16.msra.mxu0 %v1680
  %1722 = vmatpush.bf16.msra.mxu0 %v1676
  %1723 = vmatpush.bf16.msra.mxu0 %v1672
  %1724 = vmatpush.bf16.msra.mxu0 %v1668
  %1725 = vmatpush.bf16.msra.mxu0 %v1664
  %1726 = vmatpush.bf16.msra.mxu0 %v1660
  %1727 = vmatpush.bf16.msra.mxu0 %v1656
  %1728 = vmatmul.bf16.gmra.mxu0 %v1527
  %v1729 = vpop.f32.mrf.mxu0
  %v1730 = vadd.f32 0.0, %v1729
  %v1731 = vpop.f32.mrf.mxu0
  %1732 = vdwg.mxu0
  %1733 = vmatpush.bf16.msra.mxu0 %v1685
  %1734 = vmatpush.bf16.msra.mxu0 %v1681
  %1735 = vmatpush.bf16.msra.mxu0 %v1677
  %1736 = vmatpush.bf16.msra.mxu0 %v1673
  %1737 = vmatpush.bf16.msra.mxu0 %v1669
  %1738 = vmatpush.bf16.msra.mxu0 %v1665
  %1739 = vmatpush.bf16.msra.mxu0 %v1661
  %1740 = vmatpush.bf16.msra.mxu0 %v1657
  %1741 = vmatmul.bf16.gmra.mxu0 %v1527
  %v1742 = vpop.f32.mrf.mxu0
  %v1743 = vadd.f32 0.0, %v1742
  %v1744 = vpop.f32.mrf.mxu0
  %1745 = vdwg.mxu0
  %1746 = vmatpush.bf16.msra.mxu0 %v1686
  %1747 = vmatpush.bf16.msra.mxu0 %v1682
  %1748 = vmatpush.bf16.msra.mxu0 %v1678
  %1749 = vmatpush.bf16.msra.mxu0 %v1674
  %1750 = vmatpush.bf16.msra.mxu0 %v1670
  %1751 = vmatpush.bf16.msra.mxu0 %v1666
  %1752 = vmatpush.bf16.msra.mxu0 %v1662
  %1753 = vmatpush.bf16.msra.mxu0 %v1658
  %1754 = vmatmul.bf16.gmra.mxu0 %v1527
  %v1755 = vpop.f32.mrf.mxu0
  %v1756 = vadd.f32 0.0, %v1755
  %v1757 = vpop.f32.mrf.mxu0
  %1758 = vdwg.mxu0
  %1759 = vmatpush.bf16.msra.mxu0 %v1687
  %1760 = vmatpush.bf16.msra.mxu0 %v1683
  %1761 = vmatpush.bf16.msra.mxu0 %v1679
  %1762 = vmatpush.bf16.msra.mxu0 %v1675
  %1763 = vmatpush.bf16.msra.mxu0 %v1671
  %1764 = vmatpush.bf16.msra.mxu0 %v1667
  %1765 = vmatpush.bf16.msra.mxu0 %v1663
  %1766 = vmatpush.bf16.msra.mxu0 %v1659
  %1767 = vmatmul.bf16.gmra.mxu0 %v1527
  %v1768 = vpop.f32.mrf.mxu0
  %v1769 = vadd.f32 0.0, %v1768
  %v1770 = vpop.f32.mrf.mxu0
  %1771 = vdwg.mxu0
  %v1776 = vrot.slane %v1743, 6
  %v1777 = vrot.slane %v1756, 4
  %v1778 = vrot.slane %v1769, 2
  %v1779 = vsel %vm277, %v1730, %v1776
  %v1780 = vsel %vm279, %v1777, %v1778
  %v1781 = vsel %vm281, %v1779, %v1780
  %v1783 = vadd.f32 %v1526, %v1781
  %v1784 = vmul.f32 %v1783, 0.5
  %v1785 = vtanh.pop %v1784
  %v1786 = vadd.f32 %v1785, 1.0
  %v1787 = vmul.f32 %v1786, 0.5
  %v1789 = vrot.slane %v1783, 2
  %v1791 = vmul.f32 %v1789, 0.5
  %v1792 = vtanh.pop %v1791
  %v1793 = vadd.f32 %v1792, 1.0
  %v1794 = vmul.f32 %v1793, 0.5
  %v1795 = vrot.slane %v1783, 4
  %v1797 = vtanh.pop %v1795
  %v1798 = vrot.slane %v1783, 6
  %v1800 = vmul.f32 %v1798, 0.5
  %v1801 = vtanh.pop %v1800
  %v1802 = vadd.f32 %v1801, 1.0
  %v1803 = vmul.f32 %v1802, 0.5
  %v1804 = vmul.f32 %v1794, %v1517
  %v1805 = vmul.f32 %v1787, %v1797
  %v1806 = vadd.f32 %v1804, %v1805
  %v1807 = vtanh.pop %v1806
  %v1808 = vmul.f32 %v1803, %v1807
  %s1809 = sadd.s32 %s21, 5
  %v1810 = vstv %s1809
  %vm1811 = vcmp.lt.s32.totalorder %v1810, %v20
  %v1812 = vsel %vm1811, 1, 0
  %1813 = vset.pattern.permute.xlu0 0
  %1814 = vperm.xlu0 %1813, %v1812
  %v1815 = vpop.permute.xlu0 %1814
  %vm1816 = vcmp.eq.s32.totalorder %v1815, 1
  %v1817 = vsel %vm1816, %v1806, %v1517
  %v1818 = vsel %vm1816, %v1808, %v1518
  %v1819 = vsel %vm1816, %v1808, 0.0
  %v1821 = vrot.slane %v1819, 1
  %1823 = vst [vmem:[%s3 + $0x5] sm:$0x1] %v1819
  %1824 = vst [vmem:[%s3 + $0xd] sm:$0x1] %v1821
  %s1825 = scalar_lea.vmem %s0, 48
  %v1826 = vld [vmem:[%s1825] sm:$0xff]
  %v1827 = vpack.c.bf16 %v1818, %v1818
  %v1828 = vld [vmem:[%s2] sm:$0xff]
  %v1829 = vld [vmem:[%s2 + $0x8] sm:$0xff]
  %v1830 = vld [vmem:[%s2 + $0x10] sm:$0xff]
  %v1831 = vld [vmem:[%s2 + $0x18] sm:$0xff]
  %v1832 = vld [vmem:[%s2 + $0x20] sm:$0xff]
  %v1833 = vld [vmem:[%s2 + $0x28] sm:$0xff]
  %v1834 = vld [vmem:[%s2 + $0x30] sm:$0xff]
  %v1835 = vld [vmem:[%s2 + $0x38] sm:$0xff]
  %v1836 = vld [vmem:[%s2 + $0x40] sm:$0xff]
  %v1837 = vld [vmem:[%s2 + $0x48] sm:$0xff]
  %v1838 = vld [vmem:[%s2 + $0x50] sm:$0xff]
  %v1839 = vld [vmem:[%s2 + $0x58] sm:$0xff]
  %v1840 = vld [vmem:[%s2 + $0x60] sm:$0xff]
  %v1841 = vld [vmem:[%s2 + $0x68] sm:$0xff]
  %v1842 = vld [vmem:[%s2 + $0x70] sm:$0xff]
  %v1843 = vld [vmem:[%s2 + $0x78] sm:$0xff]
  %v1844 = vld [vmem:[%s2 + $0x80] sm:$0xff]
  %v1845 = vld [vmem:[%s2 + $0x88] sm:$0xff]
  %v1846 = vld [vmem:[%s2 + $0x90] sm:$0xff]
  %v1847 = vld [vmem:[%s2 + $0x98] sm:$0xff]
  %v1848 = vld [vmem:[%s2 + $0xa0] sm:$0xff]
  %v1849 = vld [vmem:[%s2 + $0xa8] sm:$0xff]
  %v1850 = vld [vmem:[%s2 + $0xb0] sm:$0xff]
  %v1851 = vld [vmem:[%s2 + $0xb8] sm:$0xff]
  %v1852 = vld [vmem:[%s2 + $0xc0] sm:$0xff]
  %v1853 = vld [vmem:[%s2 + $0xc8] sm:$0xff]
  %v1854 = vld [vmem:[%s2 + $0xd0] sm:$0xff]
  %v1855 = vld [vmem:[%s2 + $0xd8] sm:$0xff]
  %v1856 = vld [vmem:[%s2 + $0xe0] sm:$0xff]
  %v1857 = vld [vmem:[%s2 + $0xe8] sm:$0xff]
  %v1858 = vld [vmem:[%s2 + $0xf0] sm:$0xff]
  %v1859 = vld [vmem:[%s2 + $0xf8] sm:$0xff]
  %v1892 = vunpack.c.l.b16 %v1828
  %v1893 = vunpack.c.h.b16 %v1828
  %v1894 = vunpack.c.l.b16 %v1829
  %v1895 = vunpack.c.h.b16 %v1829
  %v1896 = vunpack.c.l.b16 %v1830
  %v1897 = vunpack.c.h.b16 %v1830
  %v1898 = vunpack.c.l.b16 %v1831
  %v1899 = vunpack.c.h.b16 %v1831
  %v1900 = vunpack.c.l.b16 %v1832
  %v1901 = vunpack.c.h.b16 %v1832
  %v1902 = vunpack.c.l.b16 %v1833
  %v1903 = vunpack.c.h.b16 %v1833
  %v1904 = vunpack.c.l.b16 %v1834
  %v1905 = vunpack.c.h.b16 %v1834
  %v1906 = vunpack.c.l.b16 %v1835
  %v1907 = vunpack.c.h.b16 %v1835
  %v1908 = vunpack.c.l.b16 %v1836
  %v1909 = vunpack.c.h.b16 %v1836
  %v1910 = vunpack.c.l.b16 %v1837
  %v1911 = vunpack.c.h.b16 %v1837
  %v1912 = vunpack.c.l.b16 %v1838
  %v1913 = vunpack.c.h.b16 %v1838
  %v1914 = vunpack.c.l.b16 %v1839
  %v1915 = vunpack.c.h.b16 %v1839
  %v1916 = vunpack.c.l.b16 %v1840
  %v1917 = vunpack.c.h.b16 %v1840
  %v1918 = vunpack.c.l.b16 %v1841
  %v1919 = vunpack.c.h.b16 %v1841
  %v1920 = vunpack.c.l.b16 %v1842
  %v1921 = vunpack.c.h.b16 %v1842
  %v1922 = vunpack.c.l.b16 %v1843
  %v1923 = vunpack.c.h.b16 %v1843
  %v1924 = vunpack.c.l.b16 %v1844
  %v1925 = vunpack.c.h.b16 %v1844
  %v1926 = vunpack.c.l.b16 %v1845
  %v1927 = vunpack.c.h.b16 %v1845
  %v1928 = vunpack.c.l.b16 %v1846
  %v1929 = vunpack.c.h.b16 %v1846
  %v1930 = vunpack.c.l.b16 %v1847
  %v1931 = vunpack.c.h.b16 %v1847
  %v1932 = vunpack.c.l.b16 %v1848
  %v1933 = vunpack.c.h.b16 %v1848
  %v1934 = vunpack.c.l.b16 %v1849
  %v1935 = vunpack.c.h.b16 %v1849
  %v1936 = vunpack.c.l.b16 %v1850
  %v1937 = vunpack.c.h.b16 %v1850
  %v1938 = vunpack.c.l.b16 %v1851
  %v1939 = vunpack.c.h.b16 %v1851
  %v1940 = vunpack.c.l.b16 %v1852
  %v1941 = vunpack.c.h.b16 %v1852
  %v1942 = vunpack.c.l.b16 %v1853
  %v1943 = vunpack.c.h.b16 %v1853
  %v1944 = vunpack.c.l.b16 %v1854
  %v1945 = vunpack.c.h.b16 %v1854
  %v1946 = vunpack.c.l.b16 %v1855
  %v1947 = vunpack.c.h.b16 %v1855
  %v1948 = vunpack.c.l.b16 %v1856
  %v1949 = vunpack.c.h.b16 %v1856
  %v1950 = vunpack.c.l.b16 %v1857
  %v1951 = vunpack.c.h.b16 %v1857
  %v1952 = vunpack.c.l.b16 %v1858
  %v1953 = vunpack.c.h.b16 %v1858
  %v1954 = vunpack.c.l.b16 %v1859
  %v1955 = vunpack.c.h.b16 %v1859
  %v1956 = vpack.c.b16 %v1896, %v1892
  %v1957 = vpack.c.b16 %v1897, %v1893
  %v1958 = vpack.c.b16 %v1898, %v1894
  %v1959 = vpack.c.b16 %v1899, %v1895
  %v1960 = vpack.c.b16 %v1904, %v1900
  %v1961 = vpack.c.b16 %v1905, %v1901
  %v1962 = vpack.c.b16 %v1906, %v1902
  %v1963 = vpack.c.b16 %v1907, %v1903
  %v1964 = vpack.c.b16 %v1912, %v1908
  %v1965 = vpack.c.b16 %v1913, %v1909
  %v1966 = vpack.c.b16 %v1914, %v1910
  %v1967 = vpack.c.b16 %v1915, %v1911
  %v1968 = vpack.c.b16 %v1920, %v1916
  %v1969 = vpack.c.b16 %v1921, %v1917
  %v1970 = vpack.c.b16 %v1922, %v1918
  %v1971 = vpack.c.b16 %v1923, %v1919
  %v1972 = vpack.c.b16 %v1928, %v1924
  %v1973 = vpack.c.b16 %v1929, %v1925
  %v1974 = vpack.c.b16 %v1930, %v1926
  %v1975 = vpack.c.b16 %v1931, %v1927
  %v1976 = vpack.c.b16 %v1936, %v1932
  %v1977 = vpack.c.b16 %v1937, %v1933
  %v1978 = vpack.c.b16 %v1938, %v1934
  %v1979 = vpack.c.b16 %v1939, %v1935
  %v1980 = vpack.c.b16 %v1944, %v1940
  %v1981 = vpack.c.b16 %v1945, %v1941
  %v1982 = vpack.c.b16 %v1946, %v1942
  %v1983 = vpack.c.b16 %v1947, %v1943
  %v1984 = vpack.c.b16 %v1952, %v1948
  %v1985 = vpack.c.b16 %v1953, %v1949
  %v1986 = vpack.c.b16 %v1954, %v1950
  %v1987 = vpack.c.b16 %v1955, %v1951
  %2020 = vmatpush.bf16.msra.mxu0 %v1984
  %2021 = vmatpush.bf16.msra.mxu0 %v1980
  %2022 = vmatpush.bf16.msra.mxu0 %v1976
  %2023 = vmatpush.bf16.msra.mxu0 %v1972
  %2024 = vmatpush.bf16.msra.mxu0 %v1968
  %2025 = vmatpush.bf16.msra.mxu0 %v1964
  %2026 = vmatpush.bf16.msra.mxu0 %v1960
  %2027 = vmatpush.bf16.msra.mxu0 %v1956
  %2028 = vmatmul.bf16.gmra.mxu0 %v1827
  %v2029 = vpop.f32.mrf.mxu0
  %v2030 = vadd.f32 0.0, %v2029
  %v2031 = vpop.f32.mrf.mxu0
  %2032 = vdwg.mxu0
  %2033 = vmatpush.bf16.msra.mxu0 %v1985
  %2034 = vmatpush.bf16.msra.mxu0 %v1981
  %2035 = vmatpush.bf16.msra.mxu0 %v1977
  %2036 = vmatpush.bf16.msra.mxu0 %v1973
  %2037 = vmatpush.bf16.msra.mxu0 %v1969
  %2038 = vmatpush.bf16.msra.mxu0 %v1965
  %2039 = vmatpush.bf16.msra.mxu0 %v1961
  %2040 = vmatpush.bf16.msra.mxu0 %v1957
  %2041 = vmatmul.bf16.gmra.mxu0 %v1827
  %v2042 = vpop.f32.mrf.mxu0
  %v2043 = vadd.f32 0.0, %v2042
  %v2044 = vpop.f32.mrf.mxu0
  %2045 = vdwg.mxu0
  %2046 = vmatpush.bf16.msra.mxu0 %v1986
  %2047 = vmatpush.bf16.msra.mxu0 %v1982
  %2048 = vmatpush.bf16.msra.mxu0 %v1978
  %2049 = vmatpush.bf16.msra.mxu0 %v1974
  %2050 = vmatpush.bf16.msra.mxu0 %v1970
  %2051 = vmatpush.bf16.msra.mxu0 %v1966
  %2052 = vmatpush.bf16.msra.mxu0 %v1962
  %2053 = vmatpush.bf16.msra.mxu0 %v1958
  %2054 = vmatmul.bf16.gmra.mxu0 %v1827
  %v2055 = vpop.f32.mrf.mxu0
  %v2056 = vadd.f32 0.0, %v2055
  %v2057 = vpop.f32.mrf.mxu0
  %2058 = vdwg.mxu0
  %2059 = vmatpush.bf16.msra.mxu0 %v1987
  %2060 = vmatpush.bf16.msra.mxu0 %v1983
  %2061 = vmatpush.bf16.msra.mxu0 %v1979
  %2062 = vmatpush.bf16.msra.mxu0 %v1975
  %2063 = vmatpush.bf16.msra.mxu0 %v1971
  %2064 = vmatpush.bf16.msra.mxu0 %v1967
  %2065 = vmatpush.bf16.msra.mxu0 %v1963
  %2066 = vmatpush.bf16.msra.mxu0 %v1959
  %2067 = vmatmul.bf16.gmra.mxu0 %v1827
  %v2068 = vpop.f32.mrf.mxu0
  %v2069 = vadd.f32 0.0, %v2068
  %v2070 = vpop.f32.mrf.mxu0
  %2071 = vdwg.mxu0
  %v2076 = vrot.slane %v2043, 6
  %v2077 = vrot.slane %v2056, 4
  %v2078 = vrot.slane %v2069, 2
  %v2079 = vsel %vm277, %v2030, %v2076
  %v2080 = vsel %vm279, %v2077, %v2078
  %v2081 = vsel %vm281, %v2079, %v2080
  %v2083 = vadd.f32 %v1826, %v2081
  %v2084 = vmul.f32 %v2083, 0.5
  %v2085 = vtanh.pop %v2084
  %v2086 = vadd.f32 %v2085, 1.0
  %v2087 = vmul.f32 %v2086, 0.5
  %v2089 = vrot.slane %v2083, 2
  %v2091 = vmul.f32 %v2089, 0.5
  %v2092 = vtanh.pop %v2091
  %v2093 = vadd.f32 %v2092, 1.0
  %v2094 = vmul.f32 %v2093, 0.5
  %v2095 = vrot.slane %v2083, 4
  %v2097 = vtanh.pop %v2095
  %v2098 = vrot.slane %v2083, 6
  %v2100 = vmul.f32 %v2098, 0.5
  %v2101 = vtanh.pop %v2100
  %v2102 = vadd.f32 %v2101, 1.0
  %v2103 = vmul.f32 %v2102, 0.5
  %v2104 = vmul.f32 %v2094, %v1817
  %v2105 = vmul.f32 %v2087, %v2097
  %v2106 = vadd.f32 %v2104, %v2105
  %v2107 = vtanh.pop %v2106
  %v2108 = vmul.f32 %v2103, %v2107
  %s2109 = sadd.s32 %s21, 6
  %v2110 = vstv %s2109
  %vm2111 = vcmp.lt.s32.totalorder %v2110, %v20
  %v2112 = vsel %vm2111, 1, 0
  %2113 = vset.pattern.permute.xlu0 0
  %2114 = vperm.xlu0 %2113, %v2112
  %v2115 = vpop.permute.xlu0 %2114
  %vm2116 = vcmp.eq.s32.totalorder %v2115, 1
  %v2117 = vsel %vm2116, %v2106, %v1817
  %v2118 = vsel %vm2116, %v2108, %v1818
  %v2119 = vsel %vm2116, %v2108, 0.0
  %v2121 = vrot.slane %v2119, 1
  %2123 = vst [vmem:[%s3 + $0x6] sm:$0x1] %v2119
  %2124 = vst [vmem:[%s3 + $0xe] sm:$0x1] %v2121
  %s2125 = scalar_lea.vmem %s0, 56
  %v2126 = vld [vmem:[%s2125] sm:$0xff]
  %v2127 = vpack.c.bf16 %v2118, %v2118
  %v2128 = vld [vmem:[%s2] sm:$0xff]
  %v2129 = vld [vmem:[%s2 + $0x8] sm:$0xff]
  %v2130 = vld [vmem:[%s2 + $0x10] sm:$0xff]
  %v2131 = vld [vmem:[%s2 + $0x18] sm:$0xff]
  %v2132 = vld [vmem:[%s2 + $0x20] sm:$0xff]
  %v2133 = vld [vmem:[%s2 + $0x28] sm:$0xff]
  %v2134 = vld [vmem:[%s2 + $0x30] sm:$0xff]
  %v2135 = vld [vmem:[%s2 + $0x38] sm:$0xff]
  %v2136 = vld [vmem:[%s2 + $0x40] sm:$0xff]
  %v2137 = vld [vmem:[%s2 + $0x48] sm:$0xff]
  %v2138 = vld [vmem:[%s2 + $0x50] sm:$0xff]
  %v2139 = vld [vmem:[%s2 + $0x58] sm:$0xff]
  %v2140 = vld [vmem:[%s2 + $0x60] sm:$0xff]
  %v2141 = vld [vmem:[%s2 + $0x68] sm:$0xff]
  %v2142 = vld [vmem:[%s2 + $0x70] sm:$0xff]
  %v2143 = vld [vmem:[%s2 + $0x78] sm:$0xff]
  %v2144 = vld [vmem:[%s2 + $0x80] sm:$0xff]
  %v2145 = vld [vmem:[%s2 + $0x88] sm:$0xff]
  %v2146 = vld [vmem:[%s2 + $0x90] sm:$0xff]
  %v2147 = vld [vmem:[%s2 + $0x98] sm:$0xff]
  %v2148 = vld [vmem:[%s2 + $0xa0] sm:$0xff]
  %v2149 = vld [vmem:[%s2 + $0xa8] sm:$0xff]
  %v2150 = vld [vmem:[%s2 + $0xb0] sm:$0xff]
  %v2151 = vld [vmem:[%s2 + $0xb8] sm:$0xff]
  %v2152 = vld [vmem:[%s2 + $0xc0] sm:$0xff]
  %v2153 = vld [vmem:[%s2 + $0xc8] sm:$0xff]
  %v2154 = vld [vmem:[%s2 + $0xd0] sm:$0xff]
  %v2155 = vld [vmem:[%s2 + $0xd8] sm:$0xff]
  %v2156 = vld [vmem:[%s2 + $0xe0] sm:$0xff]
  %v2157 = vld [vmem:[%s2 + $0xe8] sm:$0xff]
  %v2158 = vld [vmem:[%s2 + $0xf0] sm:$0xff]
  %v2159 = vld [vmem:[%s2 + $0xf8] sm:$0xff]
  %v2192 = vunpack.c.l.b16 %v2128
  %v2193 = vunpack.c.h.b16 %v2128
  %v2194 = vunpack.c.l.b16 %v2129
  %v2195 = vunpack.c.h.b16 %v2129
  %v2196 = vunpack.c.l.b16 %v2130
  %v2197 = vunpack.c.h.b16 %v2130
  %v2198 = vunpack.c.l.b16 %v2131
  %v2199 = vunpack.c.h.b16 %v2131
  %v2200 = vunpack.c.l.b16 %v2132
  %v2201 = vunpack.c.h.b16 %v2132
  %v2202 = vunpack.c.l.b16 %v2133
  %v2203 = vunpack.c.h.b16 %v2133
  %v2204 = vunpack.c.l.b16 %v2134
  %v2205 = vunpack.c.h.b16 %v2134
  %v2206 = vunpack.c.l.b16 %v2135
  %v2207 = vunpack.c.h.b16 %v2135
  %v2208 = vunpack.c.l.b16 %v2136
  %v2209 = vunpack.c.h.b16 %v2136
  %v2210 = vunpack.c.l.b16 %v2137
  %v2211 = vunpack.c.h.b16 %v2137
  %v2212 = vunpack.c.l.b16 %v2138
  %v2213 = vunpack.c.h.b16 %v2138
  %v2214 = vunpack.c.l.b16 %v2139
  %v2215 = vunpack.c.h.b16 %v2139
  %v2216 = vunpack.c.l.b16 %v2140
  %v2217 = vunpack.c.h.b16 %v2140
  %v2218 = vunpack.c.l.b16 %v2141
  %v2219 = vunpack.c.h.b16 %v2141
  %v2220 = vunpack.c.l.b16 %v2142
  %v2221 = vunpack.c.h.b16 %v2142
  %v2222 = vunpack.c.l.b16 %v2143
  %v2223 = vunpack.c.h.b16 %v2143
  %v2224 = vunpack.c.l.b16 %v2144
  %v2225 = vunpack.c.h.b16 %v2144
  %v2226 = vunpack.c.l.b16 %v2145
  %v2227 = vunpack.c.h.b16 %v2145
  %v2228 = vunpack.c.l.b16 %v2146
  %v2229 = vunpack.c.h.b16 %v2146
  %v2230 = vunpack.c.l.b16 %v2147
  %v2231 = vunpack.c.h.b16 %v2147
  %v2232 = vunpack.c.l.b16 %v2148
  %v2233 = vunpack.c.h.b16 %v2148
  %v2234 = vunpack.c.l.b16 %v2149
  %v2235 = vunpack.c.h.b16 %v2149
  %v2236 = vunpack.c.l.b16 %v2150
  %v2237 = vunpack.c.h.b16 %v2150
  %v2238 = vunpack.c.l.b16 %v2151
  %v2239 = vunpack.c.h.b16 %v2151
  %v2240 = vunpack.c.l.b16 %v2152
  %v2241 = vunpack.c.h.b16 %v2152
  %v2242 = vunpack.c.l.b16 %v2153
  %v2243 = vunpack.c.h.b16 %v2153
  %v2244 = vunpack.c.l.b16 %v2154
  %v2245 = vunpack.c.h.b16 %v2154
  %v2246 = vunpack.c.l.b16 %v2155
  %v2247 = vunpack.c.h.b16 %v2155
  %v2248 = vunpack.c.l.b16 %v2156
  %v2249 = vunpack.c.h.b16 %v2156
  %v2250 = vunpack.c.l.b16 %v2157
  %v2251 = vunpack.c.h.b16 %v2157
  %v2252 = vunpack.c.l.b16 %v2158
  %v2253 = vunpack.c.h.b16 %v2158
  %v2254 = vunpack.c.l.b16 %v2159
  %v2255 = vunpack.c.h.b16 %v2159
  %v2256 = vpack.c.b16 %v2196, %v2192
  %v2257 = vpack.c.b16 %v2197, %v2193
  %v2258 = vpack.c.b16 %v2198, %v2194
  %v2259 = vpack.c.b16 %v2199, %v2195
  %v2260 = vpack.c.b16 %v2204, %v2200
  %v2261 = vpack.c.b16 %v2205, %v2201
  %v2262 = vpack.c.b16 %v2206, %v2202
  %v2263 = vpack.c.b16 %v2207, %v2203
  %v2264 = vpack.c.b16 %v2212, %v2208
  %v2265 = vpack.c.b16 %v2213, %v2209
  %v2266 = vpack.c.b16 %v2214, %v2210
  %v2267 = vpack.c.b16 %v2215, %v2211
  %v2268 = vpack.c.b16 %v2220, %v2216
  %v2269 = vpack.c.b16 %v2221, %v2217
  %v2270 = vpack.c.b16 %v2222, %v2218
  %v2271 = vpack.c.b16 %v2223, %v2219
  %v2272 = vpack.c.b16 %v2228, %v2224
  %v2273 = vpack.c.b16 %v2229, %v2225
  %v2274 = vpack.c.b16 %v2230, %v2226
  %v2275 = vpack.c.b16 %v2231, %v2227
  %v2276 = vpack.c.b16 %v2236, %v2232
  %v2277 = vpack.c.b16 %v2237, %v2233
  %v2278 = vpack.c.b16 %v2238, %v2234
  %v2279 = vpack.c.b16 %v2239, %v2235
  %v2280 = vpack.c.b16 %v2244, %v2240
  %v2281 = vpack.c.b16 %v2245, %v2241
  %v2282 = vpack.c.b16 %v2246, %v2242
  %v2283 = vpack.c.b16 %v2247, %v2243
  %v2284 = vpack.c.b16 %v2252, %v2248
  %v2285 = vpack.c.b16 %v2253, %v2249
  %v2286 = vpack.c.b16 %v2254, %v2250
  %v2287 = vpack.c.b16 %v2255, %v2251
  %2320 = vmatpush.bf16.msra.mxu0 %v2284
  %2321 = vmatpush.bf16.msra.mxu0 %v2280
  %2322 = vmatpush.bf16.msra.mxu0 %v2276
  %2323 = vmatpush.bf16.msra.mxu0 %v2272
  %2324 = vmatpush.bf16.msra.mxu0 %v2268
  %2325 = vmatpush.bf16.msra.mxu0 %v2264
  %2326 = vmatpush.bf16.msra.mxu0 %v2260
  %2327 = vmatpush.bf16.msra.mxu0 %v2256
  %2328 = vmatmul.bf16.gmra.mxu0 %v2127
  %v2329 = vpop.f32.mrf.mxu0
  %v2330 = vadd.f32 0.0, %v2329
  %v2331 = vpop.f32.mrf.mxu0
  %2332 = vdwg.mxu0
  %2333 = vmatpush.bf16.msra.mxu0 %v2285
  %2334 = vmatpush.bf16.msra.mxu0 %v2281
  %2335 = vmatpush.bf16.msra.mxu0 %v2277
  %2336 = vmatpush.bf16.msra.mxu0 %v2273
  %2337 = vmatpush.bf16.msra.mxu0 %v2269
  %2338 = vmatpush.bf16.msra.mxu0 %v2265
  %2339 = vmatpush.bf16.msra.mxu0 %v2261
  %2340 = vmatpush.bf16.msra.mxu0 %v2257
  %2341 = vmatmul.bf16.gmra.mxu0 %v2127
  %v2342 = vpop.f32.mrf.mxu0
  %v2343 = vadd.f32 0.0, %v2342
  %v2344 = vpop.f32.mrf.mxu0
  %2345 = vdwg.mxu0
  %2346 = vmatpush.bf16.msra.mxu0 %v2286
  %2347 = vmatpush.bf16.msra.mxu0 %v2282
  %2348 = vmatpush.bf16.msra.mxu0 %v2278
  %2349 = vmatpush.bf16.msra.mxu0 %v2274
  %2350 = vmatpush.bf16.msra.mxu0 %v2270
  %2351 = vmatpush.bf16.msra.mxu0 %v2266
  %2352 = vmatpush.bf16.msra.mxu0 %v2262
  %2353 = vmatpush.bf16.msra.mxu0 %v2258
  %2354 = vmatmul.bf16.gmra.mxu0 %v2127
  %v2355 = vpop.f32.mrf.mxu0
  %v2356 = vadd.f32 0.0, %v2355
  %v2357 = vpop.f32.mrf.mxu0
  %2358 = vdwg.mxu0
  %2359 = vmatpush.bf16.msra.mxu0 %v2287
  %2360 = vmatpush.bf16.msra.mxu0 %v2283
  %2361 = vmatpush.bf16.msra.mxu0 %v2279
  %2362 = vmatpush.bf16.msra.mxu0 %v2275
  %2363 = vmatpush.bf16.msra.mxu0 %v2271
  %2364 = vmatpush.bf16.msra.mxu0 %v2267
  %2365 = vmatpush.bf16.msra.mxu0 %v2263
  %2366 = vmatpush.bf16.msra.mxu0 %v2259
  %2367 = vmatmul.bf16.gmra.mxu0 %v2127
  %v2368 = vpop.f32.mrf.mxu0
  %v2369 = vadd.f32 0.0, %v2368
  %v2370 = vpop.f32.mrf.mxu0
  %2371 = vdwg.mxu0
  %v2376 = vrot.slane %v2343, 6
  %v2377 = vrot.slane %v2356, 4
  %v2378 = vrot.slane %v2369, 2
  %v2379 = vsel %vm277, %v2330, %v2376
  %v2380 = vsel %vm279, %v2377, %v2378
  %v2381 = vsel %vm281, %v2379, %v2380
  %v2383 = vadd.f32 %v2126, %v2381
  %v2384 = vmul.f32 %v2383, 0.5
  %v2385 = vtanh.pop %v2384
  %v2386 = vadd.f32 %v2385, 1.0
  %v2387 = vmul.f32 %v2386, 0.5
  %v2389 = vrot.slane %v2383, 2
  %v2391 = vmul.f32 %v2389, 0.5
  %v2392 = vtanh.pop %v2391
  %v2393 = vadd.f32 %v2392, 1.0
  %v2394 = vmul.f32 %v2393, 0.5
  %v2395 = vrot.slane %v2383, 4
  %v2397 = vtanh.pop %v2395
  %v2398 = vrot.slane %v2383, 6
  %v2400 = vmul.f32 %v2398, 0.5
  %v2401 = vtanh.pop %v2400
  %v2402 = vadd.f32 %v2401, 1.0
  %v2403 = vmul.f32 %v2402, 0.5
  %v2404 = vmul.f32 %v2394, %v2117
  %v2405 = vmul.f32 %v2387, %v2397
  %v2406 = vadd.f32 %v2404, %v2405
  %v2407 = vtanh.pop %v2406
  %v2408 = vmul.f32 %v2403, %v2407
  %s2409 = sadd.s32 %s21, 7
  %v2410 = vstv %s2409
  %vm2411 = vcmp.lt.s32.totalorder %v2410, %v20
  %v2412 = vsel %vm2411, 1, 0
  %2413 = vset.pattern.permute.xlu0 0
  %2414 = vperm.xlu0 %2413, %v2412
  %v2415 = vpop.permute.xlu0 %2414
  %vm2416 = vcmp.eq.s32.totalorder %v2415, 1
  %v2417 = vsel %vm2416, %v2406, %v2117
  %v2418 = vsel %vm2416, %v2408, %v2118
  %v2419 = vsel %vm2416, %v2408, 0.0
  %v2421 = vrot.slane %v2419, 1
  %2423 = vst [vmem:[%s3 + $0x7] sm:$0x1] %v2419
  %2424 = vst [vmem:[%s3 + $0xf] sm:$0x1] %v2421
  %2425 = vst [vmem:[#allocation2] sm:$0x3] %v2418
  %2426 = vst [vmem:[#allocation3] sm:$0x3] %v2417
  // Predicated region
  $region18: #{wcp_forward.5} parent=0 // pred_check
    _
  $region19: #{wcp_forward.5} parent=0 // pred_check_branch
    %2428 = sbr.rel (0) target = $region21
  $region20: #{wcp_forward.5} parent=0 // pred_region
    _
  $region21: #{wcp_forward.5} parent=0 // pred_fallthru
    _
  // Predicated region
  $region22: #{wcp_forward.5} parent=0 // pred_check
    _
  $region23: #{wcp_forward.5} parent=0 // pred_check_branch
    %2430 = sbr.rel (0) target = $region25
  $region24: #{wcp_forward.5} parent=0 // pred_region
    _
  $region25: #{wcp_forward.5} parent=0 // pred_fallthru
    _

// kernel: wcp_forward.9
$region0: #{wcp_forward.9}
  #allocation0 [shape = 'u32[]', space=smem, size = 0x4, offset = 0x4, fixed_abs, tag = 'smem constant byte address 0x4 - core index']
  #allocation1 [shape = 'u32[72,128]{1,0:T(1,128)}', space=vmem, size = 0x9000, scoped, tag = 'internal scratch']
  #allocation2 [shape = 'f32[1,1]{1,0:T(1,128)S(6)}', space=smem, size = 0x200, scoped, tag = 'scoped memory for wcp_forward.9']
  %s0 = inlined_call_operand.vmem [shape: bf16[2,8,16], index: 0, kind: input, shape index: {}]
  %s1 = inlined_call_operand.vmem [shape: bf16[2,128,16], index: 1, kind: input, shape index: {}]
  %s2 = inlined_call_operand.vmem [shape: s32[2,1], index: 2, kind: input, shape index: {}]
  %s3 = inlined_call_operand.vmem [shape: s32[2,1], index: 3, kind: input, shape index: {}]
  %s4 = inlined_call_operand.vmem [shape: bf16[3,16,16], index: 4, kind: input, shape index: {}]
  %s5 = inlined_call_operand.vmem [shape: f32[3,16], index: 5, kind: input, shape index: {}]
  %s6 = inlined_call_operand.vmem [shape: f32[2,16], index: 6, kind: input, shape index: {}]
  %s7 = inlined_call_operand.<no memory space> [shape: f32[1,1], index: 7, kind: input, shape index: {}]
  %s8 = inlined_call_operand.hbm [shape: f32[2,128], index: 8, kind: output, shape index: {}]
  %s9 = sld [smem:[#allocation0]]
  $region42: #{wcp_forward.9} parent=0
    _
  %s11 = ssub.s32 1, %s9
  %s12 = scalar_select 0, %s11, %s9
  %13 = sst [smem:[#allocation2]] %s7
  $region1: #{wcp_forward.9} parent=0
    #allocation3 [shape = 'u8[1024]{0}', space=vmem, size = 0x400, scoped, tag = 'output window, operand 0, single buffered']
    #allocation4 [shape = 's32[1]{0}', space=sflag, size = 0x4, scoped, tag = 'scoped memory for wcp_forward.9']
    %14 = vsyncpa [#allocation4], 0
    // Predicated region
    $region2: #{wcp_forward.9} parent=1 // pred_check
      _
    $region3: #{wcp_forward.9} parent=1 // pred_check_branch
      %16 = sbr.rel (0) target = $region5
    $region4: #{wcp_forward.9} parent=1 // pred_region
      _
    $region5: #{wcp_forward.9} parent=1 // pred_fallthru
      _
    // Predicated region
    $region6: #{wcp_forward.9} parent=1 // pred_check
      _
    $region7: #{wcp_forward.9} parent=1 // pred_check_branch
      %18 = sbr.rel (0) target = $region9
    $region8: #{wcp_forward.9} parent=1 // pred_region
      _
    $region9: #{wcp_forward.9} parent=1 // pred_fallthru
      _
    // Predicated region
    $region10: #{wcp_forward.9} parent=1 // pred_check
      _
    $region11: #{wcp_forward.9} parent=1 // pred_check_branch
      %20 = sbr.rel (0) target = $region13
    $region12: #{wcp_forward.9} parent=1 // pred_region
      _
    $region13: #{wcp_forward.9} parent=1 // pred_fallthru
      _
    // Predicated region
    $region14: #{wcp_forward.9} parent=1 // pred_check
      _
    $region15: #{wcp_forward.9} parent=1 // pred_check_branch
      %22 = sbr.rel (0) target = $region17
    $region16: #{wcp_forward.9} parent=1 // pred_region
      _
    $region17: #{wcp_forward.9} parent=1 // pred_fallthru
      _
    // Predicated region
    $region18: #{wcp_forward.9} parent=1 // pred_check
      _
    $region19: #{wcp_forward.9} parent=1 // pred_check_branch
      %24 = sbr.rel (0) target = $region21
    $region20: #{wcp_forward.9} parent=1 // pred_region
      _
    $region21: #{wcp_forward.9} parent=1 // pred_fallthru
      _
    // Predicated region
    $region22: #{wcp_forward.9} parent=1 // pred_check
      _
    $region23: #{wcp_forward.9} parent=1 // pred_check_branch
      %26 = sbr.rel (0) target = $region25
    $region24: #{wcp_forward.9} parent=1 // pred_region
      _
    $region25: #{wcp_forward.9} parent=1 // pred_fallthru
      _
    // Predicated region
    $region26: #{wcp_forward.9} parent=1 // pred_check
      _
    $region27: #{wcp_forward.9} parent=1 // pred_check_branch
      %28 = sbr.rel (0) target = $region29
    $region28: #{wcp_forward.9} parent=1 // pred_region
      _
    $region29: #{wcp_forward.9} parent=1 // pred_fallthru
      _
    // Predicated region
    $region30: #{wcp_forward.9} parent=1 // pred_check
      _
    $region31: #{wcp_forward.9} parent=1 // pred_check_branch
      %30 = sbr.rel (0) target = $region33
    $region32: #{wcp_forward.9} parent=1 // pred_region
      _
    $region33: #{wcp_forward.9} parent=1 // pred_fallthru
      _
    %v32 = vld [vmem:[%s0] sm:$0xf]
    %v33 = vld [vmem:[%s0 + $0x4] sm:$0xf]
    %v34 = vld [vmem:[%s1] sm:$0xf]
    %v35 = vld [vmem:[%s1 + $0x4] sm:$0xf]
    %v36 = vld [vmem:[%s1 + $0x8] sm:$0xf]
    %v37 = vld [vmem:[%s1 + $0xc] sm:$0xf]
    %v38 = vld [vmem:[%s1 + $0x10] sm:$0xf]
    %v39 = vld [vmem:[%s1 + $0x14] sm:$0xf]
    %v40 = vld [vmem:[%s1 + $0x18] sm:$0xf]
    %v41 = vld [vmem:[%s1 + $0x1c] sm:$0xf]
    %v42 = vld [vmem:[%s1 + $0x20] sm:$0xf]
    %v43 = vld [vmem:[%s1 + $0x24] sm:$0xf]
    %v44 = vld [vmem:[%s1 + $0x28] sm:$0xf]
    %v45 = vld [vmem:[%s1 + $0x2c] sm:$0xf]
    %v46 = vld [vmem:[%s1 + $0x30] sm:$0xf]
    %v47 = vld [vmem:[%s1 + $0x34] sm:$0xf]
    %v48 = vld [vmem:[%s1 + $0x38] sm:$0xf]
    %v49 = vld [vmem:[%s1 + $0x3c] sm:$0xf]
    %v50 = vld [vmem:[%s1 + $0x40] sm:$0xf]
    %v51 = vld [vmem:[%s1 + $0x44] sm:$0xf]
    %v52 = vld [vmem:[%s1 + $0x48] sm:$0xf]
    %v53 = vld [vmem:[%s1 + $0x4c] sm:$0xf]
    %v54 = vld [vmem:[%s1 + $0x50] sm:$0xf]
    %v55 = vld [vmem:[%s1 + $0x54] sm:$0xf]
    %v56 = vld [vmem:[%s1 + $0x58] sm:$0xf]
    %v57 = vld [vmem:[%s1 + $0x5c] sm:$0xf]
    %v58 = vld [vmem:[%s1 + $0x60] sm:$0xf]
    %v59 = vld [vmem:[%s1 + $0x64] sm:$0xf]
    %v60 = vld [vmem:[%s1 + $0x68] sm:$0xf]
    %v61 = vld [vmem:[%s1 + $0x6c] sm:$0xf]
    %v62 = vld [vmem:[%s1 + $0x70] sm:$0xf]
    %v63 = vld [vmem:[%s1 + $0x74] sm:$0xf]
    %v64 = vld [vmem:[%s1 + $0x78] sm:$0xf]
    %v65 = vld [vmem:[%s1 + $0x7c] sm:$0xf]
    %v66 = vlaneseq
    %v67 = vand.u32 %v66, 127
    %v68 = vld [vmem:[%s2] sm:$0x3]
    %69 = vset.pattern.permute.xlu0 0
    %70 = vperm.xlu0 %69, %v68
    %v71 = vpop.permute.xlu0 %70
    %vm72 = vcmp.lt.s32.totalorder %v67, %v71
    %v73 = vld [vmem:[%s3] sm:$0x3]
    %74 = vset.pattern.permute.xlu0 0
    %75 = vperm.xlu0 %74, %v73
    %v76 = vpop.permute.xlu0 %75
    %vm77 = vcmp.lt.s32.totalorder %v67, %v76
    %v78 = vld [vmem:[%s4] sm:$0xf]
    %v79 = vld [vmem:[%s4 + $0x4] sm:$0xf]
    %v80 = vld [vmem:[%s5] sm:$0x1]
    %v81 = vperm.slane %v80, 0
    %v84 = vunpack.c.l.b16 %v32
    %v85 = vunpack.c.l.b16 %v33
    %v86 = vpack.c.b16 %v85, %v84
    %v89 = vunpack.c.l.b16 %v78
    %v90 = vunpack.c.l.b16 %v79
    %v91 = vpack.c.b16 %v90, %v89
    %vm93 = vcmask 130048
    %v95 = vsel %vm93, %v86, 0
    %97 = vmatpush.bf16.msra.mxu0 0
    %98 = vmatpush.bf16.msra.mxu0 0
    %99 = vmatpush.bf16.msra.mxu0 0
    %100 = vmatpush.bf16.msra.mxu0 0
    %101 = vmatpush.bf16.msra.mxu0 0
    %102 = vmatpush.bf16.msra.mxu0 0
    %103 = vmatpush.bf16.msra.mxu0 0
    %104 = vmatpush.bf16.msra.mxu0 %v91
    %105 = vmatmul.bf16.gmra.mxu0 %v95
    %v106 = vpop.f32.mrf.mxu0
    %v107 = vadd.f32 %v81, %v106
    %v108 = vpop.f32.mrf.mxu0
    %v109 = vadd.f32 %v81, %v108
    %110 = vdwg.mxu0
    %v111 = vpack.c.bf16 %v107, %v107
    %v112 = vpack.c.bf16 %v109, %v109
    %v129 = vunpack.c.l.b16 %v34
    %v130 = vunpack.c.l.b16 %v35
    %v131 = vunpack.c.l.b16 %v36
    %v132 = vunpack.c.l.b16 %v37
    %v133 = vunpack.c.l.b16 %v38
    %v134 = vunpack.c.l.b16 %v39
    %v135 = vunpack.c.l.b16 %v40
    %v136 = vunpack.c.l.b16 %v41
    %v137 = vunpack.c.l.b16 %v42
    %v138 = vunpack.c.l.b16 %v43
    %v139 = vunpack.c.l.b16 %v44
    %v140 = vunpack.c.l.b16 %v45
    %v141 = vunpack.c.l.b16 %v46
    %v142 = vunpack.c.l.b16 %v47
    %v143 = vunpack.c.l.b16 %v48
    %v144 = vunpack.c.l.b16 %v49
    %v145 = vpack.c.b16 %v130, %v129
    %v146 = vpack.c.b16 %v132, %v131
    %v147 = vpack.c.b16 %v134, %v133
    %v148 = vpack.c.b16 %v136, %v135
    %v149 = vpack.c.b16 %v138, %v137
    %v150 = vpack.c.b16 %v140, %v139
    %v151 = vpack.c.b16 %v142, %v141
    %v152 = vpack.c.b16 %v144, %v143
    %v154 = vsel %vm93, %v145, 0
    %v157 = vsel %vm93, %v146, 0
    %v160 = vsel %vm93, %v147, 0
    %v163 = vsel %vm93, %v148, 0
    %v166 = vsel %vm93, %v149, 0
    %v169 = vsel %vm93, %v150, 0
    %v172 = vsel %vm93, %v151, 0
    %v175 = vsel %vm93, %v152, 0
    %v178 = vsel %vm93, %v111, 0
    %180 = vmatpush.bf16.xpose.msra.mxu0 0
    %181 = vmatpush.bf16.xpose.msra.mxu0 0
    %182 = vmatpush.bf16.xpose.msra.mxu0 0
    %183 = vmatpush.bf16.xpose.msra.mxu0 0
    %184 = vmatpush.bf16.xpose.msra.mxu0 0
    %185 = vmatpush.bf16.xpose.msra.mxu0 0
    %186 = vmatpush.bf16.xpose.msra.mxu0 0
    %187 = vmatpush.bf16.xpose.msra.mxu0 %v178
    %188 = vmatmul.bf16.gmra.mxu0 %v154
    %v189 = vpop.f32.mrf.mxu0
    %v190 = vadd.f32 0.0, %v189
    %v191 = vpop.f32.mrf.mxu0
    %v192 = vadd.f32 0.0, %v191
    %193 = vmatmul.bf16.gmra.mxu0 %v157
    %v194 = vpop.f32.mrf.mxu0
    %v195 = vadd.f32 0.0, %v194
    %v196 = vpop.f32.mrf.mxu0
    %v197 = vadd.f32 0.0, %v196
    %198 = vmatmul.bf16.gmra.mxu0 %v160
    %v199 = vpop.f32.mrf.mxu0
    %v200 = vadd.f32 0.0, %v199
    %v201 = vpop.f32.mrf.mxu0
    %v202 = vadd.f32 0.0, %v201
    %203 = vmatmul.bf16.gmra.mxu0 %v163
    %v204 = vpop.f32.mrf.mxu0
    %v205 = vadd.f32 0.0, %v204
    %v206 = vpop.f32.mrf.mxu0
    %v207 = vadd.f32 0.0, %v206
    %208 = vmatmul.bf16.gmra.mxu0 %v166
    %v209 = vpop.f32.mrf.mxu0
    %v210 = vadd.f32 0.0, %v209
    %v211 = vpop.f32.mrf.mxu0
    %v212 = vadd.f32 0.0, %v211
    %213 = vmatmul.bf16.gmra.mxu0 %v169
    %v214 = vpop.f32.mrf.mxu0
    %v215 = vadd.f32 0.0, %v214
    %v216 = vpop.f32.mrf.mxu0
    %v217 = vadd.f32 0.0, %v216
    %218 = vmatmul.bf16.gmra.mxu0 %v172
    %v219 = vpop.f32.mrf.mxu0
    %v220 = vadd.f32 0.0, %v219
    %v221 = vpop.f32.mrf.mxu0
    %v222 = vadd.f32 0.0, %v221
    %223 = vmatmul.bf16.gmra.mxu0 %v175
    %v224 = vpop.f32.mrf.mxu0
    %v225 = vadd.f32 0.0, %v224
    %v226 = vpop.f32.mrf.mxu0
    %v227 = vadd.f32 0.0, %v226
    %228 = vdwg.mxu0
    %v245 = vunpack.c.l.b16 %v50
    %v246 = vunpack.c.l.b16 %v51
    %v247 = vunpack.c.l.b16 %v52
    %v248 = vunpack.c.l.b16 %v53
    %v249 = vunpack.c.l.b16 %v54
    %v250 = vunpack.c.l.b16 %v55
    %v251 = vunpack.c.l.b16 %v56
    %v252 = vunpack.c.l.b16 %v57
    %v253 = vunpack.c.l.b16 %v58
    %v254 = vunpack.c.l.b16 %v59
    %v255 = vunpack.c.l.b16 %v60
    %v256 = vunpack.c.l.b16 %v61
    %v257 = vunpack.c.l.b16 %v62
    %v258 = vunpack.c.l.b16 %v63
    %v259 = vunpack.c.l.b16 %v64
    %v260 = vunpack.c.l.b16 %v65
    %v261 = vpack.c.b16 %v246, %v245
    %v262 = vpack.c.b16 %v248, %v247
    %v263 = vpack.c.b16 %v250, %v249
    %v264 = vpack.c.b16 %v252, %v251
    %v265 = vpack.c.b16 %v254, %v253
    %v266 = vpack.c.b16 %v256, %v255
    %v267 = vpack.c.b16 %v258, %v257
    %v268 = vpack.c.b16 %v260, %v259
    %v270 = vsel %vm93, %v261, 0
    %v273 = vsel %vm93, %v262, 0
    %v276 = vsel %vm93, %v263, 0
    %v279 = vsel %vm93, %v264, 0
    %v282 = vsel %vm93, %v265, 0
    %v285 = vsel %vm93, %v266, 0
    %v288 = vsel %vm93, %v267, 0
    %v291 = vsel %vm93, %v268, 0
    %v294 = vsel %vm93, %v112, 0
    %296 = vmatpush.bf16.xpose.msra.mxu0 0
    %297 = vmatpush.bf16.xpose.msra.mxu0 0
    %298 = vmatpush.bf16.xpose.msra.mxu0 0
    %299 = vmatpush.bf16.xpose.msra.mxu0 0
    %300 = vmatpush.bf16.xpose.msra.mxu0 0
    %301 = vmatpush.bf16.xpose.msra.mxu0 0
    %302 = vmatpush.bf16.xpose.msra.mxu0 0
    %303 = vmatpush.bf16.xpose.msra.mxu0 %v294
    %304 = vmatmul.bf16.gmra.mxu0 %v270
    %v305 = vpop.f32.mrf.mxu0
    %v306 = vadd.f32 0.0, %v305
    %v307 = vpop.f32.mrf.mxu0
    %v308 = vadd.f32 0.0, %v307
    %309 = vmatmul.bf16.gmra.mxu0 %v273
    %v310 = vpop.f32.mrf.mxu0
    %v311 = vadd.f32 0.0, %v310
    %v312 = vpop.f32.mrf.mxu0
    %v313 = vadd.f32 0.0, %v312
    %314 = vmatmul.bf16.gmra.mxu0 %v276
    %v315 = vpop.f32.mrf.mxu0
    %v316 = vadd.f32 0.0, %v315
    %v317 = vpop.f32.mrf.mxu0
    %v318 = vadd.f32 0.0, %v317
    %319 = vmatmul.bf16.gmra.mxu0 %v279
    %v320 = vpop.f32.mrf.mxu0
    %v321 = vadd.f32 0.0, %v320
    %v322 = vpop.f32.mrf.mxu0
    %v323 = vadd.f32 0.0, %v322
    %324 = vmatmul.bf16.gmra.mxu0 %v282
    %v325 = vpop.f32.mrf.mxu0
    %v326 = vadd.f32 0.0, %v325
    %v327 = vpop.f32.mrf.mxu0
    %v328 = vadd.f32 0.0, %v327
    %329 = vmatmul.bf16.gmra.mxu0 %v285
    %v330 = vpop.f32.mrf.mxu0
    %v331 = vadd.f32 0.0, %v330
    %v332 = vpop.f32.mrf.mxu0
    %v333 = vadd.f32 0.0, %v332
    %334 = vmatmul.bf16.gmra.mxu0 %v288
    %v335 = vpop.f32.mrf.mxu0
    %v336 = vadd.f32 0.0, %v335
    %v337 = vpop.f32.mrf.mxu0
    %v338 = vadd.f32 0.0, %v337
    %339 = vmatmul.bf16.gmra.mxu0 %v291
    %v340 = vpop.f32.mrf.mxu0
    %v341 = vadd.f32 0.0, %v340
    %v342 = vpop.f32.mrf.mxu0
    %v343 = vadd.f32 0.0, %v342
    %344 = vdwg.mxu0
    %v345 = vsel %vm72, 1, 0
    %v346 = vrot.slane %v345, 1
    %vm347 = vcmp.ne.s32.totalorder %v346, 0
    %v348 = vsel %vm347, 1, 0
    %v349 = vperm.slane %v345, 0
    %v350 = vperm.slane %v348, 0
    %vm351 = vcmp.eq.s32.totalorder %v349, 1
    %vm352 = vcmp.eq.s32.totalorder %v350, 1
    %v353 = vsel %vm351, %v190, -1e+10
    %v354 = vsel %vm351, %v192, -1e+10
    %v355 = vsel %vm351, %v195, -1e+10
    %v356 = vsel %vm351, %v197, -1e+10
    %v357 = vsel %vm351, %v200, -1e+10
    %v358 = vsel %vm351, %v202, -1e+10
    %v359 = vsel %vm351, %v205, -1e+10
    %v360 = vsel %vm351, %v207, -1e+10
    %v361 = vsel %vm351, %v210, -1e+10
    %v362 = vsel %vm351, %v212, -1e+10
    %v363 = vsel %vm351, %v215, -1e+10
    %v364 = vsel %vm351, %v217, -1e+10
    %v365 = vsel %vm351, %v220, -1e+10
    %v366 = vsel %vm351, %v222, -1e+10
    %v367 = vsel %vm351, %v225, -1e+10
    %v368 = vsel %vm351, %v227, -1e+10
    %v369 = vsel %vm352, %v306, -1e+10
    %v370 = vsel %vm352, %v308, -1e+10
    %v371 = vsel %vm352, %v311, -1e+10
    %v372 = vsel %vm352, %v313, -1e+10
    %v373 = vsel %vm352, %v316, -1e+10
    %v374 = vsel %vm352, %v318, -1e+10
    %v375 = vsel %vm352, %v321, -1e+10
    %v376 = vsel %vm352, %v323, -1e+10
    %v377 = vsel %vm352, %v326, -1e+10
    %v378 = vsel %vm352, %v328, -1e+10
    %v379 = vsel %vm352, %v331, -1e+10
    %v380 = vsel %vm352, %v333, -1e+10
    %v381 = vsel %vm352, %v336, -1e+10
    %v382 = vsel %vm352, %v338, -1e+10
    %v383 = vsel %vm352, %v341, -1e+10
    %v384 = vsel %vm352, %v343, -1e+10
    %vm385 = vcmask 64512
    %v386 = vsel %vm385, %v353, -inf
    %387 = vmax.xlane.f32.xlu0 %v386
    %v388 = vpop.xlane.xlu0 %387
    %v389 = vsel %vm385, %v354, -inf
    %390 = vmax.xlane.f32.xlu0 %v389
    %v391 = vpop.xlane.xlu0 %390
    %v392 = vsel %vm385, %v355, -inf
    %393 = vmax.xlane.f32.xlu0 %v392
    %v394 = vpop.xlane.xlu0 %393
    %v395 = vsel %vm385, %v356, -inf
    %396 = vmax.xlane.f32.xlu0 %v395
    %v397 = vpop.xlane.xlu0 %396
    %v398 = vsel %vm385, %v357, -inf
    %399 = vmax.xlane.f32.xlu0 %v398
    %v400 = vpop.xlane.xlu0 %399
    %v401 = vsel %vm385, %v358, -inf
    %402 = vmax.xlane.f32.xlu0 %v401
    %v403 = vpop.xlane.xlu0 %402
    %v404 = vsel %vm385, %v359, -inf
    %405 = vmax.xlane.f32.xlu0 %v404
    %v406 = vpop.xlane.xlu0 %405
    %v407 = vsel %vm385, %v360, -inf
    %408 = vmax.xlane.f32.xlu0 %v407
    %v409 = vpop.xlane.xlu0 %408
    %v410 = vsel %vm385, %v361, -inf
    %411 = vmax.xlane.f32.xlu0 %v410
    %v412 = vpop.xlane.xlu0 %411
    %v413 = vsel %vm385, %v362, -inf
    %414 = vmax.xlane.f32.xlu0 %v413
    %v415 = vpop.xlane.xlu0 %414
    %v416 = vsel %vm385, %v363, -inf
    %417 = vmax.xlane.f32.xlu0 %v416
    %v418 = vpop.xlane.xlu0 %417
    %v419 = vsel %vm385, %v364, -inf
    %420 = vmax.xlane.f32.xlu0 %v419
    %v421 = vpop.xlane.xlu0 %420
    %v422 = vsel %vm385, %v365, -inf
    %423 = vmax.xlane.f32.xlu0 %v422
    %v424 = vpop.xlane.xlu0 %423
    %v425 = vsel %vm385, %v366, -inf
    %426 = vmax.xlane.f32.xlu0 %v425
    %v427 = vpop.xlane.xlu0 %426
    %v428 = vsel %vm385, %v367, -inf
    %429 = vmax.xlane.f32.xlu0 %v428
    %v430 = vpop.xlane.xlu0 %429
    %v431 = vsel %vm385, %v368, -inf
    %432 = vmax.xlane.f32.xlu0 %v431
    %v433 = vpop.xlane.xlu0 %432
    %v434 = vsel %vm385, %v369, -inf
    %435 = vmax.xlane.f32.xlu0 %v434
    %v436 = vpop.xlane.xlu0 %435
    %v437 = vsel %vm385, %v370, -inf
    %438 = vmax.xlane.f32.xlu0 %v437
    %v439 = vpop.xlane.xlu0 %438
    %v440 = vsel %vm385, %v371, -inf
    %441 = vmax.xlane.f32.xlu0 %v440
    %v442 = vpop.xlane.xlu0 %441
    %v443 = vsel %vm385, %v372, -inf
    %444 = vmax.xlane.f32.xlu0 %v443
    %v445 = vpop.xlane.xlu0 %444
    %v446 = vsel %vm385, %v373, -inf
    %447 = vmax.xlane.f32.xlu0 %v446
    %v448 = vpop.xlane.xlu0 %447
    %v449 = vsel %vm385, %v374, -inf
    %450 = vmax.xlane.f32.xlu0 %v449
    %v451 = vpop.xlane.xlu0 %450
    %v452 = vsel %vm385, %v375, -inf
    %453 = vmax.xlane.f32.xlu0 %v452
    %v454 = vpop.xlane.xlu0 %453
    %v455 = vsel %vm385, %v376, -inf
    %456 = vmax.xlane.f32.xlu0 %v455
    %v457 = vpop.xlane.xlu0 %456
    %v458 = vsel %vm385, %v377, -inf
    %459 = vmax.xlane.f32.xlu0 %v458
    %v460 = vpop.xlane.xlu0 %459
    %v461 = vsel %vm385, %v378, -inf
    %462 = vmax.xlane.f32.xlu0 %v461
    %v463 = vpop.xlane.xlu0 %462
    %v464 = vsel %vm385, %v379, -inf
    %465 = vmax.xlane.f32.xlu0 %v464
    %v466 = vpop.xlane.xlu0 %465
    %v467 = vsel %vm385, %v380, -inf
    %468 = vmax.xlane.f32.xlu0 %v467
    %v469 = vpop.xlane.xlu0 %468
    %v470 = vsel %vm385, %v381, -inf
    %471 = vmax.xlane.f32.xlu0 %v470
    %v472 = vpop.xlane.xlu0 %471
    %v473 = vsel %vm385, %v382, -inf
    %474 = vmax.xlane.f32.xlu0 %v473
    %v475 = vpop.xlane.xlu0 %474
    %v476 = vsel %vm385, %v383, -inf
    %477 = vmax.xlane.f32.xlu0 %v476
    %v478 = vpop.xlane.xlu0 %477
    %v479 = vsel %vm385, %v384, -inf
    %480 = vmax.xlane.f32.xlu0 %v479
    %v481 = vpop.xlane.xlu0 %480
    %v482 = vsub.f32 %v353, %v388
    %v483 = vsub.f32 %v354, %v391
    %v484 = vsub.f32 %v355, %v394
    %v485 = vsub.f32 %v356, %v397
    %v486 = vsub.f32 %v357, %v400
    %v487 = vsub.f32 %v358, %v403
    %v488 = vsub.f32 %v359, %v406
    %v489 = vsub.f32 %v360, %v409
    %v490 = vsub.f32 %v361, %v412
    %v491 = vsub.f32 %v362, %v415
    %v492 = vsub.f32 %v363, %v418
    %v493 = vsub.f32 %v364, %v421
    %v494 = vsub.f32 %v365, %v424
    %v495 = vsub.f32 %v366, %v427
    %v496 = vsub.f32 %v367, %v430
    %v497 = vsub.f32 %v368, %v433
    %v498 = vsub.f32 %v369, %v436
    %v499 = vsub.f32 %v370, %v439
    %v500 = vsub.f32 %v371, %v442
    %v501 = vsub.f32 %v372, %v445
    %v502 = vsub.f32 %v373, %v448
    %v503 = vsub.f32 %v374, %v451
    %v504 = vsub.f32 %v375, %v454
    %v505 = vsub.f32 %v376, %v457
    %v506 = vsub.f32 %v377, %v460
    %v507 = vsub.f32 %v378, %v463
    %v508 = vsub.f32 %v379, %v466
    %v509 = vsub.f32 %v380, %v469
    %v510 = vsub.f32 %v381, %v472
    %v511 = vsub.f32 %v382, %v475
    %v512 = vsub.f32 %v383, %v478
    %v513 = vsub.f32 %v384, %v481
    %v514 = vmul.f32 %v482, 1.442695
    %v515 = vpow.pop %v514
    %v516 = vmul.f32 %v483, 1.442695
    %v517 = vpow.pop %v516
    %v518 = vmul.f32 %v484, 1.442695
    %v519 = vpow.pop %v518
    %v520 = vmul.f32 %v485, 1.442695
    %v521 = vpow.pop %v520
    %v522 = vmul.f32 %v486, 1.442695
    %v523 = vpow.pop %v522
    %v524 = vmul.f32 %v487, 1.442695
    %v525 = vpow.pop %v524
    %v526 = vmul.f32 %v488, 1.442695
    %v527 = vpow.pop %v526
    %v528 = vmul.f32 %v489, 1.442695
    %v529 = vpow.pop %v528
    %v530 = vmul.f32 %v490, 1.442695
    %v531 = vpow.pop %v530
    %v532 = vmul.f32 %v491, 1.442695
    %v533 = vpow.pop %v532
    %v534 = vmul.f32 %v492, 1.442695
    %v535 = vpow.pop %v534
    %v536 = vmul.f32 %v493, 1.442695
    %v537 = vpow.pop %v536
    %v538 = vmul.f32 %v494, 1.442695
    %v539 = vpow.pop %v538
    %v540 = vmul.f32 %v495, 1.442695
    %v541 = vpow.pop %v540
    %v542 = vmul.f32 %v496, 1.442695
    %v543 = vpow.pop %v542
    %v544 = vmul.f32 %v497, 1.442695
    %v545 = vpow.pop %v544
    %v546 = vmul.f32 %v498, 1.442695
    %v547 = vpow.pop %v546
    %v548 = vmul.f32 %v499, 1.442695
    %v549 = vpow.pop %v548
    %v550 = vmul.f32 %v500, 1.442695
    %v551 = vpow.pop %v550
    %v552 = vmul.f32 %v501, 1.442695
    %v553 = vpow.pop %v552
    %v554 = vmul.f32 %v502, 1.442695
    %v555 = vpow.pop %v554
    %v556 = vmul.f32 %v503, 1.442695
    %v557 = vpow.pop %v556
    %v558 = vmul.f32 %v504, 1.442695
    %v559 = vpow.pop %v558
    %v560 = vmul.f32 %v505, 1.442695
    %v561 = vpow.pop %v560
    %v562 = vmul.f32 %v506, 1.442695
    %v563 = vpow.pop %v562
    %v564 = vmul.f32 %v507, 1.442695
    %v565 = vpow.pop %v564
    %v566 = vmul.f32 %v508, 1.442695
    %v567 = vpow.pop %v566
    %v568 = vmul.f32 %v509, 1.442695
    %v569 = vpow.pop %v568
    %v570 = vmul.f32 %v510, 1.442695
    %v571 = vpow.pop %v570
    %v572 = vmul.f32 %v511, 1.442695
    %v573 = vpow.pop %v572
    %v574 = vmul.f32 %v512, 1.442695
    %v575 = vpow.pop %v574
    %v576 = vmul.f32 %v513, 1.442695
    %v577 = vpow.pop %v576
    %v578 = vsel %vm385, %v515, 0.0
    %579 = vadd.xlane.f32.xlu0 %v578
    %v580 = vpop.xlane.xlu0 %579
    %v581 = vsel %vm385, %v517, 0.0
    %582 = vadd.xlane.f32.xlu0 %v581
    %v583 = vpop.xlane.xlu0 %582
    %v584 = vsel %vm385, %v519, 0.0
    %585 = vadd.xlane.f32.xlu0 %v584
    %v586 = vpop.xlane.xlu0 %585
    %v587 = vsel %vm385, %v521, 0.0
    %588 = vadd.xlane.f32.xlu0 %v587
    %v589 = vpop.xlane.xlu0 %588
    %v590 = vsel %vm385, %v523, 0.0
    %591 = vadd.xlane.f32.xlu0 %v590
    %v592 = vpop.xlane.xlu0 %591
    %v593 = vsel %vm385, %v525, 0.0
    %594 = vadd.xlane.f32.xlu0 %v593
    %v595 = vpop.xlane.xlu0 %594
    %v596 = vsel %vm385, %v527, 0.0
    %597 = vadd.xlane.f32.xlu0 %v596
    %v598 = vpop.xlane.xlu0 %597
    %v599 = vsel %vm385, %v529, 0.0
    %600 = vadd.xlane.f32.xlu0 %v599
    %v601 = vpop.xlane.xlu0 %600
    %v602 = vsel %vm385, %v531, 0.0
    %603 = vadd.xlane.f32.xlu0 %v602
    %v604 = vpop.xlane.xlu0 %603
    %v605 = vsel %vm385, %v533, 0.0
    %606 = vadd.xlane.f32.xlu0 %v605
    %v607 = vpop.xlane.xlu0 %606
    %v608 = vsel %vm385, %v535, 0.0
    %609 = vadd.xlane.f32.xlu0 %v608
    %v610 = vpop.xlane.xlu0 %609
    %v611 = vsel %vm385, %v537, 0.0
    %612 = vadd.xlane.f32.xlu0 %v611
    %v613 = vpop.xlane.xlu0 %612
    %v614 = vsel %vm385, %v539, 0.0
    %615 = vadd.xlane.f32.xlu0 %v614
    %v616 = vpop.xlane.xlu0 %615
    %v617 = vsel %vm385, %v541, 0.0
    %618 = vadd.xlane.f32.xlu0 %v617
    %v619 = vpop.xlane.xlu0 %618
    %v620 = vsel %vm385, %v543, 0.0
    %621 = vadd.xlane.f32.xlu0 %v620
    %v622 = vpop.xlane.xlu0 %621
    %v623 = vsel %vm385, %v545, 0.0
    %624 = vadd.xlane.f32.xlu0 %v623
    %v625 = vpop.xlane.xlu0 %624
    %v626 = vsel %vm385, %v547, 0.0
    %627 = vadd.xlane.f32.xlu0 %v626
    %v628 = vpop.xlane.xlu0 %627
    %v629 = vsel %vm385, %v549, 0.0
    %630 = vadd.xlane.f32.xlu0 %v629
    %v631 = vpop.xlane.xlu0 %630
    %v632 = vsel %vm385, %v551, 0.0
    %633 = vadd.xlane.f32.xlu0 %v632
    %v634 = vpop.xlane.xlu0 %633
    %v635 = vsel %vm385, %v553, 0.0
    %636 = vadd.xlane.f32.xlu0 %v635
    %v637 = vpop.xlane.xlu0 %636
    %v638 = vsel %vm385, %v555, 0.0
    %639 = vadd.xlane.f32.xlu0 %v638
    %v640 = vpop.xlane.xlu0 %639
    %v641 = vsel %vm385, %v557, 0.0
    %642 = vadd.xlane.f32.xlu0 %v641
    %v643 = vpop.xlane.xlu0 %642
    %v644 = vsel %vm385, %v559, 0.0
    %645 = vadd.xlane.f32.xlu0 %v644
    %v646 = vpop.xlane.xlu0 %645
    %v647 = vsel %vm385, %v561, 0.0
    %648 = vadd.xlane.f32.xlu0 %v647
    %v649 = vpop.xlane.xlu0 %648
    %v650 = vsel %vm385, %v563, 0.0
    %651 = vadd.xlane.f32.xlu0 %v650
    %v652 = vpop.xlane.xlu0 %651
    %v653 = vsel %vm385, %v565, 0.0
    %654 = vadd.xlane.f32.xlu0 %v653
    %v655 = vpop.xlane.xlu0 %654
    %v656 = vsel %vm385, %v567, 0.0
    %657 = vadd.xlane.f32.xlu0 %v656
    %v658 = vpop.xlane.xlu0 %657
    %v659 = vsel %vm385, %v569, 0.0
    %660 = vadd.xlane.f32.xlu0 %v659
    %v661 = vpop.xlane.xlu0 %660
    %v662 = vsel %vm385, %v571, 0.0
    %663 = vadd.xlane.f32.xlu0 %v662
    %v664 = vpop.xlane.xlu0 %663
    %v665 = vsel %vm385, %v573, 0.0
    %666 = vadd.xlane.f32.xlu0 %v665
    %v667 = vpop.xlane.xlu0 %666
    %v668 = vsel %vm385, %v575, 0.0
    %669 = vadd.xlane.f32.xlu0 %v668
    %v670 = vpop.xlane.xlu0 %669
    %v671 = vsel %vm385, %v577, 0.0
    %672 = vadd.xlane.f32.xlu0 %v671
    %v673 = vpop.xlane.xlu0 %672
    %v674 = vrcp.pop %v580
    %v675 = vmul.f32 %v580, %v674
    %v676 = vsub.f32 1.0, %v675
    %v677 = vmul.f32 %v674, %v676
    %v678 = vadd.f32 %v674, %v677
    %vm679 = vweird.f32 %v580
    %vm680 = vweird.f32 %v674
    %vm681 = vmor %vm679, %vm680
    %v682 = vsel %vm681, %v674, %v678
    %v683 = vand.u32 2147483647, %v580
    %vm684 = vcmp.eq.f32.partialorder %v683, 8.507059e+37
    %v685 = vand.u32 %v580, 2147483648
    %v686 = vor.u32 1.1754944e-38, %v685
    %v687 = vsel %vm684, %v686, %v682
    %v688 = vmul.f32 %v515, %v687
    %v689 = vrcp.pop %v583
    %v690 = vmul.f32 %v583, %v689
    %v691 = vsub.f32 1.0, %v690
    %v692 = vmul.f32 %v689, %v691
    %v693 = vadd.f32 %v689, %v692
    %vm694 = vweird.f32 %v583
    %vm695 = vweird.f32 %v689
    %vm696 = vmor %vm694, %vm695
    %v697 = vsel %vm696, %v689, %v693
    %v698 = vand.u32 2147483647, %v583
    %vm699 = vcmp.eq.f32.partialorder %v698, 8.507059e+37
    %v700 = vand.u32 %v583, 2147483648
    %v701 = vor.u32 1.1754944e-38, %v700
    %v702 = vsel %vm699, %v701, %v697
    %v703 = vmul.f32 %v517, %v702
    %v704 = vrcp.pop %v586
    %v705 = vmul.f32 %v586, %v704
    %v706 = vsub.f32 1.0, %v705
    %v707 = vmul.f32 %v704, %v706
    %v708 = vadd.f32 %v704, %v707
    %vm709 = vweird.f32 %v586
    %vm710 = vweird.f32 %v704
    %vm711 = vmor %vm709, %vm710
    %v712 = vsel %vm711, %v704, %v708
    %v713 = vand.u32 2147483647, %v586
    %vm714 = vcmp.eq.f32.partialorder %v713, 8.507059e+37
    %v715 = vand.u32 %v586, 2147483648
    %v716 = vor.u32 1.1754944e-38, %v715
    %v717 = vsel %vm714, %v716, %v712
    %v718 = vmul.f32 %v519, %v717
    %v719 = vrcp.pop %v589
    %v720 = vmul.f32 %v589, %v719
    %v721 = vsub.f32 1.0, %v720
    %v722 = vmul.f32 %v719, %v721
    %v723 = vadd.f32 %v719, %v722
    %vm724 = vweird.f32 %v589
    %vm725 = vweird.f32 %v719
    %vm726 = vmor %vm724, %vm725
    %v727 = vsel %vm726, %v719, %v723
    %v728 = vand.u32 2147483647, %v589
    %vm729 = vcmp.eq.f32.partialorder %v728, 8.507059e+37
    %v730 = vand.u32 %v589, 2147483648
    %v731 = vor.u32 1.1754944e-38, %v730
    %v732 = vsel %vm729, %v731, %v727
    %v733 = vmul.f32 %v521, %v732
    %v734 = vrcp.pop %v592
    %v735 = vmul.f32 %v592, %v734
    %v736 = vsub.f32 1.0, %v735
    %v737 = vmul.f32 %v734, %v736
    %v738 = vadd.f32 %v734, %v737
    %vm739 = vweird.f32 %v592
    %vm740 = vweird.f32 %v734
    %vm741 = vmor %vm739, %vm740
    %v742 = vsel %vm741, %v734, %v738
    %v743 = vand.u32 2147483647, %v592
    %vm744 = vcmp.eq.f32.partialorder %v743, 8.507059e+37
    %v745 = vand.u32 %v592, 2147483648
    %v746 = vor.u32 1.1754944e-38, %v745
    %v747 = vsel %vm744, %v746, %v742
    %v748 = vmul.f32 %v523, %v747
    %v749 = vrcp.pop %v595
    %v750 = vmul.f32 %v595, %v749
    %v751 = vsub.f32 1.0, %v750
    %v752 = vmul.f32 %v749, %v751
    %v753 = vadd.f32 %v749, %v752
    %vm754 = vweird.f32 %v595
    %vm755 = vweird.f32 %v749
    %vm756 = vmor %vm754, %vm755
    %v757 = vsel %vm756, %v749, %v753
    %v758 = vand.u32 2147483647, %v595
    %vm759 = vcmp.eq.f32.partialorder %v758, 8.507059e+37
    %v760 = vand.u32 %v595, 2147483648
    %v761 = vor.u32 1.1754944e-38, %v760
    %v762 = vsel %vm759, %v761, %v757
    %v763 = vmul.f32 %v525, %v762
    %v764 = vrcp.pop %v598
    %v765 = vmul.f32 %v598, %v764
    %v766 = vsub.f32 1.0, %v765
    %v767 = vmul.f32 %v764, %v766
    %v768 = vadd.f32 %v764, %v767
    %vm769 = vweird.f32 %v598
    %vm770 = vweird.f32 %v764
    %vm771 = vmor %vm769, %vm770
    %v772 = vsel %vm771, %v764, %v768
    %v773 = vand.u32 2147483647, %v598
    %vm774 = vcmp.eq.f32.partialorder %v773, 8.507059e+37
    %v775 = vand.u32 %v598, 2147483648
    %v776 = vor.u32 1.1754944e-38, %v775
    %v777 = vsel %vm774, %v776, %v772
    %v778 = vmul.f32 %v527, %v777
    %v779 = vrcp.pop %v601
    %v780 = vmul.f32 %v601, %v779
    %v781 = vsub.f32 1.0, %v780
    %v782 = vmul.f32 %v779, %v781
    %v783 = vadd.f32 %v779, %v782
    %vm784 = vweird.f32 %v601
    %vm785 = vweird.f32 %v779
    %vm786 = vmor %vm784, %vm785
    %v787 = vsel %vm786, %v779, %v783
    %v788 = vand.u32 2147483647, %v601
    %vm789 = vcmp.eq.f32.partialorder %v788, 8.507059e+37
    %v790 = vand.u32 %v601, 2147483648
    %v791 = vor.u32 1.1754944e-38, %v790
    %v792 = vsel %vm789, %v791, %v787
    %v793 = vmul.f32 %v529, %v792
    %v794 = vrcp.pop %v604
    %v795 = vmul.f32 %v604, %v794
    %v796 = vsub.f32 1.0, %v795
    %v797 = vmul.f32 %v794, %v796
    %v798 = vadd.f32 %v794, %v797
    %vm799 = vweird.f32 %v604
    %vm800 = vweird.f32 %v794
    %vm801 = vmor %vm799, %vm800
    %v802 = vsel %vm801, %v794, %v798
    %v803 = vand.u32 2147483647, %v604
    %vm804 = vcmp.eq.f32.partialorder %v803, 8.507059e+37
    %v805 = vand.u32 %v604, 2147483648
    %v806 = vor.u32 1.1754944e-38, %v805
    %v807 = vsel %vm804, %v806, %v802
    %v808 = vmul.f32 %v531, %v807
    %v809 = vrcp.pop %v607
    %v810 = vmul.f32 %v607, %v809
    %v811 = vsub.f32 1.0, %v810
    %v812 = vmul.f32 %v809, %v811
    %v813 = vadd.f32 %v809, %v812
    %vm814 = vweird.f32 %v607
    %vm815 = vweird.f32 %v809
    %vm816 = vmor %vm814, %vm815
    %v817 = vsel %vm816, %v809, %v813
    %v818 = vand.u32 2147483647, %v607
    %vm819 = vcmp.eq.f32.partialorder %v818, 8.507059e+37
    %v820 = vand.u32 %v607, 2147483648
    %v821 = vor.u32 1.1754944e-38, %v820
    %v822 = vsel %vm819, %v821, %v817
    %v823 = vmul.f32 %v533, %v822
    %v824 = vrcp.pop %v610
    %v825 = vmul.f32 %v610, %v824
    %v826 = vsub.f32 1.0, %v825
    %v827 = vmul.f32 %v824, %v826
    %v828 = vadd.f32 %v824, %v827
    %vm829 = vweird.f32 %v610
    %vm830 = vweird.f32 %v824
    %vm831 = vmor %vm829, %vm830
    %v832 = vsel %vm831, %v824, %v828
    %v833 = vand.u32 2147483647, %v610
    %vm834 = vcmp.eq.f32.partialorder %v833, 8.507059e+37
    %v835 = vand.u32 %v610, 2147483648
    %v836 = vor.u32 1.1754944e-38, %v835
    %v837 = vsel %vm834, %v836, %v832
    %v838 = vmul.f32 %v535, %v837
    %v839 = vrcp.pop %v613
    %v840 = vmul.f32 %v613, %v839
    %v841 = vsub.f32 1.0, %v840
    %v842 = vmul.f32 %v839, %v841
    %v843 = vadd.f32 %v839, %v842
    %vm844 = vweird.f32 %v613
    %vm845 = vweird.f32 %v839
    %vm846 = vmor %vm844, %vm845
    %v847 = vsel %vm846, %v839, %v843
    %v848 = vand.u32 2147483647, %v613
    %vm849 = vcmp.eq.f32.partialorder %v848, 8.507059e+37
    %v850 = vand.u32 %v613, 2147483648
    %v851 = vor.u32 1.1754944e-38, %v850
    %v852 = vsel %vm849, %v851, %v847
    %v853 = vmul.f32 %v537, %v852
    %v854 = vrcp.pop %v616
    %v855 = vmul.f32 %v616, %v854
    %v856 = vsub.f32 1.0, %v855
    %v857 = vmul.f32 %v854, %v856
    %v858 = vadd.f32 %v854, %v857
    %vm859 = vweird.f32 %v616
    %vm860 = vweird.f32 %v854
    %vm861 = vmor %vm859, %vm860
    %v862 = vsel %vm861, %v854, %v858
    %v863 = vand.u32 2147483647, %v616
    %vm864 = vcmp.eq.f32.partialorder %v863, 8.507059e+37
    %v865 = vand.u32 %v616, 2147483648
    %v866 = vor.u32 1.1754944e-38, %v865
    %v867 = vsel %vm864, %v866, %v862
    %v868 = vmul.f32 %v539, %v867
    %v869 = vrcp.pop %v619
    %v870 = vmul.f32 %v619, %v869
    %v871 = vsub.f32 1.0, %v870
    %v872 = vmul.f32 %v869, %v871
    %v873 = vadd.f32 %v869, %v872
    %vm874 = vweird.f32 %v619
    %vm875 = vweird.f32 %v869
    %vm876 = vmor %vm874, %vm875
    %v877 = vsel %vm876, %v869, %v873
    %v878 = vand.u32 2147483647, %v619
    %vm879 = vcmp.eq.f32.partialorder %v878, 8.507059e+37
    %v880 = vand.u32 %v619, 2147483648
    %v881 = vor.u32 1.1754944e-38, %v880
    %v882 = vsel %vm879, %v881, %v877
    %v883 = vmul.f32 %v541, %v882
    %v884 = vrcp.pop %v622
    %v885 = vmul.f32 %v622, %v884
    %v886 = vsub.f32 1.0, %v885
    %v887 = vmul.f32 %v884, %v886
    %v888 = vadd.f32 %v884, %v887
    %vm889 = vweird.f32 %v622
    %vm890 = vweird.f32 %v884
    %vm891 = vmor %vm889, %vm890
    %v892 = vsel %vm891, %v884, %v888
    %v893 = vand.u32 2147483647, %v622
    %vm894 = vcmp.eq.f32.partialorder %v893, 8.507059e+37
    %v895 = vand.u32 %v622, 2147483648
    %v896 = vor.u32 1.1754944e-38, %v895
    %v897 = vsel %vm894, %v896, %v892
    %v898 = vmul.f32 %v543, %v897
    %v899 = vrcp.pop %v625
    %v900 = vmul.f32 %v625, %v899
    %v901 = vsub.f32 1.0, %v900
    %v902 = vmul.f32 %v899, %v901
    %v903 = vadd.f32 %v899, %v902
    %vm904 = vweird.f32 %v625
    %vm905 = vweird.f32 %v899
    %vm906 = vmor %vm904, %vm905
    %v907 = vsel %vm906, %v899, %v903
    %v908 = vand.u32 2147483647, %v625
    %vm909 = vcmp.eq.f32.partialorder %v908, 8.507059e+37
    %v910 = vand.u32 %v625, 2147483648
    %v911 = vor.u32 1.1754944e-38, %v910
    %v912 = vsel %vm909, %v911, %v907
    %v913 = vmul.f32 %v545, %v912
    %v914 = vrcp.pop %v628
    %v915 = vmul.f32 %v628, %v914
    %v916 = vsub.f32 1.0, %v915
    %v917 = vmul.f32 %v914, %v916
    %v918 = vadd.f32 %v914, %v917
    %vm919 = vweird.f32 %v628
    %vm920 = vweird.f32 %v914
    %vm921 = vmor %vm919, %vm920
    %v922 = vsel %vm921, %v914, %v918
    %v923 = vand.u32 2147483647, %v628
    %vm924 = vcmp.eq.f32.partialorder %v923, 8.507059e+37
    %v925 = vand.u32 %v628, 2147483648
    %v926 = vor.u32 1.1754944e-38, %v925
    %v927 = vsel %vm924, %v926, %v922
    %v928 = vmul.f32 %v547, %v927
    %v929 = vrcp.pop %v631
    %v930 = vmul.f32 %v631, %v929
    %v931 = vsub.f32 1.0, %v930
    %v932 = vmul.f32 %v929, %v931
    %v933 = vadd.f32 %v929, %v932
    %vm934 = vweird.f32 %v631
    %vm935 = vweird.f32 %v929
    %vm936 = vmor %vm934, %vm935
    %v937 = vsel %vm936, %v929, %v933
    %v938 = vand.u32 2147483647, %v631
    %vm939 = vcmp.eq.f32.partialorder %v938, 8.507059e+37
    %v940 = vand.u32 %v631, 2147483648
    %v941 = vor.u32 1.1754944e-38, %v940
    %v942 = vsel %vm939, %v941, %v937
    %v943 = vmul.f32 %v549, %v942
    %v944 = vrcp.pop %v634
    %v945 = vmul.f32 %v634, %v944
    %v946 = vsub.f32 1.0, %v945
    %v947 = vmul.f32 %v944, %v946
    %v948 = vadd.f32 %v944, %v947
    %vm949 = vweird.f32 %v634
    %vm950 = vweird.f32 %v944
    %vm951 = vmor %vm949, %vm950
    %v952 = vsel %vm951, %v944, %v948
    %v953 = vand.u32 2147483647, %v634
    %vm954 = vcmp.eq.f32.partialorder %v953, 8.507059e+37
    %v955 = vand.u32 %v634, 2147483648
    %v956 = vor.u32 1.1754944e-38, %v955
    %v957 = vsel %vm954, %v956, %v952
    %v958 = vmul.f32 %v551, %v957
    %v959 = vrcp.pop %v637
    %v960 = vmul.f32 %v637, %v959
    %v961 = vsub.f32 1.0, %v960
    %v962 = vmul.f32 %v959, %v961
    %v963 = vadd.f32 %v959, %v962
    %vm964 = vweird.f32 %v637
    %vm965 = vweird.f32 %v959
    %vm966 = vmor %vm964, %vm965
    %v967 = vsel %vm966, %v959, %v963
    %v968 = vand.u32 2147483647, %v637
    %vm969 = vcmp.eq.f32.partialorder %v968, 8.507059e+37
    %v970 = vand.u32 %v637, 2147483648
    %v971 = vor.u32 1.1754944e-38, %v970
    %v972 = vsel %vm969, %v971, %v967
    %v973 = vmul.f32 %v553, %v972
    %v974 = vrcp.pop %v640
    %v975 = vmul.f32 %v640, %v974
    %v976 = vsub.f32 1.0, %v975
    %v977 = vmul.f32 %v974, %v976
    %v978 = vadd.f32 %v974, %v977
    %vm979 = vweird.f32 %v640
    %vm980 = vweird.f32 %v974
    %vm981 = vmor %vm979, %vm980
    %v982 = vsel %vm981, %v974, %v978
    %v983 = vand.u32 2147483647, %v640
    %vm984 = vcmp.eq.f32.partialorder %v983, 8.507059e+37
    %v985 = vand.u32 %v640, 2147483648
    %v986 = vor.u32 1.1754944e-38, %v985
    %v987 = vsel %vm984, %v986, %v982
    %v988 = vmul.f32 %v555, %v987
    %v989 = vrcp.pop %v643
    %v990 = vmul.f32 %v643, %v989
    %v991 = vsub.f32 1.0, %v990
    %v992 = vmul.f32 %v989, %v991
    %v993 = vadd.f32 %v989, %v992
    %vm994 = vweird.f32 %v643
    %vm995 = vweird.f32 %v989
    %vm996 = vmor %vm994, %vm995
    %v997 = vsel %vm996, %v989, %v993
    %v998 = vand.u32 2147483647, %v643
    %vm999 = vcmp.eq.f32.partialorder %v998, 8.507059e+37
    %v1000 = vand.u32 %v643, 2147483648
    %v1001 = vor.u32 1.1754944e-38, %v1000
    %v1002 = vsel %vm999, %v1001, %v997
    %v1003 = vmul.f32 %v557, %v1002
    %v1004 = vrcp.pop %v646
    %v1005 = vmul.f32 %v646, %v1004
    %v1006 = vsub.f32 1.0, %v1005
    %v1007 = vmul.f32 %v1004, %v1006
    %v1008 = vadd.f32 %v1004, %v1007
    %vm1009 = vweird.f32 %v646
    %vm1010 = vweird.f32 %v1004
    %vm1011 = vmor %vm1009, %vm1010
    %v1012 = vsel %vm1011, %v1004, %v1008
    %v1013 = vand.u32 2147483647, %v646
    %vm1014 = vcmp.eq.f32.partialorder %v1013, 8.507059e+37
    %v1015 = vand.u32 %v646, 2147483648
    %v1016 = vor.u32 1.1754944e-38, %v1015
    %v1017 = vsel %vm1014, %v1016, %v1012
    %v1018 = vmul.f32 %v559, %v1017
    %v1019 = vrcp.pop %v649
    %v1020 = vmul.f32 %v649, %v1019
    %v1021 = vsub.f32 1.0, %v1020
    %v1022 = vmul.f32 %v1019, %v1021
    %v1023 = vadd.f32 %v1019, %v1022
    %vm1024 = vweird.f32 %v649
    %vm1025 = vweird.f32 %v1019
    %vm1026 = vmor %vm1024, %vm1025
    %v1027 = vsel %vm1026, %v1019, %v1023
    %v1028 = vand.u32 2147483647, %v649
    %vm1029 = vcmp.eq.f32.partialorder %v1028, 8.507059e+37
    %v1030 = vand.u32 %v649, 2147483648
    %v1031 = vor.u32 1.1754944e-38, %v1030
    %v1032 = vsel %vm1029, %v1031, %v1027
    %v1033 = vmul.f32 %v561, %v1032
    %v1034 = vrcp.pop %v652
    %v1035 = vmul.f32 %v652, %v1034
    %v1036 = vsub.f32 1.0, %v1035
    %v1037 = vmul.f32 %v1034, %v1036
    %v1038 = vadd.f32 %v1034, %v1037
    %vm1039 = vweird.f32 %v652
    %vm1040 = vweird.f32 %v1034
    %vm1041 = vmor %vm1039, %vm1040
    %v1042 = vsel %vm1041, %v1034, %v1038
    %v1043 = vand.u32 2147483647, %v652
    %vm1044 = vcmp.eq.f32.partialorder %v1043, 8.507059e+37
    %v1045 = vand.u32 %v652, 2147483648
    %v1046 = vor.u32 1.1754944e-38, %v1045
    %v1047 = vsel %vm1044, %v1046, %v1042
    %v1048 = vmul.f32 %v563, %v1047
    %v1049 = vrcp.pop %v655
    %v1050 = vmul.f32 %v655, %v1049
    %v1051 = vsub.f32 1.0, %v1050
    %v1052 = vmul.f32 %v1049, %v1051
    %v1053 = vadd.f32 %v1049, %v1052
    %vm1054 = vweird.f32 %v655
    %vm1055 = vweird.f32 %v1049
    %vm1056 = vmor %vm1054, %vm1055
    %v1057 = vsel %vm1056, %v1049, %v1053
    %v1058 = vand.u32 2147483647, %v655
    %vm1059 = vcmp.eq.f32.partialorder %v1058, 8.507059e+37
    %v1060 = vand.u32 %v655, 2147483648
    %v1061 = vor.u32 1.1754944e-38, %v1060
    %v1062 = vsel %vm1059, %v1061, %v1057
    %v1063 = vmul.f32 %v565, %v1062
    %v1064 = vrcp.pop %v658
    %v1065 = vmul.f32 %v658, %v1064
    %v1066 = vsub.f32 1.0, %v1065
    %v1067 = vmul.f32 %v1064, %v1066
    %v1068 = vadd.f32 %v1064, %v1067
    %vm1069 = vweird.f32 %v658
    %vm1070 = vweird.f32 %v1064
    %vm1071 = vmor %vm1069, %vm1070
    %v1072 = vsel %vm1071, %v1064, %v1068
    %v1073 = vand.u32 2147483647, %v658
    %vm1074 = vcmp.eq.f32.partialorder %v1073, 8.507059e+37
    %v1075 = vand.u32 %v658, 2147483648
    %v1076 = vor.u32 1.1754944e-38, %v1075
    %v1077 = vsel %vm1074, %v1076, %v1072
    %v1078 = vmul.f32 %v567, %v1077
    %v1079 = vrcp.pop %v661
    %v1080 = vmul.f32 %v661, %v1079
    %v1081 = vsub.f32 1.0, %v1080
    %v1082 = vmul.f32 %v1079, %v1081
    %v1083 = vadd.f32 %v1079, %v1082
    %vm1084 = vweird.f32 %v661
    %vm1085 = vweird.f32 %v1079
    %vm1086 = vmor %vm1084, %vm1085
    %v1087 = vsel %vm1086, %v1079, %v1083
    %v1088 = vand.u32 2147483647, %v661
    %vm1089 = vcmp.eq.f32.partialorder %v1088, 8.507059e+37
    %v1090 = vand.u32 %v661, 2147483648
    %v1091 = vor.u32 1.1754944e-38, %v1090
    %v1092 = vsel %vm1089, %v1091, %v1087
    %v1093 = vmul.f32 %v569, %v1092
    %v1094 = vrcp.pop %v664
    %v1095 = vmul.f32 %v664, %v1094
    %v1096 = vsub.f32 1.0, %v1095
    %v1097 = vmul.f32 %v1094, %v1096
    %v1098 = vadd.f32 %v1094, %v1097
    %vm1099 = vweird.f32 %v664
    %vm1100 = vweird.f32 %v1094
    %vm1101 = vmor %vm1099, %vm1100
    %v1102 = vsel %vm1101, %v1094, %v1098
    %v1103 = vand.u32 2147483647, %v664
    %vm1104 = vcmp.eq.f32.partialorder %v1103, 8.507059e+37
    %v1105 = vand.u32 %v664, 2147483648
    %v1106 = vor.u32 1.1754944e-38, %v1105
    %v1107 = vsel %vm1104, %v1106, %v1102
    %v1108 = vmul.f32 %v571, %v1107
    %v1109 = vrcp.pop %v667
    %v1110 = vmul.f32 %v667, %v1109
    %v1111 = vsub.f32 1.0, %v1110
    %v1112 = vmul.f32 %v1109, %v1111
    %v1113 = vadd.f32 %v1109, %v1112
    %vm1114 = vweird.f32 %v667
    %vm1115 = vweird.f32 %v1109
    %vm1116 = vmor %vm1114, %vm1115
    %v1117 = vsel %vm1116, %v1109, %v1113
    %v1118 = vand.u32 2147483647, %v667
    %vm1119 = vcmp.eq.f32.partialorder %v1118, 8.507059e+37
    %v1120 = vand.u32 %v667, 2147483648
    %v1121 = vor.u32 1.1754944e-38, %v1120
    %v1122 = vsel %vm1119, %v1121, %v1117
    %v1123 = vmul.f32 %v573, %v1122
    %v1124 = vrcp.pop %v670
    %v1125 = vmul.f32 %v670, %v1124
    %v1126 = vsub.f32 1.0, %v1125
    %v1127 = vmul.f32 %v1124, %v1126
    %v1128 = vadd.f32 %v1124, %v1127
    %vm1129 = vweird.f32 %v670
    %vm1130 = vweird.f32 %v1124
    %vm1131 = vmor %vm1129, %vm1130
    %v1132 = vsel %vm1131, %v1124, %v1128
    %v1133 = vand.u32 2147483647, %v670
    %vm1134 = vcmp.eq.f32.partialorder %v1133, 8.507059e+37
    %v1135 = vand.u32 %v670, 2147483648
    %v1136 = vor.u32 1.1754944e-38, %v1135
    %v1137 = vsel %vm1134, %v1136, %v1132
    %v1138 = vmul.f32 %v575, %v1137
    %v1139 = vrcp.pop %v673
    %v1140 = vmul.f32 %v673, %v1139
    %v1141 = vsub.f32 1.0, %v1140
    %v1142 = vmul.f32 %v1139, %v1141
    %v1143 = vadd.f32 %v1139, %v1142
    %vm1144 = vweird.f32 %v673
    %vm1145 = vweird.f32 %v1139
    %vm1146 = vmor %vm1144, %vm1145
    %v1147 = vsel %vm1146, %v1139, %v1143
    %v1148 = vand.u32 2147483647, %v673
    %vm1149 = vcmp.eq.f32.partialorder %v1148, 8.507059e+37
    %v1150 = vand.u32 %v673, 2147483648
    %v1151 = vor.u32 1.1754944e-38, %v1150
    %v1152 = vsel %vm1149, %v1151, %v1147
    %v1153 = vmul.f32 %v577, %v1152
    %v1154 = vpack.c.bf16 %v688, %v688
    %v1155 = vpack.c.bf16 %v703, %v703
    %v1156 = vpack.c.bf16 %v718, %v718
    %v1157 = vpack.c.bf16 %v733, %v733
    %v1158 = vpack.c.bf16 %v748, %v748
    %v1159 = vpack.c.bf16 %v763, %v763
    %v1160 = vpack.c.bf16 %v778, %v778
    %v1161 = vpack.c.bf16 %v793, %v793
    %v1162 = vpack.c.bf16 %v808, %v808
    %v1163 = vpack.c.bf16 %v823, %v823
    %v1164 = vpack.c.bf16 %v838, %v838
    %v1165 = vpack.c.bf16 %v853, %v853
    %v1166 = vpack.c.bf16 %v868, %v868
    %v1167 = vpack.c.bf16 %v883, %v883
    %v1168 = vpack.c.bf16 %v898, %v898
    %v1169 = vpack.c.bf16 %v913, %v913
    %v1170 = vpack.c.bf16 %v928, %v928
    %v1171 = vpack.c.bf16 %v943, %v943
    %v1172 = vpack.c.bf16 %v958, %v958
    %v1173 = vpack.c.bf16 %v973, %v973
    %v1174 = vpack.c.bf16 %v988, %v988
    %v1175 = vpack.c.bf16 %v1003, %v1003
    %v1176 = vpack.c.bf16 %v1018, %v1018
    %v1177 = vpack.c.bf16 %v1033, %v1033
    %v1178 = vpack.c.bf16 %v1048, %v1048
    %v1179 = vpack.c.bf16 %v1063, %v1063
    %v1180 = vpack.c.bf16 %v1078, %v1078
    %v1181 = vpack.c.bf16 %v1093, %v1093
    %v1182 = vpack.c.bf16 %v1108, %v1108
    %v1183 = vpack.c.bf16 %v1123, %v1123
    %v1184 = vpack.c.bf16 %v1138, %v1138
    %v1185 = vpack.c.bf16 %v1153, %v1153
    %v1202 = vunpack.c.l.b16 %v1154
    %v1203 = vunpack.c.l.b16 %v1155
    %v1204 = vunpack.c.l.b16 %v1156
    %v1205 = vunpack.c.l.b16 %v1157
    %v1206 = vunpack.c.l.b16 %v1158
    %v1207 = vunpack.c.l.b16 %v1159
    %v1208 = vunpack.c.l.b16 %v1160
    %v1209 = vunpack.c.l.b16 %v1161
    %v1210 = vunpack.c.l.b16 %v1162
    %v1211 = vunpack.c.l.b16 %v1163
    %v1212 = vunpack.c.l.b16 %v1164
    %v1213 = vunpack.c.l.b16 %v1165
    %v1214 = vunpack.c.l.b16 %v1166
    %v1215 = vunpack.c.l.b16 %v1167
    %v1216 = vunpack.c.l.b16 %v1168
    %v1217 = vunpack.c.l.b16 %v1169
    %v1218 = vpack.c.b16 %v1203, %v1202
    %v1219 = vpack.c.b16 %v1205, %v1204
    %v1220 = vpack.c.b16 %v1207, %v1206
    %v1221 = vpack.c.b16 %v1209, %v1208
    %v1222 = vpack.c.b16 %v1211, %v1210
    %v1223 = vpack.c.b16 %v1213, %v1212
    %v1224 = vpack.c.b16 %v1215, %v1214
    %v1225 = vpack.c.b16 %v1217, %v1216
    %v1227 = vsel %vm385, %v1218, 0
    %v1230 = vsel %vm385, %v1219, 0
    %v1233 = vsel %vm385, %v1220, 0
    %v1236 = vsel %vm385, %v1221, 0
    %v1239 = vsel %vm385, %v1222, 0
    %v1242 = vsel %vm385, %v1223, 0
    %v1245 = vsel %vm385, %v1224, 0
    %v1248 = vsel %vm385, %v1225, 0
    %vm1250 = vcmask 1043456
    %v1252 = vsel %vm1250, %v32, 0
    %1254 = vmatpush.bf16.msra.mxu0 0
    %1255 = vmatpush.bf16.msra.mxu0 0
    %1256 = vmatpush.bf16.msra.mxu0 0
    %1257 = vmatpush.bf16.msra.mxu0 0
    %1258 = vmatpush.bf16.msra.mxu0 0
    %1259 = vmatpush.bf16.msra.mxu0 0
    %1260 = vmatpush.bf16.msra.mxu0 0
    %1261 = vmatpush.bf16.msra.mxu0 %v1252
    %1262 = vmatmul.bf16.gmra.mxu0 %v1227
    %v1263 = vpop.f32.mrf.mxu0
    %v1264 = vadd.f32 0.0, %v1263
    %v1265 = vpop.f32.mrf.mxu0
    %v1266 = vadd.f32 0.0, %v1265
    %1267 = vmatmul.bf16.gmra.mxu0 %v1230
    %v1268 = vpop.f32.mrf.mxu0
    %v1269 = vadd.f32 0.0, %v1268
    %v1270 = vpop.f32.mrf.mxu0
    %v1271 = vadd.f32 0.0, %v1270
    %1272 = vmatmul.bf16.gmra.mxu0 %v1233
    %v1273 = vpop.f32.mrf.mxu0
    %v1274 = vadd.f32 0.0, %v1273
    %v1275 = vpop.f32.mrf.mxu0
    %v1276 = vadd.f32 0.0, %v1275
    %1277 = vmatmul.bf16.gmra.mxu0 %v1236
    %v1278 = vpop.f32.mrf.mxu0
    %v1279 = vadd.f32 0.0, %v1278
    %v1280 = vpop.f32.mrf.mxu0
    %v1281 = vadd.f32 0.0, %v1280
    %1282 = vmatmul.bf16.gmra.mxu0 %v1239
    %v1283 = vpop.f32.mrf.mxu0
    %v1284 = vadd.f32 0.0, %v1283
    %v1285 = vpop.f32.mrf.mxu0
    %v1286 = vadd.f32 0.0, %v1285
    %1287 = vmatmul.bf16.gmra.mxu0 %v1242
    %v1288 = vpop.f32.mrf.mxu0
    %v1289 = vadd.f32 0.0, %v1288
    %v1290 = vpop.f32.mrf.mxu0
    %v1291 = vadd.f32 0.0, %v1290
    %1292 = vmatmul.bf16.gmra.mxu0 %v1245
    %v1293 = vpop.f32.mrf.mxu0
    %v1294 = vadd.f32 0.0, %v1293
    %v1295 = vpop.f32.mrf.mxu0
    %v1296 = vadd.f32 0.0, %v1295
    %1297 = vmatmul.bf16.gmra.mxu0 %v1248
    %v1298 = vpop.f32.mrf.mxu0
    %v1299 = vadd.f32 0.0, %v1298
    %v1300 = vpop.f32.mrf.mxu0
    %v1301 = vadd.f32 0.0, %v1300
    %1302 = vdwg.mxu0
    %v1319 = vunpack.c.l.b16 %v1170
    %v1320 = vunpack.c.l.b16 %v1171
    %v1321 = vunpack.c.l.b16 %v1172
    %v1322 = vunpack.c.l.b16 %v1173
    %v1323 = vunpack.c.l.b16 %v1174
    %v1324 = vunpack.c.l.b16 %v1175
    %v1325 = vunpack.c.l.b16 %v1176
    %v1326 = vunpack.c.l.b16 %v1177
    %v1327 = vunpack.c.l.b16 %v1178
    %v1328 = vunpack.c.l.b16 %v1179
    %v1329 = vunpack.c.l.b16 %v1180
    %v1330 = vunpack.c.l.b16 %v1181
    %v1331 = vunpack.c.l.b16 %v1182
    %v1332 = vunpack.c.l.b16 %v1183
    %v1333 = vunpack.c.l.b16 %v1184
    %v1334 = vunpack.c.l.b16 %v1185
    %v1335 = vpack.c.b16 %v1320, %v1319
    %v1336 = vpack.c.b16 %v1322, %v1321
    %v1337 = vpack.c.b16 %v1324, %v1323
    %v1338 = vpack.c.b16 %v1326, %v1325
    %v1339 = vpack.c.b16 %v1328, %v1327
    %v1340 = vpack.c.b16 %v1330, %v1329
    %v1341 = vpack.c.b16 %v1332, %v1331
    %v1342 = vpack.c.b16 %v1334, %v1333
    %v1344 = vsel %vm385, %v1335, 0
    %v1347 = vsel %vm385, %v1336, 0
    %v1350 = vsel %vm385, %v1337, 0
    %v1353 = vsel %vm385, %v1338, 0
    %v1356 = vsel %vm385, %v1339, 0
    %v1359 = vsel %vm385, %v1340, 0
    %v1362 = vsel %vm385, %v1341, 0
    %v1365 = vsel %vm385, %v1342, 0
    %v1368 = vsel %vm1250, %v33, 0
    %1370 = vmatpush.bf16.msra.mxu0 0
    %1371 = vmatpush.bf16.msra.mxu0 0
    %1372 = vmatpush.bf16.msra.mxu0 0
    %1373 = vmatpush.bf16.msra.mxu0 0
    %1374 = vmatpush.bf16.msra.mxu0 0
    %1375 = vmatpush.bf16.msra.mxu0 0
    %1376 = vmatpush.bf16.msra.mxu0 0
    %1377 = vmatpush.bf16.msra.mxu0 %v1368
    %1378 = vmatmul.bf16.gmra.mxu0 %v1344
    %v1379 = vpop.f32.mrf.mxu0
    %v1380 = vadd.f32 0.0, %v1379
    %v1381 = vpop.f32.mrf.mxu0
    %v1382 = vadd.f32 0.0, %v1381
    %1383 = vmatmul.bf16.gmra.mxu0 %v1347
    %v1384 = vpop.f32.mrf.mxu0
    %v1385 = vadd.f32 0.0, %v1384
    %v1386 = vpop.f32.mrf.mxu0
    %v1387 = vadd.f32 0.0, %v1386
    %1388 = vmatmul.bf16.gmra.mxu0 %v1350
    %v1389 = vpop.f32.mrf.mxu0
    %v1390 = vadd.f32 0.0, %v1389
    %v1391 = vpop.f32.mrf.mxu0
    %v1392 = vadd.f32 0.0, %v1391
    %1393 = vmatmul.bf16.gmra.mxu0 %v1353
    %v1394 = vpop.f32.mrf.mxu0
    %v1395 = vadd.f32 0.0, %v1394
    %v1396 = vpop.f32.mrf.mxu0
    %v1397 = vadd.f32 0.0, %v1396
    %1398 = vmatmul.bf16.gmra.mxu0 %v1356
    %v1399 = vpop.f32.mrf.mxu0
    %v1400 = vadd.f32 0.0, %v1399
    %v1401 = vpop.f32.mrf.mxu0
    %v1402 = vadd.f32 0.0, %v1401
    %1403 = vmatmul.bf16.gmra.mxu0 %v1359
    %v1404 = vpop.f32.mrf.mxu0
    %v1405 = vadd.f32 0.0, %v1404
    %v1406 = vpop.f32.mrf.mxu0
    %v1407 = vadd.f32 0.0, %v1406
    %1408 = vmatmul.bf16.gmra.mxu0 %v1362
    %v1409 = vpop.f32.mrf.mxu0
    %v1410 = vadd.f32 0.0, %v1409
    %v1411 = vpop.f32.mrf.mxu0
    %v1412 = vadd.f32 0.0, %v1411
    %1413 = vmatmul.bf16.gmra.mxu0 %v1365
    %v1414 = vpop.f32.mrf.mxu0
    %v1415 = vadd.f32 0.0, %v1414
    %v1416 = vpop.f32.mrf.mxu0
    %v1417 = vadd.f32 0.0, %v1416
    %1418 = vdwg.mxu0
    %v1419 = vpack.c.bf16 %v1266, %v1264
    %v1420 = vpack.c.bf16 %v1271, %v1269
    %v1421 = vpack.c.bf16 %v1276, %v1274
    %v1422 = vpack.c.bf16 %v1281, %v1279
    %v1423 = vpack.c.bf16 %v1286, %v1284
    %v1424 = vpack.c.bf16 %v1291, %v1289
    %v1425 = vpack.c.bf16 %v1296, %v1294
    %v1426 = vpack.c.bf16 %v1301, %v1299
    %v1427 = vpack.c.bf16 %v1382, %v1380
    %v1428 = vpack.c.bf16 %v1387, %v1385
    %v1429 = vpack.c.bf16 %v1392, %v1390
    %v1430 = vpack.c.bf16 %v1397, %v1395
    %v1431 = vpack.c.bf16 %v1402, %v1400
    %v1432 = vpack.c.bf16 %v1407, %v1405
    %v1433 = vpack.c.bf16 %v1412, %v1410
    %v1434 = vpack.c.bf16 %v1417, %v1415
    %s1435 = scalar_lea.vmem %s4, 8
    %v1436 = vld [vmem:[%s1435] sm:$0xf]
    %v1437 = vld [vmem:[%s1435 + $0x4] sm:$0xf]
    %v1438 = vld [vmem:[%s5 + $0x1] sm:$0x1]
    %v1439 = vperm.slane %v1438, 0
    %v1442 = vunpack.c.l.b16 %v1436
    %v1443 = vunpack.c.l.b16 %v1437
    %v1444 = vpack.c.b16 %v1443, %v1442
    %v1447 = vsel %vm93, %v1419, 0
    %v1450 = vsel %vm93, %v1420, 0
    %v1453 = vsel %vm93, %v1421, 0
    %v1456 = vsel %vm93, %v1422, 0
    %v1459 = vsel %vm93, %v1423, 0
    %v1462 = vsel %vm93, %v1424, 0
    %v1465 = vsel %vm93, %v1425, 0
    %v1468 = vsel %vm93, %v1426, 0
    %v1471 = vsel %vm93, %v1427, 0
    %v1474 = vsel %vm93, %v1428, 0
    %v1477 = vsel %vm93, %v1429, 0
    %v1480 = vsel %vm93, %v1430, 0
    %v1483 = vsel %vm93, %v1431, 0
    %v1486 = vsel %vm93, %v1432, 0
    %v1489 = vsel %vm93, %v1433, 0
    %v1492 = vsel %vm93, %v1434, 0
    %1494 = vmatpush.bf16.msra.mxu0 0
    %1495 = vmatpush.bf16.msra.mxu0 0
    %1496 = vmatpush.bf16.msra.mxu0 0
    %1497 = vmatpush.bf16.msra.mxu0 0
    %1498 = vmatpush.bf16.msra.mxu0 0
    %1499 = vmatpush.bf16.msra.mxu0 0
    %1500 = vmatpush.bf16.msra.mxu0 0
    %1501 = vmatpush.bf16.msra.mxu0 %v1444
    %1502 = vmatmul.bf16.gmra.mxu0 %v1447
    %v1503 = vpop.f32.mrf.mxu0
    %v1504 = vadd.f32 %v1439, %v1503
    %v1505 = vpop.f32.mrf.mxu0
    %v1506 = vadd.f32 %v1439, %v1505
    %1507 = vmatmul.bf16.gmra.mxu0 %v1450
    %v1508 = vpop.f32.mrf.mxu0
    %v1509 = vadd.f32 %v1439, %v1508
    %v1510 = vpop.f32.mrf.mxu0
    %v1511 = vadd.f32 %v1439, %v1510
    %1512 = vmatmul.bf16.gmra.mxu0 %v1453
    %v1513 = vpop.f32.mrf.mxu0
    %v1514 = vadd.f32 %v1439, %v1513
    %v1515 = vpop.f32.mrf.mxu0
    %v1516 = vadd.f32 %v1439, %v1515
    %1517 = vmatmul.bf16.gmra.mxu0 %v1456
    %v1518 = vpop.f32.mrf.mxu0
    %v1519 = vadd.f32 %v1439, %v1518
    %v1520 = vpop.f32.mrf.mxu0
    %v1521 = vadd.f32 %v1439, %v1520
    %1522 = vmatmul.bf16.gmra.mxu0 %v1459
    %v1523 = vpop.f32.mrf.mxu0
    %v1524 = vadd.f32 %v1439, %v1523
    %v1525 = vpop.f32.mrf.mxu0
    %v1526 = vadd.f32 %v1439, %v1525
    %1527 = vmatmul.bf16.gmra.mxu0 %v1462
    %v1528 = vpop.f32.mrf.mxu0
    %v1529 = vadd.f32 %v1439, %v1528
    %v1530 = vpop.f32.mrf.mxu0
    %v1531 = vadd.f32 %v1439, %v1530
    %1532 = vmatmul.bf16.gmra.mxu0 %v1465
    %v1533 = vpop.f32.mrf.mxu0
    %v1534 = vadd.f32 %v1439, %v1533
    %v1535 = vpop.f32.mrf.mxu0
    %v1536 = vadd.f32 %v1439, %v1535
    %1537 = vmatmul.bf16.gmra.mxu0 %v1468
    %v1538 = vpop.f32.mrf.mxu0
    %v1539 = vadd.f32 %v1439, %v1538
    %v1540 = vpop.f32.mrf.mxu0
    %v1541 = vadd.f32 %v1439, %v1540
    %1542 = vmatmul.bf16.gmra.mxu0 %v1471
    %v1543 = vpop.f32.mrf.mxu0
    %v1544 = vadd.f32 %v1439, %v1543
    %v1545 = vpop.f32.mrf.mxu0
    %v1546 = vadd.f32 %v1439, %v1545
    %1547 = vmatmul.bf16.gmra.mxu0 %v1474
    %v1548 = vpop.f32.mrf.mxu0
    %v1549 = vadd.f32 %v1439, %v1548
    %v1550 = vpop.f32.mrf.mxu0
    %v1551 = vadd.f32 %v1439, %v1550
    %1552 = vmatmul.bf16.gmra.mxu0 %v1477
    %v1553 = vpop.f32.mrf.mxu0
    %v1554 = vadd.f32 %v1439, %v1553
    %v1555 = vpop.f32.mrf.mxu0
    %v1556 = vadd.f32 %v1439, %v1555
    %1557 = vmatmul.bf16.gmra.mxu0 %v1480
    %v1558 = vpop.f32.mrf.mxu0
    %v1559 = vadd.f32 %v1439, %v1558
    %v1560 = vpop.f32.mrf.mxu0
    %v1561 = vadd.f32 %v1439, %v1560
    %1562 = vmatmul.bf16.gmra.mxu0 %v1483
    %v1563 = vpop.f32.mrf.mxu0
    %v1564 = vadd.f32 %v1439, %v1563
    %v1565 = vpop.f32.mrf.mxu0
    %v1566 = vadd.f32 %v1439, %v1565
    %1567 = vmatmul.bf16.gmra.mxu0 %v1486
    %v1568 = vpop.f32.mrf.mxu0
    %v1569 = vadd.f32 %v1439, %v1568
    %v1570 = vpop.f32.mrf.mxu0
    %v1571 = vadd.f32 %v1439, %v1570
    %1572 = vmatmul.bf16.gmra.mxu0 %v1489
    %v1573 = vpop.f32.mrf.mxu0
    %v1574 = vadd.f32 %v1439, %v1573
    %v1575 = vpop.f32.mrf.mxu0
    %v1576 = vadd.f32 %v1439, %v1575
    %1577 = vmatmul.bf16.gmra.mxu0 %v1492
    %v1578 = vpop.f32.mrf.mxu0
    %v1579 = vadd.f32 %v1439, %v1578
    %v1580 = vpop.f32.mrf.mxu0
    %v1581 = vadd.f32 %v1439, %v1580
    %1582 = vdwg.mxu0
    %s1583 = scalar_lea.vmem %s4, 16
    %v1584 = vld [vmem:[%s1583] sm:$0xf]
    %v1585 = vld [vmem:[%s1583 + $0x4] sm:$0xf]
    %v1586 = vld [vmem:[%s5 + $0x2] sm:$0x1]
    %v1587 = vperm.slane %v1586, 0
    %v1590 = vunpack.c.l.b16 %v1584
    %v1591 = vunpack.c.l.b16 %v1585
    %v1592 = vpack.c.b16 %v1591, %v1590
    %1594 = vmatpush.bf16.msra.mxu0 0
    %1595 = vmatpush.bf16.msra.mxu0 0
    %1596 = vmatpush.bf16.msra.mxu0 0
    %1597 = vmatpush.bf16.msra.mxu0 0
    %1598 = vmatpush.bf16.msra.mxu0 0
    %1599 = vmatpush.bf16.msra.mxu0 0
    %1600 = vmatpush.bf16.msra.mxu0 0
    %1601 = vmatpush.bf16.msra.mxu0 %v1592
    %1602 = vmatmul.bf16.gmra.mxu0 %v154
    %v1603 = vpop.f32.mrf.mxu0
    %v1604 = vadd.f32 %v1587, %v1603
    %v1605 = vpop.f32.mrf.mxu0
    %v1606 = vadd.f32 %v1587, %v1605
    %1607 = vmatmul.bf16.gmra.mxu0 %v157
    %v1608 = vpop.f32.mrf.mxu0
    %v1609 = vadd.f32 %v1587, %v1608
    %v1610 = vpop.f32.mrf.mxu0
    %v1611 = vadd.f32 %v1587, %v1610
    %1612 = vmatmul.bf16.gmra.mxu0 %v160
    %v1613 = vpop.f32.mrf.mxu0
    %v1614 = vadd.f32 %v1587, %v1613
    %v1615 = vpop.f32.mrf.mxu0
    %v1616 = vadd.f32 %v1587, %v1615
    %1617 = vmatmul.bf16.gmra.mxu0 %v163
    %v1618 = vpop.f32.mrf.mxu0
    %v1619 = vadd.f32 %v1587, %v1618
    %v1620 = vpop.f32.mrf.mxu0
    %v1621 = vadd.f32 %v1587, %v1620
    %1622 = vmatmul.bf16.gmra.mxu0 %v166
    %v1623 = vpop.f32.mrf.mxu0
    %v1624 = vadd.f32 %v1587, %v1623
    %v1625 = vpop.f32.mrf.mxu0
    %v1626 = vadd.f32 %v1587, %v1625
    %1627 = vmatmul.bf16.gmra.mxu0 %v169
    %v1628 = vpop.f32.mrf.mxu0
    %v1629 = vadd.f32 %v1587, %v1628
    %v1630 = vpop.f32.mrf.mxu0
    %v1631 = vadd.f32 %v1587, %v1630
    %1632 = vmatmul.bf16.gmra.mxu0 %v172
    %v1633 = vpop.f32.mrf.mxu0
    %v1634 = vadd.f32 %v1587, %v1633
    %v1635 = vpop.f32.mrf.mxu0
    %v1636 = vadd.f32 %v1587, %v1635
    %1637 = vmatmul.bf16.gmra.mxu0 %v175
    %v1638 = vpop.f32.mrf.mxu0
    %v1639 = vadd.f32 %v1587, %v1638
    %v1640 = vpop.f32.mrf.mxu0
    %v1641 = vadd.f32 %v1587, %v1640
    %1642 = vmatmul.bf16.gmra.mxu0 %v270
    %v1643 = vpop.f32.mrf.mxu0
    %v1644 = vadd.f32 %v1587, %v1643
    %v1645 = vpop.f32.mrf.mxu0
    %v1646 = vadd.f32 %v1587, %v1645
    %1647 = vmatmul.bf16.gmra.mxu0 %v273
    %v1648 = vpop.f32.mrf.mxu0
    %v1649 = vadd.f32 %v1587, %v1648
    %v1650 = vpop.f32.mrf.mxu0
    %v1651 = vadd.f32 %v1587, %v1650
    %1652 = vmatmul.bf16.gmra.mxu0 %v276
    %v1653 = vpop.f32.mrf.mxu0
    %v1654 = vadd.f32 %v1587, %v1653
    %v1655 = vpop.f32.mrf.mxu0
    %v1656 = vadd.f32 %v1587, %v1655
    %1657 = vmatmul.bf16.gmra.mxu0 %v279
    %v1658 = vpop.f32.mrf.mxu0
    %v1659 = vadd.f32 %v1587, %v1658
    %v1660 = vpop.f32.mrf.mxu0
    %v1661 = vadd.f32 %v1587, %v1660
    %1662 = vmatmul.bf16.gmra.mxu0 %v282
    %v1663 = vpop.f32.mrf.mxu0
    %v1664 = vadd.f32 %v1587, %v1663
    %v1665 = vpop.f32.mrf.mxu0
    %v1666 = vadd.f32 %v1587, %v1665
    %1667 = vmatmul.bf16.gmra.mxu0 %v285
    %v1668 = vpop.f32.mrf.mxu0
    %v1669 = vadd.f32 %v1587, %v1668
    %v1670 = vpop.f32.mrf.mxu0
    %v1671 = vadd.f32 %v1587, %v1670
    %1672 = vmatmul.bf16.gmra.mxu0 %v288
    %v1673 = vpop.f32.mrf.mxu0
    %v1674 = vadd.f32 %v1587, %v1673
    %v1675 = vpop.f32.mrf.mxu0
    %v1676 = vadd.f32 %v1587, %v1675
    %1677 = vmatmul.bf16.gmra.mxu0 %v291
    %v1678 = vpop.f32.mrf.mxu0
    %v1679 = vadd.f32 %v1587, %v1678
    %v1680 = vpop.f32.mrf.mxu0
    %v1681 = vadd.f32 %v1587, %v1680
    %1682 = vdwg.mxu0
    %v1683 = vtanh.pop %v1504
    %v1684 = vtanh.pop %v1506
    %v1685 = vtanh.pop %v1509
    %v1686 = vtanh.pop %v1511
    %v1687 = vtanh.pop %v1514
    %v1688 = vtanh.pop %v1516
    %v1689 = vtanh.pop %v1519
    %v1690 = vtanh.pop %v1521
    %v1691 = vtanh.pop %v1524
    %v1692 = vtanh.pop %v1526
    %v1693 = vtanh.pop %v1529
    %v1694 = vtanh.pop %v1531
    %v1695 = vtanh.pop %v1534
    %v1696 = vtanh.pop %v1536
    %v1697 = vtanh.pop %v1539
    %v1698 = vtanh.pop %v1541
    %v1699 = vtanh.pop %v1544
    %v1700 = vtanh.pop %v1546
    %v1701 = vtanh.pop %v1549
    %v1702 = vtanh.pop %v1551
    %v1703 = vtanh.pop %v1554
    %v1704 = vtanh.pop %v1556
    %v1705 = vtanh.pop %v1559
    %v1706 = vtanh.pop %v1561
    %v1707 = vtanh.pop %v1564
    %v1708 = vtanh.pop %v1566
    %v1709 = vtanh.pop %v1569
    %v1710 = vtanh.pop %v1571
    %v1711 = vtanh.pop %v1574
    %v1712 = vtanh.pop %v1576
    %v1713 = vtanh.pop %v1579
    %v1714 = vtanh.pop %v1581
    %v1715 = vtanh.pop %v1604
    %v1716 = vtanh.pop %v1606
    %v1717 = vtanh.pop %v1609
    %v1718 = vtanh.pop %v1611
    %v1719 = vtanh.pop %v1614
    %v1720 = vtanh.pop %v1616
    %v1721 = vtanh.pop %v1619
    %v1722 = vtanh.pop %v1621
    %v1723 = vtanh.pop %v1624
    %v1724 = vtanh.pop %v1626
    %v1725 = vtanh.pop %v1629
    %v1726 = vtanh.pop %v1631
    %v1727 = vtanh.pop %v1634
    %v1728 = vtanh.pop %v1636
    %v1729 = vtanh.pop %v1639
    %v1730 = vtanh.pop %v1641
    %v1731 = vtanh.pop %v1644
    %v1732 = vtanh.pop %v1646
    %v1733 = vtanh.pop %v1649
    %v1734 = vtanh.pop %v1651
    %v1735 = vtanh.pop %v1654
    %v1736 = vtanh.pop %v1656
    %v1737 = vtanh.pop %v1659
    %v1738 = vtanh.pop %v1661
    %v1739 = vtanh.pop %v1664
    %v1740 = vtanh.pop %v1666
    %v1741 = vtanh.pop %v1669
    %v1742 = vtanh.pop %v1671
    %v1743 = vtanh.pop %v1674
    %v1744 = vtanh.pop %v1676
    %v1745 = vtanh.pop %v1679
    %v1746 = vtanh.pop %v1681
    %v1747 = vld [vmem:[%s6] sm:$0x1]
    %v1748 = vld [vmem:[%s6 + $0x1] sm:$0x1]
    %v1749 = vperm.slane %v1747, 0
    %v1750 = vmul.f32 %v1683, %v1749
    %v1751 = vmul.f32 %v1684, %v1749
    %v1752 = vmul.f32 %v1685, %v1749
    %v1753 = vmul.f32 %v1686, %v1749
    %v1754 = vmul.f32 %v1687, %v1749
    %v1755 = vmul.f32 %v1688, %v1749
    %v1756 = vmul.f32 %v1689, %v1749
    %v1757 = vmul.f32 %v1690, %v1749
    %v1758 = vmul.f32 %v1691, %v1749
    %v1759 = vmul.f32 %v1692, %v1749
    %v1760 = vmul.f32 %v1693, %v1749
    %v1761 = vmul.f32 %v1694, %v1749
    %v1762 = vmul.f32 %v1695, %v1749
    %v1763 = vmul.f32 %v1696, %v1749
    %v1764 = vmul.f32 %v1697, %v1749
    %v1765 = vmul.f32 %v1698, %v1749
    %v1766 = vmul.f32 %v1699, %v1749
    %v1767 = vmul.f32 %v1700, %v1749
    %v1768 = vmul.f32 %v1701, %v1749
    %v1769 = vmul.f32 %v1702, %v1749
    %v1770 = vmul.f32 %v1703, %v1749
    %v1771 = vmul.f32 %v1704, %v1749
    %v1772 = vmul.f32 %v1705, %v1749
    %v1773 = vmul.f32 %v1706, %v1749
    %v1774 = vmul.f32 %v1707, %v1749
    %v1775 = vmul.f32 %v1708, %v1749
    %v1776 = vmul.f32 %v1709, %v1749
    %v1777 = vmul.f32 %v1710, %v1749
    %v1778 = vmul.f32 %v1711, %v1749
    %v1779 = vmul.f32 %v1712, %v1749
    %v1780 = vmul.f32 %v1713, %v1749
    %v1781 = vmul.f32 %v1714, %v1749
    %v1782 = vsel %vm93, %v1750, 0.0
    %1783 = vadd.xlane.f32.xlu0 %v1782
    %v1784 = vpop.xlane.xlu0 %1783
    %v1785 = vsel %vm93, %v1751, 0.0
    %1786 = vadd.xlane.f32.xlu0 %v1785
    %v1787 = vpop.xlane.xlu0 %1786
    %v1788 = vsel %vm93, %v1752, 0.0
    %1789 = vadd.xlane.f32.xlu0 %v1788
    %v1790 = vpop.xlane.xlu0 %1789
    %v1791 = vsel %vm93, %v1753, 0.0
    %1792 = vadd.xlane.f32.xlu0 %v1791
    %v1793 = vpop.xlane.xlu0 %1792
    %v1794 = vsel %vm93, %v1754, 0.0
    %1795 = vadd.xlane.f32.xlu0 %v1794
    %v1796 = vpop.xlane.xlu0 %1795
    %v1797 = vsel %vm93, %v1755, 0.0
    %1798 = vadd.xlane.f32.xlu0 %v1797
    %v1799 = vpop.xlane.xlu0 %1798
    %v1800 = vsel %vm93, %v1756, 0.0
    %1801 = vadd.xlane.f32.xlu0 %v1800
    %v1802 = vpop.xlane.xlu0 %1801
    %v1803 = vsel %vm93, %v1757, 0.0
    %1804 = vadd.xlane.f32.xlu0 %v1803
    %v1805 = vpop.xlane.xlu0 %1804
    %v1806 = vsel %vm93, %v1758, 0.0
    %1807 = vadd.xlane.f32.xlu0 %v1806
    %v1808 = vpop.xlane.xlu0 %1807
    %v1809 = vsel %vm93, %v1759, 0.0
    %1810 = vadd.xlane.f32.xlu0 %v1809
    %v1811 = vpop.xlane.xlu0 %1810
    %v1812 = vsel %vm93, %v1760, 0.0
    %1813 = vadd.xlane.f32.xlu0 %v1812
    %v1814 = vpop.xlane.xlu0 %1813
    %v1815 = vsel %vm93, %v1761, 0.0
    %1816 = vadd.xlane.f32.xlu0 %v1815
    %v1817 = vpop.xlane.xlu0 %1816
    %v1818 = vsel %vm93, %v1762, 0.0
    %1819 = vadd.xlane.f32.xlu0 %v1818
    %v1820 = vpop.xlane.xlu0 %1819
    %v1821 = vsel %vm93, %v1763, 0.0
    %1822 = vadd.xlane.f32.xlu0 %v1821
    %v1823 = vpop.xlane.xlu0 %1822
    %v1824 = vsel %vm93, %v1764, 0.0
    %1825 = vadd.xlane.f32.xlu0 %v1824
    %v1826 = vpop.xlane.xlu0 %1825
    %v1827 = vsel %vm93, %v1765, 0.0
    %1828 = vadd.xlane.f32.xlu0 %v1827
    %v1829 = vpop.xlane.xlu0 %1828
    %v1830 = vsel %vm93, %v1766, 0.0
    %1831 = vadd.xlane.f32.xlu0 %v1830
    %v1832 = vpop.xlane.xlu0 %1831
    %v1833 = vsel %vm93, %v1767, 0.0
    %1834 = vadd.xlane.f32.xlu0 %v1833
    %v1835 = vpop.xlane.xlu0 %1834
    %v1836 = vsel %vm93, %v1768, 0.0
    %1837 = vadd.xlane.f32.xlu0 %v1836
    %v1838 = vpop.xlane.xlu0 %1837
    %v1839 = vsel %vm93, %v1769, 0.0
    %1840 = vadd.xlane.f32.xlu0 %v1839
    %v1841 = vpop.xlane.xlu0 %1840
    %v1842 = vsel %vm93, %v1770, 0.0
    %1843 = vadd.xlane.f32.xlu0 %v1842
    %v1844 = vpop.xlane.xlu0 %1843
    %v1845 = vsel %vm93, %v1771, 0.0
    %1846 = vadd.xlane.f32.xlu0 %v1845
    %v1847 = vpop.xlane.xlu0 %1846
    %v1848 = vsel %vm93, %v1772, 0.0
    %1849 = vadd.xlane.f32.xlu0 %v1848
    %v1850 = vpop.xlane.xlu0 %1849
    %v1851 = vsel %vm93, %v1773, 0.0
    %1852 = vadd.xlane.f32.xlu0 %v1851
    %v1853 = vpop.xlane.xlu0 %1852
    %v1854 = vsel %vm93, %v1774, 0.0
    %1855 = vadd.xlane.f32.xlu0 %v1854
    %v1856 = vpop.xlane.xlu0 %1855
    %v1857 = vsel %vm93, %v1775, 0.0
    %1858 = vadd.xlane.f32.xlu0 %v1857
    %v1859 = vpop.xlane.xlu0 %1858
    %v1860 = vsel %vm93, %v1776, 0.0
    %1861 = vadd.xlane.f32.xlu0 %v1860
    %v1862 = vpop.xlane.xlu0 %1861
    %v1863 = vsel %vm93, %v1777, 0.0
    %1864 = vadd.xlane.f32.xlu0 %v1863
    %v1865 = vpop.xlane.xlu0 %1864
    %v1866 = vsel %vm93, %v1778, 0.0
    %1867 = vadd.xlane.f32.xlu0 %v1866
    %v1868 = vpop.xlane.xlu0 %1867
    %v1869 = vsel %vm93, %v1779, 0.0
    %1870 = vadd.xlane.f32.xlu0 %v1869
    %v1871 = vpop.xlane.xlu0 %1870
    %v1872 = vsel %vm93, %v1780, 0.0
    %1873 = vadd.xlane.f32.xlu0 %v1872
    %v1874 = vpop.xlane.xlu0 %1873
    %v1875 = vsel %vm93, %v1781, 0.0
    %1876 = vadd.xlane.f32.xlu0 %v1875
    %v1877 = vpop.xlane.xlu0 %1876
    %v1878 = vperm.slane %v1748, 0
    %v1879 = vmul.f32 %v1715, %v1878
    %v1880 = vmul.f32 %v1716, %v1878
    %v1881 = vmul.f32 %v1717, %v1878
    %v1882 = vmul.f32 %v1718, %v1878
    %v1883 = vmul.f32 %v1719, %v1878
    %v1884 = vmul.f32 %v1720, %v1878
    %v1885 = vmul.f32 %v1721, %v1878
    %v1886 = vmul.f32 %v1722, %v1878
    %v1887 = vmul.f32 %v1723, %v1878
    %v1888 = vmul.f32 %v1724, %v1878
    %v1889 = vmul.f32 %v1725, %v1878
    %v1890 = vmul.f32 %v1726, %v1878
    %v1891 = vmul.f32 %v1727, %v1878
    %v1892 = vmul.f32 %v1728, %v1878
    %v1893 = vmul.f32 %v1729, %v1878
    %v1894 = vmul.f32 %v1730, %v1878
    %v1895 = vmul.f32 %v1731, %v1878
    %v1896 = vmul.f32 %v1732, %v1878
    %v1897 = vmul.f32 %v1733, %v1878
    %v1898 = vmul.f32 %v1734, %v1878
    %v1899 = vmul.f32 %v1735, %v1878
    %v1900 = vmul.f32 %v1736, %v1878
    %v1901 = vmul.f32 %v1737, %v1878
    %v1902 = vmul.f32 %v1738, %v1878
    %v1903 = vmul.f32 %v1739, %v1878
    %v1904 = vmul.f32 %v1740, %v1878
    %v1905 = vmul.f32 %v1741, %v1878
    %v1906 = vmul.f32 %v1742, %v1878
    %v1907 = vmul.f32 %v1743, %v1878
    %v1908 = vmul.f32 %v1744, %v1878
    %v1909 = vmul.f32 %v1745, %v1878
    %v1910 = vmul.f32 %v1746, %v1878
    %v1911 = vsel %vm93, %v1879, 0.0
    %1912 = vadd.xlane.f32.xlu0 %v1911
    %v1913 = vpop.xlane.xlu0 %1912
    %v1914 = vsel %vm93, %v1880, 0.0
    %1915 = vadd.xlane.f32.xlu0 %v1914
    %v1916 = vpop.xlane.xlu0 %1915
    %v1917 = vsel %vm93, %v1881, 0.0
    %1918 = vadd.xlane.f32.xlu0 %v1917
    %v1919 = vpop.xlane.xlu0 %1918
    %v1920 = vsel %vm93, %v1882, 0.0
    %1921 = vadd.xlane.f32.xlu0 %v1920
    %v1922 = vpop.xlane.xlu0 %1921
    %v1923 = vsel %vm93, %v1883, 0.0
    %1924 = vadd.xlane.f32.xlu0 %v1923
    %v1925 = vpop.xlane.xlu0 %1924
    %v1926 = vsel %vm93, %v1884, 0.0
    %1927 = vadd.xlane.f32.xlu0 %v1926
    %v1928 = vpop.xlane.xlu0 %1927
    %v1929 = vsel %vm93, %v1885, 0.0
    %1930 = vadd.xlane.f32.xlu0 %v1929
    %v1931 = vpop.xlane.xlu0 %1930
    %v1932 = vsel %vm93, %v1886, 0.0
    %1933 = vadd.xlane.f32.xlu0 %v1932
    %v1934 = vpop.xlane.xlu0 %1933
    %v1935 = vsel %vm93, %v1887, 0.0
    %1936 = vadd.xlane.f32.xlu0 %v1935
    %v1937 = vpop.xlane.xlu0 %1936
    %v1938 = vsel %vm93, %v1888, 0.0
    %1939 = vadd.xlane.f32.xlu0 %v1938
    %v1940 = vpop.xlane.xlu0 %1939
    %v1941 = vsel %vm93, %v1889, 0.0
    %1942 = vadd.xlane.f32.xlu0 %v1941
    %v1943 = vpop.xlane.xlu0 %1942
    %v1944 = vsel %vm93, %v1890, 0.0
    %1945 = vadd.xlane.f32.xlu0 %v1944
    %v1946 = vpop.xlane.xlu0 %1945
    %v1947 = vsel %vm93, %v1891, 0.0
    %1948 = vadd.xlane.f32.xlu0 %v1947
    %v1949 = vpop.xlane.xlu0 %1948
    %v1950 = vsel %vm93, %v1892, 0.0
    %1951 = vadd.xlane.f32.xlu0 %v1950
    %v1952 = vpop.xlane.xlu0 %1951
    %v1953 = vsel %vm93, %v1893, 0.0
    %1954 = vadd.xlane.f32.xlu0 %v1953
    %v1955 = vpop.xlane.xlu0 %1954
    %v1956 = vsel %vm93, %v1894, 0.0
    %1957 = vadd.xlane.f32.xlu0 %v1956
    %v1958 = vpop.xlane.xlu0 %1957
    %v1959 = vsel %vm93, %v1895, 0.0
    %1960 = vadd.xlane.f32.xlu0 %v1959
    %v1961 = vpop.xlane.xlu0 %1960
    %v1962 = vsel %vm93, %v1896, 0.0
    %1963 = vadd.xlane.f32.xlu0 %v1962
    %v1964 = vpop.xlane.xlu0 %1963
    %v1965 = vsel %vm93, %v1897, 0.0
    %1966 = vadd.xlane.f32.xlu0 %v1965
    %v1967 = vpop.xlane.xlu0 %1966
    %v1968 = vsel %vm93, %v1898, 0.0
    %1969 = vadd.xlane.f32.xlu0 %v1968
    %v1970 = vpop.xlane.xlu0 %1969
    %v1971 = vsel %vm93, %v1899, 0.0
    %1972 = vadd.xlane.f32.xlu0 %v1971
    %v1973 = vpop.xlane.xlu0 %1972
    %v1974 = vsel %vm93, %v1900, 0.0
    %1975 = vadd.xlane.f32.xlu0 %v1974
    %v1976 = vpop.xlane.xlu0 %1975
    %v1977 = vsel %vm93, %v1901, 0.0
    %1978 = vadd.xlane.f32.xlu0 %v1977
    %v1979 = vpop.xlane.xlu0 %1978
    %v1980 = vsel %vm93, %v1902, 0.0
    %1981 = vadd.xlane.f32.xlu0 %v1980
    %v1982 = vpop.xlane.xlu0 %1981
    %v1983 = vsel %vm93, %v1903, 0.0
    %1984 = vadd.xlane.f32.xlu0 %v1983
    %v1985 = vpop.xlane.xlu0 %1984
    %v1986 = vsel %vm93, %v1904, 0.0
    %1987 = vadd.xlane.f32.xlu0 %v1986
    %v1988 = vpop.xlane.xlu0 %1987
    %v1989 = vsel %vm93, %v1905, 0.0
    %1990 = vadd.xlane.f32.xlu0 %v1989
    %v1991 = vpop.xlane.xlu0 %1990
    %v1992 = vsel %vm93, %v1906, 0.0
    %1993 = vadd.xlane.f32.xlu0 %v1992
    %v1994 = vpop.xlane.xlu0 %1993
    %v1995 = vsel %vm93, %v1907, 0.0
    %1996 = vadd.xlane.f32.xlu0 %v1995
    %v1997 = vpop.xlane.xlu0 %1996
    %v1998 = vsel %vm93, %v1908, 0.0
    %1999 = vadd.xlane.f32.xlu0 %v1998
    %v2000 = vpop.xlane.xlu0 %1999
    %v2001 = vsel %vm93, %v1909, 0.0
    %2002 = vadd.xlane.f32.xlu0 %v2001
    %v2003 = vpop.xlane.xlu0 %2002
    %v2004 = vsel %vm93, %v1910, 0.0
    %2005 = vadd.xlane.f32.xlu0 %v2004
    %v2006 = vpop.xlane.xlu0 %2005
    %v2007 = vadd.f32 %v1784, %v1913
    %v2008 = vadd.f32 %v1787, %v1916
    %v2009 = vadd.f32 %v1790, %v1919
    %v2010 = vadd.f32 %v1793, %v1922
    %v2011 = vadd.f32 %v1796, %v1925
    %v2012 = vadd.f32 %v1799, %v1928
    %v2013 = vadd.f32 %v1802, %v1931
    %v2014 = vadd.f32 %v1805, %v1934
    %v2015 = vadd.f32 %v1808, %v1937
    %v2016 = vadd.f32 %v1811, %v1940
    %v2017 = vadd.f32 %v1814, %v1943
    %v2018 = vadd.f32 %v1817, %v1946
    %v2019 = vadd.f32 %v1820, %v1949
    %v2020 = vadd.f32 %v1823, %v1952
    %v2021 = vadd.f32 %v1826, %v1955
    %v2022 = vadd.f32 %v1829, %v1958
    %v2023 = vadd.f32 %v1832, %v1961
    %v2024 = vadd.f32 %v1835, %v1964
    %v2025 = vadd.f32 %v1838, %v1967
    %v2026 = vadd.f32 %v1841, %v1970
    %v2027 = vadd.f32 %v1844, %v1973
    %v2028 = vadd.f32 %v1847, %v1976
    %v2029 = vadd.f32 %v1850, %v1979
    %v2030 = vadd.f32 %v1853, %v1982
    %v2031 = vadd.f32 %v1856, %v1985
    %v2032 = vadd.f32 %v1859, %v1988
    %v2033 = vadd.f32 %v1862, %v1991
    %v2034 = vadd.f32 %v1865, %v1994
    %v2035 = vadd.f32 %v1868, %v1997
    %v2036 = vadd.f32 %v1871, %v2000
    %v2037 = vadd.f32 %v1874, %v2003
    %v2038 = vadd.f32 %v1877, %v2006
    %s2039 = sld [smem:[#allocation2]]
    %v2040 = vstv %s2039
    %v2041 = vadd.f32 %v2007, %v2040
    %v2042 = vadd.f32 %v2008, %v2040
    %v2043 = vadd.f32 %v2009, %v2040
    %v2044 = vadd.f32 %v2010, %v2040
    %v2045 = vadd.f32 %v2011, %v2040
    %v2046 = vadd.f32 %v2012, %v2040
    %v2047 = vadd.f32 %v2013, %v2040
    %v2048 = vadd.f32 %v2014, %v2040
    %v2049 = vadd.f32 %v2015, %v2040
    %v2050 = vadd.f32 %v2016, %v2040
    %v2051 = vadd.f32 %v2017, %v2040
    %v2052 = vadd.f32 %v2018, %v2040
    %v2053 = vadd.f32 %v2019, %v2040
    %v2054 = vadd.f32 %v2020, %v2040
    %v2055 = vadd.f32 %v2021, %v2040
    %v2056 = vadd.f32 %v2022, %v2040
    %v2057 = vadd.f32 %v2023, %v2040
    %v2058 = vadd.f32 %v2024, %v2040
    %v2059 = vadd.f32 %v2025, %v2040
    %v2060 = vadd.f32 %v2026, %v2040
    %v2061 = vadd.f32 %v2027, %v2040
    %v2062 = vadd.f32 %v2028, %v2040
    %v2063 = vadd.f32 %v2029, %v2040
    %v2064 = vadd.f32 %v2030, %v2040
    %v2065 = vadd.f32 %v2031, %v2040
    %v2066 = vadd.f32 %v2032, %v2040
    %v2067 = vadd.f32 %v2033, %v2040
    %v2068 = vadd.f32 %v2034, %v2040
    %v2069 = vadd.f32 %v2035, %v2040
    %v2070 = vadd.f32 %v2036, %v2040
    %v2071 = vadd.f32 %v2037, %v2040
    %v2072 = vadd.f32 %v2038, %v2040
    %v2105 = vperm.slane %v2041, %v67
    %v2106 = vadd.s32 %v67, 4294967288
    %v2107 = vperm.slane %v2042, %v2106
    %vm2108 = vcmask 130112
    %v2109 = vsel %vm2108, %v2107, %v2105
    %v2110 = vadd.s32 %v67, 4294967280
    %v2111 = vperm.slane %v2043, %v2110
    %vm2112 = vcmask 195712
    %v2113 = vsel %vm2112, %v2111, %v2109
    %v2114 = vadd.s32 %v67, 4294967272
    %v2115 = vperm.slane %v2044, %v2114
    %vm2116 = vcmask 261312
    %v2117 = vsel %vm2116, %v2115, %v2113
    %v2118 = vadd.s32 %v67, 4294967264
    %v2119 = vperm.slane %v2045, %v2118
    %vm2120 = vcmask 326912
    %v2121 = vsel %vm2120, %v2119, %v2117
    %v2122 = vadd.s32 %v67, 4294967256
    %v2123 = vperm.slane %v2046, %v2122
    %vm2124 = vcmask 392512
    %v2125 = vsel %vm2124, %v2123, %v2121
    %v2126 = vadd.s32 %v67, 4294967248
    %v2127 = vperm.slane %v2047, %v2126
    %vm2128 = vcmask 458112
    %v2129 = vsel %vm2128, %v2127, %v2125
    %v2130 = vadd.s32 %v67, 4294967240
    %v2131 = vperm.slane %v2048, %v2130
    %vm2132 = vcmask 523712
    %v2133 = vsel %vm2132, %v2131, %v2129
    %v2134 = vadd.s32 %v67, 4294967232
    %v2135 = vperm.slane %v2049, %v2134
    %vm2136 = vcmask 589312
    %v2137 = vsel %vm2136, %v2135, %v2133
    %v2138 = vadd.s32 %v67, 4294967224
    %v2139 = vperm.slane %v2050, %v2138
    %vm2140 = vcmask 654912
    %v2141 = vsel %vm2140, %v2139, %v2137
    %v2142 = vadd.s32 %v67, 4294967216
    %v2143 = vperm.slane %v2051, %v2142
    %vm2144 = vcmask 720512
    %v2145 = vsel %vm2144, %v2143, %v2141
    %v2146 = vadd.s32 %v67, 4294967208
    %v2147 = vperm.slane %v2052, %v2146
    %vm2148 = vcmask 786112
    %v2149 = vsel %vm2148, %v2147, %v2145
    %v2150 = vadd.s32 %v67, 4294967200
    %v2151 = vperm.slane %v2053, %v2150
    %vm2152 = vcmask 851712
    %v2153 = vsel %vm2152, %v2151, %v2149
    %v2154 = vadd.s32 %v67, 4294967192
    %v2155 = vperm.slane %v2054, %v2154
    %vm2156 = vcmask 917312
    %v2157 = vsel %vm2156, %v2155, %v2153
    %v2158 = vadd.s32 %v67, 4294967184
    %v2159 = vperm.slane %v2055, %v2158
    %vm2160 = vcmask 982912
    %v2161 = vsel %vm2160, %v2159, %v2157
    %v2162 = vadd.s32 %v67, 4294967176
    %v2163 = vperm.slane %v2056, %v2162
    %vm2164 = vcmask 1048512
    %v2165 = vsel %vm2164, %v2163, %v2161
    %v2166 = vperm.slane %v2057, %v67
    %v2167 = vperm.slane %v2058, %v2106
    %v2168 = vsel %vm2108, %v2167, %v2166
    %v2169 = vperm.slane %v2059, %v2110
    %v2170 = vsel %vm2112, %v2169, %v2168
    %v2171 = vperm.slane %v2060, %v2114
    %v2172 = vsel %vm2116, %v2171, %v2170
    %v2173 = vperm.slane %v2061, %v2118
    %v2174 = vsel %vm2120, %v2173, %v2172
    %v2175 = vperm.slane %v2062, %v2122
    %v2176 = vsel %vm2124, %v2175, %v2174
    %v2177 = vperm.slane %v2063, %v2126
    %v2178 = vsel %vm2128, %v2177, %v2176
    %v2179 = vperm.slane %v2064, %v2130
    %v2180 = vsel %vm2132, %v2179, %v2178
    %v2181 = vperm.slane %v2065, %v2134
    %v2182 = vsel %vm2136, %v2181, %v2180
    %v2183 = vperm.slane %v2066, %v2138
    %v2184 = vsel %vm2140, %v2183, %v2182
    %v2185 = vperm.slane %v2067, %v2142
    %v2186 = vsel %vm2144, %v2185, %v2184
    %v2187 = vperm.slane %v2068, %v2146
    %v2188 = vsel %vm2148, %v2187, %v2186
    %v2189 = vperm.slane %v2069, %v2150
    %v2190 = vsel %vm2152, %v2189, %v2188
    %v2191 = vperm.slane %v2070, %v2154
    %v2192 = vsel %vm2156, %v2191, %v2190
    %v2193 = vperm.slane %v2071, %v2158
    %v2194 = vsel %vm2160, %v2193, %v2192
    %v2195 = vperm.slane %v2072, %v2162
    %v2196 = vsel %vm2164, %v2195, %v2194
    %vm2197 = vcmask 1041409
    %v2198 = vsel %vm2197, %v2196, %v2165
    %v2200 = vsel %vm77, %v2198, -1e+10
    %2201 = vst [vmem:[#allocation3] sm:$0x3] %v2200
    // Predicated region
    $region34: #{wcp_forward.9} parent=1 // pred_check
      _
    $region35: #{wcp_forward.9} parent=1 // pred_check_branch
      %2203 = sbr.rel (0) target = $region37
    $region36: #{wcp_forward.9} parent=1 // pred_region
      %2205 = vsyncadd [#allocation4], 0
      %s2207 = sshll.u32 [#allocation3], 4
      %s2208 = int_to_ptr.vmem [resolvable:$true] %s2207
      %s2209 = sshll.u32 %s8, 4
      %s2210 = int_to_ptr.hbm [resolvable:$true] %s2209
      %2212 = dma.vmem_to_hbm [thread:$0]  %s2208, 32, %s2210, [#allocation4]
    $region37: #{wcp_forward.9} parent=1 // pred_fallthru
      _
    // Predicated region
    $region38: #{wcp_forward.9} parent=1 // pred_check
      _
    $region39: #{wcp_forward.9} parent=1 // pred_check_branch
      %2214 = sbr.rel (0) target = $region41
    $region40: #{wcp_forward.9} parent=1 // pred_region
      %2216 = dma.done [#allocation4], 32
    $region41: #{wcp_forward.9} parent=1 // pred_fallthru
      _
    %2217 = vsyncpa [#allocation4], 1

</llo_original>
